<compile_context>
chip_gen: v6e
topology: v6e:2x2x1
jax: 0.10.0
libtpu: 0.0.40
codegen_flags: <defaults>
</compile_context>

<pallas_src>
import math
import functools

import jax
import jax.numpy as jnp
from jax.experimental import pallas as pl
from jax.experimental.pallas import tpu as pltpu


def _pack_layout(hidden_dim, ff_dim):
    """128-lane-aligned offsets for the packed small-parameter array (one row per layer)."""
    D, FF = hidden_dim, ff_dim
    fields = [("b_in", 3 * D), ("b_out", D), ("g1", D), ("be1", D),
              ("b1", FF), ("b2", D), ("g2", D), ("be2", D)]
    layout, off = {}, 0
    for name, width in fields:
        layout[name] = (off, width)
        off += ((width + 127) // 128) * 128   # keep every field tile-aligned in the lane dim
    layout["_total"] = off
    return layout


def _transformer_kernel(x_ref, w_in_ref, w_out_ref, w1_ref, w2_ref, smalls_ref, o_ref, *,
                        batch, seq, nhead, num_layers, compute_dtype, layout):
    """Full L-layer encoder stack over the whole (B*S, D) activation slab in one grid step."""
    BS, D = x_ref.shape
    B, S = batch, seq
    hd = D // nhead
    scale = 1.0 / math.sqrt(hd)
    cd = compute_dtype

    def small(name, l):
        off, w = layout[name]
        # (1, w) f32 slice of the packed per-layer vector row; broadcasts over (BS, w).
        return smalls_ref[l:l + 1, off:off + w]

    def mm(a, w):
        # MXU matmul: bf16 (or f32) operands, always f32 accumulation.
        return jnp.dot(a.astype(cd), w.astype(cd), preferred_element_type=jnp.float32)

    def layernorm(z, gain, beta):
        mu = jnp.mean(z, axis=-1, keepdims=True)
        var = jnp.mean(jnp.square(z - mu), axis=-1, keepdims=True)
        return (z - mu) * jax.lax.rsqrt(var + 1e-5) * gain + beta

    x = x_ref[...].astype(jnp.float32)                                   # (BS, D)

    # Static unroll: activations never leave VMEM/vregs between layers.
    # TODO(synk): switch to lax.fori_loop over l (dynamic w_in_ref[l] indexing) when L >= 8
    # to bound vreg live ranges / code size.
    for l in range(num_layers):
        # ---- self-attention: fused QKV projection (weights pre-transposed, x @ W form) ----
        qkv = mm(x, w_in_ref[l]) + small("b_in", l)                      # (BS, 3D) f32
        q = qkv[:, :D].reshape(B, S, D)                                  # leading-dim split only
        k = qkv[:, D:2 * D].reshape(B, S, D)
        v = qkv[:, 2 * D:3 * D].reshape(B, S, D)

        # Per-head attention via STATIC lane slices (no (S,H,hd)<->(H,S,hd) relayout);
        # batched over B only, which the MXU dot_general handles natively.
        ctx_heads = []
        for h in range(nhead):
            c0, c1 = h * hd, (h + 1) * hd
            qh = q[..., c0:c1].astype(cd)                                # (B, S, hd)
            kh = k[..., c0:c1].astype(cd)
            vh = v[..., c0:c1].astype(cd)
            s = jnp.einsum("bqd,bkd->bqk", qh, kh,
                           preferred_element_type=jnp.float32) * scale    # (B, S, S) f32
            s = s - jnp.max(s, axis=-1, keepdims=True)
            p = jnp.exp(s)
            # EUP reciprocal frees the VALU slot; set approx=False for exact-division parity.
            p = p * pl.reciprocal(jnp.sum(p, axis=-1, keepdims=True), approx=True)
            ctx_heads.append(jnp.einsum("bqk,bkd->bqd", p.astype(cd), vh,
                                        preferred_element_type=jnp.float32))
        attn = jnp.concatenate(ctx_heads, axis=-1).reshape(BS, D)         # heads concat (lanes)
        attn = mm(attn, w_out_ref[l]) + small("b_out", l)

        # ---- residual + LayerNorm1 (post-norm) ----
        y = layernorm(x + attn, small("g1", l), small("be1", l))

        # ---- feed-forward: linear1 -> relu -> linear2 ----
        h1 = jnp.maximum(mm(y, w1_ref[l]) + small("b1", l), 0.0)          # (BS, FF)
        h2 = mm(h1, w2_ref[l]) + small("b2", l)                           # (BS, D)

        # ---- residual + LayerNorm2 ----
        x = layernorm(y + h2, small("g2", l), small("be2", l))

    # Output slab is tiny (B*S*D*4 = 2 KiB); a (B, S*D) lane-dense repack would cost more in
    # XLU relayout than the masked-store savings at this size -- revisit when S*D grows.
    o_ref[...] = x.astype(o_ref.dtype)


def simple_transformer_forward(x, params, nhead, *, compute_dtype=None):
    """Equivalent of Simple_Transformer.forward on batch-first x of shape (B, S, D).

    Single pallas_call, single grid step: the batch is folded into the row dimension so all
    matmuls see M = B*S rows.  Weights stay VMEM-resident across the whole layer stack.
    """
    B, S, D = x.shape
    L, _, threeD = params["w_in_t"].shape
    FF = params["w1_t"].shape[2]
    assert threeD == 3 * D
    if compute_dtype is None:
        compute_dtype = params["w_in_t"].dtype          # follow the stored weight dtype

    layout = _pack_layout(D, FF)
    x2 = x.reshape(B * S, D)                            # fold batch into the row (sublane) dim

    kernel = functools.partial(
        _transformer_kernel, batch=B, seq=S, nhead=nhead, num_layers=L,
        compute_dtype=compute_dtype, layout=layout)

    def full_spec(arr):
        # Whole array resident in VMEM; constant block index => DMA'd once.
        return pl.BlockSpec(arr.shape, lambda i, _nd=arr.ndim: (0,) * _nd)

    args = (x2, params["w_in_t"], params["w_out_t"], params["w1_t"], params["w2_t"],
            params["smalls"])

    out = pl.pallas_call(
        kernel,
        out_shape=jax.ShapeDtypeStruct((B * S, D), x.dtype),
        grid=(1,),
        in_specs=[full_spec(a) for a in args],
        out_specs=pl.BlockSpec((B * S, D), lambda i: (0, 0)),
        compiler_params=pltpu.CompilerParams(dimension_semantics=("arbitrary",)),
    )(*args)
    return out.reshape(B, S, D)


def init_params(key, hidden_dim, ff_dim, num_layers, *, weight_dtype=jnp.bfloat16):
    """Deterministic synthetic parameters: pre-transposed, layer-stacked, bf16 weights,
    and all small per-layer vectors packed into one lane-aligned (L, P) f32 array."""
    D, FF = hidden_dim, ff_dim
    layout = _pack_layout(D, FF)
    P = layout["_total"]
    s = 0.02
    w_in, w_out, w1, w2, smalls = [], [], [], [], []
    for i in range(num_layers):
        ks = jax.random.split(jax.random.fold_in(key, i), 8)
        # PyTorch stores Linear weights as (out, in); pre-transpose to (in, out) so the
        # kernel computes x @ W with no in-kernel transpose.
        w_in.append((jax.random.normal(ks[0], (3 * D, D), jnp.float32) * s).T)   # (D, 3D)
        w_out.append((jax.random.normal(ks[2], (D, D), jnp.float32) * s).T)      # (D, D)
        w1.append((jax.random.normal(ks[4], (FF, D), jnp.float32) * s).T)        # (D, FF)
        w2.append((jax.random.normal(ks[6], (D, FF), jnp.float32) * s).T)        # (FF, D)

        fields = {
            "b_in":  jax.random.normal(ks[1], (3 * D,), jnp.float32) * s,
            "b_out": jax.random.normal(ks[3], (D,), jnp.float32) * s,
            "g1":    jnp.ones((D,), jnp.float32),
            "be1":   jnp.zeros((D,), jnp.float32),
            "b1":    jax.random.normal(ks[5], (FF,), jnp.float32) * s,
            "b2":    jax.random.normal(ks[7], (D,), jnp.float32) * s,
            "g2":    jnp.ones((D,), jnp.float32),
            "be2":   jnp.zeros((D,), jnp.float32),
        }
        row = jnp.zeros((P,), jnp.float32)
        for name, val in fields.items():
            off, w = layout[name]
            row = row.at[off:off + w].set(val)
        smalls.append(row)

    return {
        "w_in_t":  jnp.stack(w_in).astype(weight_dtype),    # (L, D, 3D)
        "w_out_t": jnp.stack(w_out).astype(weight_dtype),   # (L, D, D)
        "w1_t":    jnp.stack(w1).astype(weight_dtype),      # (L, D, FF)
        "w2_t":    jnp.stack(w2).astype(weight_dtype),      # (L, FF, D)
        "smalls":  jnp.stack(smalls),                        # (L, P) f32, lane-aligned fields
    }


if __name__ == "__main__":
    # Simple_Transformer(hidden_dim=32, nhead=4, num_layers=2, seq_length=8)
    B, S, D, H, L = 2, 8, 32, 4, 2
    FF = 2048  # PyTorch TransformerEncoderLayer default dim_feedforward

    key = jax.random.PRNGKey(0)
    kx, kp = jax.random.split(key)
    x = jax.random.normal(kx, (B, S, D), jnp.float32)          # batch-first input
    params = init_params(kp, D, FF, L)                          # bf16 weights, f32 smalls

    out = simple_transformer_forward(x, params, H)              # bf16 matmuls, f32 accum/elementwise
    out = jax.block_until_ready(out)

    assert out.shape == (B, S, D), out.shape
    assert bool(jnp.all(jnp.isfinite(out)))
    print("KERNEL_OK")
</pallas_src>

<mosaic_0001>
module attributes {stable_mosaic.version = 11 : i64} {
  func.func @_transformer_kernel(%arg0: i32, %arg1: memref<16x32xf32, #tpu.memory_space<vmem>>, %arg2: memref<2x32x96xbf16, #tpu.memory_space<vmem>>, %arg3: memref<2x32x32xbf16, #tpu.memory_space<vmem>>, %arg4: memref<2x32x2048xbf16, #tpu.memory_space<vmem>>, %arg5: memref<2x2048x32xbf16, #tpu.memory_space<vmem>>, %arg6: memref<2x2944xf32, #tpu.memory_space<vmem>>, %arg7: memref<16x32xf32, #tpu.memory_space<vmem>>) attributes {dimension_semantics = [#tpu.dimension_semantics<arbitrary>], iteration_bounds = array<i64: 1>, scalar_prefetch = 0 : i64, scratch_operands = 0 : i64, tpu.core_type = #tpu.core_type<tc>, window_params = [{pipeline_mode = #tpu.pipeline_mode<synchronous>, transform_indices = @transform_0, window_bounds = array<i64: 16, 32>}, {pipeline_mode = #tpu.pipeline_mode<synchronous>, transform_indices = @transform_1, window_bounds = array<i64: 2, 32, 96>}, {pipeline_mode = #tpu.pipeline_mode<synchronous>, transform_indices = @transform_2, window_bounds = array<i64: 2, 32, 32>}, {pipeline_mode = #tpu.pipeline_mode<synchronous>, transform_indices = @transform_3, window_bounds = array<i64: 2, 32, 2048>}, {pipeline_mode = #tpu.pipeline_mode<synchronous>, transform_indices = @transform_4, window_bounds = array<i64: 2, 2048, 32>}, {pipeline_mode = #tpu.pipeline_mode<synchronous>, transform_indices = @transform_5, window_bounds = array<i64: 2, 2944>}, {pipeline_mode = #tpu.pipeline_mode<synchronous>, transform_indices = @transform_6, window_bounds = array<i64: 16, 32>}]} {
    %c0 = arith.constant 0 : index
    %c0_0 = arith.constant 0 : index
    %0 = vector.load %arg1[%c0, %c0_0] : memref<16x32xf32, #tpu.memory_space<vmem>>, vector<16x32xf32>
    %c0_1 = arith.constant 0 : index
    %c0_2 = arith.constant 0 : index
    %c0_3 = arith.constant 0 : index
    %1 = vector.load %arg2[%c0_1, %c0_2, %c0_3] : memref<2x32x96xbf16, #tpu.memory_space<vmem>>, vector<1x32x96xbf16>
    %2 = vector.shape_cast %1 : vector<1x32x96xbf16> to vector<32x96xbf16>
    %3 = arith.truncf %0 : vector<16x32xf32> to vector<16x32xbf16>
    %cst = arith.constant dense<0.000000e+00> : vector<16x96xf32>
    %4 = tpu.matmul %3, %2, %cst {dimension_numbers = #tpu.dot_dimension_numbers<[1], [0], [0], [1], [0, 0, 1, 1], [], []>} : vector<16x32xbf16>, vector<32x96xbf16>, vector<16x96xf32> -> vector<16x96xf32>
    %c0_4 = arith.constant 0 : index
    %c0_5 = arith.constant 0 : index
    %5 = vector.load %arg6[%c0_4, %c0_5] : memref<2x2944xf32, #tpu.memory_space<vmem>>, vector<1x96xf32>
    %6 = vector.broadcast %5 : vector<1x96xf32> to vector<16x96xf32>
    %7 = arith.addf %4, %6 : vector<16x96xf32>
    %8 = vector.extract_strided_slice %7 {offsets = [0, 0], sizes = [16, 32], strides = [1, 1]} : vector<16x96xf32> to vector<16x32xf32>
    %9 = vector.shape_cast %8 : vector<16x32xf32> to vector<2x8x32xf32>
    %10 = vector.extract_strided_slice %7 {offsets = [0, 32], sizes = [16, 32], strides = [1, 1]} : vector<16x96xf32> to vector<16x32xf32>
    %11 = vector.shape_cast %10 : vector<16x32xf32> to vector<2x8x32xf32>
    %12 = vector.extract_strided_slice %7 {offsets = [0, 64], sizes = [16, 32], strides = [1, 1]} : vector<16x96xf32> to vector<16x32xf32>
    %13 = vector.shape_cast %12 : vector<16x32xf32> to vector<2x8x32xf32>
    %14 = vector.extract_strided_slice %9 {offsets = [0, 0, 0], sizes = [2, 8, 8], strides = [1, 1, 1]} : vector<2x8x32xf32> to vector<2x8x8xf32>
    %15 = arith.truncf %14 : vector<2x8x8xf32> to vector<2x8x8xbf16>
    %16 = vector.extract_strided_slice %11 {offsets = [0, 0, 0], sizes = [2, 8, 8], strides = [1, 1, 1]} : vector<2x8x32xf32> to vector<2x8x8xf32>
    %17 = arith.truncf %16 : vector<2x8x8xf32> to vector<2x8x8xbf16>
    %18 = vector.extract_strided_slice %13 {offsets = [0, 0, 0], sizes = [2, 8, 8], strides = [1, 1, 1]} : vector<2x8x32xf32> to vector<2x8x8xf32>
    %19 = arith.truncf %18 : vector<2x8x8xf32> to vector<2x8x8xbf16>
    "tpu.trace_start"() <{level = 10 : i32, message = "bqd,bkd->bqk"}> : () -> ()
    %cst_6 = arith.constant dense<0.000000e+00> : vector<2x8x8xf32>
    %20 = tpu.matmul %15, %17, %cst_6 {dimension_numbers = #tpu.dot_dimension_numbers<[2], [2], [1], [1], [0, 0, 0, 1, 1, 1], [0], [0]>} : vector<2x8x8xbf16>, vector<2x8x8xbf16>, vector<2x8x8xf32> -> vector<2x8x8xf32>
    "tpu.trace_stop"() : () -> ()
    %cst_7 = arith.constant 0.353553385 : f32
    %21 = vector.broadcast %cst_7 : f32 to vector<2x8x8xf32>
    %22 = arith.mulf %20, %21 : vector<2x8x8xf32>
    %cst_8 = arith.constant dense<0xFF800000> : vector<2x8xf32>
    %23 = vector.multi_reduction <maximumf>, %22, %cst_8 [2] : vector<2x8x8xf32> to vector<2x8xf32>
    %24 = vector.shape_cast %23 : vector<2x8xf32> to vector<2x8x1xf32>
    %25 = vector.broadcast %24 : vector<2x8x1xf32> to vector<2x8x8xf32>
    %26 = arith.subf %22, %25 : vector<2x8x8xf32>
    %27 = math.exp %26 : vector<2x8x8xf32>
    %cst_9 = arith.constant dense<0.000000e+00> : vector<2x8xf32>
    %28 = vector.multi_reduction <add>, %27, %cst_9 [2] : vector<2x8x8xf32> to vector<2x8xf32>
    %29 = vector.shape_cast %28 : vector<2x8xf32> to vector<2x8x1xf32>
    %30 = tpu.reciprocal %29 {approx = true} : vector<2x8x1xf32> -> vector<2x8x1xf32>
    %31 = vector.broadcast %30 : vector<2x8x1xf32> to vector<2x8x8xf32>
    %32 = arith.mulf %27, %31 : vector<2x8x8xf32>
    %33 = arith.truncf %32 : vector<2x8x8xf32> to vector<2x8x8xbf16>
    "tpu.trace_start"() <{level = 10 : i32, message = "bqk,bkd->bqd"}> : () -> ()
    %cst_10 = arith.constant dense<0.000000e+00> : vector<2x8x8xf32>
    %34 = tpu.matmul %33, %19, %cst_10 {dimension_numbers = #tpu.dot_dimension_numbers<[2], [1], [1], [2], [0, 0, 0, 1, 1, 2], [0], [0]>} : vector<2x8x8xbf16>, vector<2x8x8xbf16>, vector<2x8x8xf32> -> vector<2x8x8xf32>
    "tpu.trace_stop"() : () -> ()
    %35 = vector.extract_strided_slice %9 {offsets = [0, 0, 8], sizes = [2, 8, 8], strides = [1, 1, 1]} : vector<2x8x32xf32> to vector<2x8x8xf32>
    %36 = arith.truncf %35 : vector<2x8x8xf32> to vector<2x8x8xbf16>
    %37 = vector.extract_strided_slice %11 {offsets = [0, 0, 8], sizes = [2, 8, 8], strides = [1, 1, 1]} : vector<2x8x32xf32> to vector<2x8x8xf32>
    %38 = arith.truncf %37 : vector<2x8x8xf32> to vector<2x8x8xbf16>
    %39 = vector.extract_strided_slice %13 {offsets = [0, 0, 8], sizes = [2, 8, 8], strides = [1, 1, 1]} : vector<2x8x32xf32> to vector<2x8x8xf32>
    %40 = arith.truncf %39 : vector<2x8x8xf32> to vector<2x8x8xbf16>
    "tpu.trace_start"() <{level = 10 : i32, message = "bqd,bkd->bqk"}> : () -> ()
    %cst_11 = arith.constant dense<0.000000e+00> : vector<2x8x8xf32>
    %41 = tpu.matmul %36, %38, %cst_11 {dimension_numbers = #tpu.dot_dimension_numbers<[2], [2], [1], [1], [0, 0, 0, 1, 1, 1], [0], [0]>} : vector<2x8x8xbf16>, vector<2x8x8xbf16>, vector<2x8x8xf32> -> vector<2x8x8xf32>
    "tpu.trace_stop"() : () -> ()
    %cst_12 = arith.constant 0.353553385 : f32
    %42 = vector.broadcast %cst_12 : f32 to vector<2x8x8xf32>
    %43 = arith.mulf %41, %42 : vector<2x8x8xf32>
    %cst_13 = arith.constant dense<0xFF800000> : vector<2x8xf32>
    %44 = vector.multi_reduction <maximumf>, %43, %cst_13 [2] : vector<2x8x8xf32> to vector<2x8xf32>
    %45 = vector.shape_cast %44 : vector<2x8xf32> to vector<2x8x1xf32>
    %46 = vector.broadcast %45 : vector<2x8x1xf32> to vector<2x8x8xf32>
    %47 = arith.subf %43, %46 : vector<2x8x8xf32>
    %48 = math.exp %47 : vector<2x8x8xf32>
    %cst_14 = arith.constant dense<0.000000e+00> : vector<2x8xf32>
    %49 = vector.multi_reduction <add>, %48, %cst_14 [2] : vector<2x8x8xf32> to vector<2x8xf32>
    %50 = vector.shape_cast %49 : vector<2x8xf32> to vector<2x8x1xf32>
    %51 = tpu.reciprocal %50 {approx = true} : vector<2x8x1xf32> -> vector<2x8x1xf32>
    %52 = vector.broadcast %51 : vector<2x8x1xf32> to vector<2x8x8xf32>
    %53 = arith.mulf %48, %52 : vector<2x8x8xf32>
    %54 = arith.truncf %53 : vector<2x8x8xf32> to vector<2x8x8xbf16>
    "tpu.trace_start"() <{level = 10 : i32, message = "bqk,bkd->bqd"}> : () -> ()
    %cst_15 = arith.constant dense<0.000000e+00> : vector<2x8x8xf32>
    %55 = tpu.matmul %54, %40, %cst_15 {dimension_numbers = #tpu.dot_dimension_numbers<[2], [1], [1], [2], [0, 0, 0, 1, 1, 2], [0], [0]>} : vector<2x8x8xbf16>, vector<2x8x8xbf16>, vector<2x8x8xf32> -> vector<2x8x8xf32>
    "tpu.trace_stop"() : () -> ()
    %56 = vector.extract_strided_slice %9 {offsets = [0, 0, 16], sizes = [2, 8, 8], strides = [1, 1, 1]} : vector<2x8x32xf32> to vector<2x8x8xf32>
    %57 = arith.truncf %56 : vector<2x8x8xf32> to vector<2x8x8xbf16>
    %58 = vector.extract_strided_slice %11 {offsets = [0, 0, 16], sizes = [2, 8, 8], strides = [1, 1, 1]} : vector<2x8x32xf32> to vector<2x8x8xf32>
    %59 = arith.truncf %58 : vector<2x8x8xf32> to vector<2x8x8xbf16>
    %60 = vector.extract_strided_slice %13 {offsets = [0, 0, 16], sizes = [2, 8, 8], strides = [1, 1, 1]} : vector<2x8x32xf32> to vector<2x8x8xf32>
    %61 = arith.truncf %60 : vector<2x8x8xf32> to vector<2x8x8xbf16>
    "tpu.trace_start"() <{level = 10 : i32, message = "bqd,bkd->bqk"}> : () -> ()
    %cst_16 = arith.constant dense<0.000000e+00> : vector<2x8x8xf32>
    %62 = tpu.matmul %57, %59, %cst_16 {dimension_numbers = #tpu.dot_dimension_numbers<[2], [2], [1], [1], [0, 0, 0, 1, 1, 1], [0], [0]>} : vector<2x8x8xbf16>, vector<2x8x8xbf16>, vector<2x8x8xf32> -> vector<2x8x8xf32>
    "tpu.trace_stop"() : () -> ()
    %cst_17 = arith.constant 0.353553385 : f32
    %63 = vector.broadcast %cst_17 : f32 to vector<2x8x8xf32>
    %64 = arith.mulf %62, %63 : vector<2x8x8xf32>
    %cst_18 = arith.constant dense<0xFF800000> : vector<2x8xf32>
    %65 = vector.multi_reduction <maximumf>, %64, %cst_18 [2] : vector<2x8x8xf32> to vector<2x8xf32>
    %66 = vector.shape_cast %65 : vector<2x8xf32> to vector<2x8x1xf32>
    %67 = vector.broadcast %66 : vector<2x8x1xf32> to vector<2x8x8xf32>
    %68 = arith.subf %64, %67 : vector<2x8x8xf32>
    %69 = math.exp %68 : vector<2x8x8xf32>
    %cst_19 = arith.constant dense<0.000000e+00> : vector<2x8xf32>
    %70 = vector.multi_reduction <add>, %69, %cst_19 [2] : vector<2x8x8xf32> to vector<2x8xf32>
    %71 = vector.shape_cast %70 : vector<2x8xf32> to vector<2x8x1xf32>
    %72 = tpu.reciprocal %71 {approx = true} : vector<2x8x1xf32> -> vector<2x8x1xf32>
    %73 = vector.broadcast %72 : vector<2x8x1xf32> to vector<2x8x8xf32>
    %74 = arith.mulf %69, %73 : vector<2x8x8xf32>
    %75 = arith.truncf %74 : vector<2x8x8xf32> to vector<2x8x8xbf16>
    "tpu.trace_start"() <{level = 10 : i32, message = "bqk,bkd->bqd"}> : () -> ()
    %cst_20 = arith.constant dense<0.000000e+00> : vector<2x8x8xf32>
    %76 = tpu.matmul %75, %61, %cst_20 {dimension_numbers = #tpu.dot_dimension_numbers<[2], [1], [1], [2], [0, 0, 0, 1, 1, 2], [0], [0]>} : vector<2x8x8xbf16>, vector<2x8x8xbf16>, vector<2x8x8xf32> -> vector<2x8x8xf32>
    "tpu.trace_stop"() : () -> ()
    %77 = vector.extract_strided_slice %9 {offsets = [0, 0, 24], sizes = [2, 8, 8], strides = [1, 1, 1]} : vector<2x8x32xf32> to vector<2x8x8xf32>
    %78 = arith.truncf %77 : vector<2x8x8xf32> to vector<2x8x8xbf16>
    %79 = vector.extract_strided_slice %11 {offsets = [0, 0, 24], sizes = [2, 8, 8], strides = [1, 1, 1]} : vector<2x8x32xf32> to vector<2x8x8xf32>
    %80 = arith.truncf %79 : vector<2x8x8xf32> to vector<2x8x8xbf16>
    %81 = vector.extract_strided_slice %13 {offsets = [0, 0, 24], sizes = [2, 8, 8], strides = [1, 1, 1]} : vector<2x8x32xf32> to vector<2x8x8xf32>
    %82 = arith.truncf %81 : vector<2x8x8xf32> to vector<2x8x8xbf16>
    "tpu.trace_start"() <{level = 10 : i32, message = "bqd,bkd->bqk"}> : () -> ()
    %cst_21 = arith.constant dense<0.000000e+00> : vector<2x8x8xf32>
    %83 = tpu.matmul %78, %80, %cst_21 {dimension_numbers = #tpu.dot_dimension_numbers<[2], [2], [1], [1], [0, 0, 0, 1, 1, 1], [0], [0]>} : vector<2x8x8xbf16>, vector<2x8x8xbf16>, vector<2x8x8xf32> -> vector<2x8x8xf32>
    "tpu.trace_stop"() : () -> ()
    %cst_22 = arith.constant 0.353553385 : f32
    %84 = vector.broadcast %cst_22 : f32 to vector<2x8x8xf32>
    %85 = arith.mulf %83, %84 : vector<2x8x8xf32>
    %cst_23 = arith.constant dense<0xFF800000> : vector<2x8xf32>
    %86 = vector.multi_reduction <maximumf>, %85, %cst_23 [2] : vector<2x8x8xf32> to vector<2x8xf32>
    %87 = vector.shape_cast %86 : vector<2x8xf32> to vector<2x8x1xf32>
    %88 = vector.broadcast %87 : vector<2x8x1xf32> to vector<2x8x8xf32>
    %89 = arith.subf %85, %88 : vector<2x8x8xf32>
    %90 = math.exp %89 : vector<2x8x8xf32>
    %cst_24 = arith.constant dense<0.000000e+00> : vector<2x8xf32>
    %91 = vector.multi_reduction <add>, %90, %cst_24 [2] : vector<2x8x8xf32> to vector<2x8xf32>
    %92 = vector.shape_cast %91 : vector<2x8xf32> to vector<2x8x1xf32>
    %93 = tpu.reciprocal %92 {approx = true} : vector<2x8x1xf32> -> vector<2x8x1xf32>
    %94 = vector.broadcast %93 : vector<2x8x1xf32> to vector<2x8x8xf32>
    %95 = arith.mulf %90, %94 : vector<2x8x8xf32>
    %96 = arith.truncf %95 : vector<2x8x8xf32> to vector<2x8x8xbf16>
    "tpu.trace_start"() <{level = 10 : i32, message = "bqk,bkd->bqd"}> : () -> ()
    %cst_25 = arith.constant dense<0.000000e+00> : vector<2x8x8xf32>
    %97 = tpu.matmul %96, %82, %cst_25 {dimension_numbers = #tpu.dot_dimension_numbers<[2], [1], [1], [2], [0, 0, 0, 1, 1, 2], [0], [0]>} : vector<2x8x8xbf16>, vector<2x8x8xbf16>, vector<2x8x8xf32> -> vector<2x8x8xf32>
    "tpu.trace_stop"() : () -> ()
    %98 = tpu.concatenate %34, %55, %76, %97 in 2 : vector<2x8x8xf32>, vector<2x8x8xf32>, vector<2x8x8xf32>, vector<2x8x8xf32> -> vector<2x8x32xf32>
    %99 = vector.shape_cast %98 : vector<2x8x32xf32> to vector<16x32xf32>
    %c0_26 = arith.constant 0 : index
    %c0_27 = arith.constant 0 : index
    %c0_28 = arith.constant 0 : index
    %100 = vector.load %arg3[%c0_26, %c0_27, %c0_28] : memref<2x32x32xbf16, #tpu.memory_space<vmem>>, vector<1x32x32xbf16>
    %101 = vector.shape_cast %100 : vector<1x32x32xbf16> to vector<32x32xbf16>
    %102 = arith.truncf %99 : vector<16x32xf32> to vector<16x32xbf16>
    %cst_29 = arith.constant dense<0.000000e+00> : vector<16x32xf32>
    %103 = tpu.matmul %102, %101, %cst_29 {dimension_numbers = #tpu.dot_dimension_numbers<[1], [0], [0], [1], [0, 0, 1, 1], [], []>} : vector<16x32xbf16>, vector<32x32xbf16>, vector<16x32xf32> -> vector<16x32xf32>
    %c0_30 = arith.constant 0 : index
    %c128 = arith.constant 128 : index
    %104 = vector.load %arg6[%c0_30, %c128] : memref<2x2944xf32, #tpu.memory_space<vmem>>, vector<1x32xf32>
    %105 = vector.broadcast %104 : vector<1x32xf32> to vector<16x32xf32>
    %106 = arith.addf %103, %105 : vector<16x32xf32>
    %107 = arith.addf %0, %106 : vector<16x32xf32>
    %c0_31 = arith.constant 0 : index
    %c256 = arith.constant 256 : index
    %108 = vector.load %arg6[%c0_31, %c256] : memref<2x2944xf32, #tpu.memory_space<vmem>>, vector<1x32xf32>
    %c0_32 = arith.constant 0 : index
    %c384 = arith.constant 384 : index
    %109 = vector.load %arg6[%c0_32, %c384] : memref<2x2944xf32, #tpu.memory_space<vmem>>, vector<1x32xf32>
    %cst_33 = arith.constant dense<0.000000e+00> : vector<16xf32>
    %110 = vector.multi_reduction <add>, %107, %cst_33 [1] : vector<16x32xf32> to vector<16xf32>
    %111 = vector.shape_cast %110 : vector<16xf32> to vector<16x1xf32>
    %cst_34 = arith.constant 3.200000e+01 : f32
    %112 = vector.broadcast %cst_34 : f32 to vector<16x1xf32>
    %113 = arith.divf %111, %112 : vector<16x1xf32>
    %114 = vector.broadcast %113 : vector<16x1xf32> to vector<16x32xf32>
    %115 = arith.subf %107, %114 : vector<16x32xf32>
    %116 = arith.mulf %115, %115 : vector<16x32xf32>
    %cst_35 = arith.constant dense<0.000000e+00> : vector<16xf32>
    %117 = vector.multi_reduction <add>, %116, %cst_35 [1] : vector<16x32xf32> to vector<16xf32>
    %118 = vector.shape_cast %117 : vector<16xf32> to vector<16x1xf32>
    %cst_36 = arith.constant 3.200000e+01 : f32
    %119 = vector.broadcast %cst_36 : f32 to vector<16x1xf32>
    %120 = arith.divf %118, %119 : vector<16x1xf32>
    %121 = vector.broadcast %113 : vector<16x1xf32> to vector<16x32xf32>
    %122 = arith.subf %107, %121 : vector<16x32xf32>
    %cst_37 = arith.constant 9.99999974E-6 : f32
    %123 = vector.broadcast %cst_37 : f32 to vector<16x1xf32>
    %124 = arith.addf %120, %123 : vector<16x1xf32>
    %125 = math.rsqrt %124 : vector<16x1xf32>
    %126 = vector.broadcast %125 : vector<16x1xf32> to vector<16x32xf32>
    %127 = arith.mulf %122, %126 : vector<16x32xf32>
    %128 = vector.broadcast %108 : vector<1x32xf32> to vector<16x32xf32>
    %129 = arith.mulf %127, %128 : vector<16x32xf32>
    %130 = vector.broadcast %109 : vector<1x32xf32> to vector<16x32xf32>
    %131 = arith.addf %129, %130 : vector<16x32xf32>
    %c0_38 = arith.constant 0 : index
    %c0_39 = arith.constant 0 : index
    %c0_40 = arith.constant 0 : index
    %132 = vector.load %arg4[%c0_38, %c0_39, %c0_40] : memref<2x32x2048xbf16, #tpu.memory_space<vmem>>, vector<1x32x2048xbf16>
    %133 = vector.shape_cast %132 : vector<1x32x2048xbf16> to vector<32x2048xbf16>
    %134 = arith.truncf %131 : vector<16x32xf32> to vector<16x32xbf16>
    %cst_41 = arith.constant dense<0.000000e+00> : vector<16x2048xf32>
    %135 = tpu.matmul %134, %133, %cst_41 {dimension_numbers = #tpu.dot_dimension_numbers<[1], [0], [0], [1], [0, 0, 1, 1], [], []>} : vector<16x32xbf16>, vector<32x2048xbf16>, vector<16x2048xf32> -> vector<16x2048xf32>
    %c0_42 = arith.constant 0 : index
    %c512 = arith.constant 512 : index
    %136 = vector.load %arg6[%c0_42, %c512] : memref<2x2944xf32, #tpu.memory_space<vmem>>, vector<1x2048xf32>
    %137 = vector.broadcast %136 : vector<1x2048xf32> to vector<16x2048xf32>
    %138 = arith.addf %135, %137 : vector<16x2048xf32>
    %cst_43 = arith.constant 0.000000e+00 : f32
    %139 = vector.broadcast %cst_43 : f32 to vector<16x2048xf32>
    %140 = arith.maximumf %138, %139 : vector<16x2048xf32>
    %c0_44 = arith.constant 0 : index
    %c0_45 = arith.constant 0 : index
    %c0_46 = arith.constant 0 : index
    %141 = vector.load %arg5[%c0_44, %c0_45, %c0_46] : memref<2x2048x32xbf16, #tpu.memory_space<vmem>>, vector<1x2048x32xbf16>
    %142 = vector.shape_cast %141 : vector<1x2048x32xbf16> to vector<2048x32xbf16>
    %143 = arith.truncf %140 : vector<16x2048xf32> to vector<16x2048xbf16>
    %cst_47 = arith.constant dense<0.000000e+00> : vector<16x32xf32>
    %144 = tpu.matmul %143, %142, %cst_47 {dimension_numbers = #tpu.dot_dimension_numbers<[1], [0], [0], [1], [0, 0, 1, 1], [], []>} : vector<16x2048xbf16>, vector<2048x32xbf16>, vector<16x32xf32> -> vector<16x32xf32>
    %c0_48 = arith.constant 0 : index
    %c2560 = arith.constant 2560 : index
    %145 = vector.load %arg6[%c0_48, %c2560] : memref<2x2944xf32, #tpu.memory_space<vmem>>, vector<1x32xf32>
    %146 = vector.broadcast %145 : vector<1x32xf32> to vector<16x32xf32>
    %147 = arith.addf %144, %146 : vector<16x32xf32>
    %148 = arith.addf %131, %147 : vector<16x32xf32>
    %c0_49 = arith.constant 0 : index
    %c2688 = arith.constant 2688 : index
    %149 = vector.load %arg6[%c0_49, %c2688] : memref<2x2944xf32, #tpu.memory_space<vmem>>, vector<1x32xf32>
    %c0_50 = arith.constant 0 : index
    %c2816 = arith.constant 2816 : index
    %150 = vector.load %arg6[%c0_50, %c2816] : memref<2x2944xf32, #tpu.memory_space<vmem>>, vector<1x32xf32>
    %cst_51 = arith.constant dense<0.000000e+00> : vector<16xf32>
    %151 = vector.multi_reduction <add>, %148, %cst_51 [1] : vector<16x32xf32> to vector<16xf32>
    %152 = vector.shape_cast %151 : vector<16xf32> to vector<16x1xf32>
    %cst_52 = arith.constant 3.200000e+01 : f32
    %153 = vector.broadcast %cst_52 : f32 to vector<16x1xf32>
    %154 = arith.divf %152, %153 : vector<16x1xf32>
    %155 = vector.broadcast %154 : vector<16x1xf32> to vector<16x32xf32>
    %156 = arith.subf %148, %155 : vector<16x32xf32>
    %157 = arith.mulf %156, %156 : vector<16x32xf32>
    %cst_53 = arith.constant dense<0.000000e+00> : vector<16xf32>
    %158 = vector.multi_reduction <add>, %157, %cst_53 [1] : vector<16x32xf32> to vector<16xf32>
    %159 = vector.shape_cast %158 : vector<16xf32> to vector<16x1xf32>
    %cst_54 = arith.constant 3.200000e+01 : f32
    %160 = vector.broadcast %cst_54 : f32 to vector<16x1xf32>
    %161 = arith.divf %159, %160 : vector<16x1xf32>
    %162 = vector.broadcast %154 : vector<16x1xf32> to vector<16x32xf32>
    %163 = arith.subf %148, %162 : vector<16x32xf32>
    %cst_55 = arith.constant 9.99999974E-6 : f32
    %164 = vector.broadcast %cst_55 : f32 to vector<16x1xf32>
    %165 = arith.addf %161, %164 : vector<16x1xf32>
    %166 = math.rsqrt %165 : vector<16x1xf32>
    %167 = vector.broadcast %166 : vector<16x1xf32> to vector<16x32xf32>
    %168 = arith.mulf %163, %167 : vector<16x32xf32>
    %169 = vector.broadcast %149 : vector<1x32xf32> to vector<16x32xf32>
    %170 = arith.mulf %168, %169 : vector<16x32xf32>
    %171 = vector.broadcast %150 : vector<1x32xf32> to vector<16x32xf32>
    %172 = arith.addf %170, %171 : vector<16x32xf32>
    %c1 = arith.constant 1 : index
    %c0_56 = arith.constant 0 : index
    %c0_57 = arith.constant 0 : index
    %173 = vector.load %arg2[%c1, %c0_56, %c0_57] : memref<2x32x96xbf16, #tpu.memory_space<vmem>>, vector<1x32x96xbf16>
    %174 = vector.shape_cast %173 : vector<1x32x96xbf16> to vector<32x96xbf16>
    %175 = arith.truncf %172 : vector<16x32xf32> to vector<16x32xbf16>
    %cst_58 = arith.constant dense<0.000000e+00> : vector<16x96xf32>
    %176 = tpu.matmul %175, %174, %cst_58 {dimension_numbers = #tpu.dot_dimension_numbers<[1], [0], [0], [1], [0, 0, 1, 1], [], []>} : vector<16x32xbf16>, vector<32x96xbf16>, vector<16x96xf32> -> vector<16x96xf32>
    %c1_59 = arith.constant 1 : index
    %c0_60 = arith.constant 0 : index
    %177 = vector.load %arg6[%c1_59, %c0_60] : memref<2x2944xf32, #tpu.memory_space<vmem>>, vector<1x96xf32>
    %178 = vector.broadcast %177 : vector<1x96xf32> to vector<16x96xf32>
    %179 = arith.addf %176, %178 : vector<16x96xf32>
    %180 = vector.extract_strided_slice %179 {offsets = [0, 0], sizes = [16, 32], strides = [1, 1]} : vector<16x96xf32> to vector<16x32xf32>
    %181 = vector.shape_cast %180 : vector<16x32xf32> to vector<2x8x32xf32>
    %182 = vector.extract_strided_slice %179 {offsets = [0, 32], sizes = [16, 32], strides = [1, 1]} : vector<16x96xf32> to vector<16x32xf32>
    %183 = vector.shape_cast %182 : vector<16x32xf32> to vector<2x8x32xf32>
    %184 = vector.extract_strided_slice %179 {offsets = [0, 64], sizes = [16, 32], strides = [1, 1]} : vector<16x96xf32> to vector<16x32xf32>
    %185 = vector.shape_cast %184 : vector<16x32xf32> to vector<2x8x32xf32>
    %186 = vector.extract_strided_slice %181 {offsets = [0, 0, 0], sizes = [2, 8, 8], strides = [1, 1, 1]} : vector<2x8x32xf32> to vector<2x8x8xf32>
    %187 = arith.truncf %186 : vector<2x8x8xf32> to vector<2x8x8xbf16>
    %188 = vector.extract_strided_slice %183 {offsets = [0, 0, 0], sizes = [2, 8, 8], strides = [1, 1, 1]} : vector<2x8x32xf32> to vector<2x8x8xf32>
    %189 = arith.truncf %188 : vector<2x8x8xf32> to vector<2x8x8xbf16>
    %190 = vector.extract_strided_slice %185 {offsets = [0, 0, 0], sizes = [2, 8, 8], strides = [1, 1, 1]} : vector<2x8x32xf32> to vector<2x8x8xf32>
    %191 = arith.truncf %190 : vector<2x8x8xf32> to vector<2x8x8xbf16>
    "tpu.trace_start"() <{level = 10 : i32, message = "bqd,bkd->bqk"}> : () -> ()
    %cst_61 = arith.constant dense<0.000000e+00> : vector<2x8x8xf32>
    %192 = tpu.matmul %187, %189, %cst_61 {dimension_numbers = #tpu.dot_dimension_numbers<[2], [2], [1], [1], [0, 0, 0, 1, 1, 1], [0], [0]>} : vector<2x8x8xbf16>, vector<2x8x8xbf16>, vector<2x8x8xf32> -> vector<2x8x8xf32>
    "tpu.trace_stop"() : () -> ()
    %cst_62 = arith.constant 0.353553385 : f32
    %193 = vector.broadcast %cst_62 : f32 to vector<2x8x8xf32>
    %194 = arith.mulf %192, %193 : vector<2x8x8xf32>
    %cst_63 = arith.constant dense<0xFF800000> : vector<2x8xf32>
    %195 = vector.multi_reduction <maximumf>, %194, %cst_63 [2] : vector<2x8x8xf32> to vector<2x8xf32>
    %196 = vector.shape_cast %195 : vector<2x8xf32> to vector<2x8x1xf32>
    %197 = vector.broadcast %196 : vector<2x8x1xf32> to vector<2x8x8xf32>
    %198 = arith.subf %194, %197 : vector<2x8x8xf32>
    %199 = math.exp %198 : vector<2x8x8xf32>
    %cst_64 = arith.constant dense<0.000000e+00> : vector<2x8xf32>
    %200 = vector.multi_reduction <add>, %199, %cst_64 [2] : vector<2x8x8xf32> to vector<2x8xf32>
    %201 = vector.shape_cast %200 : vector<2x8xf32> to vector<2x8x1xf32>
    %202 = tpu.reciprocal %201 {approx = true} : vector<2x8x1xf32> -> vector<2x8x1xf32>
    %203 = vector.broadcast %202 : vector<2x8x1xf32> to vector<2x8x8xf32>
    %204 = arith.mulf %199, %203 : vector<2x8x8xf32>
    %205 = arith.truncf %204 : vector<2x8x8xf32> to vector<2x8x8xbf16>
    "tpu.trace_start"() <{level = 10 : i32, message = "bqk,bkd->bqd"}> : () -> ()
    %cst_65 = arith.constant dense<0.000000e+00> : vector<2x8x8xf32>
    %206 = tpu.matmul %205, %191, %cst_65 {dimension_numbers = #tpu.dot_dimension_numbers<[2], [1], [1], [2], [0, 0, 0, 1, 1, 2], [0], [0]>} : vector<2x8x8xbf16>, vector<2x8x8xbf16>, vector<2x8x8xf32> -> vector<2x8x8xf32>
    "tpu.trace_stop"() : () -> ()
    %207 = vector.extract_strided_slice %181 {offsets = [0, 0, 8], sizes = [2, 8, 8], strides = [1, 1, 1]} : vector<2x8x32xf32> to vector<2x8x8xf32>
    %208 = arith.truncf %207 : vector<2x8x8xf32> to vector<2x8x8xbf16>
    %209 = vector.extract_strided_slice %183 {offsets = [0, 0, 8], sizes = [2, 8, 8], strides = [1, 1, 1]} : vector<2x8x32xf32> to vector<2x8x8xf32>
    %210 = arith.truncf %209 : vector<2x8x8xf32> to vector<2x8x8xbf16>
    %211 = vector.extract_strided_slice %185 {offsets = [0, 0, 8], sizes = [2, 8, 8], strides = [1, 1, 1]} : vector<2x8x32xf32> to vector<2x8x8xf32>
    %212 = arith.truncf %211 : vector<2x8x8xf32> to vector<2x8x8xbf16>
    "tpu.trace_start"() <{level = 10 : i32, message = "bqd,bkd->bqk"}> : () -> ()
    %cst_66 = arith.constant dense<0.000000e+00> : vector<2x8x8xf32>
    %213 = tpu.matmul %208, %210, %cst_66 {dimension_numbers = #tpu.dot_dimension_numbers<[2], [2], [1], [1], [0, 0, 0, 1, 1, 1], [0], [0]>} : vector<2x8x8xbf16>, vector<2x8x8xbf16>, vector<2x8x8xf32> -> vector<2x8x8xf32>
    "tpu.trace_stop"() : () -> ()
    %cst_67 = arith.constant 0.353553385 : f32
    %214 = vector.broadcast %cst_67 : f32 to vector<2x8x8xf32>
    %215 = arith.mulf %213, %214 : vector<2x8x8xf32>
    %cst_68 = arith.constant dense<0xFF800000> : vector<2x8xf32>
    %216 = vector.multi_reduction <maximumf>, %215, %cst_68 [2] : vector<2x8x8xf32> to vector<2x8xf32>
    %217 = vector.shape_cast %216 : vector<2x8xf32> to vector<2x8x1xf32>
    %218 = vector.broadcast %217 : vector<2x8x1xf32> to vector<2x8x8xf32>
    %219 = arith.subf %215, %218 : vector<2x8x8xf32>
    %220 = math.exp %219 : vector<2x8x8xf32>
    %cst_69 = arith.constant dense<0.000000e+00> : vector<2x8xf32>
    %221 = vector.multi_reduction <add>, %220, %cst_69 [2] : vector<2x8x8xf32> to vector<2x8xf32>
    %222 = vector.shape_cast %221 : vector<2x8xf32> to vector<2x8x1xf32>
    %223 = tpu.reciprocal %222 {approx = true} : vector<2x8x1xf32> -> vector<2x8x1xf32>
    %224 = vector.broadcast %223 : vector<2x8x1xf32> to vector<2x8x8xf32>
    %225 = arith.mulf %220, %224 : vector<2x8x8xf32>
    %226 = arith.truncf %225 : vector<2x8x8xf32> to vector<2x8x8xbf16>
    "tpu.trace_start"() <{level = 10 : i32, message = "bqk,bkd->bqd"}> : () -> ()
    %cst_70 = arith.constant dense<0.000000e+00> : vector<2x8x8xf32>
    %227 = tpu.matmul %226, %212, %cst_70 {dimension_numbers = #tpu.dot_dimension_numbers<[2], [1], [1], [2], [0, 0, 0, 1, 1, 2], [0], [0]>} : vector<2x8x8xbf16>, vector<2x8x8xbf16>, vector<2x8x8xf32> -> vector<2x8x8xf32>
    "tpu.trace_stop"() : () -> ()
    %228 = vector.extract_strided_slice %181 {offsets = [0, 0, 16], sizes = [2, 8, 8], strides = [1, 1, 1]} : vector<2x8x32xf32> to vector<2x8x8xf32>
    %229 = arith.truncf %228 : vector<2x8x8xf32> to vector<2x8x8xbf16>
    %230 = vector.extract_strided_slice %183 {offsets = [0, 0, 16], sizes = [2, 8, 8], strides = [1, 1, 1]} : vector<2x8x32xf32> to vector<2x8x8xf32>
    %231 = arith.truncf %230 : vector<2x8x8xf32> to vector<2x8x8xbf16>
    %232 = vector.extract_strided_slice %185 {offsets = [0, 0, 16], sizes = [2, 8, 8], strides = [1, 1, 1]} : vector<2x8x32xf32> to vector<2x8x8xf32>
    %233 = arith.truncf %232 : vector<2x8x8xf32> to vector<2x8x8xbf16>
    "tpu.trace_start"() <{level = 10 : i32, message = "bqd,bkd->bqk"}> : () -> ()
    %cst_71 = arith.constant dense<0.000000e+00> : vector<2x8x8xf32>
    %234 = tpu.matmul %229, %231, %cst_71 {dimension_numbers = #tpu.dot_dimension_numbers<[2], [2], [1], [1], [0, 0, 0, 1, 1, 1], [0], [0]>} : vector<2x8x8xbf16>, vector<2x8x8xbf16>, vector<2x8x8xf32> -> vector<2x8x8xf32>
    "tpu.trace_stop"() : () -> ()
    %cst_72 = arith.constant 0.353553385 : f32
    %235 = vector.broadcast %cst_72 : f32 to vector<2x8x8xf32>
    %236 = arith.mulf %234, %235 : vector<2x8x8xf32>
    %cst_73 = arith.constant dense<0xFF800000> : vector<2x8xf32>
    %237 = vector.multi_reduction <maximumf>, %236, %cst_73 [2] : vector<2x8x8xf32> to vector<2x8xf32>
    %238 = vector.shape_cast %237 : vector<2x8xf32> to vector<2x8x1xf32>
    %239 = vector.broadcast %238 : vector<2x8x1xf32> to vector<2x8x8xf32>
    %240 = arith.subf %236, %239 : vector<2x8x8xf32>
    %241 = math.exp %240 : vector<2x8x8xf32>
    %cst_74 = arith.constant dense<0.000000e+00> : vector<2x8xf32>
    %242 = vector.multi_reduction <add>, %241, %cst_74 [2] : vector<2x8x8xf32> to vector<2x8xf32>
    %243 = vector.shape_cast %242 : vector<2x8xf32> to vector<2x8x1xf32>
    %244 = tpu.reciprocal %243 {approx = true} : vector<2x8x1xf32> -> vector<2x8x1xf32>
    %245 = vector.broadcast %244 : vector<2x8x1xf32> to vector<2x8x8xf32>
    %246 = arith.mulf %241, %245 : vector<2x8x8xf32>
    %247 = arith.truncf %246 : vector<2x8x8xf32> to vector<2x8x8xbf16>
    "tpu.trace_start"() <{level = 10 : i32, message = "bqk,bkd->bqd"}> : () -> ()
    %cst_75 = arith.constant dense<0.000000e+00> : vector<2x8x8xf32>
    %248 = tpu.matmul %247, %233, %cst_75 {dimension_numbers = #tpu.dot_dimension_numbers<[2], [1], [1], [2], [0, 0, 0, 1, 1, 2], [0], [0]>} : vector<2x8x8xbf16>, vector<2x8x8xbf16>, vector<2x8x8xf32> -> vector<2x8x8xf32>
    "tpu.trace_stop"() : () -> ()
    %249 = vector.extract_strided_slice %181 {offsets = [0, 0, 24], sizes = [2, 8, 8], strides = [1, 1, 1]} : vector<2x8x32xf32> to vector<2x8x8xf32>
    %250 = arith.truncf %249 : vector<2x8x8xf32> to vector<2x8x8xbf16>
    %251 = vector.extract_strided_slice %183 {offsets = [0, 0, 24], sizes = [2, 8, 8], strides = [1, 1, 1]} : vector<2x8x32xf32> to vector<2x8x8xf32>
    %252 = arith.truncf %251 : vector<2x8x8xf32> to vector<2x8x8xbf16>
    %253 = vector.extract_strided_slice %185 {offsets = [0, 0, 24], sizes = [2, 8, 8], strides = [1, 1, 1]} : vector<2x8x32xf32> to vector<2x8x8xf32>
    %254 = arith.truncf %253 : vector<2x8x8xf32> to vector<2x8x8xbf16>
    "tpu.trace_start"() <{level = 10 : i32, message = "bqd,bkd->bqk"}> : () -> ()
    %cst_76 = arith.constant dense<0.000000e+00> : vector<2x8x8xf32>
    %255 = tpu.matmul %250, %252, %cst_76 {dimension_numbers = #tpu.dot_dimension_numbers<[2], [2], [1], [1], [0, 0, 0, 1, 1, 1], [0], [0]>} : vector<2x8x8xbf16>, vector<2x8x8xbf16>, vector<2x8x8xf32> -> vector<2x8x8xf32>
    "tpu.trace_stop"() : () -> ()
    %cst_77 = arith.constant 0.353553385 : f32
    %256 = vector.broadcast %cst_77 : f32 to vector<2x8x8xf32>
    %257 = arith.mulf %255, %256 : vector<2x8x8xf32>
    %cst_78 = arith.constant dense<0xFF800000> : vector<2x8xf32>
    %258 = vector.multi_reduction <maximumf>, %257, %cst_78 [2] : vector<2x8x8xf32> to vector<2x8xf32>
    %259 = vector.shape_cast %258 : vector<2x8xf32> to vector<2x8x1xf32>
    %260 = vector.broadcast %259 : vector<2x8x1xf32> to vector<2x8x8xf32>
    %261 = arith.subf %257, %260 : vector<2x8x8xf32>
    %262 = math.exp %261 : vector<2x8x8xf32>
    %cst_79 = arith.constant dense<0.000000e+00> : vector<2x8xf32>
    %263 = vector.multi_reduction <add>, %262, %cst_79 [2] : vector<2x8x8xf32> to vector<2x8xf32>
    %264 = vector.shape_cast %263 : vector<2x8xf32> to vector<2x8x1xf32>
    %265 = tpu.reciprocal %264 {approx = true} : vector<2x8x1xf32> -> vector<2x8x1xf32>
    %266 = vector.broadcast %265 : vector<2x8x1xf32> to vector<2x8x8xf32>
    %267 = arith.mulf %262, %266 : vector<2x8x8xf32>
    %268 = arith.truncf %267 : vector<2x8x8xf32> to vector<2x8x8xbf16>
    "tpu.trace_start"() <{level = 10 : i32, message = "bqk,bkd->bqd"}> : () -> ()
    %cst_80 = arith.constant dense<0.000000e+00> : vector<2x8x8xf32>
    %269 = tpu.matmul %268, %254, %cst_80 {dimension_numbers = #tpu.dot_dimension_numbers<[2], [1], [1], [2], [0, 0, 0, 1, 1, 2], [0], [0]>} : vector<2x8x8xbf16>, vector<2x8x8xbf16>, vector<2x8x8xf32> -> vector<2x8x8xf32>
    "tpu.trace_stop"() : () -> ()
    %270 = tpu.concatenate %206, %227, %248, %269 in 2 : vector<2x8x8xf32>, vector<2x8x8xf32>, vector<2x8x8xf32>, vector<2x8x8xf32> -> vector<2x8x32xf32>
    %271 = vector.shape_cast %270 : vector<2x8x32xf32> to vector<16x32xf32>
    %c1_81 = arith.constant 1 : index
    %c0_82 = arith.constant 0 : index
    %c0_83 = arith.constant 0 : index
    %272 = vector.load %arg3[%c1_81, %c0_82, %c0_83] : memref<2x32x32xbf16, #tpu.memory_space<vmem>>, vector<1x32x32xbf16>
    %273 = vector.shape_cast %272 : vector<1x32x32xbf16> to vector<32x32xbf16>
    %274 = arith.truncf %271 : vector<16x32xf32> to vector<16x32xbf16>
    %cst_84 = arith.constant dense<0.000000e+00> : vector<16x32xf32>
    %275 = tpu.matmul %274, %273, %cst_84 {dimension_numbers = #tpu.dot_dimension_numbers<[1], [0], [0], [1], [0, 0, 1, 1], [], []>} : vector<16x32xbf16>, vector<32x32xbf16>, vector<16x32xf32> -> vector<16x32xf32>
    %c1_85 = arith.constant 1 : index
    %c128_86 = arith.constant 128 : index
    %276 = vector.load %arg6[%c1_85, %c128_86] : memref<2x2944xf32, #tpu.memory_space<vmem>>, vector<1x32xf32>
    %277 = vector.broadcast %276 : vector<1x32xf32> to vector<16x32xf32>
    %278 = arith.addf %275, %277 : vector<16x32xf32>
    %279 = arith.addf %172, %278 : vector<16x32xf32>
    %c1_87 = arith.constant 1 : index
    %c256_88 = arith.constant 256 : index
    %280 = vector.load %arg6[%c1_87, %c256_88] : memref<2x2944xf32, #tpu.memory_space<vmem>>, vector<1x32xf32>
    %c1_89 = arith.constant 1 : index
    %c384_90 = arith.constant 384 : index
    %281 = vector.load %arg6[%c1_89, %c384_90] : memref<2x2944xf32, #tpu.memory_space<vmem>>, vector<1x32xf32>
    %cst_91 = arith.constant dense<0.000000e+00> : vector<16xf32>
    %282 = vector.multi_reduction <add>, %279, %cst_91 [1] : vector<16x32xf32> to vector<16xf32>
    %283 = vector.shape_cast %282 : vector<16xf32> to vector<16x1xf32>
    %cst_92 = arith.constant 3.200000e+01 : f32
    %284 = vector.broadcast %cst_92 : f32 to vector<16x1xf32>
    %285 = arith.divf %283, %284 : vector<16x1xf32>
    %286 = vector.broadcast %285 : vector<16x1xf32> to vector<16x32xf32>
    %287 = arith.subf %279, %286 : vector<16x32xf32>
    %288 = arith.mulf %287, %287 : vector<16x32xf32>
    %cst_93 = arith.constant dense<0.000000e+00> : vector<16xf32>
    %289 = vector.multi_reduction <add>, %288, %cst_93 [1] : vector<16x32xf32> to vector<16xf32>
    %290 = vector.shape_cast %289 : vector<16xf32> to vector<16x1xf32>
    %cst_94 = arith.constant 3.200000e+01 : f32
    %291 = vector.broadcast %cst_94 : f32 to vector<16x1xf32>
    %292 = arith.divf %290, %291 : vector<16x1xf32>
    %293 = vector.broadcast %285 : vector<16x1xf32> to vector<16x32xf32>
    %294 = arith.subf %279, %293 : vector<16x32xf32>
    %cst_95 = arith.constant 9.99999974E-6 : f32
    %295 = vector.broadcast %cst_95 : f32 to vector<16x1xf32>
    %296 = arith.addf %292, %295 : vector<16x1xf32>
    %297 = math.rsqrt %296 : vector<16x1xf32>
    %298 = vector.broadcast %297 : vector<16x1xf32> to vector<16x32xf32>
    %299 = arith.mulf %294, %298 : vector<16x32xf32>
    %300 = vector.broadcast %280 : vector<1x32xf32> to vector<16x32xf32>
    %301 = arith.mulf %299, %300 : vector<16x32xf32>
    %302 = vector.broadcast %281 : vector<1x32xf32> to vector<16x32xf32>
    %303 = arith.addf %301, %302 : vector<16x32xf32>
    %c1_96 = arith.constant 1 : index
    %c0_97 = arith.constant 0 : index
    %c0_98 = arith.constant 0 : index
    %304 = vector.load %arg4[%c1_96, %c0_97, %c0_98] : memref<2x32x2048xbf16, #tpu.memory_space<vmem>>, vector<1x32x2048xbf16>
    %305 = vector.shape_cast %304 : vector<1x32x2048xbf16> to vector<32x2048xbf16>
    %306 = arith.truncf %303 : vector<16x32xf32> to vector<16x32xbf16>
    %cst_99 = arith.constant dense<0.000000e+00> : vector<16x2048xf32>
    %307 = tpu.matmul %306, %305, %cst_99 {dimension_numbers = #tpu.dot_dimension_numbers<[1], [0], [0], [1], [0, 0, 1, 1], [], []>} : vector<16x32xbf16>, vector<32x2048xbf16>, vector<16x2048xf32> -> vector<16x2048xf32>
    %c1_100 = arith.constant 1 : index
    %c512_101 = arith.constant 512 : index
    %308 = vector.load %arg6[%c1_100, %c512_101] : memref<2x2944xf32, #tpu.memory_space<vmem>>, vector<1x2048xf32>
    %309 = vector.broadcast %308 : vector<1x2048xf32> to vector<16x2048xf32>
    %310 = arith.addf %307, %309 : vector<16x2048xf32>
    %cst_102 = arith.constant 0.000000e+00 : f32
    %311 = vector.broadcast %cst_102 : f32 to vector<16x2048xf32>
    %312 = arith.maximumf %310, %311 : vector<16x2048xf32>
    %c1_103 = arith.constant 1 : index
    %c0_104 = arith.constant 0 : index
    %c0_105 = arith.constant 0 : index
    %313 = vector.load %arg5[%c1_103, %c0_104, %c0_105] : memref<2x2048x32xbf16, #tpu.memory_space<vmem>>, vector<1x2048x32xbf16>
    %314 = vector.shape_cast %313 : vector<1x2048x32xbf16> to vector<2048x32xbf16>
    %315 = arith.truncf %312 : vector<16x2048xf32> to vector<16x2048xbf16>
    %cst_106 = arith.constant dense<0.000000e+00> : vector<16x32xf32>
    %316 = tpu.matmul %315, %314, %cst_106 {dimension_numbers = #tpu.dot_dimension_numbers<[1], [0], [0], [1], [0, 0, 1, 1], [], []>} : vector<16x2048xbf16>, vector<2048x32xbf16>, vector<16x32xf32> -> vector<16x32xf32>
    %c1_107 = arith.constant 1 : index
    %c2560_108 = arith.constant 2560 : index
    %317 = vector.load %arg6[%c1_107, %c2560_108] : memref<2x2944xf32, #tpu.memory_space<vmem>>, vector<1x32xf32>
    %318 = vector.broadcast %317 : vector<1x32xf32> to vector<16x32xf32>
    %319 = arith.addf %316, %318 : vector<16x32xf32>
    %320 = arith.addf %303, %319 : vector<16x32xf32>
    %c1_109 = arith.constant 1 : index
    %c2688_110 = arith.constant 2688 : index
    %321 = vector.load %arg6[%c1_109, %c2688_110] : memref<2x2944xf32, #tpu.memory_space<vmem>>, vector<1x32xf32>
    %c1_111 = arith.constant 1 : index
    %c2816_112 = arith.constant 2816 : index
    %322 = vector.load %arg6[%c1_111, %c2816_112] : memref<2x2944xf32, #tpu.memory_space<vmem>>, vector<1x32xf32>
    %cst_113 = arith.constant dense<0.000000e+00> : vector<16xf32>
    %323 = vector.multi_reduction <add>, %320, %cst_113 [1] : vector<16x32xf32> to vector<16xf32>
    %324 = vector.shape_cast %323 : vector<16xf32> to vector<16x1xf32>
    %cst_114 = arith.constant 3.200000e+01 : f32
    %325 = vector.broadcast %cst_114 : f32 to vector<16x1xf32>
    %326 = arith.divf %324, %325 : vector<16x1xf32>
    %327 = vector.broadcast %326 : vector<16x1xf32> to vector<16x32xf32>
    %328 = arith.subf %320, %327 : vector<16x32xf32>
    %329 = arith.mulf %328, %328 : vector<16x32xf32>
    %cst_115 = arith.constant dense<0.000000e+00> : vector<16xf32>
    %330 = vector.multi_reduction <add>, %329, %cst_115 [1] : vector<16x32xf32> to vector<16xf32>
    %331 = vector.shape_cast %330 : vector<16xf32> to vector<16x1xf32>
    %cst_116 = arith.constant 3.200000e+01 : f32
    %332 = vector.broadcast %cst_116 : f32 to vector<16x1xf32>
    %333 = arith.divf %331, %332 : vector<16x1xf32>
    %334 = vector.broadcast %326 : vector<16x1xf32> to vector<16x32xf32>
    %335 = arith.subf %320, %334 : vector<16x32xf32>
    %cst_117 = arith.constant 9.99999974E-6 : f32
    %336 = vector.broadcast %cst_117 : f32 to vector<16x1xf32>
    %337 = arith.addf %333, %336 : vector<16x1xf32>
    %338 = math.rsqrt %337 : vector<16x1xf32>
    %339 = vector.broadcast %338 : vector<16x1xf32> to vector<16x32xf32>
    %340 = arith.mulf %335, %339 : vector<16x32xf32>
    %341 = vector.broadcast %321 : vector<1x32xf32> to vector<16x32xf32>
    %342 = arith.mulf %340, %341 : vector<16x32xf32>
    %343 = vector.broadcast %322 : vector<1x32xf32> to vector<16x32xf32>
    %344 = arith.addf %342, %343 : vector<16x32xf32>
    %c0_118 = arith.constant 0 : index
    %c0_119 = arith.constant 0 : index
    %345 = vector.load %arg7[%c0_118, %c0_119] : memref<16x32xf32, #tpu.memory_space<vmem>>, vector<16x32xf32>
    tpu.vector_store %arg7[%c0_118, %c0_119], %344 {strides = array<i32>} : memref<16x32xf32, #tpu.memory_space<vmem>>, vector<16x32xf32>,
    return
  }
  func.func @transform_0(%arg0: i32) -> (i32, i32) {
    %c0_i32 = arith.constant 0 : i32
    %c0_i32_0 = arith.constant 0 : i32
    %c0_i32_1 = arith.constant 0 : i32
    return %c0_i32, %c0_i32_0 : i32, i32
  }
  func.func @transform_1(%arg0: i32) -> (i32, i32, i32) {
    %c0_i32 = arith.constant 0 : i32
    %c0_i32_0 = arith.constant 0 : i32
    %c0_i32_1 = arith.constant 0 : i32
    %c0_i32_2 = arith.constant 0 : i32
    return %c0_i32, %c0_i32_0, %c0_i32_1 : i32, i32, i32
  }
  func.func @transform_2(%arg0: i32) -> (i32, i32, i32) {
    %c0_i32 = arith.constant 0 : i32
    %c0_i32_0 = arith.constant 0 : i32
    %c0_i32_1 = arith.constant 0 : i32
    %c0_i32_2 = arith.constant 0 : i32
    return %c0_i32, %c0_i32_0, %c0_i32_1 : i32, i32, i32
  }
  func.func @transform_3(%arg0: i32) -> (i32, i32, i32) {
    %c0_i32 = arith.constant 0 : i32
    %c0_i32_0 = arith.constant 0 : i32
    %c0_i32_1 = arith.constant 0 : i32
    %c0_i32_2 = arith.constant 0 : i32
    return %c0_i32, %c0_i32_0, %c0_i32_1 : i32, i32, i32
  }
  func.func @transform_4(%arg0: i32) -> (i32, i32, i32) {
    %c0_i32 = arith.constant 0 : i32
    %c0_i32_0 = arith.constant 0 : i32
    %c0_i32_1 = arith.constant 0 : i32
    %c0_i32_2 = arith.constant 0 : i32
    return %c0_i32, %c0_i32_0, %c0_i32_1 : i32, i32, i32
  }
  func.func @transform_5(%arg0: i32) -> (i32, i32) {
    %c0_i32 = arith.constant 0 : i32
    %c0_i32_0 = arith.constant 0 : i32
    %c0_i32_1 = arith.constant 0 : i32
    return %c0_i32, %c0_i32_0 : i32, i32
  }
  func.func @transform_6(%arg0: i32) -> (i32, i32) {
    %c0_i32 = arith.constant 0 : i32
    %c0_i32_0 = arith.constant 0 : i32
    %c0_i32_1 = arith.constant 0 : i32
    return %c0_i32, %c0_i32_0 : i32, i32
  }
}

</mosaic_0001>

<llo_original>
// kernel: tpu_custom_call.1
$region0: #{tpu_custom_call.1}
  #allocation0 [shape = 'u32[]', space=smem, size = 0x4, offset = 0x4, fixed_abs, tag = 'smem constant byte address 0x4 - core index']
  #allocation1 [shape = 'u32[144,128]{1,0:T(1,128)}', space=vmem, size = 0x12000, scoped, tag = 'internal scratch']
  %s0 = inlined_call_operand.vmem [shape: f32[16,32], index: 0, kind: input, shape index: {}]
  %s1 = inlined_call_operand.vmem [shape: bf16[2,32,96], index: 1, kind: input, shape index: {}]
  %s2 = inlined_call_operand.vmem [shape: bf16[2,32,32], index: 2, kind: input, shape index: {}]
  %s3 = inlined_call_operand.vmem [shape: bf16[2,32,2048], index: 3, kind: input, shape index: {}]
  %s4 = inlined_call_operand.vmem [shape: bf16[2,2048,32], index: 4, kind: input, shape index: {}]
  %s5 = inlined_call_operand.vmem [shape: f32[2,2944], index: 5, kind: input, shape index: {}]
  %s6 = inlined_call_operand.hbm [shape: f32[16,32], index: 6, kind: output, shape index: {}]
  %s7 = sld [smem:[#allocation0]]
  $region34: #{tpu_custom_call.1} parent=0
    _
  %s9 = ssub.s32 1, %s7
  %s10 = scalar_select 0, %s9, %s7
  $region1: #{tpu_custom_call.1} parent=0
    #allocation2 [shape = 'u8[8192]{0}', space=vmem, size = 0x2000, scoped, tag = 'output window, operand 0, single buffered']
    #allocation3 [shape = 's32[1]{0}', space=sflag, size = 0x4, scoped, tag = 'scoped memory for tpu_custom_call.1']
    %11 = vsyncpa [#allocation3], 0
    // Predicated region
    $region2: #{tpu_custom_call.1} parent=1 // pred_check
      _
    $region3: #{tpu_custom_call.1} parent=1 // pred_check_branch
      %13 = sbr.rel (0) target = $region5
    $region4: #{tpu_custom_call.1} parent=1 // pred_region
      _
    $region5: #{tpu_custom_call.1} parent=1 // pred_fallthru
      _
    // Predicated region
    $region6: #{tpu_custom_call.1} parent=1 // pred_check
      _
    $region7: #{tpu_custom_call.1} parent=1 // pred_check_branch
      %15 = sbr.rel (0) target = $region9
    $region8: #{tpu_custom_call.1} parent=1 // pred_region
      _
    $region9: #{tpu_custom_call.1} parent=1 // pred_fallthru
      _
    // Predicated region
    $region10: #{tpu_custom_call.1} parent=1 // pred_check
      _
    $region11: #{tpu_custom_call.1} parent=1 // pred_check_branch
      %17 = sbr.rel (0) target = $region13
    $region12: #{tpu_custom_call.1} parent=1 // pred_region
      _
    $region13: #{tpu_custom_call.1} parent=1 // pred_fallthru
      _
    // Predicated region
    $region14: #{tpu_custom_call.1} parent=1 // pred_check
      _
    $region15: #{tpu_custom_call.1} parent=1 // pred_check_branch
      %19 = sbr.rel (0) target = $region17
    $region16: #{tpu_custom_call.1} parent=1 // pred_region
      _
    $region17: #{tpu_custom_call.1} parent=1 // pred_fallthru
      _
    // Predicated region
    $region18: #{tpu_custom_call.1} parent=1 // pred_check
      _
    $region19: #{tpu_custom_call.1} parent=1 // pred_check_branch
      %21 = sbr.rel (0) target = $region21
    $region20: #{tpu_custom_call.1} parent=1 // pred_region
      _
    $region21: #{tpu_custom_call.1} parent=1 // pred_fallthru
      _
    // Predicated region
    $region22: #{tpu_custom_call.1} parent=1 // pred_check
      _
    $region23: #{tpu_custom_call.1} parent=1 // pred_check_branch
      %23 = sbr.rel (0) target = $region25
    $region24: #{tpu_custom_call.1} parent=1 // pred_region
      _
    $region25: #{tpu_custom_call.1} parent=1 // pred_fallthru
      _
    %v25 = vld [vmem:[%s0] sm:$0xff]
    %v26 = vld [vmem:[%s0 + $0x8] sm:$0xff]
    %v27 = vld [vmem:[%s1] sm:$0xf]
    %v28 = vld [vmem:[%s1 + $0x4] sm:$0xf]
    %v29 = vld [vmem:[%s1 + $0x8] sm:$0xf]
    %v30 = vld [vmem:[%s1 + $0xc] sm:$0xf]
    %v31 = vpack.c.bf16 %v26, %v25
    %v32 = vld [vmem:[%s5] sm:$0x1]
    %v33 = vlaneseq
    %v34 = vshrl.u32 %v33, 7
    %v35 = vsub.s32 0, %v34
    %v36 = vrot.slane %v32, %v35
    %v41 = vunpack.c.l.b16 %v27
    %v42 = vunpack.c.l.b16 %v28
    %v43 = vunpack.c.l.b16 %v29
    %v44 = vunpack.c.l.b16 %v30
    %v45 = vpack.c.b16 %v42, %v41
    %v46 = vpack.c.b16 %v44, %v43
    %vm49 = vcmask 261120
    %v51 = vsel %vm49, %v31, 0
    %53 = vmatprep.subr.bf16.mxu0 0
    %54 = vmatpush1.bf16.msra.mxu0 0
    %55 = vmatprep.subr.bf16.mxu0 0
    %56 = vmatpush1.bf16.msra.mxu0 0
    %57 = vmatprep.subr.bf16.mxu0 0
    %58 = vmatpush1.bf16.msra.mxu0 0
    %59 = vmatprep.subr.bf16.mxu0 0
    %60 = vmatpush1.bf16.msra.mxu0 0
    %61 = vmatprep.subr.bf16.mxu0 0
    %62 = vmatpush1.bf16.msra.mxu0 0
    %63 = vmatprep.subr.bf16.mxu0 0
    %64 = vmatpush1.bf16.msra.mxu0 0
    %65 = vmatprep.subr.bf16.mxu0 0
    %66 = vmatpush1.bf16.msra.mxu0 %v46
    %67 = vmatprep.subr.bf16.mxu0 0
    %68 = vmatpush1.bf16.msra.mxu0 %v45
    %69 = vmatprep.subr.bf16.mxu0 0
    %70 = vmatpush2.bf16.msra.mxu0 0
    %71 = vmatprep.subr.bf16.mxu0 0
    %72 = vmatpush2.bf16.msra.mxu0 0
    %73 = vmatprep.subr.bf16.mxu0 0
    %74 = vmatpush2.bf16.msra.mxu0 0
    %75 = vmatprep.subr.bf16.mxu0 0
    %76 = vmatpush2.bf16.msra.mxu0 0
    %77 = vmatprep.subr.bf16.mxu0 0
    %78 = vmatpush2.bf16.msra.mxu0 0
    %79 = vmatprep.subr.bf16.mxu0 0
    %80 = vmatpush2.bf16.msra.mxu0 0
    %81 = vmatprep.subr.bf16.mxu0 0
    %82 = vmatpush2.bf16.msra.mxu0 0
    %83 = vmatprep.subr.bf16.mxu0 0
    %84 = vmatpush2.bf16.msra.mxu0 0
    %85 = vmatprep.mubr.bf16.mxu0 0
    %86 = vmatmul.mubr.bf16.gmra.mxu0 %v51
    %v87 = vpop.f32.mrf.mxu0
    %v88 = vadd.f32 %v36, %v87
    %v89 = vpop.f32.mrf.mxu0
    %v90 = vpop.f32.mrf.mxu0
    %v91 = vadd.f32 %v36, %v90
    %v92 = vpop.f32.mrf.mxu0
    %93 = vdwg.mxu0
    %v94 = vpack.c.bf16 %v88, %v88
    %v95 = vpack.c.bf16 %v91, %v91
    %97 = vrot.lane.b32.xlu0 %v94, 96
    %v98 = vpop.permute.xlu0 %97
    %vm99 = vcmask 64512
    %v101 = vsel %vm99, %v94, 0
    %v104 = vsel %vm99, %v98, 0
    %106 = vmatprep.subr.bf16.mxu0 0
    %107 = vmatpush1.bf16.xpose.msra.mxu0 0
    %108 = vmatprep.subr.bf16.mxu0 0
    %109 = vmatpush1.bf16.xpose.msra.mxu0 0
    %110 = vmatprep.subr.bf16.mxu0 0
    %111 = vmatpush1.bf16.xpose.msra.mxu0 0
    %112 = vmatprep.subr.bf16.mxu0 0
    %113 = vmatpush1.bf16.xpose.msra.mxu0 0
    %114 = vmatprep.subr.bf16.mxu0 0
    %115 = vmatpush1.bf16.xpose.msra.mxu0 0
    %116 = vmatprep.subr.bf16.mxu0 0
    %117 = vmatpush1.bf16.xpose.msra.mxu0 0
    %118 = vmatprep.subr.bf16.mxu0 0
    %119 = vmatpush1.bf16.xpose.msra.mxu0 0
    %120 = vmatprep.subr.bf16.mxu0 0
    %121 = vmatpush1.bf16.xpose.msra.mxu0 %v104
    %122 = vmatprep.subr.bf16.mxu0 0
    %123 = vmatpush2.bf16.xpose.msra.mxu0 0
    %124 = vmatprep.subr.bf16.mxu0 0
    %125 = vmatpush2.bf16.xpose.msra.mxu0 0
    %126 = vmatprep.subr.bf16.mxu0 0
    %127 = vmatpush2.bf16.xpose.msra.mxu0 0
    %128 = vmatprep.subr.bf16.mxu0 0
    %129 = vmatpush2.bf16.xpose.msra.mxu0 0
    %130 = vmatprep.subr.bf16.mxu0 0
    %131 = vmatpush2.bf16.xpose.msra.mxu0 0
    %132 = vmatprep.subr.bf16.mxu0 0
    %133 = vmatpush2.bf16.xpose.msra.mxu0 0
    %134 = vmatprep.subr.bf16.mxu0 0
    %135 = vmatpush2.bf16.xpose.msra.mxu0 0
    %136 = vmatprep.subr.bf16.mxu0 0
    %137 = vmatpush2.bf16.xpose.msra.mxu0 0
    %138 = vmatprep.mubr.bf16.mxu0 0
    %139 = vmatmul.mubr.bf16.gmra.mxu0 %v101
    %v140 = vpop.f32.mrf.mxu0
    %v141 = vadd.f32 0.0, %v140
    %v142 = vpop.f32.mrf.mxu0
    %v143 = vpop.f32.mrf.mxu0
    %v144 = vpop.f32.mrf.mxu0
    %145 = vdwg.mxu0
    %147 = vrot.lane.b32.xlu0 %v95, 96
    %v148 = vpop.permute.xlu0 %147
    %v150 = vsel %vm99, %v95, 0
    %v153 = vsel %vm99, %v148, 0
    %155 = vmatprep.subr.bf16.mxu0 0
    %156 = vmatpush1.bf16.xpose.msra.mxu0 0
    %157 = vmatprep.subr.bf16.mxu0 0
    %158 = vmatpush1.bf16.xpose.msra.mxu0 0
    %159 = vmatprep.subr.bf16.mxu0 0
    %160 = vmatpush1.bf16.xpose.msra.mxu0 0
    %161 = vmatprep.subr.bf16.mxu0 0
    %162 = vmatpush1.bf16.xpose.msra.mxu0 0
    %163 = vmatprep.subr.bf16.mxu0 0
    %164 = vmatpush1.bf16.xpose.msra.mxu0 0
    %165 = vmatprep.subr.bf16.mxu0 0
    %166 = vmatpush1.bf16.xpose.msra.mxu0 0
    %167 = vmatprep.subr.bf16.mxu0 0
    %168 = vmatpush1.bf16.xpose.msra.mxu0 0
    %169 = vmatprep.subr.bf16.mxu0 0
    %170 = vmatpush1.bf16.xpose.msra.mxu0 %v153
    %171 = vmatprep.subr.bf16.mxu0 0
    %172 = vmatpush2.bf16.xpose.msra.mxu0 0
    %173 = vmatprep.subr.bf16.mxu0 0
    %174 = vmatpush2.bf16.xpose.msra.mxu0 0
    %175 = vmatprep.subr.bf16.mxu0 0
    %176 = vmatpush2.bf16.xpose.msra.mxu0 0
    %177 = vmatprep.subr.bf16.mxu0 0
    %178 = vmatpush2.bf16.xpose.msra.mxu0 0
    %179 = vmatprep.subr.bf16.mxu0 0
    %180 = vmatpush2.bf16.xpose.msra.mxu0 0
    %181 = vmatprep.subr.bf16.mxu0 0
    %182 = vmatpush2.bf16.xpose.msra.mxu0 0
    %183 = vmatprep.subr.bf16.mxu0 0
    %184 = vmatpush2.bf16.xpose.msra.mxu0 0
    %185 = vmatprep.subr.bf16.mxu0 0
    %186 = vmatpush2.bf16.xpose.msra.mxu0 0
    %187 = vmatprep.mubr.bf16.mxu0 0
    %188 = vmatmul.mubr.bf16.gmra.mxu0 %v150
    %v189 = vpop.f32.mrf.mxu0
    %v190 = vadd.f32 0.0, %v189
    %v191 = vpop.f32.mrf.mxu0
    %v192 = vpop.f32.mrf.mxu0
    %v193 = vpop.f32.mrf.mxu0
    %194 = vdwg.mxu0
    %v195 = vmul.f32 %v141, 0.35355338
    %v196 = vmul.f32 %v190, 0.35355338
    %v197 = vsel %vm99, %v195, -inf
    %198 = vmax.xlane.f32.xlu0 %v197
    %v199 = vpop.xlane.xlu0 %198
    %v200 = vsel %vm99, %v196, -inf
    %201 = vmax.xlane.f32.xlu0 %v200
    %v202 = vpop.xlane.xlu0 %201
    %v203 = vsub.f32 %v195, %v199
    %v204 = vsub.f32 %v196, %v202
    %v205 = vmul.f32 %v203, 1.442695
    %v206 = vpow.pop %v205
    %v207 = vmul.f32 %v204, 1.442695
    %v208 = vpow.pop %v207
    %v209 = vsel %vm99, %v206, 0.0
    %210 = vadd.xlane.f32.xlu0 %v209
    %v211 = vpop.xlane.xlu0 %210
    %v212 = vsel %vm99, %v208, 0.0
    %213 = vadd.xlane.f32.xlu0 %v212
    %v214 = vpop.xlane.xlu0 %213
    %v215 = vrcp.pop %v211
    %v216 = vrcp.pop %v214
    %v217 = vmul.f32 %v206, %v215
    %v218 = vmul.f32 %v208, %v216
    %v219 = vpack.c.bf16 %v217, %v217
    %v220 = vpack.c.bf16 %v218, %v218
    %221 = vrot.lane.b32.xlu0 %v94, 64
    %v222 = vpop.permute.xlu0 %221
    %v224 = vsel %vm99, %v219, 0
    %vm226 = vcmask 1043456
    %v228 = vsel %vm226, %v222, 0
    %230 = vmatprep.subr.bf16.mxu0 0
    %231 = vmatpush1.bf16.msra.mxu0 0
    %232 = vmatprep.subr.bf16.mxu0 0
    %233 = vmatpush1.bf16.msra.mxu0 0
    %234 = vmatprep.subr.bf16.mxu0 0
    %235 = vmatpush1.bf16.msra.mxu0 0
    %236 = vmatprep.subr.bf16.mxu0 0
    %237 = vmatpush1.bf16.msra.mxu0 0
    %238 = vmatprep.subr.bf16.mxu0 0
    %239 = vmatpush1.bf16.msra.mxu0 0
    %240 = vmatprep.subr.bf16.mxu0 0
    %241 = vmatpush1.bf16.msra.mxu0 0
    %242 = vmatprep.subr.bf16.mxu0 0
    %243 = vmatpush1.bf16.msra.mxu0 0
    %244 = vmatprep.subr.bf16.mxu0 0
    %245 = vmatpush1.bf16.msra.mxu0 %v228
    %246 = vmatprep.subr.bf16.mxu0 0
    %247 = vmatpush2.bf16.msra.mxu0 0
    %248 = vmatprep.subr.bf16.mxu0 0
    %249 = vmatpush2.bf16.msra.mxu0 0
    %250 = vmatprep.subr.bf16.mxu0 0
    %251 = vmatpush2.bf16.msra.mxu0 0
    %252 = vmatprep.subr.bf16.mxu0 0
    %253 = vmatpush2.bf16.msra.mxu0 0
    %254 = vmatprep.subr.bf16.mxu0 0
    %255 = vmatpush2.bf16.msra.mxu0 0
    %256 = vmatprep.subr.bf16.mxu0 0
    %257 = vmatpush2.bf16.msra.mxu0 0
    %258 = vmatprep.subr.bf16.mxu0 0
    %259 = vmatpush2.bf16.msra.mxu0 0
    %260 = vmatprep.subr.bf16.mxu0 0
    %261 = vmatpush2.bf16.msra.mxu0 0
    %262 = vmatprep.mubr.bf16.mxu0 0
    %263 = vmatmul.mubr.bf16.gmra.mxu0 %v224
    %v264 = vpop.f32.mrf.mxu0
    %v265 = vadd.f32 0.0, %v264
    %v266 = vpop.f32.mrf.mxu0
    %v267 = vpop.f32.mrf.mxu0
    %v268 = vpop.f32.mrf.mxu0
    %269 = vdwg.mxu0
    %270 = vrot.lane.b32.xlu0 %v95, 64
    %v271 = vpop.permute.xlu0 %270
    %v273 = vsel %vm99, %v220, 0
    %v276 = vsel %vm226, %v271, 0
    %278 = vmatprep.subr.bf16.mxu0 0
    %279 = vmatpush1.bf16.msra.mxu0 0
    %280 = vmatprep.subr.bf16.mxu0 0
    %281 = vmatpush1.bf16.msra.mxu0 0
    %282 = vmatprep.subr.bf16.mxu0 0
    %283 = vmatpush1.bf16.msra.mxu0 0
    %284 = vmatprep.subr.bf16.mxu0 0
    %285 = vmatpush1.bf16.msra.mxu0 0
    %286 = vmatprep.subr.bf16.mxu0 0
    %287 = vmatpush1.bf16.msra.mxu0 0
    %288 = vmatprep.subr.bf16.mxu0 0
    %289 = vmatpush1.bf16.msra.mxu0 0
    %290 = vmatprep.subr.bf16.mxu0 0
    %291 = vmatpush1.bf16.msra.mxu0 0
    %292 = vmatprep.subr.bf16.mxu0 0
    %293 = vmatpush1.bf16.msra.mxu0 %v276
    %294 = vmatprep.subr.bf16.mxu0 0
    %295 = vmatpush2.bf16.msra.mxu0 0
    %296 = vmatprep.subr.bf16.mxu0 0
    %297 = vmatpush2.bf16.msra.mxu0 0
    %298 = vmatprep.subr.bf16.mxu0 0
    %299 = vmatpush2.bf16.msra.mxu0 0
    %300 = vmatprep.subr.bf16.mxu0 0
    %301 = vmatpush2.bf16.msra.mxu0 0
    %302 = vmatprep.subr.bf16.mxu0 0
    %303 = vmatpush2.bf16.msra.mxu0 0
    %304 = vmatprep.subr.bf16.mxu0 0
    %305 = vmatpush2.bf16.msra.mxu0 0
    %306 = vmatprep.subr.bf16.mxu0 0
    %307 = vmatpush2.bf16.msra.mxu0 0
    %308 = vmatprep.subr.bf16.mxu0 0
    %309 = vmatpush2.bf16.msra.mxu0 0
    %310 = vmatprep.mubr.bf16.mxu0 0
    %311 = vmatmul.mubr.bf16.gmra.mxu0 %v273
    %v312 = vpop.f32.mrf.mxu0
    %v313 = vadd.f32 0.0, %v312
    %v314 = vpop.f32.mrf.mxu0
    %v315 = vpop.f32.mrf.mxu0
    %v316 = vpop.f32.mrf.mxu0
    %317 = vdwg.mxu0
    %318 = vrot.lane.b32.xlu0 %v94, 120
    %v319 = vpop.permute.xlu0 %318
    %320 = vrot.lane.b32.xlu0 %v94, 88
    %v321 = vpop.permute.xlu0 %320
    %v323 = vsel %vm99, %v319, 0
    %v326 = vsel %vm99, %v321, 0
    %328 = vmatprep.subr.bf16.mxu0 0
    %329 = vmatpush1.bf16.xpose.msra.mxu0 0
    %330 = vmatprep.subr.bf16.mxu0 0
    %331 = vmatpush1.bf16.xpose.msra.mxu0 0
    %332 = vmatprep.subr.bf16.mxu0 0
    %333 = vmatpush1.bf16.xpose.msra.mxu0 0
    %334 = vmatprep.subr.bf16.mxu0 0
    %335 = vmatpush1.bf16.xpose.msra.mxu0 0
    %336 = vmatprep.subr.bf16.mxu0 0
    %337 = vmatpush1.bf16.xpose.msra.mxu0 0
    %338 = vmatprep.subr.bf16.mxu0 0
    %339 = vmatpush1.bf16.xpose.msra.mxu0 0
    %340 = vmatprep.subr.bf16.mxu0 0
    %341 = vmatpush1.bf16.xpose.msra.mxu0 0
    %342 = vmatprep.subr.bf16.mxu0 0
    %343 = vmatpush1.bf16.xpose.msra.mxu0 %v326
    %344 = vmatprep.subr.bf16.mxu0 0
    %345 = vmatpush2.bf16.xpose.msra.mxu0 0
    %346 = vmatprep.subr.bf16.mxu0 0
    %347 = vmatpush2.bf16.xpose.msra.mxu0 0
    %348 = vmatprep.subr.bf16.mxu0 0
    %349 = vmatpush2.bf16.xpose.msra.mxu0 0
    %350 = vmatprep.subr.bf16.mxu0 0
    %351 = vmatpush2.bf16.xpose.msra.mxu0 0
    %352 = vmatprep.subr.bf16.mxu0 0
    %353 = vmatpush2.bf16.xpose.msra.mxu0 0
    %354 = vmatprep.subr.bf16.mxu0 0
    %355 = vmatpush2.bf16.xpose.msra.mxu0 0
    %356 = vmatprep.subr.bf16.mxu0 0
    %357 = vmatpush2.bf16.xpose.msra.mxu0 0
    %358 = vmatprep.subr.bf16.mxu0 0
    %359 = vmatpush2.bf16.xpose.msra.mxu0 0
    %360 = vmatprep.mubr.bf16.mxu0 0
    %361 = vmatmul.mubr.bf16.gmra.mxu0 %v323
    %v362 = vpop.f32.mrf.mxu0
    %v363 = vadd.f32 0.0, %v362
    %v364 = vpop.f32.mrf.mxu0
    %v365 = vpop.f32.mrf.mxu0
    %v366 = vpop.f32.mrf.mxu0
    %367 = vdwg.mxu0
    %368 = vrot.lane.b32.xlu0 %v95, 120
    %v369 = vpop.permute.xlu0 %368
    %370 = vrot.lane.b32.xlu0 %v95, 88
    %v371 = vpop.permute.xlu0 %370
    %v373 = vsel %vm99, %v369, 0
    %v376 = vsel %vm99, %v371, 0
    %378 = vmatprep.subr.bf16.mxu0 0
    %379 = vmatpush1.bf16.xpose.msra.mxu0 0
    %380 = vmatprep.subr.bf16.mxu0 0
    %381 = vmatpush1.bf16.xpose.msra.mxu0 0
    %382 = vmatprep.subr.bf16.mxu0 0
    %383 = vmatpush1.bf16.xpose.msra.mxu0 0
    %384 = vmatprep.subr.bf16.mxu0 0
    %385 = vmatpush1.bf16.xpose.msra.mxu0 0
    %386 = vmatprep.subr.bf16.mxu0 0
    %387 = vmatpush1.bf16.xpose.msra.mxu0 0
    %388 = vmatprep.subr.bf16.mxu0 0
    %389 = vmatpush1.bf16.xpose.msra.mxu0 0
    %390 = vmatprep.subr.bf16.mxu0 0
    %391 = vmatpush1.bf16.xpose.msra.mxu0 0
    %392 = vmatprep.subr.bf16.mxu0 0
    %393 = vmatpush1.bf16.xpose.msra.mxu0 %v376
    %394 = vmatprep.subr.bf16.mxu0 0
    %395 = vmatpush2.bf16.xpose.msra.mxu0 0
    %396 = vmatprep.subr.bf16.mxu0 0
    %397 = vmatpush2.bf16.xpose.msra.mxu0 0
    %398 = vmatprep.subr.bf16.mxu0 0
    %399 = vmatpush2.bf16.xpose.msra.mxu0 0
    %400 = vmatprep.subr.bf16.mxu0 0
    %401 = vmatpush2.bf16.xpose.msra.mxu0 0
    %402 = vmatprep.subr.bf16.mxu0 0
    %403 = vmatpush2.bf16.xpose.msra.mxu0 0
    %404 = vmatprep.subr.bf16.mxu0 0
    %405 = vmatpush2.bf16.xpose.msra.mxu0 0
    %406 = vmatprep.subr.bf16.mxu0 0
    %407 = vmatpush2.bf16.xpose.msra.mxu0 0
    %408 = vmatprep.subr.bf16.mxu0 0
    %409 = vmatpush2.bf16.xpose.msra.mxu0 0
    %410 = vmatprep.mubr.bf16.mxu0 0
    %411 = vmatmul.mubr.bf16.gmra.mxu0 %v373
    %v412 = vpop.f32.mrf.mxu0
    %v413 = vadd.f32 0.0, %v412
    %v414 = vpop.f32.mrf.mxu0
    %v415 = vpop.f32.mrf.mxu0
    %v416 = vpop.f32.mrf.mxu0
    %417 = vdwg.mxu0
    %v418 = vmul.f32 %v363, 0.35355338
    %v419 = vmul.f32 %v413, 0.35355338
    %v420 = vsel %vm99, %v418, -inf
    %421 = vmax.xlane.f32.xlu0 %v420
    %v422 = vpop.xlane.xlu0 %421
    %v423 = vsel %vm99, %v419, -inf
    %424 = vmax.xlane.f32.xlu0 %v423
    %v425 = vpop.xlane.xlu0 %424
    %v426 = vsub.f32 %v418, %v422
    %v427 = vsub.f32 %v419, %v425
    %v428 = vmul.f32 %v426, 1.442695
    %v429 = vpow.pop %v428
    %v430 = vmul.f32 %v427, 1.442695
    %v431 = vpow.pop %v430
    %v432 = vsel %vm99, %v429, 0.0
    %433 = vadd.xlane.f32.xlu0 %v432
    %v434 = vpop.xlane.xlu0 %433
    %v435 = vsel %vm99, %v431, 0.0
    %436 = vadd.xlane.f32.xlu0 %v435
    %v437 = vpop.xlane.xlu0 %436
    %v438 = vrcp.pop %v434
    %v439 = vrcp.pop %v437
    %v440 = vmul.f32 %v429, %v438
    %v441 = vmul.f32 %v431, %v439
    %v442 = vpack.c.bf16 %v440, %v440
    %v443 = vpack.c.bf16 %v441, %v441
    %444 = vrot.lane.b32.xlu0 %v94, 56
    %v445 = vpop.permute.xlu0 %444
    %v447 = vsel %vm99, %v442, 0
    %v450 = vsel %vm226, %v445, 0
    %452 = vmatprep.subr.bf16.mxu0 0
    %453 = vmatpush1.bf16.msra.mxu0 0
    %454 = vmatprep.subr.bf16.mxu0 0
    %455 = vmatpush1.bf16.msra.mxu0 0
    %456 = vmatprep.subr.bf16.mxu0 0
    %457 = vmatpush1.bf16.msra.mxu0 0
    %458 = vmatprep.subr.bf16.mxu0 0
    %459 = vmatpush1.bf16.msra.mxu0 0
    %460 = vmatprep.subr.bf16.mxu0 0
    %461 = vmatpush1.bf16.msra.mxu0 0
    %462 = vmatprep.subr.bf16.mxu0 0
    %463 = vmatpush1.bf16.msra.mxu0 0
    %464 = vmatprep.subr.bf16.mxu0 0
    %465 = vmatpush1.bf16.msra.mxu0 0
    %466 = vmatprep.subr.bf16.mxu0 0
    %467 = vmatpush1.bf16.msra.mxu0 %v450
    %468 = vmatprep.subr.bf16.mxu0 0
    %469 = vmatpush2.bf16.msra.mxu0 0
    %470 = vmatprep.subr.bf16.mxu0 0
    %471 = vmatpush2.bf16.msra.mxu0 0
    %472 = vmatprep.subr.bf16.mxu0 0
    %473 = vmatpush2.bf16.msra.mxu0 0
    %474 = vmatprep.subr.bf16.mxu0 0
    %475 = vmatpush2.bf16.msra.mxu0 0
    %476 = vmatprep.subr.bf16.mxu0 0
    %477 = vmatpush2.bf16.msra.mxu0 0
    %478 = vmatprep.subr.bf16.mxu0 0
    %479 = vmatpush2.bf16.msra.mxu0 0
    %480 = vmatprep.subr.bf16.mxu0 0
    %481 = vmatpush2.bf16.msra.mxu0 0
    %482 = vmatprep.subr.bf16.mxu0 0
    %483 = vmatpush2.bf16.msra.mxu0 0
    %484 = vmatprep.mubr.bf16.mxu0 0
    %485 = vmatmul.mubr.bf16.gmra.mxu0 %v447
    %v486 = vpop.f32.mrf.mxu0
    %v487 = vadd.f32 0.0, %v486
    %v488 = vpop.f32.mrf.mxu0
    %v489 = vpop.f32.mrf.mxu0
    %v490 = vpop.f32.mrf.mxu0
    %491 = vdwg.mxu0
    %492 = vrot.lane.b32.xlu0 %v95, 56
    %v493 = vpop.permute.xlu0 %492
    %v495 = vsel %vm99, %v443, 0
    %v498 = vsel %vm226, %v493, 0
    %500 = vmatprep.subr.bf16.mxu0 0
    %501 = vmatpush1.bf16.msra.mxu0 0
    %502 = vmatprep.subr.bf16.mxu0 0
    %503 = vmatpush1.bf16.msra.mxu0 0
    %504 = vmatprep.subr.bf16.mxu0 0
    %505 = vmatpush1.bf16.msra.mxu0 0
    %506 = vmatprep.subr.bf16.mxu0 0
    %507 = vmatpush1.bf16.msra.mxu0 0
    %508 = vmatprep.subr.bf16.mxu0 0
    %509 = vmatpush1.bf16.msra.mxu0 0
    %510 = vmatprep.subr.bf16.mxu0 0
    %511 = vmatpush1.bf16.msra.mxu0 0
    %512 = vmatprep.subr.bf16.mxu0 0
    %513 = vmatpush1.bf16.msra.mxu0 0
    %514 = vmatprep.subr.bf16.mxu0 0
    %515 = vmatpush1.bf16.msra.mxu0 %v498
    %516 = vmatprep.subr.bf16.mxu0 0
    %517 = vmatpush2.bf16.msra.mxu0 0
    %518 = vmatprep.subr.bf16.mxu0 0
    %519 = vmatpush2.bf16.msra.mxu0 0
    %520 = vmatprep.subr.bf16.mxu0 0
    %521 = vmatpush2.bf16.msra.mxu0 0
    %522 = vmatprep.subr.bf16.mxu0 0
    %523 = vmatpush2.bf16.msra.mxu0 0
    %524 = vmatprep.subr.bf16.mxu0 0
    %525 = vmatpush2.bf16.msra.mxu0 0
    %526 = vmatprep.subr.bf16.mxu0 0
    %527 = vmatpush2.bf16.msra.mxu0 0
    %528 = vmatprep.subr.bf16.mxu0 0
    %529 = vmatpush2.bf16.msra.mxu0 0
    %530 = vmatprep.subr.bf16.mxu0 0
    %531 = vmatpush2.bf16.msra.mxu0 0
    %532 = vmatprep.mubr.bf16.mxu0 0
    %533 = vmatmul.mubr.bf16.gmra.mxu0 %v495
    %v534 = vpop.f32.mrf.mxu0
    %v535 = vadd.f32 0.0, %v534
    %v536 = vpop.f32.mrf.mxu0
    %v537 = vpop.f32.mrf.mxu0
    %v538 = vpop.f32.mrf.mxu0
    %539 = vdwg.mxu0
    %540 = vrot.lane.b32.xlu0 %v94, 112
    %v541 = vpop.permute.xlu0 %540
    %542 = vrot.lane.b32.xlu0 %v94, 80
    %v543 = vpop.permute.xlu0 %542
    %v545 = vsel %vm99, %v541, 0
    %v548 = vsel %vm99, %v543, 0
    %550 = vmatprep.subr.bf16.mxu0 0
    %551 = vmatpush1.bf16.xpose.msra.mxu0 0
    %552 = vmatprep.subr.bf16.mxu0 0
    %553 = vmatpush1.bf16.xpose.msra.mxu0 0
    %554 = vmatprep.subr.bf16.mxu0 0
    %555 = vmatpush1.bf16.xpose.msra.mxu0 0
    %556 = vmatprep.subr.bf16.mxu0 0
    %557 = vmatpush1.bf16.xpose.msra.mxu0 0
    %558 = vmatprep.subr.bf16.mxu0 0
    %559 = vmatpush1.bf16.xpose.msra.mxu0 0
    %560 = vmatprep.subr.bf16.mxu0 0
    %561 = vmatpush1.bf16.xpose.msra.mxu0 0
    %562 = vmatprep.subr.bf16.mxu0 0
    %563 = vmatpush1.bf16.xpose.msra.mxu0 0
    %564 = vmatprep.subr.bf16.mxu0 0
    %565 = vmatpush1.bf16.xpose.msra.mxu0 %v548
    %566 = vmatprep.subr.bf16.mxu0 0
    %567 = vmatpush2.bf16.xpose.msra.mxu0 0
    %568 = vmatprep.subr.bf16.mxu0 0
    %569 = vmatpush2.bf16.xpose.msra.mxu0 0
    %570 = vmatprep.subr.bf16.mxu0 0
    %571 = vmatpush2.bf16.xpose.msra.mxu0 0
    %572 = vmatprep.subr.bf16.mxu0 0
    %573 = vmatpush2.bf16.xpose.msra.mxu0 0
    %574 = vmatprep.subr.bf16.mxu0 0
    %575 = vmatpush2.bf16.xpose.msra.mxu0 0
    %576 = vmatprep.subr.bf16.mxu0 0
    %577 = vmatpush2.bf16.xpose.msra.mxu0 0
    %578 = vmatprep.subr.bf16.mxu0 0
    %579 = vmatpush2.bf16.xpose.msra.mxu0 0
    %580 = vmatprep.subr.bf16.mxu0 0
    %581 = vmatpush2.bf16.xpose.msra.mxu0 0
    %582 = vmatprep.mubr.bf16.mxu0 0
    %583 = vmatmul.mubr.bf16.gmra.mxu0 %v545
    %v584 = vpop.f32.mrf.mxu0
    %v585 = vadd.f32 0.0, %v584
    %v586 = vpop.f32.mrf.mxu0
    %v587 = vpop.f32.mrf.mxu0
    %v588 = vpop.f32.mrf.mxu0
    %589 = vdwg.mxu0
    %590 = vrot.lane.b32.xlu0 %v95, 112
    %v591 = vpop.permute.xlu0 %590
    %592 = vrot.lane.b32.xlu0 %v95, 80
    %v593 = vpop.permute.xlu0 %592
    %v595 = vsel %vm99, %v591, 0
    %v598 = vsel %vm99, %v593, 0
    %600 = vmatprep.subr.bf16.mxu0 0
    %601 = vmatpush1.bf16.xpose.msra.mxu0 0
    %602 = vmatprep.subr.bf16.mxu0 0
    %603 = vmatpush1.bf16.xpose.msra.mxu0 0
    %604 = vmatprep.subr.bf16.mxu0 0
    %605 = vmatpush1.bf16.xpose.msra.mxu0 0
    %606 = vmatprep.subr.bf16.mxu0 0
    %607 = vmatpush1.bf16.xpose.msra.mxu0 0
    %608 = vmatprep.subr.bf16.mxu0 0
    %609 = vmatpush1.bf16.xpose.msra.mxu0 0
    %610 = vmatprep.subr.bf16.mxu0 0
    %611 = vmatpush1.bf16.xpose.msra.mxu0 0
    %612 = vmatprep.subr.bf16.mxu0 0
    %613 = vmatpush1.bf16.xpose.msra.mxu0 0
    %614 = vmatprep.subr.bf16.mxu0 0
    %615 = vmatpush1.bf16.xpose.msra.mxu0 %v598
    %616 = vmatprep.subr.bf16.mxu0 0
    %617 = vmatpush2.bf16.xpose.msra.mxu0 0
    %618 = vmatprep.subr.bf16.mxu0 0
    %619 = vmatpush2.bf16.xpose.msra.mxu0 0
    %620 = vmatprep.subr.bf16.mxu0 0
    %621 = vmatpush2.bf16.xpose.msra.mxu0 0
    %622 = vmatprep.subr.bf16.mxu0 0
    %623 = vmatpush2.bf16.xpose.msra.mxu0 0
    %624 = vmatprep.subr.bf16.mxu0 0
    %625 = vmatpush2.bf16.xpose.msra.mxu0 0
    %626 = vmatprep.subr.bf16.mxu0 0
    %627 = vmatpush2.bf16.xpose.msra.mxu0 0
    %628 = vmatprep.subr.bf16.mxu0 0
    %629 = vmatpush2.bf16.xpose.msra.mxu0 0
    %630 = vmatprep.subr.bf16.mxu0 0
    %631 = vmatpush2.bf16.xpose.msra.mxu0 0
    %632 = vmatprep.mubr.bf16.mxu0 0
    %633 = vmatmul.mubr.bf16.gmra.mxu0 %v595
    %v634 = vpop.f32.mrf.mxu0
    %v635 = vadd.f32 0.0, %v634
    %v636 = vpop.f32.mrf.mxu0
    %v637 = vpop.f32.mrf.mxu0
    %v638 = vpop.f32.mrf.mxu0
    %639 = vdwg.mxu0
    %v640 = vmul.f32 %v585, 0.35355338
    %v641 = vmul.f32 %v635, 0.35355338
    %v642 = vsel %vm99, %v640, -inf
    %643 = vmax.xlane.f32.xlu0 %v642
    %v644 = vpop.xlane.xlu0 %643
    %v645 = vsel %vm99, %v641, -inf
    %646 = vmax.xlane.f32.xlu0 %v645
    %v647 = vpop.xlane.xlu0 %646
    %v648 = vsub.f32 %v640, %v644
    %v649 = vsub.f32 %v641, %v647
    %v650 = vmul.f32 %v648, 1.442695
    %v651 = vpow.pop %v650
    %v652 = vmul.f32 %v649, 1.442695
    %v653 = vpow.pop %v652
    %v654 = vsel %vm99, %v651, 0.0
    %655 = vadd.xlane.f32.xlu0 %v654
    %v656 = vpop.xlane.xlu0 %655
    %v657 = vsel %vm99, %v653, 0.0
    %658 = vadd.xlane.f32.xlu0 %v657
    %v659 = vpop.xlane.xlu0 %658
    %v660 = vrcp.pop %v656
    %v661 = vrcp.pop %v659
    %v662 = vmul.f32 %v651, %v660
    %v663 = vmul.f32 %v653, %v661
    %v664 = vpack.c.bf16 %v662, %v662
    %v665 = vpack.c.bf16 %v663, %v663
    %666 = vrot.lane.b32.xlu0 %v94, 48
    %v667 = vpop.permute.xlu0 %666
    %v669 = vsel %vm99, %v664, 0
    %v672 = vsel %vm226, %v667, 0
    %674 = vmatprep.subr.bf16.mxu0 0
    %675 = vmatpush1.bf16.msra.mxu0 0
    %676 = vmatprep.subr.bf16.mxu0 0
    %677 = vmatpush1.bf16.msra.mxu0 0
    %678 = vmatprep.subr.bf16.mxu0 0
    %679 = vmatpush1.bf16.msra.mxu0 0
    %680 = vmatprep.subr.bf16.mxu0 0
    %681 = vmatpush1.bf16.msra.mxu0 0
    %682 = vmatprep.subr.bf16.mxu0 0
    %683 = vmatpush1.bf16.msra.mxu0 0
    %684 = vmatprep.subr.bf16.mxu0 0
    %685 = vmatpush1.bf16.msra.mxu0 0
    %686 = vmatprep.subr.bf16.mxu0 0
    %687 = vmatpush1.bf16.msra.mxu0 0
    %688 = vmatprep.subr.bf16.mxu0 0
    %689 = vmatpush1.bf16.msra.mxu0 %v672
    %690 = vmatprep.subr.bf16.mxu0 0
    %691 = vmatpush2.bf16.msra.mxu0 0
    %692 = vmatprep.subr.bf16.mxu0 0
    %693 = vmatpush2.bf16.msra.mxu0 0
    %694 = vmatprep.subr.bf16.mxu0 0
    %695 = vmatpush2.bf16.msra.mxu0 0
    %696 = vmatprep.subr.bf16.mxu0 0
    %697 = vmatpush2.bf16.msra.mxu0 0
    %698 = vmatprep.subr.bf16.mxu0 0
    %699 = vmatpush2.bf16.msra.mxu0 0
    %700 = vmatprep.subr.bf16.mxu0 0
    %701 = vmatpush2.bf16.msra.mxu0 0
    %702 = vmatprep.subr.bf16.mxu0 0
    %703 = vmatpush2.bf16.msra.mxu0 0
    %704 = vmatprep.subr.bf16.mxu0 0
    %705 = vmatpush2.bf16.msra.mxu0 0
    %706 = vmatprep.mubr.bf16.mxu0 0
    %707 = vmatmul.mubr.bf16.gmra.mxu0 %v669
    %v708 = vpop.f32.mrf.mxu0
    %v709 = vadd.f32 0.0, %v708
    %v710 = vpop.f32.mrf.mxu0
    %v711 = vpop.f32.mrf.mxu0
    %v712 = vpop.f32.mrf.mxu0
    %713 = vdwg.mxu0
    %714 = vrot.lane.b32.xlu0 %v95, 48
    %v715 = vpop.permute.xlu0 %714
    %v717 = vsel %vm99, %v665, 0
    %v720 = vsel %vm226, %v715, 0
    %722 = vmatprep.subr.bf16.mxu0 0
    %723 = vmatpush1.bf16.msra.mxu0 0
    %724 = vmatprep.subr.bf16.mxu0 0
    %725 = vmatpush1.bf16.msra.mxu0 0
    %726 = vmatprep.subr.bf16.mxu0 0
    %727 = vmatpush1.bf16.msra.mxu0 0
    %728 = vmatprep.subr.bf16.mxu0 0
    %729 = vmatpush1.bf16.msra.mxu0 0
    %730 = vmatprep.subr.bf16.mxu0 0
    %731 = vmatpush1.bf16.msra.mxu0 0
    %732 = vmatprep.subr.bf16.mxu0 0
    %733 = vmatpush1.bf16.msra.mxu0 0
    %734 = vmatprep.subr.bf16.mxu0 0
    %735 = vmatpush1.bf16.msra.mxu0 0
    %736 = vmatprep.subr.bf16.mxu0 0
    %737 = vmatpush1.bf16.msra.mxu0 %v720
    %738 = vmatprep.subr.bf16.mxu0 0
    %739 = vmatpush2.bf16.msra.mxu0 0
    %740 = vmatprep.subr.bf16.mxu0 0
    %741 = vmatpush2.bf16.msra.mxu0 0
    %742 = vmatprep.subr.bf16.mxu0 0
    %743 = vmatpush2.bf16.msra.mxu0 0
    %744 = vmatprep.subr.bf16.mxu0 0
    %745 = vmatpush2.bf16.msra.mxu0 0
    %746 = vmatprep.subr.bf16.mxu0 0
    %747 = vmatpush2.bf16.msra.mxu0 0
    %748 = vmatprep.subr.bf16.mxu0 0
    %749 = vmatpush2.bf16.msra.mxu0 0
    %750 = vmatprep.subr.bf16.mxu0 0
    %751 = vmatpush2.bf16.msra.mxu0 0
    %752 = vmatprep.subr.bf16.mxu0 0
    %753 = vmatpush2.bf16.msra.mxu0 0
    %754 = vmatprep.mubr.bf16.mxu0 0
    %755 = vmatmul.mubr.bf16.gmra.mxu0 %v717
    %v756 = vpop.f32.mrf.mxu0
    %v757 = vadd.f32 0.0, %v756
    %v758 = vpop.f32.mrf.mxu0
    %v759 = vpop.f32.mrf.mxu0
    %v760 = vpop.f32.mrf.mxu0
    %761 = vdwg.mxu0
    %762 = vrot.lane.b32.xlu0 %v94, 104
    %v763 = vpop.permute.xlu0 %762
    %764 = vrot.lane.b32.xlu0 %v94, 72
    %v765 = vpop.permute.xlu0 %764
    %v767 = vsel %vm99, %v763, 0
    %v770 = vsel %vm99, %v765, 0
    %772 = vmatprep.subr.bf16.mxu0 0
    %773 = vmatpush1.bf16.xpose.msra.mxu0 0
    %774 = vmatprep.subr.bf16.mxu0 0
    %775 = vmatpush1.bf16.xpose.msra.mxu0 0
    %776 = vmatprep.subr.bf16.mxu0 0
    %777 = vmatpush1.bf16.xpose.msra.mxu0 0
    %778 = vmatprep.subr.bf16.mxu0 0
    %779 = vmatpush1.bf16.xpose.msra.mxu0 0
    %780 = vmatprep.subr.bf16.mxu0 0
    %781 = vmatpush1.bf16.xpose.msra.mxu0 0
    %782 = vmatprep.subr.bf16.mxu0 0
    %783 = vmatpush1.bf16.xpose.msra.mxu0 0
    %784 = vmatprep.subr.bf16.mxu0 0
    %785 = vmatpush1.bf16.xpose.msra.mxu0 0
    %786 = vmatprep.subr.bf16.mxu0 0
    %787 = vmatpush1.bf16.xpose.msra.mxu0 %v770
    %788 = vmatprep.subr.bf16.mxu0 0
    %789 = vmatpush2.bf16.xpose.msra.mxu0 0
    %790 = vmatprep.subr.bf16.mxu0 0
    %791 = vmatpush2.bf16.xpose.msra.mxu0 0
    %792 = vmatprep.subr.bf16.mxu0 0
    %793 = vmatpush2.bf16.xpose.msra.mxu0 0
    %794 = vmatprep.subr.bf16.mxu0 0
    %795 = vmatpush2.bf16.xpose.msra.mxu0 0
    %796 = vmatprep.subr.bf16.mxu0 0
    %797 = vmatpush2.bf16.xpose.msra.mxu0 0
    %798 = vmatprep.subr.bf16.mxu0 0
    %799 = vmatpush2.bf16.xpose.msra.mxu0 0
    %800 = vmatprep.subr.bf16.mxu0 0
    %801 = vmatpush2.bf16.xpose.msra.mxu0 0
    %802 = vmatprep.subr.bf16.mxu0 0
    %803 = vmatpush2.bf16.xpose.msra.mxu0 0
    %804 = vmatprep.mubr.bf16.mxu0 0
    %805 = vmatmul.mubr.bf16.gmra.mxu0 %v767
    %v806 = vpop.f32.mrf.mxu0
    %v807 = vadd.f32 0.0, %v806
    %v808 = vpop.f32.mrf.mxu0
    %v809 = vpop.f32.mrf.mxu0
    %v810 = vpop.f32.mrf.mxu0
    %811 = vdwg.mxu0
    %812 = vrot.lane.b32.xlu0 %v95, 104
    %v813 = vpop.permute.xlu0 %812
    %814 = vrot.lane.b32.xlu0 %v95, 72
    %v815 = vpop.permute.xlu0 %814
    %v817 = vsel %vm99, %v813, 0
    %v820 = vsel %vm99, %v815, 0
    %822 = vmatprep.subr.bf16.mxu0 0
    %823 = vmatpush1.bf16.xpose.msra.mxu0 0
    %824 = vmatprep.subr.bf16.mxu0 0
    %825 = vmatpush1.bf16.xpose.msra.mxu0 0
    %826 = vmatprep.subr.bf16.mxu0 0
    %827 = vmatpush1.bf16.xpose.msra.mxu0 0
    %828 = vmatprep.subr.bf16.mxu0 0
    %829 = vmatpush1.bf16.xpose.msra.mxu0 0
    %830 = vmatprep.subr.bf16.mxu0 0
    %831 = vmatpush1.bf16.xpose.msra.mxu0 0
    %832 = vmatprep.subr.bf16.mxu0 0
    %833 = vmatpush1.bf16.xpose.msra.mxu0 0
    %834 = vmatprep.subr.bf16.mxu0 0
    %835 = vmatpush1.bf16.xpose.msra.mxu0 0
    %836 = vmatprep.subr.bf16.mxu0 0
    %837 = vmatpush1.bf16.xpose.msra.mxu0 %v820
    %838 = vmatprep.subr.bf16.mxu0 0
    %839 = vmatpush2.bf16.xpose.msra.mxu0 0
    %840 = vmatprep.subr.bf16.mxu0 0
    %841 = vmatpush2.bf16.xpose.msra.mxu0 0
    %842 = vmatprep.subr.bf16.mxu0 0
    %843 = vmatpush2.bf16.xpose.msra.mxu0 0
    %844 = vmatprep.subr.bf16.mxu0 0
    %845 = vmatpush2.bf16.xpose.msra.mxu0 0
    %846 = vmatprep.subr.bf16.mxu0 0
    %847 = vmatpush2.bf16.xpose.msra.mxu0 0
    %848 = vmatprep.subr.bf16.mxu0 0
    %849 = vmatpush2.bf16.xpose.msra.mxu0 0
    %850 = vmatprep.subr.bf16.mxu0 0
    %851 = vmatpush2.bf16.xpose.msra.mxu0 0
    %852 = vmatprep.subr.bf16.mxu0 0
    %853 = vmatpush2.bf16.xpose.msra.mxu0 0
    %854 = vmatprep.mubr.bf16.mxu0 0
    %855 = vmatmul.mubr.bf16.gmra.mxu0 %v817
    %v856 = vpop.f32.mrf.mxu0
    %v857 = vadd.f32 0.0, %v856
    %v858 = vpop.f32.mrf.mxu0
    %v859 = vpop.f32.mrf.mxu0
    %v860 = vpop.f32.mrf.mxu0
    %861 = vdwg.mxu0
    %v862 = vmul.f32 %v807, 0.35355338
    %v863 = vmul.f32 %v857, 0.35355338
    %v864 = vsel %vm99, %v862, -inf
    %865 = vmax.xlane.f32.xlu0 %v864
    %v866 = vpop.xlane.xlu0 %865
    %v867 = vsel %vm99, %v863, -inf
    %868 = vmax.xlane.f32.xlu0 %v867
    %v869 = vpop.xlane.xlu0 %868
    %v870 = vsub.f32 %v862, %v866
    %v871 = vsub.f32 %v863, %v869
    %v872 = vmul.f32 %v870, 1.442695
    %v873 = vpow.pop %v872
    %v874 = vmul.f32 %v871, 1.442695
    %v875 = vpow.pop %v874
    %v876 = vsel %vm99, %v873, 0.0
    %877 = vadd.xlane.f32.xlu0 %v876
    %v878 = vpop.xlane.xlu0 %877
    %v879 = vsel %vm99, %v875, 0.0
    %880 = vadd.xlane.f32.xlu0 %v879
    %v881 = vpop.xlane.xlu0 %880
    %v882 = vrcp.pop %v878
    %v883 = vrcp.pop %v881
    %v884 = vmul.f32 %v873, %v882
    %v885 = vmul.f32 %v875, %v883
    %v886 = vpack.c.bf16 %v884, %v884
    %v887 = vpack.c.bf16 %v885, %v885
    %888 = vrot.lane.b32.xlu0 %v94, 40
    %v889 = vpop.permute.xlu0 %888
    %v891 = vsel %vm99, %v886, 0
    %v894 = vsel %vm226, %v889, 0
    %896 = vmatprep.subr.bf16.mxu0 0
    %897 = vmatpush1.bf16.msra.mxu0 0
    %898 = vmatprep.subr.bf16.mxu0 0
    %899 = vmatpush1.bf16.msra.mxu0 0
    %900 = vmatprep.subr.bf16.mxu0 0
    %901 = vmatpush1.bf16.msra.mxu0 0
    %902 = vmatprep.subr.bf16.mxu0 0
    %903 = vmatpush1.bf16.msra.mxu0 0
    %904 = vmatprep.subr.bf16.mxu0 0
    %905 = vmatpush1.bf16.msra.mxu0 0
    %906 = vmatprep.subr.bf16.mxu0 0
    %907 = vmatpush1.bf16.msra.mxu0 0
    %908 = vmatprep.subr.bf16.mxu0 0
    %909 = vmatpush1.bf16.msra.mxu0 0
    %910 = vmatprep.subr.bf16.mxu0 0
    %911 = vmatpush1.bf16.msra.mxu0 %v894
    %912 = vmatprep.subr.bf16.mxu0 0
    %913 = vmatpush2.bf16.msra.mxu0 0
    %914 = vmatprep.subr.bf16.mxu0 0
    %915 = vmatpush2.bf16.msra.mxu0 0
    %916 = vmatprep.subr.bf16.mxu0 0
    %917 = vmatpush2.bf16.msra.mxu0 0
    %918 = vmatprep.subr.bf16.mxu0 0
    %919 = vmatpush2.bf16.msra.mxu0 0
    %920 = vmatprep.subr.bf16.mxu0 0
    %921 = vmatpush2.bf16.msra.mxu0 0
    %922 = vmatprep.subr.bf16.mxu0 0
    %923 = vmatpush2.bf16.msra.mxu0 0
    %924 = vmatprep.subr.bf16.mxu0 0
    %925 = vmatpush2.bf16.msra.mxu0 0
    %926 = vmatprep.subr.bf16.mxu0 0
    %927 = vmatpush2.bf16.msra.mxu0 0
    %928 = vmatprep.mubr.bf16.mxu0 0
    %929 = vmatmul.mubr.bf16.gmra.mxu0 %v891
    %v930 = vpop.f32.mrf.mxu0
    %v931 = vadd.f32 0.0, %v930
    %v932 = vpop.f32.mrf.mxu0
    %v933 = vpop.f32.mrf.mxu0
    %v934 = vpop.f32.mrf.mxu0
    %935 = vdwg.mxu0
    %936 = vrot.lane.b32.xlu0 %v95, 40
    %v937 = vpop.permute.xlu0 %936
    %v939 = vsel %vm99, %v887, 0
    %v942 = vsel %vm226, %v937, 0
    %944 = vmatprep.subr.bf16.mxu0 0
    %945 = vmatpush1.bf16.msra.mxu0 0
    %946 = vmatprep.subr.bf16.mxu0 0
    %947 = vmatpush1.bf16.msra.mxu0 0
    %948 = vmatprep.subr.bf16.mxu0 0
    %949 = vmatpush1.bf16.msra.mxu0 0
    %950 = vmatprep.subr.bf16.mxu0 0
    %951 = vmatpush1.bf16.msra.mxu0 0
    %952 = vmatprep.subr.bf16.mxu0 0
    %953 = vmatpush1.bf16.msra.mxu0 0
    %954 = vmatprep.subr.bf16.mxu0 0
    %955 = vmatpush1.bf16.msra.mxu0 0
    %956 = vmatprep.subr.bf16.mxu0 0
    %957 = vmatpush1.bf16.msra.mxu0 0
    %958 = vmatprep.subr.bf16.mxu0 0
    %959 = vmatpush1.bf16.msra.mxu0 %v942
    %960 = vmatprep.subr.bf16.mxu0 0
    %961 = vmatpush2.bf16.msra.mxu0 0
    %962 = vmatprep.subr.bf16.mxu0 0
    %963 = vmatpush2.bf16.msra.mxu0 0
    %964 = vmatprep.subr.bf16.mxu0 0
    %965 = vmatpush2.bf16.msra.mxu0 0
    %966 = vmatprep.subr.bf16.mxu0 0
    %967 = vmatpush2.bf16.msra.mxu0 0
    %968 = vmatprep.subr.bf16.mxu0 0
    %969 = vmatpush2.bf16.msra.mxu0 0
    %970 = vmatprep.subr.bf16.mxu0 0
    %971 = vmatpush2.bf16.msra.mxu0 0
    %972 = vmatprep.subr.bf16.mxu0 0
    %973 = vmatpush2.bf16.msra.mxu0 0
    %974 = vmatprep.subr.bf16.mxu0 0
    %975 = vmatpush2.bf16.msra.mxu0 0
    %976 = vmatprep.mubr.bf16.mxu0 0
    %977 = vmatmul.mubr.bf16.gmra.mxu0 %v939
    %v978 = vpop.f32.mrf.mxu0
    %v979 = vadd.f32 0.0, %v978
    %v980 = vpop.f32.mrf.mxu0
    %v981 = vpop.f32.mrf.mxu0
    %v982 = vpop.f32.mrf.mxu0
    %983 = vdwg.mxu0
    %986 = vrot.lane.b32.xlu0 %v487, 8
    %v987 = vpop.permute.xlu0 %986
    %988 = vrot.lane.b32.xlu0 %v535, 8
    %v989 = vpop.permute.xlu0 %988
    %994 = vrot.lane.b32.xlu0 %v709, 16
    %v995 = vpop.permute.xlu0 %994
    %996 = vrot.lane.b32.xlu0 %v757, 16
    %v997 = vpop.permute.xlu0 %996
    %1002 = vrot.lane.b32.xlu0 %v931, 24
    %v1003 = vpop.permute.xlu0 %1002
    %1004 = vrot.lane.b32.xlu0 %v979, 24
    %v1005 = vpop.permute.xlu0 %1004
    %v1008 = vsel %vm99, %v265, %v987
    %v1009 = vsel %vm99, %v313, %v989
    %vm1010 = vcmask 130048
    %v1011 = vsel %vm1010, %v1008, %v995
    %v1012 = vsel %vm1010, %v1009, %v997
    %vm1013 = vcmask 195584
    %v1014 = vsel %vm1013, %v1011, %v1003
    %v1015 = vsel %vm1013, %v1012, %v1005
    %v1016 = vld [vmem:[%s2] sm:$0xf]
    %v1017 = vld [vmem:[%s2 + $0x4] sm:$0xf]
    %v1018 = vld [vmem:[%s2 + $0x8] sm:$0xf]
    %v1019 = vld [vmem:[%s2 + $0xc] sm:$0xf]
    %v1020 = vpack.c.bf16 %v1015, %v1014
    %v1021 = vld [vmem:[%s5 + $0x2] sm:$0x1]
    %v1022 = vlaneseq
    %v1023 = vshrl.u32 %v1022, 7
    %v1024 = vsub.s32 0, %v1023
    %v1025 = vrot.slane %v1021, %v1024
    %v1030 = vunpack.c.l.b16 %v1016
    %v1031 = vunpack.c.l.b16 %v1017
    %v1032 = vunpack.c.l.b16 %v1018
    %v1033 = vunpack.c.l.b16 %v1019
    %v1034 = vpack.c.b16 %v1031, %v1030
    %v1035 = vpack.c.b16 %v1033, %v1032
    %v1039 = vsel %vm49, %v1020, 0
    %1041 = vmatprep.subr.bf16.mxu0 0
    %1042 = vmatpush1.bf16.msra.mxu0 0
    %1043 = vmatprep.subr.bf16.mxu0 0
    %1044 = vmatpush1.bf16.msra.mxu0 0
    %1045 = vmatprep.subr.bf16.mxu0 0
    %1046 = vmatpush1.bf16.msra.mxu0 0
    %1047 = vmatprep.subr.bf16.mxu0 0
    %1048 = vmatpush1.bf16.msra.mxu0 0
    %1049 = vmatprep.subr.bf16.mxu0 0
    %1050 = vmatpush1.bf16.msra.mxu0 0
    %1051 = vmatprep.subr.bf16.mxu0 0
    %1052 = vmatpush1.bf16.msra.mxu0 0
    %1053 = vmatprep.subr.bf16.mxu0 0
    %1054 = vmatpush1.bf16.msra.mxu0 %v1035
    %1055 = vmatprep.subr.bf16.mxu0 0
    %1056 = vmatpush1.bf16.msra.mxu0 %v1034
    %1057 = vmatprep.subr.bf16.mxu0 0
    %1058 = vmatpush2.bf16.msra.mxu0 0
    %1059 = vmatprep.subr.bf16.mxu0 0
    %1060 = vmatpush2.bf16.msra.mxu0 0
    %1061 = vmatprep.subr.bf16.mxu0 0
    %1062 = vmatpush2.bf16.msra.mxu0 0
    %1063 = vmatprep.subr.bf16.mxu0 0
    %1064 = vmatpush2.bf16.msra.mxu0 0
    %1065 = vmatprep.subr.bf16.mxu0 0
    %1066 = vmatpush2.bf16.msra.mxu0 0
    %1067 = vmatprep.subr.bf16.mxu0 0
    %1068 = vmatpush2.bf16.msra.mxu0 0
    %1069 = vmatprep.subr.bf16.mxu0 0
    %1070 = vmatpush2.bf16.msra.mxu0 0
    %1071 = vmatprep.subr.bf16.mxu0 0
    %1072 = vmatpush2.bf16.msra.mxu0 0
    %1073 = vmatprep.mubr.bf16.mxu0 0
    %1074 = vmatmul.mubr.bf16.gmra.mxu0 %v1039
    %v1075 = vpop.f32.mrf.mxu0
    %v1076 = vadd.f32 %v1025, %v1075
    %v1077 = vpop.f32.mrf.mxu0
    %v1078 = vpop.f32.mrf.mxu0
    %v1079 = vadd.f32 %v1025, %v1078
    %v1080 = vpop.f32.mrf.mxu0
    %1081 = vdwg.mxu0
    %v1082 = vadd.f32 %v25, %v1076
    %v1083 = vadd.f32 %v26, %v1079
    %v1084 = vld [vmem:[%s5 + $0x4] sm:$0x1]
    %v1085 = vld [vmem:[%s5 + $0x6] sm:$0x1]
    %v1086 = vsel %vm49, %v1082, 0.0
    %1087 = vadd.xlane.f32.xlu0 %v1086
    %v1088 = vpop.xlane.xlu0 %1087
    %v1089 = vsel %vm49, %v1083, 0.0
    %1090 = vadd.xlane.f32.xlu0 %v1089
    %v1091 = vpop.xlane.xlu0 %1090
    %v1092 = vrcp.pop 32.0
    %v1093 = vmul.f32 %v1088, %v1092
    %v1094 = vmul.f32 %v1091, %v1092
    %v1095 = vsub.f32 %v1082, %v1093
    %v1096 = vsub.f32 %v1083, %v1094
    %v1097 = vmul.f32 %v1095, %v1095
    %v1098 = vmul.f32 %v1096, %v1096
    %v1099 = vsel %vm49, %v1097, 0.0
    %1100 = vadd.xlane.f32.xlu0 %v1099
    %v1101 = vpop.xlane.xlu0 %1100
    %v1102 = vsel %vm49, %v1098, 0.0
    %1103 = vadd.xlane.f32.xlu0 %v1102
    %v1104 = vpop.xlane.xlu0 %1103
    %v1105 = vmul.f32 %v1101, %v1092
    %v1106 = vmul.f32 %v1104, %v1092
    %v1107 = vadd.f32 %v1105, 1e-05
    %v1108 = vadd.f32 %v1106, 1e-05
    %v1109 = vrsqrt.pop %v1107
    %v1110 = vrsqrt.pop %v1108
    %v1111 = vmul.f32 %v1095, %v1109
    %v1112 = vmul.f32 %v1096, %v1110
    %v1113 = vlaneseq
    %v1114 = vshrl.u32 %v1113, 7
    %v1115 = vsub.s32 0, %v1114
    %v1116 = vrot.slane %v1084, %v1115
    %v1117 = vmul.f32 %v1111, %v1116
    %v1118 = vmul.f32 %v1112, %v1116
    %v1119 = vlaneseq
    %v1120 = vshrl.u32 %v1119, 7
    %v1121 = vsub.s32 0, %v1120
    %v1122 = vrot.slane %v1085, %v1121
    %v1123 = vadd.f32 %v1117, %v1122
    %v1124 = vadd.f32 %v1118, %v1122
    %v1125 = vld [vmem:[%s3] sm:$0xff]
    %v1126 = vld [vmem:[%s3 + $0x8] sm:$0xff]
    %v1127 = vld [vmem:[%s3 + $0x10] sm:$0xff]
    %v1128 = vld [vmem:[%s3 + $0x18] sm:$0xff]
    %v1129 = vld [vmem:[%s3 + $0x20] sm:$0xff]
    %v1130 = vld [vmem:[%s3 + $0x28] sm:$0xff]
    %v1131 = vld [vmem:[%s3 + $0x30] sm:$0xff]
    %v1132 = vld [vmem:[%s3 + $0x38] sm:$0xff]
    %v1133 = vld [vmem:[%s3 + $0x40] sm:$0xff]
    %v1134 = vld [vmem:[%s3 + $0x48] sm:$0xff]
    %v1135 = vld [vmem:[%s3 + $0x50] sm:$0xff]
    %v1136 = vld [vmem:[%s3 + $0x58] sm:$0xff]
    %v1137 = vld [vmem:[%s3 + $0x60] sm:$0xff]
    %v1138 = vld [vmem:[%s3 + $0x68] sm:$0xff]
    %v1139 = vld [vmem:[%s3 + $0x70] sm:$0xff]
    %v1140 = vld [vmem:[%s3 + $0x78] sm:$0xff]
    %v1141 = vld [vmem:[%s3 + $0x80] sm:$0xff]
    %v1142 = vld [vmem:[%s3 + $0x88] sm:$0xff]
    %v1143 = vld [vmem:[%s3 + $0x90] sm:$0xff]
    %v1144 = vld [vmem:[%s3 + $0x98] sm:$0xff]
    %v1145 = vld [vmem:[%s3 + $0xa0] sm:$0xff]
    %v1146 = vld [vmem:[%s3 + $0xa8] sm:$0xff]
    %v1147 = vld [vmem:[%s3 + $0xb0] sm:$0xff]
    %v1148 = vld [vmem:[%s3 + $0xb8] sm:$0xff]
    %v1149 = vld [vmem:[%s3 + $0xc0] sm:$0xff]
    %v1150 = vld [vmem:[%s3 + $0xc8] sm:$0xff]
    %v1151 = vld [vmem:[%s3 + $0xd0] sm:$0xff]
    %v1152 = vld [vmem:[%s3 + $0xd8] sm:$0xff]
    %v1153 = vld [vmem:[%s3 + $0xe0] sm:$0xff]
    %v1154 = vld [vmem:[%s3 + $0xe8] sm:$0xff]
    %v1155 = vld [vmem:[%s3 + $0xf0] sm:$0xff]
    %v1156 = vld [vmem:[%s3 + $0xf8] sm:$0xff]
    %v1157 = vpack.c.bf16 %v1124, %v1123
    %s1158 = scalar_lea.vmem %s5, 8
    %v1159 = vld [vmem:[%s1158] ss:$2 sm:$0xff]
    %s1160 = scalar_lea.vmem %s5, 24
    %v1161 = vld [vmem:[%s1160] ss:$2 sm:$0xff]
    %v1164 = vlaneseq
    %v1165 = vshrl.u32 %v1164, 7
    %v1166 = vsub.s32 0, %v1165
    %v1167 = vrot.slane %v1159, %v1166
    %v1168 = vlaneseq
    %v1169 = vshrl.u32 %v1168, 7
    %v1170 = vsub.s32 1, %v1169
    %v1171 = vrot.slane %v1159, %v1170
    %v1172 = vlaneseq
    %v1173 = vshrl.u32 %v1172, 7
    %v1174 = vsub.s32 2, %v1173
    %v1175 = vrot.slane %v1159, %v1174
    %v1176 = vlaneseq
    %v1177 = vshrl.u32 %v1176, 7
    %v1178 = vsub.s32 3, %v1177
    %v1179 = vrot.slane %v1159, %v1178
    %v1180 = vlaneseq
    %v1181 = vshrl.u32 %v1180, 7
    %v1182 = vsub.s32 4, %v1181
    %v1183 = vrot.slane %v1159, %v1182
    %v1184 = vlaneseq
    %v1185 = vshrl.u32 %v1184, 7
    %v1186 = vsub.s32 5, %v1185
    %v1187 = vrot.slane %v1159, %v1186
    %v1188 = vlaneseq
    %v1189 = vshrl.u32 %v1188, 7
    %v1190 = vsub.s32 6, %v1189
    %v1191 = vrot.slane %v1159, %v1190
    %v1192 = vlaneseq
    %v1193 = vshrl.u32 %v1192, 7
    %v1194 = vsub.s32 7, %v1193
    %v1195 = vrot.slane %v1159, %v1194
    %v1196 = vlaneseq
    %v1197 = vshrl.u32 %v1196, 7
    %v1198 = vsub.s32 0, %v1197
    %v1199 = vrot.slane %v1161, %v1198
    %v1200 = vlaneseq
    %v1201 = vshrl.u32 %v1200, 7
    %v1202 = vsub.s32 1, %v1201
    %v1203 = vrot.slane %v1161, %v1202
    %v1204 = vlaneseq
    %v1205 = vshrl.u32 %v1204, 7
    %v1206 = vsub.s32 2, %v1205
    %v1207 = vrot.slane %v1161, %v1206
    %v1208 = vlaneseq
    %v1209 = vshrl.u32 %v1208, 7
    %v1210 = vsub.s32 3, %v1209
    %v1211 = vrot.slane %v1161, %v1210
    %v1212 = vlaneseq
    %v1213 = vshrl.u32 %v1212, 7
    %v1214 = vsub.s32 4, %v1213
    %v1215 = vrot.slane %v1161, %v1214
    %v1216 = vlaneseq
    %v1217 = vshrl.u32 %v1216, 7
    %v1218 = vsub.s32 5, %v1217
    %v1219 = vrot.slane %v1161, %v1218
    %v1220 = vlaneseq
    %v1221 = vshrl.u32 %v1220, 7
    %v1222 = vsub.s32 6, %v1221
    %v1223 = vrot.slane %v1161, %v1222
    %v1224 = vlaneseq
    %v1225 = vshrl.u32 %v1224, 7
    %v1226 = vsub.s32 7, %v1225
    %v1227 = vrot.slane %v1161, %v1226
    %v1276 = vunpack.c.l.b16 %v1125
    %v1277 = vunpack.c.h.b16 %v1125
    %v1278 = vunpack.c.l.b16 %v1126
    %v1279 = vunpack.c.h.b16 %v1126
    %v1280 = vunpack.c.l.b16 %v1127
    %v1281 = vunpack.c.h.b16 %v1127
    %v1282 = vunpack.c.l.b16 %v1128
    %v1283 = vunpack.c.h.b16 %v1128
    %v1284 = vunpack.c.l.b16 %v1129
    %v1285 = vunpack.c.h.b16 %v1129
    %v1286 = vunpack.c.l.b16 %v1130
    %v1287 = vunpack.c.h.b16 %v1130
    %v1288 = vunpack.c.l.b16 %v1131
    %v1289 = vunpack.c.h.b16 %v1131
    %v1290 = vunpack.c.l.b16 %v1132
    %v1291 = vunpack.c.h.b16 %v1132
    %v1292 = vunpack.c.l.b16 %v1133
    %v1293 = vunpack.c.h.b16 %v1133
    %v1294 = vunpack.c.l.b16 %v1134
    %v1295 = vunpack.c.h.b16 %v1134
    %v1296 = vunpack.c.l.b16 %v1135
    %v1297 = vunpack.c.h.b16 %v1135
    %v1298 = vunpack.c.l.b16 %v1136
    %v1299 = vunpack.c.h.b16 %v1136
    %v1300 = vunpack.c.l.b16 %v1137
    %v1301 = vunpack.c.h.b16 %v1137
    %v1302 = vunpack.c.l.b16 %v1138
    %v1303 = vunpack.c.h.b16 %v1138
    %v1304 = vunpack.c.l.b16 %v1139
    %v1305 = vunpack.c.h.b16 %v1139
    %v1306 = vunpack.c.l.b16 %v1140
    %v1307 = vunpack.c.h.b16 %v1140
    %v1308 = vunpack.c.l.b16 %v1141
    %v1309 = vunpack.c.h.b16 %v1141
    %v1310 = vunpack.c.l.b16 %v1142
    %v1311 = vunpack.c.h.b16 %v1142
    %v1312 = vunpack.c.l.b16 %v1143
    %v1313 = vunpack.c.h.b16 %v1143
    %v1314 = vunpack.c.l.b16 %v1144
    %v1315 = vunpack.c.h.b16 %v1144
    %v1316 = vunpack.c.l.b16 %v1145
    %v1317 = vunpack.c.h.b16 %v1145
    %v1318 = vunpack.c.l.b16 %v1146
    %v1319 = vunpack.c.h.b16 %v1146
    %v1320 = vunpack.c.l.b16 %v1147
    %v1321 = vunpack.c.h.b16 %v1147
    %v1322 = vunpack.c.l.b16 %v1148
    %v1323 = vunpack.c.h.b16 %v1148
    %v1324 = vunpack.c.l.b16 %v1149
    %v1325 = vunpack.c.h.b16 %v1149
    %v1326 = vunpack.c.l.b16 %v1150
    %v1327 = vunpack.c.h.b16 %v1150
    %v1328 = vunpack.c.l.b16 %v1151
    %v1329 = vunpack.c.h.b16 %v1151
    %v1330 = vunpack.c.l.b16 %v1152
    %v1331 = vunpack.c.h.b16 %v1152
    %v1332 = vunpack.c.l.b16 %v1153
    %v1333 = vunpack.c.h.b16 %v1153
    %v1334 = vunpack.c.l.b16 %v1154
    %v1335 = vunpack.c.h.b16 %v1154
    %v1336 = vunpack.c.l.b16 %v1155
    %v1337 = vunpack.c.h.b16 %v1155
    %v1338 = vunpack.c.l.b16 %v1156
    %v1339 = vunpack.c.h.b16 %v1156
    %v1340 = vpack.c.b16 %v1292, %v1276
    %v1341 = vpack.c.b16 %v1293, %v1277
    %v1342 = vpack.c.b16 %v1294, %v1278
    %v1343 = vpack.c.b16 %v1295, %v1279
    %v1344 = vpack.c.b16 %v1296, %v1280
    %v1345 = vpack.c.b16 %v1297, %v1281
    %v1346 = vpack.c.b16 %v1298, %v1282
    %v1347 = vpack.c.b16 %v1299, %v1283
    %v1348 = vpack.c.b16 %v1300, %v1284
    %v1349 = vpack.c.b16 %v1301, %v1285
    %v1350 = vpack.c.b16 %v1302, %v1286
    %v1351 = vpack.c.b16 %v1303, %v1287
    %v1352 = vpack.c.b16 %v1304, %v1288
    %v1353 = vpack.c.b16 %v1305, %v1289
    %v1354 = vpack.c.b16 %v1306, %v1290
    %v1355 = vpack.c.b16 %v1307, %v1291
    %v1356 = vpack.c.b16 %v1324, %v1308
    %v1357 = vpack.c.b16 %v1325, %v1309
    %v1358 = vpack.c.b16 %v1326, %v1310
    %v1359 = vpack.c.b16 %v1327, %v1311
    %v1360 = vpack.c.b16 %v1328, %v1312
    %v1361 = vpack.c.b16 %v1329, %v1313
    %v1362 = vpack.c.b16 %v1330, %v1314
    %v1363 = vpack.c.b16 %v1331, %v1315
    %v1364 = vpack.c.b16 %v1332, %v1316
    %v1365 = vpack.c.b16 %v1333, %v1317
    %v1366 = vpack.c.b16 %v1334, %v1318
    %v1367 = vpack.c.b16 %v1335, %v1319
    %v1368 = vpack.c.b16 %v1336, %v1320
    %v1369 = vpack.c.b16 %v1337, %v1321
    %v1370 = vpack.c.b16 %v1338, %v1322
    %v1371 = vpack.c.b16 %v1339, %v1323
    %v1405 = vsel %vm49, %v1157, 0
    %1407 = vmatprep.subr.bf16.mxu0 0
    %1408 = vmatpush1.bf16.msra.mxu0 0
    %1409 = vmatprep.subr.bf16.mxu0 0
    %1410 = vmatpush1.bf16.msra.mxu0 0
    %1411 = vmatprep.subr.bf16.mxu0 0
    %1412 = vmatpush1.bf16.msra.mxu0 0
    %1413 = vmatprep.subr.bf16.mxu0 0
    %1414 = vmatpush1.bf16.msra.mxu0 0
    %1415 = vmatprep.subr.bf16.mxu0 0
    %1416 = vmatpush1.bf16.msra.mxu0 0
    %1417 = vmatprep.subr.bf16.mxu0 0
    %1418 = vmatpush1.bf16.msra.mxu0 0
    %1419 = vmatprep.subr.bf16.mxu0 %v1357
    %1420 = vmatpush1.bf16.msra.mxu0 %v1356
    %1421 = vmatprep.subr.bf16.mxu0 %v1341
    %1422 = vmatpush1.bf16.msra.mxu0 %v1340
    %1423 = vmatprep.subr.bf16.mxu0 0
    %1424 = vmatpush2.bf16.msra.mxu0 0
    %1425 = vmatprep.subr.bf16.mxu0 0
    %1426 = vmatpush2.bf16.msra.mxu0 0
    %1427 = vmatprep.subr.bf16.mxu0 0
    %1428 = vmatpush2.bf16.msra.mxu0 0
    %1429 = vmatprep.subr.bf16.mxu0 0
    %1430 = vmatpush2.bf16.msra.mxu0 0
    %1431 = vmatprep.subr.bf16.mxu0 0
    %1432 = vmatpush2.bf16.msra.mxu0 0
    %1433 = vmatprep.subr.bf16.mxu0 0
    %1434 = vmatpush2.bf16.msra.mxu0 0
    %1435 = vmatprep.subr.bf16.mxu0 0
    %1436 = vmatpush2.bf16.msra.mxu0 0
    %1437 = vmatprep.subr.bf16.mxu0 0
    %1438 = vmatpush2.bf16.msra.mxu0 0
    %1439 = vmatprep.mubr.bf16.mxu0 0
    %1440 = vmatmul.mubr.bf16.gmra.mxu0 %v1405
    %v1441 = vpop.f32.mrf.mxu0
    %v1442 = vadd.f32 %v1167, %v1441
    %v1443 = vpop.f32.mrf.mxu0
    %v1444 = vadd.f32 %v1171, %v1443
    %v1445 = vpop.f32.mrf.mxu0
    %v1446 = vadd.f32 %v1167, %v1445
    %v1447 = vpop.f32.mrf.mxu0
    %v1448 = vadd.f32 %v1171, %v1447
    %1449 = vdwg.mxu0
    %1450 = vmatprep.subr.bf16.mxu0 0
    %1451 = vmatpush1.bf16.msra.mxu0 0
    %1452 = vmatprep.subr.bf16.mxu0 0
    %1453 = vmatpush1.bf16.msra.mxu0 0
    %1454 = vmatprep.subr.bf16.mxu0 0
    %1455 = vmatpush1.bf16.msra.mxu0 0
    %1456 = vmatprep.subr.bf16.mxu0 0
    %1457 = vmatpush1.bf16.msra.mxu0 0
    %1458 = vmatprep.subr.bf16.mxu0 0
    %1459 = vmatpush1.bf16.msra.mxu0 0
    %1460 = vmatprep.subr.bf16.mxu0 0
    %1461 = vmatpush1.bf16.msra.mxu0 0
    %1462 = vmatprep.subr.bf16.mxu0 %v1359
    %1463 = vmatpush1.bf16.msra.mxu0 %v1358
    %1464 = vmatprep.subr.bf16.mxu0 %v1343
    %1465 = vmatpush1.bf16.msra.mxu0 %v1342
    %1466 = vmatprep.subr.bf16.mxu0 0
    %1467 = vmatpush2.bf16.msra.mxu0 0
    %1468 = vmatprep.subr.bf16.mxu0 0
    %1469 = vmatpush2.bf16.msra.mxu0 0
    %1470 = vmatprep.subr.bf16.mxu0 0
    %1471 = vmatpush2.bf16.msra.mxu0 0
    %1472 = vmatprep.subr.bf16.mxu0 0
    %1473 = vmatpush2.bf16.msra.mxu0 0
    %1474 = vmatprep.subr.bf16.mxu0 0
    %1475 = vmatpush2.bf16.msra.mxu0 0
    %1476 = vmatprep.subr.bf16.mxu0 0
    %1477 = vmatpush2.bf16.msra.mxu0 0
    %1478 = vmatprep.subr.bf16.mxu0 0
    %1479 = vmatpush2.bf16.msra.mxu0 0
    %1480 = vmatprep.subr.bf16.mxu0 0
    %1481 = vmatpush2.bf16.msra.mxu0 0
    %1482 = vmatprep.mubr.bf16.mxu0 0
    %1483 = vmatmul.mubr.bf16.gmra.mxu0 %v1405
    %v1484 = vpop.f32.mrf.mxu0
    %v1485 = vadd.f32 %v1175, %v1484
    %v1486 = vpop.f32.mrf.mxu0
    %v1487 = vadd.f32 %v1179, %v1486
    %v1488 = vpop.f32.mrf.mxu0
    %v1489 = vadd.f32 %v1175, %v1488
    %v1490 = vpop.f32.mrf.mxu0
    %v1491 = vadd.f32 %v1179, %v1490
    %1492 = vdwg.mxu0
    %1493 = vmatprep.subr.bf16.mxu0 0
    %1494 = vmatpush1.bf16.msra.mxu0 0
    %1495 = vmatprep.subr.bf16.mxu0 0
    %1496 = vmatpush1.bf16.msra.mxu0 0
    %1497 = vmatprep.subr.bf16.mxu0 0
    %1498 = vmatpush1.bf16.msra.mxu0 0
    %1499 = vmatprep.subr.bf16.mxu0 0
    %1500 = vmatpush1.bf16.msra.mxu0 0
    %1501 = vmatprep.subr.bf16.mxu0 0
    %1502 = vmatpush1.bf16.msra.mxu0 0
    %1503 = vmatprep.subr.bf16.mxu0 0
    %1504 = vmatpush1.bf16.msra.mxu0 0
    %1505 = vmatprep.subr.bf16.mxu0 %v1361
    %1506 = vmatpush1.bf16.msra.mxu0 %v1360
    %1507 = vmatprep.subr.bf16.mxu0 %v1345
    %1508 = vmatpush1.bf16.msra.mxu0 %v1344
    %1509 = vmatprep.subr.bf16.mxu0 0
    %1510 = vmatpush2.bf16.msra.mxu0 0
    %1511 = vmatprep.subr.bf16.mxu0 0
    %1512 = vmatpush2.bf16.msra.mxu0 0
    %1513 = vmatprep.subr.bf16.mxu0 0
    %1514 = vmatpush2.bf16.msra.mxu0 0
    %1515 = vmatprep.subr.bf16.mxu0 0
    %1516 = vmatpush2.bf16.msra.mxu0 0
    %1517 = vmatprep.subr.bf16.mxu0 0
    %1518 = vmatpush2.bf16.msra.mxu0 0
    %1519 = vmatprep.subr.bf16.mxu0 0
    %1520 = vmatpush2.bf16.msra.mxu0 0
    %1521 = vmatprep.subr.bf16.mxu0 0
    %1522 = vmatpush2.bf16.msra.mxu0 0
    %1523 = vmatprep.subr.bf16.mxu0 0
    %1524 = vmatpush2.bf16.msra.mxu0 0
    %1525 = vmatprep.mubr.bf16.mxu0 0
    %1526 = vmatmul.mubr.bf16.gmra.mxu0 %v1405
    %v1527 = vpop.f32.mrf.mxu0
    %v1528 = vadd.f32 %v1183, %v1527
    %v1529 = vpop.f32.mrf.mxu0
    %v1530 = vadd.f32 %v1187, %v1529
    %v1531 = vpop.f32.mrf.mxu0
    %v1532 = vadd.f32 %v1183, %v1531
    %v1533 = vpop.f32.mrf.mxu0
    %v1534 = vadd.f32 %v1187, %v1533
    %1535 = vdwg.mxu0
    %1536 = vmatprep.subr.bf16.mxu0 0
    %1537 = vmatpush1.bf16.msra.mxu0 0
    %1538 = vmatprep.subr.bf16.mxu0 0
    %1539 = vmatpush1.bf16.msra.mxu0 0
    %1540 = vmatprep.subr.bf16.mxu0 0
    %1541 = vmatpush1.bf16.msra.mxu0 0
    %1542 = vmatprep.subr.bf16.mxu0 0
    %1543 = vmatpush1.bf16.msra.mxu0 0
    %1544 = vmatprep.subr.bf16.mxu0 0
    %1545 = vmatpush1.bf16.msra.mxu0 0
    %1546 = vmatprep.subr.bf16.mxu0 0
    %1547 = vmatpush1.bf16.msra.mxu0 0
    %1548 = vmatprep.subr.bf16.mxu0 %v1363
    %1549 = vmatpush1.bf16.msra.mxu0 %v1362
    %1550 = vmatprep.subr.bf16.mxu0 %v1347
    %1551 = vmatpush1.bf16.msra.mxu0 %v1346
    %1552 = vmatprep.subr.bf16.mxu0 0
    %1553 = vmatpush2.bf16.msra.mxu0 0
    %1554 = vmatprep.subr.bf16.mxu0 0
    %1555 = vmatpush2.bf16.msra.mxu0 0
    %1556 = vmatprep.subr.bf16.mxu0 0
    %1557 = vmatpush2.bf16.msra.mxu0 0
    %1558 = vmatprep.subr.bf16.mxu0 0
    %1559 = vmatpush2.bf16.msra.mxu0 0
    %1560 = vmatprep.subr.bf16.mxu0 0
    %1561 = vmatpush2.bf16.msra.mxu0 0
    %1562 = vmatprep.subr.bf16.mxu0 0
    %1563 = vmatpush2.bf16.msra.mxu0 0
    %1564 = vmatprep.subr.bf16.mxu0 0
    %1565 = vmatpush2.bf16.msra.mxu0 0
    %1566 = vmatprep.subr.bf16.mxu0 0
    %1567 = vmatpush2.bf16.msra.mxu0 0
    %1568 = vmatprep.mubr.bf16.mxu0 0
    %1569 = vmatmul.mubr.bf16.gmra.mxu0 %v1405
    %v1570 = vpop.f32.mrf.mxu0
    %v1571 = vadd.f32 %v1191, %v1570
    %v1572 = vpop.f32.mrf.mxu0
    %v1573 = vadd.f32 %v1195, %v1572
    %v1574 = vpop.f32.mrf.mxu0
    %v1575 = vadd.f32 %v1191, %v1574
    %v1576 = vpop.f32.mrf.mxu0
    %v1577 = vadd.f32 %v1195, %v1576
    %1578 = vdwg.mxu0
    %1579 = vmatprep.subr.bf16.mxu0 0
    %1580 = vmatpush1.bf16.msra.mxu0 0
    %1581 = vmatprep.subr.bf16.mxu0 0
    %1582 = vmatpush1.bf16.msra.mxu0 0
    %1583 = vmatprep.subr.bf16.mxu0 0
    %1584 = vmatpush1.bf16.msra.mxu0 0
    %1585 = vmatprep.subr.bf16.mxu0 0
    %1586 = vmatpush1.bf16.msra.mxu0 0
    %1587 = vmatprep.subr.bf16.mxu0 0
    %1588 = vmatpush1.bf16.msra.mxu0 0
    %1589 = vmatprep.subr.bf16.mxu0 0
    %1590 = vmatpush1.bf16.msra.mxu0 0
    %1591 = vmatprep.subr.bf16.mxu0 %v1365
    %1592 = vmatpush1.bf16.msra.mxu0 %v1364
    %1593 = vmatprep.subr.bf16.mxu0 %v1349
    %1594 = vmatpush1.bf16.msra.mxu0 %v1348
    %1595 = vmatprep.subr.bf16.mxu0 0
    %1596 = vmatpush2.bf16.msra.mxu0 0
    %1597 = vmatprep.subr.bf16.mxu0 0
    %1598 = vmatpush2.bf16.msra.mxu0 0
    %1599 = vmatprep.subr.bf16.mxu0 0
    %1600 = vmatpush2.bf16.msra.mxu0 0
    %1601 = vmatprep.subr.bf16.mxu0 0
    %1602 = vmatpush2.bf16.msra.mxu0 0
    %1603 = vmatprep.subr.bf16.mxu0 0
    %1604 = vmatpush2.bf16.msra.mxu0 0
    %1605 = vmatprep.subr.bf16.mxu0 0
    %1606 = vmatpush2.bf16.msra.mxu0 0
    %1607 = vmatprep.subr.bf16.mxu0 0
    %1608 = vmatpush2.bf16.msra.mxu0 0
    %1609 = vmatprep.subr.bf16.mxu0 0
    %1610 = vmatpush2.bf16.msra.mxu0 0
    %1611 = vmatprep.mubr.bf16.mxu0 0
    %1612 = vmatmul.mubr.bf16.gmra.mxu0 %v1405
    %v1613 = vpop.f32.mrf.mxu0
    %v1614 = vadd.f32 %v1199, %v1613
    %v1615 = vpop.f32.mrf.mxu0
    %v1616 = vadd.f32 %v1203, %v1615
    %v1617 = vpop.f32.mrf.mxu0
    %v1618 = vadd.f32 %v1199, %v1617
    %v1619 = vpop.f32.mrf.mxu0
    %v1620 = vadd.f32 %v1203, %v1619
    %1621 = vdwg.mxu0
    %1622 = vmatprep.subr.bf16.mxu0 0
    %1623 = vmatpush1.bf16.msra.mxu0 0
    %1624 = vmatprep.subr.bf16.mxu0 0
    %1625 = vmatpush1.bf16.msra.mxu0 0
    %1626 = vmatprep.subr.bf16.mxu0 0
    %1627 = vmatpush1.bf16.msra.mxu0 0
    %1628 = vmatprep.subr.bf16.mxu0 0
    %1629 = vmatpush1.bf16.msra.mxu0 0
    %1630 = vmatprep.subr.bf16.mxu0 0
    %1631 = vmatpush1.bf16.msra.mxu0 0
    %1632 = vmatprep.subr.bf16.mxu0 0
    %1633 = vmatpush1.bf16.msra.mxu0 0
    %1634 = vmatprep.subr.bf16.mxu0 %v1367
    %1635 = vmatpush1.bf16.msra.mxu0 %v1366
    %1636 = vmatprep.subr.bf16.mxu0 %v1351
    %1637 = vmatpush1.bf16.msra.mxu0 %v1350
    %1638 = vmatprep.subr.bf16.mxu0 0
    %1639 = vmatpush2.bf16.msra.mxu0 0
    %1640 = vmatprep.subr.bf16.mxu0 0
    %1641 = vmatpush2.bf16.msra.mxu0 0
    %1642 = vmatprep.subr.bf16.mxu0 0
    %1643 = vmatpush2.bf16.msra.mxu0 0
    %1644 = vmatprep.subr.bf16.mxu0 0
    %1645 = vmatpush2.bf16.msra.mxu0 0
    %1646 = vmatprep.subr.bf16.mxu0 0
    %1647 = vmatpush2.bf16.msra.mxu0 0
    %1648 = vmatprep.subr.bf16.mxu0 0
    %1649 = vmatpush2.bf16.msra.mxu0 0
    %1650 = vmatprep.subr.bf16.mxu0 0
    %1651 = vmatpush2.bf16.msra.mxu0 0
    %1652 = vmatprep.subr.bf16.mxu0 0
    %1653 = vmatpush2.bf16.msra.mxu0 0
    %1654 = vmatprep.mubr.bf16.mxu0 0
    %1655 = vmatmul.mubr.bf16.gmra.mxu0 %v1405
    %v1656 = vpop.f32.mrf.mxu0
    %v1657 = vadd.f32 %v1207, %v1656
    %v1658 = vpop.f32.mrf.mxu0
    %v1659 = vadd.f32 %v1211, %v1658
    %v1660 = vpop.f32.mrf.mxu0
    %v1661 = vadd.f32 %v1207, %v1660
    %v1662 = vpop.f32.mrf.mxu0
    %v1663 = vadd.f32 %v1211, %v1662
    %1664 = vdwg.mxu0
    %1665 = vmatprep.subr.bf16.mxu0 0
    %1666 = vmatpush1.bf16.msra.mxu0 0
    %1667 = vmatprep.subr.bf16.mxu0 0
    %1668 = vmatpush1.bf16.msra.mxu0 0
    %1669 = vmatprep.subr.bf16.mxu0 0
    %1670 = vmatpush1.bf16.msra.mxu0 0
    %1671 = vmatprep.subr.bf16.mxu0 0
    %1672 = vmatpush1.bf16.msra.mxu0 0
    %1673 = vmatprep.subr.bf16.mxu0 0
    %1674 = vmatpush1.bf16.msra.mxu0 0
    %1675 = vmatprep.subr.bf16.mxu0 0
    %1676 = vmatpush1.bf16.msra.mxu0 0
    %1677 = vmatprep.subr.bf16.mxu0 %v1369
    %1678 = vmatpush1.bf16.msra.mxu0 %v1368
    %1679 = vmatprep.subr.bf16.mxu0 %v1353
    %1680 = vmatpush1.bf16.msra.mxu0 %v1352
    %1681 = vmatprep.subr.bf16.mxu0 0
    %1682 = vmatpush2.bf16.msra.mxu0 0
    %1683 = vmatprep.subr.bf16.mxu0 0
    %1684 = vmatpush2.bf16.msra.mxu0 0
    %1685 = vmatprep.subr.bf16.mxu0 0
    %1686 = vmatpush2.bf16.msra.mxu0 0
    %1687 = vmatprep.subr.bf16.mxu0 0
    %1688 = vmatpush2.bf16.msra.mxu0 0
    %1689 = vmatprep.subr.bf16.mxu0 0
    %1690 = vmatpush2.bf16.msra.mxu0 0
    %1691 = vmatprep.subr.bf16.mxu0 0
    %1692 = vmatpush2.bf16.msra.mxu0 0
    %1693 = vmatprep.subr.bf16.mxu0 0
    %1694 = vmatpush2.bf16.msra.mxu0 0
    %1695 = vmatprep.subr.bf16.mxu0 0
    %1696 = vmatpush2.bf16.msra.mxu0 0
    %1697 = vmatprep.mubr.bf16.mxu0 0
    %1698 = vmatmul.mubr.bf16.gmra.mxu0 %v1405
    %v1699 = vpop.f32.mrf.mxu0
    %v1700 = vadd.f32 %v1215, %v1699
    %v1701 = vpop.f32.mrf.mxu0
    %v1702 = vadd.f32 %v1219, %v1701
    %v1703 = vpop.f32.mrf.mxu0
    %v1704 = vadd.f32 %v1215, %v1703
    %v1705 = vpop.f32.mrf.mxu0
    %v1706 = vadd.f32 %v1219, %v1705
    %1707 = vdwg.mxu0
    %1708 = vmatprep.subr.bf16.mxu0 0
    %1709 = vmatpush1.bf16.msra.mxu0 0
    %1710 = vmatprep.subr.bf16.mxu0 0
    %1711 = vmatpush1.bf16.msra.mxu0 0
    %1712 = vmatprep.subr.bf16.mxu0 0
    %1713 = vmatpush1.bf16.msra.mxu0 0
    %1714 = vmatprep.subr.bf16.mxu0 0
    %1715 = vmatpush1.bf16.msra.mxu0 0
    %1716 = vmatprep.subr.bf16.mxu0 0
    %1717 = vmatpush1.bf16.msra.mxu0 0
    %1718 = vmatprep.subr.bf16.mxu0 0
    %1719 = vmatpush1.bf16.msra.mxu0 0
    %1720 = vmatprep.subr.bf16.mxu0 %v1371
    %1721 = vmatpush1.bf16.msra.mxu0 %v1370
    %1722 = vmatprep.subr.bf16.mxu0 %v1355
    %1723 = vmatpush1.bf16.msra.mxu0 %v1354
    %1724 = vmatprep.subr.bf16.mxu0 0
    %1725 = vmatpush2.bf16.msra.mxu0 0
    %1726 = vmatprep.subr.bf16.mxu0 0
    %1727 = vmatpush2.bf16.msra.mxu0 0
    %1728 = vmatprep.subr.bf16.mxu0 0
    %1729 = vmatpush2.bf16.msra.mxu0 0
    %1730 = vmatprep.subr.bf16.mxu0 0
    %1731 = vmatpush2.bf16.msra.mxu0 0
    %1732 = vmatprep.subr.bf16.mxu0 0
    %1733 = vmatpush2.bf16.msra.mxu0 0
    %1734 = vmatprep.subr.bf16.mxu0 0
    %1735 = vmatpush2.bf16.msra.mxu0 0
    %1736 = vmatprep.subr.bf16.mxu0 0
    %1737 = vmatpush2.bf16.msra.mxu0 0
    %1738 = vmatprep.subr.bf16.mxu0 0
    %1739 = vmatpush2.bf16.msra.mxu0 0
    %1740 = vmatprep.mubr.bf16.mxu0 0
    %1741 = vmatmul.mubr.bf16.gmra.mxu0 %v1405
    %v1742 = vpop.f32.mrf.mxu0
    %v1743 = vadd.f32 %v1223, %v1742
    %v1744 = vpop.f32.mrf.mxu0
    %v1745 = vadd.f32 %v1227, %v1744
    %v1746 = vpop.f32.mrf.mxu0
    %v1747 = vadd.f32 %v1223, %v1746
    %v1748 = vpop.f32.mrf.mxu0
    %v1749 = vadd.f32 %v1227, %v1748
    %1750 = vdwg.mxu0
    %v1751 = vmax.f32 %v1442, 0.0
    %v1752 = vmax.f32 %v1444, 0.0
    %v1753 = vmax.f32 %v1485, 0.0
    %v1754 = vmax.f32 %v1487, 0.0
    %v1755 = vmax.f32 %v1528, 0.0
    %v1756 = vmax.f32 %v1530, 0.0
    %v1757 = vmax.f32 %v1571, 0.0
    %v1758 = vmax.f32 %v1573, 0.0
    %v1759 = vmax.f32 %v1614, 0.0
    %v1760 = vmax.f32 %v1616, 0.0
    %v1761 = vmax.f32 %v1657, 0.0
    %v1762 = vmax.f32 %v1659, 0.0
    %v1763 = vmax.f32 %v1700, 0.0
    %v1764 = vmax.f32 %v1702, 0.0
    %v1765 = vmax.f32 %v1743, 0.0
    %v1766 = vmax.f32 %v1745, 0.0
    %v1767 = vmax.f32 %v1446, 0.0
    %v1768 = vmax.f32 %v1448, 0.0
    %v1769 = vmax.f32 %v1489, 0.0
    %v1770 = vmax.f32 %v1491, 0.0
    %v1771 = vmax.f32 %v1532, 0.0
    %v1772 = vmax.f32 %v1534, 0.0
    %v1773 = vmax.f32 %v1575, 0.0
    %v1774 = vmax.f32 %v1577, 0.0
    %v1775 = vmax.f32 %v1618, 0.0
    %v1776 = vmax.f32 %v1620, 0.0
    %v1777 = vmax.f32 %v1661, 0.0
    %v1778 = vmax.f32 %v1663, 0.0
    %v1779 = vmax.f32 %v1704, 0.0
    %v1780 = vmax.f32 %v1706, 0.0
    %v1781 = vmax.f32 %v1747, 0.0
    %v1782 = vmax.f32 %v1749, 0.0
    %v1783 = vld [vmem:[%s4] sm:$0xf]
    %v1784 = vld [vmem:[%s4 + $0x4] sm:$0xf]
    %v1785 = vld [vmem:[%s4 + $0x8] sm:$0xf]
    %v1786 = vld [vmem:[%s4 + $0xc] sm:$0xf]
    %v1787 = vld [vmem:[%s4 + $0x10] sm:$0xf]
    %v1788 = vld [vmem:[%s4 + $0x14] sm:$0xf]
    %v1789 = vld [vmem:[%s4 + $0x18] sm:$0xf]
    %v1790 = vld [vmem:[%s4 + $0x1c] sm:$0xf]
    %v1791 = vld [vmem:[%s4 + $0x20] sm:$0xf]
    %v1792 = vld [vmem:[%s4 + $0x24] sm:$0xf]
    %v1793 = vld [vmem:[%s4 + $0x28] sm:$0xf]
    %v1794 = vld [vmem:[%s4 + $0x2c] sm:$0xf]
    %v1795 = vld [vmem:[%s4 + $0x30] sm:$0xf]
    %v1796 = vld [vmem:[%s4 + $0x34] sm:$0xf]
    %v1797 = vld [vmem:[%s4 + $0x38] sm:$0xf]
    %v1798 = vld [vmem:[%s4 + $0x3c] sm:$0xf]
    %v1799 = vld [vmem:[%s4 + $0x40] sm:$0xf]
    %v1800 = vld [vmem:[%s4 + $0x44] sm:$0xf]
    %v1801 = vld [vmem:[%s4 + $0x48] sm:$0xf]
    %v1802 = vld [vmem:[%s4 + $0x4c] sm:$0xf]
    %v1803 = vld [vmem:[%s4 + $0x50] sm:$0xf]
    %v1804 = vld [vmem:[%s4 + $0x54] sm:$0xf]
    %v1805 = vld [vmem:[%s4 + $0x58] sm:$0xf]
    %v1806 = vld [vmem:[%s4 + $0x5c] sm:$0xf]
    %v1807 = vld [vmem:[%s4 + $0x60] sm:$0xf]
    %v1808 = vld [vmem:[%s4 + $0x64] sm:$0xf]
    %v1809 = vld [vmem:[%s4 + $0x68] sm:$0xf]
    %v1810 = vld [vmem:[%s4 + $0x6c] sm:$0xf]
    %v1811 = vld [vmem:[%s4 + $0x70] sm:$0xf]
    %v1812 = vld [vmem:[%s4 + $0x74] sm:$0xf]
    %v1813 = vld [vmem:[%s4 + $0x78] sm:$0xf]
    %v1814 = vld [vmem:[%s4 + $0x7c] sm:$0xf]
    %v1815 = vld [vmem:[%s4 + $0x80] sm:$0xf]
    %v1816 = vld [vmem:[%s4 + $0x84] sm:$0xf]
    %v1817 = vld [vmem:[%s4 + $0x88] sm:$0xf]
    %v1818 = vld [vmem:[%s4 + $0x8c] sm:$0xf]
    %v1819 = vld [vmem:[%s4 + $0x90] sm:$0xf]
    %v1820 = vld [vmem:[%s4 + $0x94] sm:$0xf]
    %v1821 = vld [vmem:[%s4 + $0x98] sm:$0xf]
    %v1822 = vld [vmem:[%s4 + $0x9c] sm:$0xf]
    %v1823 = vld [vmem:[%s4 + $0xa0] sm:$0xf]
    %v1824 = vld [vmem:[%s4 + $0xa4] sm:$0xf]
    %v1825 = vld [vmem:[%s4 + $0xa8] sm:$0xf]
    %v1826 = vld [vmem:[%s4 + $0xac] sm:$0xf]
    %v1827 = vld [vmem:[%s4 + $0xb0] sm:$0xf]
    %v1828 = vld [vmem:[%s4 + $0xb4] sm:$0xf]
    %v1829 = vld [vmem:[%s4 + $0xb8] sm:$0xf]
    %v1830 = vld [vmem:[%s4 + $0xbc] sm:$0xf]
    %v1831 = vld [vmem:[%s4 + $0xc0] sm:$0xf]
    %v1832 = vld [vmem:[%s4 + $0xc4] sm:$0xf]
    %v1833 = vld [vmem:[%s4 + $0xc8] sm:$0xf]
    %v1834 = vld [vmem:[%s4 + $0xcc] sm:$0xf]
    %v1835 = vld [vmem:[%s4 + $0xd0] sm:$0xf]
    %v1836 = vld [vmem:[%s4 + $0xd4] sm:$0xf]
    %v1837 = vld [vmem:[%s4 + $0xd8] sm:$0xf]
    %v1838 = vld [vmem:[%s4 + $0xdc] sm:$0xf]
    %v1839 = vld [vmem:[%s4 + $0xe0] sm:$0xf]
    %v1840 = vld [vmem:[%s4 + $0xe4] sm:$0xf]
    %v1841 = vld [vmem:[%s4 + $0xe8] sm:$0xf]
    %v1842 = vld [vmem:[%s4 + $0xec] sm:$0xf]
    %v1843 = vld [vmem:[%s4 + $0xf0] sm:$0xf]
    %v1844 = vld [vmem:[%s4 + $0xf4] sm:$0xf]
    %v1845 = vld [vmem:[%s4 + $0xf8] sm:$0xf]
    %v1846 = vld [vmem:[%s4 + $0xfc] sm:$0xf]
    %v1847 = vld [vmem:[%s4 + $0x100] sm:$0xf]
    %v1848 = vld [vmem:[%s4 + $0x104] sm:$0xf]
    %v1849 = vld [vmem:[%s4 + $0x108] sm:$0xf]
    %v1850 = vld [vmem:[%s4 + $0x10c] sm:$0xf]
    %v1851 = vld [vmem:[%s4 + $0x110] sm:$0xf]
    %v1852 = vld [vmem:[%s4 + $0x114] sm:$0xf]
    %v1853 = vld [vmem:[%s4 + $0x118] sm:$0xf]
    %v1854 = vld [vmem:[%s4 + $0x11c] sm:$0xf]
    %v1855 = vld [vmem:[%s4 + $0x120] sm:$0xf]
    %v1856 = vld [vmem:[%s4 + $0x124] sm:$0xf]
    %v1857 = vld [vmem:[%s4 + $0x128] sm:$0xf]
    %v1858 = vld [vmem:[%s4 + $0x12c] sm:$0xf]
    %v1859 = vld [vmem:[%s4 + $0x130] sm:$0xf]
    %v1860 = vld [vmem:[%s4 + $0x134] sm:$0xf]
    %v1861 = vld [vmem:[%s4 + $0x138] sm:$0xf]
    %v1862 = vld [vmem:[%s4 + $0x13c] sm:$0xf]
    %v1863 = vld [vmem:[%s4 + $0x140] sm:$0xf]
    %v1864 = vld [vmem:[%s4 + $0x144] sm:$0xf]
    %v1865 = vld [vmem:[%s4 + $0x148] sm:$0xf]
    %v1866 = vld [vmem:[%s4 + $0x14c] sm:$0xf]
    %v1867 = vld [vmem:[%s4 + $0x150] sm:$0xf]
    %v1868 = vld [vmem:[%s4 + $0x154] sm:$0xf]
    %v1869 = vld [vmem:[%s4 + $0x158] sm:$0xf]
    %v1870 = vld [vmem:[%s4 + $0x15c] sm:$0xf]
    %v1871 = vld [vmem:[%s4 + $0x160] sm:$0xf]
    %v1872 = vld [vmem:[%s4 + $0x164] sm:$0xf]
    %v1873 = vld [vmem:[%s4 + $0x168] sm:$0xf]
    %v1874 = vld [vmem:[%s4 + $0x16c] sm:$0xf]
    %v1875 = vld [vmem:[%s4 + $0x170] sm:$0xf]
    %v1876 = vld [vmem:[%s4 + $0x174] sm:$0xf]
    %v1877 = vld [vmem:[%s4 + $0x178] sm:$0xf]
    %v1878 = vld [vmem:[%s4 + $0x17c] sm:$0xf]
    %v1879 = vld [vmem:[%s4 + $0x180] sm:$0xf]
    %v1880 = vld [vmem:[%s4 + $0x184] sm:$0xf]
    %v1881 = vld [vmem:[%s4 + $0x188] sm:$0xf]
    %v1882 = vld [vmem:[%s4 + $0x18c] sm:$0xf]
    %v1883 = vld [vmem:[%s4 + $0x190] sm:$0xf]
    %v1884 = vld [vmem:[%s4 + $0x194] sm:$0xf]
    %v1885 = vld [vmem:[%s4 + $0x198] sm:$0xf]
    %v1886 = vld [vmem:[%s4 + $0x19c] sm:$0xf]
    %v1887 = vld [vmem:[%s4 + $0x1a0] sm:$0xf]
    %v1888 = vld [vmem:[%s4 + $0x1a4] sm:$0xf]
    %v1889 = vld [vmem:[%s4 + $0x1a8] sm:$0xf]
    %v1890 = vld [vmem:[%s4 + $0x1ac] sm:$0xf]
    %v1891 = vld [vmem:[%s4 + $0x1b0] sm:$0xf]
    %v1892 = vld [vmem:[%s4 + $0x1b4] sm:$0xf]
    %v1893 = vld [vmem:[%s4 + $0x1b8] sm:$0xf]
    %v1894 = vld [vmem:[%s4 + $0x1bc] sm:$0xf]
    %v1895 = vld [vmem:[%s4 + $0x1c0] sm:$0xf]
    %v1896 = vld [vmem:[%s4 + $0x1c4] sm:$0xf]
    %v1897 = vld [vmem:[%s4 + $0x1c8] sm:$0xf]
    %v1898 = vld [vmem:[%s4 + $0x1cc] sm:$0xf]
    %v1899 = vld [vmem:[%s4 + $0x1d0] sm:$0xf]
    %v1900 = vld [vmem:[%s4 + $0x1d4] sm:$0xf]
    %v1901 = vld [vmem:[%s4 + $0x1d8] sm:$0xf]
    %v1902 = vld [vmem:[%s4 + $0x1dc] sm:$0xf]
    %v1903 = vld [vmem:[%s4 + $0x1e0] sm:$0xf]
    %v1904 = vld [vmem:[%s4 + $0x1e4] sm:$0xf]
    %v1905 = vld [vmem:[%s4 + $0x1e8] sm:$0xf]
    %v1906 = vld [vmem:[%s4 + $0x1ec] sm:$0xf]
    %v1907 = vld [vmem:[%s4 + $0x1f0] sm:$0xf]
    %v1908 = vld [vmem:[%s4 + $0x1f4] sm:$0xf]
    %v1909 = vld [vmem:[%s4 + $0x1f8] sm:$0xf]
    %v1910 = vld [vmem:[%s4 + $0x1fc] sm:$0xf]
    %v1911 = vld [vmem:[%s4 + $0x200] sm:$0xf]
    %v1912 = vld [vmem:[%s4 + $0x204] sm:$0xf]
    %v1913 = vld [vmem:[%s4 + $0x208] sm:$0xf]
    %v1914 = vld [vmem:[%s4 + $0x20c] sm:$0xf]
    %v1915 = vld [vmem:[%s4 + $0x210] sm:$0xf]
    %v1916 = vld [vmem:[%s4 + $0x214] sm:$0xf]
    %v1917 = vld [vmem:[%s4 + $0x218] sm:$0xf]
    %v1918 = vld [vmem:[%s4 + $0x21c] sm:$0xf]
    %v1919 = vld [vmem:[%s4 + $0x220] sm:$0xf]
    %v1920 = vld [vmem:[%s4 + $0x224] sm:$0xf]
    %v1921 = vld [vmem:[%s4 + $0x228] sm:$0xf]
    %v1922 = vld [vmem:[%s4 + $0x22c] sm:$0xf]
    %v1923 = vld [vmem:[%s4 + $0x230] sm:$0xf]
    %v1924 = vld [vmem:[%s4 + $0x234] sm:$0xf]
    %v1925 = vld [vmem:[%s4 + $0x238] sm:$0xf]
    %v1926 = vld [vmem:[%s4 + $0x23c] sm:$0xf]
    %v1927 = vld [vmem:[%s4 + $0x240] sm:$0xf]
    %v1928 = vld [vmem:[%s4 + $0x244] sm:$0xf]
    %v1929 = vld [vmem:[%s4 + $0x248] sm:$0xf]
    %v1930 = vld [vmem:[%s4 + $0x24c] sm:$0xf]
    %v1931 = vld [vmem:[%s4 + $0x250] sm:$0xf]
    %v1932 = vld [vmem:[%s4 + $0x254] sm:$0xf]
    %v1933 = vld [vmem:[%s4 + $0x258] sm:$0xf]
    %v1934 = vld [vmem:[%s4 + $0x25c] sm:$0xf]
    %v1935 = vld [vmem:[%s4 + $0x260] sm:$0xf]
    %v1936 = vld [vmem:[%s4 + $0x264] sm:$0xf]
    %v1937 = vld [vmem:[%s4 + $0x268] sm:$0xf]
    %v1938 = vld [vmem:[%s4 + $0x26c] sm:$0xf]
    %v1939 = vld [vmem:[%s4 + $0x270] sm:$0xf]
    %v1940 = vld [vmem:[%s4 + $0x274] sm:$0xf]
    %v1941 = vld [vmem:[%s4 + $0x278] sm:$0xf]
    %v1942 = vld [vmem:[%s4 + $0x27c] sm:$0xf]
    %v1943 = vld [vmem:[%s4 + $0x280] sm:$0xf]
    %v1944 = vld [vmem:[%s4 + $0x284] sm:$0xf]
    %v1945 = vld [vmem:[%s4 + $0x288] sm:$0xf]
    %v1946 = vld [vmem:[%s4 + $0x28c] sm:$0xf]
    %v1947 = vld [vmem:[%s4 + $0x290] sm:$0xf]
    %v1948 = vld [vmem:[%s4 + $0x294] sm:$0xf]
    %v1949 = vld [vmem:[%s4 + $0x298] sm:$0xf]
    %v1950 = vld [vmem:[%s4 + $0x29c] sm:$0xf]
    %v1951 = vld [vmem:[%s4 + $0x2a0] sm:$0xf]
    %v1952 = vld [vmem:[%s4 + $0x2a4] sm:$0xf]
    %v1953 = vld [vmem:[%s4 + $0x2a8] sm:$0xf]
    %v1954 = vld [vmem:[%s4 + $0x2ac] sm:$0xf]
    %v1955 = vld [vmem:[%s4 + $0x2b0] sm:$0xf]
    %v1956 = vld [vmem:[%s4 + $0x2b4] sm:$0xf]
    %v1957 = vld [vmem:[%s4 + $0x2b8] sm:$0xf]
    %v1958 = vld [vmem:[%s4 + $0x2bc] sm:$0xf]
    %v1959 = vld [vmem:[%s4 + $0x2c0] sm:$0xf]
    %v1960 = vld [vmem:[%s4 + $0x2c4] sm:$0xf]
    %v1961 = vld [vmem:[%s4 + $0x2c8] sm:$0xf]
    %v1962 = vld [vmem:[%s4 + $0x2cc] sm:$0xf]
    %v1963 = vld [vmem:[%s4 + $0x2d0] sm:$0xf]
    %v1964 = vld [vmem:[%s4 + $0x2d4] sm:$0xf]
    %v1965 = vld [vmem:[%s4 + $0x2d8] sm:$0xf]
    %v1966 = vld [vmem:[%s4 + $0x2dc] sm:$0xf]
    %v1967 = vld [vmem:[%s4 + $0x2e0] sm:$0xf]
    %v1968 = vld [vmem:[%s4 + $0x2e4] sm:$0xf]
    %v1969 = vld [vmem:[%s4 + $0x2e8] sm:$0xf]
    %v1970 = vld [vmem:[%s4 + $0x2ec] sm:$0xf]
    %v1971 = vld [vmem:[%s4 + $0x2f0] sm:$0xf]
    %v1972 = vld [vmem:[%s4 + $0x2f4] sm:$0xf]
    %v1973 = vld [vmem:[%s4 + $0x2f8] sm:$0xf]
    %v1974 = vld [vmem:[%s4 + $0x2fc] sm:$0xf]
    %v1975 = vld [vmem:[%s4 + $0x300] sm:$0xf]
    %v1976 = vld [vmem:[%s4 + $0x304] sm:$0xf]
    %v1977 = vld [vmem:[%s4 + $0x308] sm:$0xf]
    %v1978 = vld [vmem:[%s4 + $0x30c] sm:$0xf]
    %v1979 = vld [vmem:[%s4 + $0x310] sm:$0xf]
    %v1980 = vld [vmem:[%s4 + $0x314] sm:$0xf]
    %v1981 = vld [vmem:[%s4 + $0x318] sm:$0xf]
    %v1982 = vld [vmem:[%s4 + $0x31c] sm:$0xf]
    %v1983 = vld [vmem:[%s4 + $0x320] sm:$0xf]
    %v1984 = vld [vmem:[%s4 + $0x324] sm:$0xf]
    %v1985 = vld [vmem:[%s4 + $0x328] sm:$0xf]
    %v1986 = vld [vmem:[%s4 + $0x32c] sm:$0xf]
    %v1987 = vld [vmem:[%s4 + $0x330] sm:$0xf]
    %v1988 = vld [vmem:[%s4 + $0x334] sm:$0xf]
    %v1989 = vld [vmem:[%s4 + $0x338] sm:$0xf]
    %v1990 = vld [vmem:[%s4 + $0x33c] sm:$0xf]
    %v1991 = vld [vmem:[%s4 + $0x340] sm:$0xf]
    %v1992 = vld [vmem:[%s4 + $0x344] sm:$0xf]
    %v1993 = vld [vmem:[%s4 + $0x348] sm:$0xf]
    %v1994 = vld [vmem:[%s4 + $0x34c] sm:$0xf]
    %v1995 = vld [vmem:[%s4 + $0x350] sm:$0xf]
    %v1996 = vld [vmem:[%s4 + $0x354] sm:$0xf]
    %v1997 = vld [vmem:[%s4 + $0x358] sm:$0xf]
    %v1998 = vld [vmem:[%s4 + $0x35c] sm:$0xf]
    %v1999 = vld [vmem:[%s4 + $0x360] sm:$0xf]
    %v2000 = vld [vmem:[%s4 + $0x364] sm:$0xf]
    %v2001 = vld [vmem:[%s4 + $0x368] sm:$0xf]
    %v2002 = vld [vmem:[%s4 + $0x36c] sm:$0xf]
    %v2003 = vld [vmem:[%s4 + $0x370] sm:$0xf]
    %v2004 = vld [vmem:[%s4 + $0x374] sm:$0xf]
    %v2005 = vld [vmem:[%s4 + $0x378] sm:$0xf]
    %v2006 = vld [vmem:[%s4 + $0x37c] sm:$0xf]
    %v2007 = vld [vmem:[%s4 + $0x380] sm:$0xf]
    %v2008 = vld [vmem:[%s4 + $0x384] sm:$0xf]
    %v2009 = vld [vmem:[%s4 + $0x388] sm:$0xf]
    %v2010 = vld [vmem:[%s4 + $0x38c] sm:$0xf]
    %v2011 = vld [vmem:[%s4 + $0x390] sm:$0xf]
    %v2012 = vld [vmem:[%s4 + $0x394] sm:$0xf]
    %v2013 = vld [vmem:[%s4 + $0x398] sm:$0xf]
    %v2014 = vld [vmem:[%s4 + $0x39c] sm:$0xf]
    %v2015 = vld [vmem:[%s4 + $0x3a0] sm:$0xf]
    %v2016 = vld [vmem:[%s4 + $0x3a4] sm:$0xf]
    %v2017 = vld [vmem:[%s4 + $0x3a8] sm:$0xf]
    %v2018 = vld [vmem:[%s4 + $0x3ac] sm:$0xf]
    %v2019 = vld [vmem:[%s4 + $0x3b0] sm:$0xf]
    %v2020 = vld [vmem:[%s4 + $0x3b4] sm:$0xf]
    %v2021 = vld [vmem:[%s4 + $0x3b8] sm:$0xf]
    %v2022 = vld [vmem:[%s4 + $0x3bc] sm:$0xf]
    %v2023 = vld [vmem:[%s4 + $0x3c0] sm:$0xf]
    %v2024 = vld [vmem:[%s4 + $0x3c4] sm:$0xf]
    %v2025 = vld [vmem:[%s4 + $0x3c8] sm:$0xf]
    %v2026 = vld [vmem:[%s4 + $0x3cc] sm:$0xf]
    %v2027 = vld [vmem:[%s4 + $0x3d0] sm:$0xf]
    %v2028 = vld [vmem:[%s4 + $0x3d4] sm:$0xf]
    %v2029 = vld [vmem:[%s4 + $0x3d8] sm:$0xf]
    %v2030 = vld [vmem:[%s4 + $0x3dc] sm:$0xf]
    %v2031 = vld [vmem:[%s4 + $0x3e0] sm:$0xf]
    %v2032 = vld [vmem:[%s4 + $0x3e4] sm:$0xf]
    %v2033 = vld [vmem:[%s4 + $0x3e8] sm:$0xf]
    %v2034 = vld [vmem:[%s4 + $0x3ec] sm:$0xf]
    %v2035 = vld [vmem:[%s4 + $0x3f0] sm:$0xf]
    %v2036 = vld [vmem:[%s4 + $0x3f4] sm:$0xf]
    %v2037 = vld [vmem:[%s4 + $0x3f8] sm:$0xf]
    %v2038 = vld [vmem:[%s4 + $0x3fc] sm:$0xf]
    %v2039 = vpack.c.bf16 %v1767, %v1751
    %v2040 = vpack.c.bf16 %v1768, %v1752
    %v2041 = vpack.c.bf16 %v1769, %v1753
    %v2042 = vpack.c.bf16 %v1770, %v1754
    %v2043 = vpack.c.bf16 %v1771, %v1755
    %v2044 = vpack.c.bf16 %v1772, %v1756
    %v2045 = vpack.c.bf16 %v1773, %v1757
    %v2046 = vpack.c.bf16 %v1774, %v1758
    %v2047 = vpack.c.bf16 %v1775, %v1759
    %v2048 = vpack.c.bf16 %v1776, %v1760
    %v2049 = vpack.c.bf16 %v1777, %v1761
    %v2050 = vpack.c.bf16 %v1778, %v1762
    %v2051 = vpack.c.bf16 %v1779, %v1763
    %v2052 = vpack.c.bf16 %v1780, %v1764
    %v2053 = vpack.c.bf16 %v1781, %v1765
    %v2054 = vpack.c.bf16 %v1782, %v1766
    %v2055 = vld [vmem:[%s5 + $0x28] sm:$0x1]
    %v2056 = vlaneseq
    %v2057 = vshrl.u32 %v2056, 7
    %v2058 = vsub.s32 0, %v2057
    %v2059 = vrot.slane %v2055, %v2058
    %v2316 = vunpack.c.l.b16 %v1783
    %v2317 = vunpack.c.l.b16 %v1784
    %v2318 = vunpack.c.l.b16 %v1785
    %v2319 = vunpack.c.l.b16 %v1786
    %v2320 = vunpack.c.l.b16 %v1787
    %v2321 = vunpack.c.l.b16 %v1788
    %v2322 = vunpack.c.l.b16 %v1789
    %v2323 = vunpack.c.l.b16 %v1790
    %v2324 = vunpack.c.l.b16 %v1791
    %v2325 = vunpack.c.l.b16 %v1792
    %v2326 = vunpack.c.l.b16 %v1793
    %v2327 = vunpack.c.l.b16 %v1794
    %v2328 = vunpack.c.l.b16 %v1795
    %v2329 = vunpack.c.l.b16 %v1796
    %v2330 = vunpack.c.l.b16 %v1797
    %v2331 = vunpack.c.l.b16 %v1798
    %v2332 = vunpack.c.l.b16 %v1799
    %v2333 = vunpack.c.l.b16 %v1800
    %v2334 = vunpack.c.l.b16 %v1801
    %v2335 = vunpack.c.l.b16 %v1802
    %v2336 = vunpack.c.l.b16 %v1803
    %v2337 = vunpack.c.l.b16 %v1804
    %v2338 = vunpack.c.l.b16 %v1805
    %v2339 = vunpack.c.l.b16 %v1806
    %v2340 = vunpack.c.l.b16 %v1807
    %v2341 = vunpack.c.l.b16 %v1808
    %v2342 = vunpack.c.l.b16 %v1809
    %v2343 = vunpack.c.l.b16 %v1810
    %v2344 = vunpack.c.l.b16 %v1811
    %v2345 = vunpack.c.l.b16 %v1812
    %v2346 = vunpack.c.l.b16 %v1813
    %v2347 = vunpack.c.l.b16 %v1814
    %v2348 = vunpack.c.l.b16 %v1815
    %v2349 = vunpack.c.l.b16 %v1816
    %v2350 = vunpack.c.l.b16 %v1817
    %v2351 = vunpack.c.l.b16 %v1818
    %v2352 = vunpack.c.l.b16 %v1819
    %v2353 = vunpack.c.l.b16 %v1820
    %v2354 = vunpack.c.l.b16 %v1821
    %v2355 = vunpack.c.l.b16 %v1822
    %v2356 = vunpack.c.l.b16 %v1823
    %v2357 = vunpack.c.l.b16 %v1824
    %v2358 = vunpack.c.l.b16 %v1825
    %v2359 = vunpack.c.l.b16 %v1826
    %v2360 = vunpack.c.l.b16 %v1827
    %v2361 = vunpack.c.l.b16 %v1828
    %v2362 = vunpack.c.l.b16 %v1829
    %v2363 = vunpack.c.l.b16 %v1830
    %v2364 = vunpack.c.l.b16 %v1831
    %v2365 = vunpack.c.l.b16 %v1832
    %v2366 = vunpack.c.l.b16 %v1833
    %v2367 = vunpack.c.l.b16 %v1834
    %v2368 = vunpack.c.l.b16 %v1835
    %v2369 = vunpack.c.l.b16 %v1836
    %v2370 = vunpack.c.l.b16 %v1837
    %v2371 = vunpack.c.l.b16 %v1838
    %v2372 = vunpack.c.l.b16 %v1839
    %v2373 = vunpack.c.l.b16 %v1840
    %v2374 = vunpack.c.l.b16 %v1841
    %v2375 = vunpack.c.l.b16 %v1842
    %v2376 = vunpack.c.l.b16 %v1843
    %v2377 = vunpack.c.l.b16 %v1844
    %v2378 = vunpack.c.l.b16 %v1845
    %v2379 = vunpack.c.l.b16 %v1846
    %v2380 = vunpack.c.l.b16 %v1847
    %v2381 = vunpack.c.l.b16 %v1848
    %v2382 = vunpack.c.l.b16 %v1849
    %v2383 = vunpack.c.l.b16 %v1850
    %v2384 = vunpack.c.l.b16 %v1851
    %v2385 = vunpack.c.l.b16 %v1852
    %v2386 = vunpack.c.l.b16 %v1853
    %v2387 = vunpack.c.l.b16 %v1854
    %v2388 = vunpack.c.l.b16 %v1855
    %v2389 = vunpack.c.l.b16 %v1856
    %v2390 = vunpack.c.l.b16 %v1857
    %v2391 = vunpack.c.l.b16 %v1858
    %v2392 = vunpack.c.l.b16 %v1859
    %v2393 = vunpack.c.l.b16 %v1860
    %v2394 = vunpack.c.l.b16 %v1861
    %v2395 = vunpack.c.l.b16 %v1862
    %v2396 = vunpack.c.l.b16 %v1863
    %v2397 = vunpack.c.l.b16 %v1864
    %v2398 = vunpack.c.l.b16 %v1865
    %v2399 = vunpack.c.l.b16 %v1866
    %v2400 = vunpack.c.l.b16 %v1867
    %v2401 = vunpack.c.l.b16 %v1868
    %v2402 = vunpack.c.l.b16 %v1869
    %v2403 = vunpack.c.l.b16 %v1870
    %v2404 = vunpack.c.l.b16 %v1871
    %v2405 = vunpack.c.l.b16 %v1872
    %v2406 = vunpack.c.l.b16 %v1873
    %v2407 = vunpack.c.l.b16 %v1874
    %v2408 = vunpack.c.l.b16 %v1875
    %v2409 = vunpack.c.l.b16 %v1876
    %v2410 = vunpack.c.l.b16 %v1877
    %v2411 = vunpack.c.l.b16 %v1878
    %v2412 = vunpack.c.l.b16 %v1879
    %v2413 = vunpack.c.l.b16 %v1880
    %v2414 = vunpack.c.l.b16 %v1881
    %v2415 = vunpack.c.l.b16 %v1882
    %v2416 = vunpack.c.l.b16 %v1883
    %v2417 = vunpack.c.l.b16 %v1884
    %v2418 = vunpack.c.l.b16 %v1885
    %v2419 = vunpack.c.l.b16 %v1886
    %v2420 = vunpack.c.l.b16 %v1887
    %v2421 = vunpack.c.l.b16 %v1888
    %v2422 = vunpack.c.l.b16 %v1889
    %v2423 = vunpack.c.l.b16 %v1890
    %v2424 = vunpack.c.l.b16 %v1891
    %v2425 = vunpack.c.l.b16 %v1892
    %v2426 = vunpack.c.l.b16 %v1893
    %v2427 = vunpack.c.l.b16 %v1894
    %v2428 = vunpack.c.l.b16 %v1895
    %v2429 = vunpack.c.l.b16 %v1896
    %v2430 = vunpack.c.l.b16 %v1897
    %v2431 = vunpack.c.l.b16 %v1898
    %v2432 = vunpack.c.l.b16 %v1899
    %v2433 = vunpack.c.l.b16 %v1900
    %v2434 = vunpack.c.l.b16 %v1901
    %v2435 = vunpack.c.l.b16 %v1902
    %v2436 = vunpack.c.l.b16 %v1903
    %v2437 = vunpack.c.l.b16 %v1904
    %v2438 = vunpack.c.l.b16 %v1905
    %v2439 = vunpack.c.l.b16 %v1906
    %v2440 = vunpack.c.l.b16 %v1907
    %v2441 = vunpack.c.l.b16 %v1908
    %v2442 = vunpack.c.l.b16 %v1909
    %v2443 = vunpack.c.l.b16 %v1910
    %v2444 = vunpack.c.l.b16 %v1911
    %v2445 = vunpack.c.l.b16 %v1912
    %v2446 = vunpack.c.l.b16 %v1913
    %v2447 = vunpack.c.l.b16 %v1914
    %v2448 = vunpack.c.l.b16 %v1915
    %v2449 = vunpack.c.l.b16 %v1916
    %v2450 = vunpack.c.l.b16 %v1917
    %v2451 = vunpack.c.l.b16 %v1918
    %v2452 = vunpack.c.l.b16 %v1919
    %v2453 = vunpack.c.l.b16 %v1920
    %v2454 = vunpack.c.l.b16 %v1921
    %v2455 = vunpack.c.l.b16 %v1922
    %v2456 = vunpack.c.l.b16 %v1923
    %v2457 = vunpack.c.l.b16 %v1924
    %v2458 = vunpack.c.l.b16 %v1925
    %v2459 = vunpack.c.l.b16 %v1926
    %v2460 = vunpack.c.l.b16 %v1927
    %v2461 = vunpack.c.l.b16 %v1928
    %v2462 = vunpack.c.l.b16 %v1929
    %v2463 = vunpack.c.l.b16 %v1930
    %v2464 = vunpack.c.l.b16 %v1931
    %v2465 = vunpack.c.l.b16 %v1932
    %v2466 = vunpack.c.l.b16 %v1933
    %v2467 = vunpack.c.l.b16 %v1934
    %v2468 = vunpack.c.l.b16 %v1935
    %v2469 = vunpack.c.l.b16 %v1936
    %v2470 = vunpack.c.l.b16 %v1937
    %v2471 = vunpack.c.l.b16 %v1938
    %v2472 = vunpack.c.l.b16 %v1939
    %v2473 = vunpack.c.l.b16 %v1940
    %v2474 = vunpack.c.l.b16 %v1941
    %v2475 = vunpack.c.l.b16 %v1942
    %v2476 = vunpack.c.l.b16 %v1943
    %v2477 = vunpack.c.l.b16 %v1944
    %v2478 = vunpack.c.l.b16 %v1945
    %v2479 = vunpack.c.l.b16 %v1946
    %v2480 = vunpack.c.l.b16 %v1947
    %v2481 = vunpack.c.l.b16 %v1948
    %v2482 = vunpack.c.l.b16 %v1949
    %v2483 = vunpack.c.l.b16 %v1950
    %v2484 = vunpack.c.l.b16 %v1951
    %v2485 = vunpack.c.l.b16 %v1952
    %v2486 = vunpack.c.l.b16 %v1953
    %v2487 = vunpack.c.l.b16 %v1954
    %v2488 = vunpack.c.l.b16 %v1955
    %v2489 = vunpack.c.l.b16 %v1956
    %v2490 = vunpack.c.l.b16 %v1957
    %v2491 = vunpack.c.l.b16 %v1958
    %v2492 = vunpack.c.l.b16 %v1959
    %v2493 = vunpack.c.l.b16 %v1960
    %v2494 = vunpack.c.l.b16 %v1961
    %v2495 = vunpack.c.l.b16 %v1962
    %v2496 = vunpack.c.l.b16 %v1963
    %v2497 = vunpack.c.l.b16 %v1964
    %v2498 = vunpack.c.l.b16 %v1965
    %v2499 = vunpack.c.l.b16 %v1966
    %v2500 = vunpack.c.l.b16 %v1967
    %v2501 = vunpack.c.l.b16 %v1968
    %v2502 = vunpack.c.l.b16 %v1969
    %v2503 = vunpack.c.l.b16 %v1970
    %v2504 = vunpack.c.l.b16 %v1971
    %v2505 = vunpack.c.l.b16 %v1972
    %v2506 = vunpack.c.l.b16 %v1973
    %v2507 = vunpack.c.l.b16 %v1974
    %v2508 = vunpack.c.l.b16 %v1975
    %v2509 = vunpack.c.l.b16 %v1976
    %v2510 = vunpack.c.l.b16 %v1977
    %v2511 = vunpack.c.l.b16 %v1978
    %v2512 = vunpack.c.l.b16 %v1979
    %v2513 = vunpack.c.l.b16 %v1980
    %v2514 = vunpack.c.l.b16 %v1981
    %v2515 = vunpack.c.l.b16 %v1982
    %v2516 = vunpack.c.l.b16 %v1983
    %v2517 = vunpack.c.l.b16 %v1984
    %v2518 = vunpack.c.l.b16 %v1985
    %v2519 = vunpack.c.l.b16 %v1986
    %v2520 = vunpack.c.l.b16 %v1987
    %v2521 = vunpack.c.l.b16 %v1988
    %v2522 = vunpack.c.l.b16 %v1989
    %v2523 = vunpack.c.l.b16 %v1990
    %v2524 = vunpack.c.l.b16 %v1991
    %v2525 = vunpack.c.l.b16 %v1992
    %v2526 = vunpack.c.l.b16 %v1993
    %v2527 = vunpack.c.l.b16 %v1994
    %v2528 = vunpack.c.l.b16 %v1995
    %v2529 = vunpack.c.l.b16 %v1996
    %v2530 = vunpack.c.l.b16 %v1997
    %v2531 = vunpack.c.l.b16 %v1998
    %v2532 = vunpack.c.l.b16 %v1999
    %v2533 = vunpack.c.l.b16 %v2000
    %v2534 = vunpack.c.l.b16 %v2001
    %v2535 = vunpack.c.l.b16 %v2002
    %v2536 = vunpack.c.l.b16 %v2003
    %v2537 = vunpack.c.l.b16 %v2004
    %v2538 = vunpack.c.l.b16 %v2005
    %v2539 = vunpack.c.l.b16 %v2006
    %v2540 = vunpack.c.l.b16 %v2007
    %v2541 = vunpack.c.l.b16 %v2008
    %v2542 = vunpack.c.l.b16 %v2009
    %v2543 = vunpack.c.l.b16 %v2010
    %v2544 = vunpack.c.l.b16 %v2011
    %v2545 = vunpack.c.l.b16 %v2012
    %v2546 = vunpack.c.l.b16 %v2013
    %v2547 = vunpack.c.l.b16 %v2014
    %v2548 = vunpack.c.l.b16 %v2015
    %v2549 = vunpack.c.l.b16 %v2016
    %v2550 = vunpack.c.l.b16 %v2017
    %v2551 = vunpack.c.l.b16 %v2018
    %v2552 = vunpack.c.l.b16 %v2019
    %v2553 = vunpack.c.l.b16 %v2020
    %v2554 = vunpack.c.l.b16 %v2021
    %v2555 = vunpack.c.l.b16 %v2022
    %v2556 = vunpack.c.l.b16 %v2023
    %v2557 = vunpack.c.l.b16 %v2024
    %v2558 = vunpack.c.l.b16 %v2025
    %v2559 = vunpack.c.l.b16 %v2026
    %v2560 = vunpack.c.l.b16 %v2027
    %v2561 = vunpack.c.l.b16 %v2028
    %v2562 = vunpack.c.l.b16 %v2029
    %v2563 = vunpack.c.l.b16 %v2030
    %v2564 = vunpack.c.l.b16 %v2031
    %v2565 = vunpack.c.l.b16 %v2032
    %v2566 = vunpack.c.l.b16 %v2033
    %v2567 = vunpack.c.l.b16 %v2034
    %v2568 = vunpack.c.l.b16 %v2035
    %v2569 = vunpack.c.l.b16 %v2036
    %v2570 = vunpack.c.l.b16 %v2037
    %v2571 = vunpack.c.l.b16 %v2038
    %v2572 = vpack.c.b16 %v2317, %v2316
    %v2573 = vpack.c.b16 %v2319, %v2318
    %v2574 = vpack.c.b16 %v2321, %v2320
    %v2575 = vpack.c.b16 %v2323, %v2322
    %v2576 = vpack.c.b16 %v2325, %v2324
    %v2577 = vpack.c.b16 %v2327, %v2326
    %v2578 = vpack.c.b16 %v2329, %v2328
    %v2579 = vpack.c.b16 %v2331, %v2330
    %v2580 = vpack.c.b16 %v2333, %v2332
    %v2581 = vpack.c.b16 %v2335, %v2334
    %v2582 = vpack.c.b16 %v2337, %v2336
    %v2583 = vpack.c.b16 %v2339, %v2338
    %v2584 = vpack.c.b16 %v2341, %v2340
    %v2585 = vpack.c.b16 %v2343, %v2342
    %v2586 = vpack.c.b16 %v2345, %v2344
    %v2587 = vpack.c.b16 %v2347, %v2346
    %v2588 = vpack.c.b16 %v2349, %v2348
    %v2589 = vpack.c.b16 %v2351, %v2350
    %v2590 = vpack.c.b16 %v2353, %v2352
    %v2591 = vpack.c.b16 %v2355, %v2354
    %v2592 = vpack.c.b16 %v2357, %v2356
    %v2593 = vpack.c.b16 %v2359, %v2358
    %v2594 = vpack.c.b16 %v2361, %v2360
    %v2595 = vpack.c.b16 %v2363, %v2362
    %v2596 = vpack.c.b16 %v2365, %v2364
    %v2597 = vpack.c.b16 %v2367, %v2366
    %v2598 = vpack.c.b16 %v2369, %v2368
    %v2599 = vpack.c.b16 %v2371, %v2370
    %v2600 = vpack.c.b16 %v2373, %v2372
    %v2601 = vpack.c.b16 %v2375, %v2374
    %v2602 = vpack.c.b16 %v2377, %v2376
    %v2603 = vpack.c.b16 %v2379, %v2378
    %v2604 = vpack.c.b16 %v2381, %v2380
    %v2605 = vpack.c.b16 %v2383, %v2382
    %v2606 = vpack.c.b16 %v2385, %v2384
    %v2607 = vpack.c.b16 %v2387, %v2386
    %v2608 = vpack.c.b16 %v2389, %v2388
    %v2609 = vpack.c.b16 %v2391, %v2390
    %v2610 = vpack.c.b16 %v2393, %v2392
    %v2611 = vpack.c.b16 %v2395, %v2394
    %v2612 = vpack.c.b16 %v2397, %v2396
    %v2613 = vpack.c.b16 %v2399, %v2398
    %v2614 = vpack.c.b16 %v2401, %v2400
    %v2615 = vpack.c.b16 %v2403, %v2402
    %v2616 = vpack.c.b16 %v2405, %v2404
    %v2617 = vpack.c.b16 %v2407, %v2406
    %v2618 = vpack.c.b16 %v2409, %v2408
    %v2619 = vpack.c.b16 %v2411, %v2410
    %v2620 = vpack.c.b16 %v2413, %v2412
    %v2621 = vpack.c.b16 %v2415, %v2414
    %v2622 = vpack.c.b16 %v2417, %v2416
    %v2623 = vpack.c.b16 %v2419, %v2418
    %v2624 = vpack.c.b16 %v2421, %v2420
    %v2625 = vpack.c.b16 %v2423, %v2422
    %v2626 = vpack.c.b16 %v2425, %v2424
    %v2627 = vpack.c.b16 %v2427, %v2426
    %v2628 = vpack.c.b16 %v2429, %v2428
    %v2629 = vpack.c.b16 %v2431, %v2430
    %v2630 = vpack.c.b16 %v2433, %v2432
    %v2631 = vpack.c.b16 %v2435, %v2434
    %v2632 = vpack.c.b16 %v2437, %v2436
    %v2633 = vpack.c.b16 %v2439, %v2438
    %v2634 = vpack.c.b16 %v2441, %v2440
    %v2635 = vpack.c.b16 %v2443, %v2442
    %v2636 = vpack.c.b16 %v2445, %v2444
    %v2637 = vpack.c.b16 %v2447, %v2446
    %v2638 = vpack.c.b16 %v2449, %v2448
    %v2639 = vpack.c.b16 %v2451, %v2450
    %v2640 = vpack.c.b16 %v2453, %v2452
    %v2641 = vpack.c.b16 %v2455, %v2454
    %v2642 = vpack.c.b16 %v2457, %v2456
    %v2643 = vpack.c.b16 %v2459, %v2458
    %v2644 = vpack.c.b16 %v2461, %v2460
    %v2645 = vpack.c.b16 %v2463, %v2462
    %v2646 = vpack.c.b16 %v2465, %v2464
    %v2647 = vpack.c.b16 %v2467, %v2466
    %v2648 = vpack.c.b16 %v2469, %v2468
    %v2649 = vpack.c.b16 %v2471, %v2470
    %v2650 = vpack.c.b16 %v2473, %v2472
    %v2651 = vpack.c.b16 %v2475, %v2474
    %v2652 = vpack.c.b16 %v2477, %v2476
    %v2653 = vpack.c.b16 %v2479, %v2478
    %v2654 = vpack.c.b16 %v2481, %v2480
    %v2655 = vpack.c.b16 %v2483, %v2482
    %v2656 = vpack.c.b16 %v2485, %v2484
    %v2657 = vpack.c.b16 %v2487, %v2486
    %v2658 = vpack.c.b16 %v2489, %v2488
    %v2659 = vpack.c.b16 %v2491, %v2490
    %v2660 = vpack.c.b16 %v2493, %v2492
    %v2661 = vpack.c.b16 %v2495, %v2494
    %v2662 = vpack.c.b16 %v2497, %v2496
    %v2663 = vpack.c.b16 %v2499, %v2498
    %v2664 = vpack.c.b16 %v2501, %v2500
    %v2665 = vpack.c.b16 %v2503, %v2502
    %v2666 = vpack.c.b16 %v2505, %v2504
    %v2667 = vpack.c.b16 %v2507, %v2506
    %v2668 = vpack.c.b16 %v2509, %v2508
    %v2669 = vpack.c.b16 %v2511, %v2510
    %v2670 = vpack.c.b16 %v2513, %v2512
    %v2671 = vpack.c.b16 %v2515, %v2514
    %v2672 = vpack.c.b16 %v2517, %v2516
    %v2673 = vpack.c.b16 %v2519, %v2518
    %v2674 = vpack.c.b16 %v2521, %v2520
    %v2675 = vpack.c.b16 %v2523, %v2522
    %v2676 = vpack.c.b16 %v2525, %v2524
    %v2677 = vpack.c.b16 %v2527, %v2526
    %v2678 = vpack.c.b16 %v2529, %v2528
    %v2679 = vpack.c.b16 %v2531, %v2530
    %v2680 = vpack.c.b16 %v2533, %v2532
    %v2681 = vpack.c.b16 %v2535, %v2534
    %v2682 = vpack.c.b16 %v2537, %v2536
    %v2683 = vpack.c.b16 %v2539, %v2538
    %v2684 = vpack.c.b16 %v2541, %v2540
    %v2685 = vpack.c.b16 %v2543, %v2542
    %v2686 = vpack.c.b16 %v2545, %v2544
    %v2687 = vpack.c.b16 %v2547, %v2546
    %v2688 = vpack.c.b16 %v2549, %v2548
    %v2689 = vpack.c.b16 %v2551, %v2550
    %v2690 = vpack.c.b16 %v2553, %v2552
    %v2691 = vpack.c.b16 %v2555, %v2554
    %v2692 = vpack.c.b16 %v2557, %v2556
    %v2693 = vpack.c.b16 %v2559, %v2558
    %v2694 = vpack.c.b16 %v2561, %v2560
    %v2695 = vpack.c.b16 %v2563, %v2562
    %v2696 = vpack.c.b16 %v2565, %v2564
    %v2697 = vpack.c.b16 %v2567, %v2566
    %v2698 = vpack.c.b16 %v2569, %v2568
    %v2699 = vpack.c.b16 %v2571, %v2570
    %2828 = vmatprep.subr.bf16.mxu0 0
    %2829 = vmatpush1.bf16.msra.mxu0 %v2579
    %2830 = vmatprep.subr.bf16.mxu0 0
    %2831 = vmatpush1.bf16.msra.mxu0 %v2578
    %2832 = vmatprep.subr.bf16.mxu0 0
    %2833 = vmatpush1.bf16.msra.mxu0 %v2577
    %2834 = vmatprep.subr.bf16.mxu0 0
    %2835 = vmatpush1.bf16.msra.mxu0 %v2576
    %2836 = vmatprep.subr.bf16.mxu0 0
    %2837 = vmatpush1.bf16.msra.mxu0 %v2575
    %2838 = vmatprep.subr.bf16.mxu0 0
    %2839 = vmatpush1.bf16.msra.mxu0 %v2574
    %2840 = vmatprep.subr.bf16.mxu0 0
    %2841 = vmatpush1.bf16.msra.mxu0 %v2573
    %2842 = vmatprep.subr.bf16.mxu0 0
    %2843 = vmatpush1.bf16.msra.mxu0 %v2572
    %2844 = vmatprep.subr.bf16.mxu0 0
    %2845 = vmatpush2.bf16.msra.mxu0 %v2587
    %2846 = vmatprep.subr.bf16.mxu0 0
    %2847 = vmatpush2.bf16.msra.mxu0 %v2586
    %2848 = vmatprep.subr.bf16.mxu0 0
    %2849 = vmatpush2.bf16.msra.mxu0 %v2585
    %2850 = vmatprep.subr.bf16.mxu0 0
    %2851 = vmatpush2.bf16.msra.mxu0 %v2584
    %2852 = vmatprep.subr.bf16.mxu0 0
    %2853 = vmatpush2.bf16.msra.mxu0 %v2583
    %2854 = vmatprep.subr.bf16.mxu0 0
    %2855 = vmatpush2.bf16.msra.mxu0 %v2582
    %2856 = vmatprep.subr.bf16.mxu0 0
    %2857 = vmatpush2.bf16.msra.mxu0 %v2581
    %2858 = vmatprep.subr.bf16.mxu0 0
    %2859 = vmatpush2.bf16.msra.mxu0 %v2580
    %2860 = vmatprep.mubr.bf16.mxu0 %v2040
    %2861 = vmatmul.mubr.bf16.gmra.mxu0 %v2039
    %v2862 = vpop.f32.mrf.mxu0
    %v2863 = vadd.f32 %v2059, %v2862
    %v2864 = vpop.f32.mrf.mxu0
    %v2865 = vpop.f32.mrf.mxu0
    %v2866 = vadd.f32 %v2059, %v2865
    %v2867 = vpop.f32.mrf.mxu0
    %2868 = vdwg.mxu0
    %2869 = vmatprep.subr.bf16.mxu0 0
    %2870 = vmatpush1.bf16.msra.mxu0 %v2595
    %2871 = vmatprep.subr.bf16.mxu0 0
    %2872 = vmatpush1.bf16.msra.mxu0 %v2594
    %2873 = vmatprep.subr.bf16.mxu0 0
    %2874 = vmatpush1.bf16.msra.mxu0 %v2593
    %2875 = vmatprep.subr.bf16.mxu0 0
    %2876 = vmatpush1.bf16.msra.mxu0 %v2592
    %2877 = vmatprep.subr.bf16.mxu0 0
    %2878 = vmatpush1.bf16.msra.mxu0 %v2591
    %2879 = vmatprep.subr.bf16.mxu0 0
    %2880 = vmatpush1.bf16.msra.mxu0 %v2590
    %2881 = vmatprep.subr.bf16.mxu0 0
    %2882 = vmatpush1.bf16.msra.mxu0 %v2589
    %2883 = vmatprep.subr.bf16.mxu0 0
    %2884 = vmatpush1.bf16.msra.mxu0 %v2588
    %2885 = vmatprep.subr.bf16.mxu0 0
    %2886 = vmatpush2.bf16.msra.mxu0 %v2603
    %2887 = vmatprep.subr.bf16.mxu0 0
    %2888 = vmatpush2.bf16.msra.mxu0 %v2602
    %2889 = vmatprep.subr.bf16.mxu0 0
    %2890 = vmatpush2.bf16.msra.mxu0 %v2601
    %2891 = vmatprep.subr.bf16.mxu0 0
    %2892 = vmatpush2.bf16.msra.mxu0 %v2600
    %2893 = vmatprep.subr.bf16.mxu0 0
    %2894 = vmatpush2.bf16.msra.mxu0 %v2599
    %2895 = vmatprep.subr.bf16.mxu0 0
    %2896 = vmatpush2.bf16.msra.mxu0 %v2598
    %2897 = vmatprep.subr.bf16.mxu0 0
    %2898 = vmatpush2.bf16.msra.mxu0 %v2597
    %2899 = vmatprep.subr.bf16.mxu0 0
    %2900 = vmatpush2.bf16.msra.mxu0 %v2596
    %2901 = vmatprep.mubr.bf16.mxu0 %v2042
    %2902 = vmatmul.mubr.bf16.gmra.mxu0 %v2041
    %v2903 = vpop.f32.mrf.mxu0
    %v2904 = vadd.f32 %v2863, %v2903
    %v2905 = vpop.f32.mrf.mxu0
    %v2906 = vpop.f32.mrf.mxu0
    %v2907 = vadd.f32 %v2866, %v2906
    %v2908 = vpop.f32.mrf.mxu0
    %2909 = vdwg.mxu0
    %2910 = vmatprep.subr.bf16.mxu0 0
    %2911 = vmatpush1.bf16.msra.mxu0 %v2611
    %2912 = vmatprep.subr.bf16.mxu0 0
    %2913 = vmatpush1.bf16.msra.mxu0 %v2610
    %2914 = vmatprep.subr.bf16.mxu0 0
    %2915 = vmatpush1.bf16.msra.mxu0 %v2609
    %2916 = vmatprep.subr.bf16.mxu0 0
    %2917 = vmatpush1.bf16.msra.mxu0 %v2608
    %2918 = vmatprep.subr.bf16.mxu0 0
    %2919 = vmatpush1.bf16.msra.mxu0 %v2607
    %2920 = vmatprep.subr.bf16.mxu0 0
    %2921 = vmatpush1.bf16.msra.mxu0 %v2606
    %2922 = vmatprep.subr.bf16.mxu0 0
    %2923 = vmatpush1.bf16.msra.mxu0 %v2605
    %2924 = vmatprep.subr.bf16.mxu0 0
    %2925 = vmatpush1.bf16.msra.mxu0 %v2604
    %2926 = vmatprep.subr.bf16.mxu0 0
    %2927 = vmatpush2.bf16.msra.mxu0 %v2619
    %2928 = vmatprep.subr.bf16.mxu0 0
    %2929 = vmatpush2.bf16.msra.mxu0 %v2618
    %2930 = vmatprep.subr.bf16.mxu0 0
    %2931 = vmatpush2.bf16.msra.mxu0 %v2617
    %2932 = vmatprep.subr.bf16.mxu0 0
    %2933 = vmatpush2.bf16.msra.mxu0 %v2616
    %2934 = vmatprep.subr.bf16.mxu0 0
    %2935 = vmatpush2.bf16.msra.mxu0 %v2615
    %2936 = vmatprep.subr.bf16.mxu0 0
    %2937 = vmatpush2.bf16.msra.mxu0 %v2614
    %2938 = vmatprep.subr.bf16.mxu0 0
    %2939 = vmatpush2.bf16.msra.mxu0 %v2613
    %2940 = vmatprep.subr.bf16.mxu0 0
    %2941 = vmatpush2.bf16.msra.mxu0 %v2612
    %2942 = vmatprep.mubr.bf16.mxu0 %v2044
    %2943 = vmatmul.mubr.bf16.gmra.mxu0 %v2043
    %v2944 = vpop.f32.mrf.mxu0
    %v2945 = vadd.f32 %v2904, %v2944
    %v2946 = vpop.f32.mrf.mxu0
    %v2947 = vpop.f32.mrf.mxu0
    %v2948 = vadd.f32 %v2907, %v2947
    %v2949 = vpop.f32.mrf.mxu0
    %2950 = vdwg.mxu0
    %2951 = vmatprep.subr.bf16.mxu0 0
    %2952 = vmatpush1.bf16.msra.mxu0 %v2627
    %2953 = vmatprep.subr.bf16.mxu0 0
    %2954 = vmatpush1.bf16.msra.mxu0 %v2626
    %2955 = vmatprep.subr.bf16.mxu0 0
    %2956 = vmatpush1.bf16.msra.mxu0 %v2625
    %2957 = vmatprep.subr.bf16.mxu0 0
    %2958 = vmatpush1.bf16.msra.mxu0 %v2624
    %2959 = vmatprep.subr.bf16.mxu0 0
    %2960 = vmatpush1.bf16.msra.mxu0 %v2623
    %2961 = vmatprep.subr.bf16.mxu0 0
    %2962 = vmatpush1.bf16.msra.mxu0 %v2622
    %2963 = vmatprep.subr.bf16.mxu0 0
    %2964 = vmatpush1.bf16.msra.mxu0 %v2621
    %2965 = vmatprep.subr.bf16.mxu0 0
    %2966 = vmatpush1.bf16.msra.mxu0 %v2620
    %2967 = vmatprep.subr.bf16.mxu0 0
    %2968 = vmatpush2.bf16.msra.mxu0 %v2635
    %2969 = vmatprep.subr.bf16.mxu0 0
    %2970 = vmatpush2.bf16.msra.mxu0 %v2634
    %2971 = vmatprep.subr.bf16.mxu0 0
    %2972 = vmatpush2.bf16.msra.mxu0 %v2633
    %2973 = vmatprep.subr.bf16.mxu0 0
    %2974 = vmatpush2.bf16.msra.mxu0 %v2632
    %2975 = vmatprep.subr.bf16.mxu0 0
    %2976 = vmatpush2.bf16.msra.mxu0 %v2631
    %2977 = vmatprep.subr.bf16.mxu0 0
    %2978 = vmatpush2.bf16.msra.mxu0 %v2630
    %2979 = vmatprep.subr.bf16.mxu0 0
    %2980 = vmatpush2.bf16.msra.mxu0 %v2629
    %2981 = vmatprep.subr.bf16.mxu0 0
    %2982 = vmatpush2.bf16.msra.mxu0 %v2628
    %2983 = vmatprep.mubr.bf16.mxu0 %v2046
    %2984 = vmatmul.mubr.bf16.gmra.mxu0 %v2045
    %v2985 = vpop.f32.mrf.mxu0
    %v2986 = vadd.f32 %v2945, %v2985
    %v2987 = vpop.f32.mrf.mxu0
    %v2988 = vpop.f32.mrf.mxu0
    %v2989 = vadd.f32 %v2948, %v2988
    %v2990 = vpop.f32.mrf.mxu0
    %2991 = vdwg.mxu0
    %2992 = vmatprep.subr.bf16.mxu0 0
    %2993 = vmatpush1.bf16.msra.mxu0 %v2643
    %2994 = vmatprep.subr.bf16.mxu0 0
    %2995 = vmatpush1.bf16.msra.mxu0 %v2642
    %2996 = vmatprep.subr.bf16.mxu0 0
    %2997 = vmatpush1.bf16.msra.mxu0 %v2641
    %2998 = vmatprep.subr.bf16.mxu0 0
    %2999 = vmatpush1.bf16.msra.mxu0 %v2640
    %3000 = vmatprep.subr.bf16.mxu0 0
    %3001 = vmatpush1.bf16.msra.mxu0 %v2639
    %3002 = vmatprep.subr.bf16.mxu0 0
    %3003 = vmatpush1.bf16.msra.mxu0 %v2638
    %3004 = vmatprep.subr.bf16.mxu0 0
    %3005 = vmatpush1.bf16.msra.mxu0 %v2637
    %3006 = vmatprep.subr.bf16.mxu0 0
    %3007 = vmatpush1.bf16.msra.mxu0 %v2636
    %3008 = vmatprep.subr.bf16.mxu0 0
    %3009 = vmatpush2.bf16.msra.mxu0 %v2651
    %3010 = vmatprep.subr.bf16.mxu0 0
    %3011 = vmatpush2.bf16.msra.mxu0 %v2650
    %3012 = vmatprep.subr.bf16.mxu0 0
    %3013 = vmatpush2.bf16.msra.mxu0 %v2649
    %3014 = vmatprep.subr.bf16.mxu0 0
    %3015 = vmatpush2.bf16.msra.mxu0 %v2648
    %3016 = vmatprep.subr.bf16.mxu0 0
    %3017 = vmatpush2.bf16.msra.mxu0 %v2647
    %3018 = vmatprep.subr.bf16.mxu0 0
    %3019 = vmatpush2.bf16.msra.mxu0 %v2646
    %3020 = vmatprep.subr.bf16.mxu0 0
    %3021 = vmatpush2.bf16.msra.mxu0 %v2645
    %3022 = vmatprep.subr.bf16.mxu0 0
    %3023 = vmatpush2.bf16.msra.mxu0 %v2644
    %3024 = vmatprep.mubr.bf16.mxu0 %v2048
    %3025 = vmatmul.mubr.bf16.gmra.mxu0 %v2047
    %v3026 = vpop.f32.mrf.mxu0
    %v3027 = vadd.f32 %v2986, %v3026
    %v3028 = vpop.f32.mrf.mxu0
    %v3029 = vpop.f32.mrf.mxu0
    %v3030 = vadd.f32 %v2989, %v3029
    %v3031 = vpop.f32.mrf.mxu0
    %3032 = vdwg.mxu0
    %3033 = vmatprep.subr.bf16.mxu0 0
    %3034 = vmatpush1.bf16.msra.mxu0 %v2659
    %3035 = vmatprep.subr.bf16.mxu0 0
    %3036 = vmatpush1.bf16.msra.mxu0 %v2658
    %3037 = vmatprep.subr.bf16.mxu0 0
    %3038 = vmatpush1.bf16.msra.mxu0 %v2657
    %3039 = vmatprep.subr.bf16.mxu0 0
    %3040 = vmatpush1.bf16.msra.mxu0 %v2656
    %3041 = vmatprep.subr.bf16.mxu0 0
    %3042 = vmatpush1.bf16.msra.mxu0 %v2655
    %3043 = vmatprep.subr.bf16.mxu0 0
    %3044 = vmatpush1.bf16.msra.mxu0 %v2654
    %3045 = vmatprep.subr.bf16.mxu0 0
    %3046 = vmatpush1.bf16.msra.mxu0 %v2653
    %3047 = vmatprep.subr.bf16.mxu0 0
    %3048 = vmatpush1.bf16.msra.mxu0 %v2652
    %3049 = vmatprep.subr.bf16.mxu0 0
    %3050 = vmatpush2.bf16.msra.mxu0 %v2667
    %3051 = vmatprep.subr.bf16.mxu0 0
    %3052 = vmatpush2.bf16.msra.mxu0 %v2666
    %3053 = vmatprep.subr.bf16.mxu0 0
    %3054 = vmatpush2.bf16.msra.mxu0 %v2665
    %3055 = vmatprep.subr.bf16.mxu0 0
    %3056 = vmatpush2.bf16.msra.mxu0 %v2664
    %3057 = vmatprep.subr.bf16.mxu0 0
    %3058 = vmatpush2.bf16.msra.mxu0 %v2663
    %3059 = vmatprep.subr.bf16.mxu0 0
    %3060 = vmatpush2.bf16.msra.mxu0 %v2662
    %3061 = vmatprep.subr.bf16.mxu0 0
    %3062 = vmatpush2.bf16.msra.mxu0 %v2661
    %3063 = vmatprep.subr.bf16.mxu0 0
    %3064 = vmatpush2.bf16.msra.mxu0 %v2660
    %3065 = vmatprep.mubr.bf16.mxu0 %v2050
    %3066 = vmatmul.mubr.bf16.gmra.mxu0 %v2049
    %v3067 = vpop.f32.mrf.mxu0
    %v3068 = vadd.f32 %v3027, %v3067
    %v3069 = vpop.f32.mrf.mxu0
    %v3070 = vpop.f32.mrf.mxu0
    %v3071 = vadd.f32 %v3030, %v3070
    %v3072 = vpop.f32.mrf.mxu0
    %3073 = vdwg.mxu0
    %3074 = vmatprep.subr.bf16.mxu0 0
    %3075 = vmatpush1.bf16.msra.mxu0 %v2675
    %3076 = vmatprep.subr.bf16.mxu0 0
    %3077 = vmatpush1.bf16.msra.mxu0 %v2674
    %3078 = vmatprep.subr.bf16.mxu0 0
    %3079 = vmatpush1.bf16.msra.mxu0 %v2673
    %3080 = vmatprep.subr.bf16.mxu0 0
    %3081 = vmatpush1.bf16.msra.mxu0 %v2672
    %3082 = vmatprep.subr.bf16.mxu0 0
    %3083 = vmatpush1.bf16.msra.mxu0 %v2671
    %3084 = vmatprep.subr.bf16.mxu0 0
    %3085 = vmatpush1.bf16.msra.mxu0 %v2670
    %3086 = vmatprep.subr.bf16.mxu0 0
    %3087 = vmatpush1.bf16.msra.mxu0 %v2669
    %3088 = vmatprep.subr.bf16.mxu0 0
    %3089 = vmatpush1.bf16.msra.mxu0 %v2668
    %3090 = vmatprep.subr.bf16.mxu0 0
    %3091 = vmatpush2.bf16.msra.mxu0 %v2683
    %3092 = vmatprep.subr.bf16.mxu0 0
    %3093 = vmatpush2.bf16.msra.mxu0 %v2682
    %3094 = vmatprep.subr.bf16.mxu0 0
    %3095 = vmatpush2.bf16.msra.mxu0 %v2681
    %3096 = vmatprep.subr.bf16.mxu0 0
    %3097 = vmatpush2.bf16.msra.mxu0 %v2680
    %3098 = vmatprep.subr.bf16.mxu0 0
    %3099 = vmatpush2.bf16.msra.mxu0 %v2679
    %3100 = vmatprep.subr.bf16.mxu0 0
    %3101 = vmatpush2.bf16.msra.mxu0 %v2678
    %3102 = vmatprep.subr.bf16.mxu0 0
    %3103 = vmatpush2.bf16.msra.mxu0 %v2677
    %3104 = vmatprep.subr.bf16.mxu0 0
    %3105 = vmatpush2.bf16.msra.mxu0 %v2676
    %3106 = vmatprep.mubr.bf16.mxu0 %v2052
    %3107 = vmatmul.mubr.bf16.gmra.mxu0 %v2051
    %v3108 = vpop.f32.mrf.mxu0
    %v3109 = vadd.f32 %v3068, %v3108
    %v3110 = vpop.f32.mrf.mxu0
    %v3111 = vpop.f32.mrf.mxu0
    %v3112 = vadd.f32 %v3071, %v3111
    %v3113 = vpop.f32.mrf.mxu0
    %3114 = vdwg.mxu0
    %3115 = vmatprep.subr.bf16.mxu0 0
    %3116 = vmatpush1.bf16.msra.mxu0 %v2691
    %3117 = vmatprep.subr.bf16.mxu0 0
    %3118 = vmatpush1.bf16.msra.mxu0 %v2690
    %3119 = vmatprep.subr.bf16.mxu0 0
    %3120 = vmatpush1.bf16.msra.mxu0 %v2689
    %3121 = vmatprep.subr.bf16.mxu0 0
    %3122 = vmatpush1.bf16.msra.mxu0 %v2688
    %3123 = vmatprep.subr.bf16.mxu0 0
    %3124 = vmatpush1.bf16.msra.mxu0 %v2687
    %3125 = vmatprep.subr.bf16.mxu0 0
    %3126 = vmatpush1.bf16.msra.mxu0 %v2686
    %3127 = vmatprep.subr.bf16.mxu0 0
    %3128 = vmatpush1.bf16.msra.mxu0 %v2685
    %3129 = vmatprep.subr.bf16.mxu0 0
    %3130 = vmatpush1.bf16.msra.mxu0 %v2684
    %3131 = vmatprep.subr.bf16.mxu0 0
    %3132 = vmatpush2.bf16.msra.mxu0 %v2699
    %3133 = vmatprep.subr.bf16.mxu0 0
    %3134 = vmatpush2.bf16.msra.mxu0 %v2698
    %3135 = vmatprep.subr.bf16.mxu0 0
    %3136 = vmatpush2.bf16.msra.mxu0 %v2697
    %3137 = vmatprep.subr.bf16.mxu0 0
    %3138 = vmatpush2.bf16.msra.mxu0 %v2696
    %3139 = vmatprep.subr.bf16.mxu0 0
    %3140 = vmatpush2.bf16.msra.mxu0 %v2695
    %3141 = vmatprep.subr.bf16.mxu0 0
    %3142 = vmatpush2.bf16.msra.mxu0 %v2694
    %3143 = vmatprep.subr.bf16.mxu0 0
    %3144 = vmatpush2.bf16.msra.mxu0 %v2693
    %3145 = vmatprep.subr.bf16.mxu0 0
    %3146 = vmatpush2.bf16.msra.mxu0 %v2692
    %3147 = vmatprep.mubr.bf16.mxu0 %v2054
    %3148 = vmatmul.mubr.bf16.gmra.mxu0 %v2053
    %v3149 = vpop.f32.mrf.mxu0
    %v3150 = vadd.f32 %v3109, %v3149
    %v3151 = vpop.f32.mrf.mxu0
    %v3152 = vpop.f32.mrf.mxu0
    %v3153 = vadd.f32 %v3112, %v3152
    %v3154 = vpop.f32.mrf.mxu0
    %3155 = vdwg.mxu0
    %v3156 = vadd.f32 %v1123, %v3150
    %v3157 = vadd.f32 %v1124, %v3153
    %v3158 = vld [vmem:[%s5 + $0x2a] sm:$0x1]
    %v3159 = vld [vmem:[%s5 + $0x2c] sm:$0x1]
    %v3160 = vsel %vm49, %v3156, 0.0
    %3161 = vadd.xlane.f32.xlu0 %v3160
    %v3162 = vpop.xlane.xlu0 %3161
    %v3163 = vsel %vm49, %v3157, 0.0
    %3164 = vadd.xlane.f32.xlu0 %v3163
    %v3165 = vpop.xlane.xlu0 %3164
    %v3166 = vmul.f32 %v3162, %v1092
    %v3167 = vmul.f32 %v3165, %v1092
    %v3168 = vsub.f32 %v3156, %v3166
    %v3169 = vsub.f32 %v3157, %v3167
    %v3170 = vmul.f32 %v3168, %v3168
    %v3171 = vmul.f32 %v3169, %v3169
    %v3172 = vsel %vm49, %v3170, 0.0
    %3173 = vadd.xlane.f32.xlu0 %v3172
    %v3174 = vpop.xlane.xlu0 %3173
    %v3175 = vsel %vm49, %v3171, 0.0
    %3176 = vadd.xlane.f32.xlu0 %v3175
    %v3177 = vpop.xlane.xlu0 %3176
    %v3178 = vmul.f32 %v3174, %v1092
    %v3179 = vmul.f32 %v3177, %v1092
    %v3180 = vadd.f32 %v3178, 1e-05
    %v3181 = vadd.f32 %v3179, 1e-05
    %v3182 = vrsqrt.pop %v3180
    %v3183 = vrsqrt.pop %v3181
    %v3184 = vmul.f32 %v3168, %v3182
    %v3185 = vmul.f32 %v3169, %v3183
    %v3186 = vlaneseq
    %v3187 = vshrl.u32 %v3186, 7
    %v3188 = vsub.s32 0, %v3187
    %v3189 = vrot.slane %v3158, %v3188
    %v3190 = vmul.f32 %v3184, %v3189
    %v3191 = vmul.f32 %v3185, %v3189
    %v3192 = vlaneseq
    %v3193 = vshrl.u32 %v3192, 7
    %v3194 = vsub.s32 0, %v3193
    %v3195 = vrot.slane %v3159, %v3194
    %v3196 = vadd.f32 %v3190, %v3195
    %v3197 = vadd.f32 %v3191, %v3195
    %s3198 = scalar_lea.vmem %s1, 16
    %v3199 = vld [vmem:[%s3198] sm:$0xf]
    %v3200 = vld [vmem:[%s3198 + $0x4] sm:$0xf]
    %v3201 = vld [vmem:[%s3198 + $0x8] sm:$0xf]
    %v3202 = vld [vmem:[%s3198 + $0xc] sm:$0xf]
    %v3203 = vpack.c.bf16 %v3197, %v3196
    %v3204 = vld [vmem:[%s5 + $0x1] sm:$0x1]
    %v3205 = vlaneseq
    %v3206 = vshrl.u32 %v3205, 7
    %v3207 = vsub.s32 0, %v3206
    %v3208 = vrot.slane %v3204, %v3207
    %v3213 = vunpack.c.l.b16 %v3199
    %v3214 = vunpack.c.l.b16 %v3200
    %v3215 = vunpack.c.l.b16 %v3201
    %v3216 = vunpack.c.l.b16 %v3202
    %v3217 = vpack.c.b16 %v3214, %v3213
    %v3218 = vpack.c.b16 %v3216, %v3215
    %v3222 = vsel %vm49, %v3203, 0
    %3224 = vmatprep.subr.bf16.mxu0 0
    %3225 = vmatpush1.bf16.msra.mxu0 0
    %3226 = vmatprep.subr.bf16.mxu0 0
    %3227 = vmatpush1.bf16.msra.mxu0 0
    %3228 = vmatprep.subr.bf16.mxu0 0
    %3229 = vmatpush1.bf16.msra.mxu0 0
    %3230 = vmatprep.subr.bf16.mxu0 0
    %3231 = vmatpush1.bf16.msra.mxu0 0
    %3232 = vmatprep.subr.bf16.mxu0 0
    %3233 = vmatpush1.bf16.msra.mxu0 0
    %3234 = vmatprep.subr.bf16.mxu0 0
    %3235 = vmatpush1.bf16.msra.mxu0 0
    %3236 = vmatprep.subr.bf16.mxu0 0
    %3237 = vmatpush1.bf16.msra.mxu0 %v3218
    %3238 = vmatprep.subr.bf16.mxu0 0
    %3239 = vmatpush1.bf16.msra.mxu0 %v3217
    %3240 = vmatprep.subr.bf16.mxu0 0
    %3241 = vmatpush2.bf16.msra.mxu0 0
    %3242 = vmatprep.subr.bf16.mxu0 0
    %3243 = vmatpush2.bf16.msra.mxu0 0
    %3244 = vmatprep.subr.bf16.mxu0 0
    %3245 = vmatpush2.bf16.msra.mxu0 0
    %3246 = vmatprep.subr.bf16.mxu0 0
    %3247 = vmatpush2.bf16.msra.mxu0 0
    %3248 = vmatprep.subr.bf16.mxu0 0
    %3249 = vmatpush2.bf16.msra.mxu0 0
    %3250 = vmatprep.subr.bf16.mxu0 0
    %3251 = vmatpush2.bf16.msra.mxu0 0
    %3252 = vmatprep.subr.bf16.mxu0 0
    %3253 = vmatpush2.bf16.msra.mxu0 0
    %3254 = vmatprep.subr.bf16.mxu0 0
    %3255 = vmatpush2.bf16.msra.mxu0 0
    %3256 = vmatprep.mubr.bf16.mxu0 0
    %3257 = vmatmul.mubr.bf16.gmra.mxu0 %v3222
    %v3258 = vpop.f32.mrf.mxu0
    %v3259 = vadd.f32 %v3208, %v3258
    %v3260 = vpop.f32.mrf.mxu0
    %v3261 = vpop.f32.mrf.mxu0
    %v3262 = vadd.f32 %v3208, %v3261
    %v3263 = vpop.f32.mrf.mxu0
    %3264 = vdwg.mxu0
    %v3265 = vpack.c.bf16 %v3259, %v3259
    %v3266 = vpack.c.bf16 %v3262, %v3262
    %3268 = vrot.lane.b32.xlu0 %v3265, 96
    %v3269 = vpop.permute.xlu0 %3268
    %v3271 = vsel %vm99, %v3265, 0
    %v3274 = vsel %vm99, %v3269, 0
    %3276 = vmatprep.subr.bf16.mxu0 0
    %3277 = vmatpush1.bf16.xpose.msra.mxu0 0
    %3278 = vmatprep.subr.bf16.mxu0 0
    %3279 = vmatpush1.bf16.xpose.msra.mxu0 0
    %3280 = vmatprep.subr.bf16.mxu0 0
    %3281 = vmatpush1.bf16.xpose.msra.mxu0 0
    %3282 = vmatprep.subr.bf16.mxu0 0
    %3283 = vmatpush1.bf16.xpose.msra.mxu0 0
    %3284 = vmatprep.subr.bf16.mxu0 0
    %3285 = vmatpush1.bf16.xpose.msra.mxu0 0
    %3286 = vmatprep.subr.bf16.mxu0 0
    %3287 = vmatpush1.bf16.xpose.msra.mxu0 0
    %3288 = vmatprep.subr.bf16.mxu0 0
    %3289 = vmatpush1.bf16.xpose.msra.mxu0 0
    %3290 = vmatprep.subr.bf16.mxu0 0
    %3291 = vmatpush1.bf16.xpose.msra.mxu0 %v3274
    %3292 = vmatprep.subr.bf16.mxu0 0
    %3293 = vmatpush2.bf16.xpose.msra.mxu0 0
    %3294 = vmatprep.subr.bf16.mxu0 0
    %3295 = vmatpush2.bf16.xpose.msra.mxu0 0
    %3296 = vmatprep.subr.bf16.mxu0 0
    %3297 = vmatpush2.bf16.xpose.msra.mxu0 0
    %3298 = vmatprep.subr.bf16.mxu0 0
    %3299 = vmatpush2.bf16.xpose.msra.mxu0 0
    %3300 = vmatprep.subr.bf16.mxu0 0
    %3301 = vmatpush2.bf16.xpose.msra.mxu0 0
    %3302 = vmatprep.subr.bf16.mxu0 0
    %3303 = vmatpush2.bf16.xpose.msra.mxu0 0
    %3304 = vmatprep.subr.bf16.mxu0 0
    %3305 = vmatpush2.bf16.xpose.msra.mxu0 0
    %3306 = vmatprep.subr.bf16.mxu0 0
    %3307 = vmatpush2.bf16.xpose.msra.mxu0 0
    %3308 = vmatprep.mubr.bf16.mxu0 0
    %3309 = vmatmul.mubr.bf16.gmra.mxu0 %v3271
    %v3310 = vpop.f32.mrf.mxu0
    %v3311 = vadd.f32 0.0, %v3310
    %v3312 = vpop.f32.mrf.mxu0
    %v3313 = vpop.f32.mrf.mxu0
    %v3314 = vpop.f32.mrf.mxu0
    %3315 = vdwg.mxu0
    %3317 = vrot.lane.b32.xlu0 %v3266, 96
    %v3318 = vpop.permute.xlu0 %3317
    %v3320 = vsel %vm99, %v3266, 0
    %v3323 = vsel %vm99, %v3318, 0
    %3325 = vmatprep.subr.bf16.mxu0 0
    %3326 = vmatpush1.bf16.xpose.msra.mxu0 0
    %3327 = vmatprep.subr.bf16.mxu0 0
    %3328 = vmatpush1.bf16.xpose.msra.mxu0 0
    %3329 = vmatprep.subr.bf16.mxu0 0
    %3330 = vmatpush1.bf16.xpose.msra.mxu0 0
    %3331 = vmatprep.subr.bf16.mxu0 0
    %3332 = vmatpush1.bf16.xpose.msra.mxu0 0
    %3333 = vmatprep.subr.bf16.mxu0 0
    %3334 = vmatpush1.bf16.xpose.msra.mxu0 0
    %3335 = vmatprep.subr.bf16.mxu0 0
    %3336 = vmatpush1.bf16.xpose.msra.mxu0 0
    %3337 = vmatprep.subr.bf16.mxu0 0
    %3338 = vmatpush1.bf16.xpose.msra.mxu0 0
    %3339 = vmatprep.subr.bf16.mxu0 0
    %3340 = vmatpush1.bf16.xpose.msra.mxu0 %v3323
    %3341 = vmatprep.subr.bf16.mxu0 0
    %3342 = vmatpush2.bf16.xpose.msra.mxu0 0
    %3343 = vmatprep.subr.bf16.mxu0 0
    %3344 = vmatpush2.bf16.xpose.msra.mxu0 0
    %3345 = vmatprep.subr.bf16.mxu0 0
    %3346 = vmatpush2.bf16.xpose.msra.mxu0 0
    %3347 = vmatprep.subr.bf16.mxu0 0
    %3348 = vmatpush2.bf16.xpose.msra.mxu0 0
    %3349 = vmatprep.subr.bf16.mxu0 0
    %3350 = vmatpush2.bf16.xpose.msra.mxu0 0
    %3351 = vmatprep.subr.bf16.mxu0 0
    %3352 = vmatpush2.bf16.xpose.msra.mxu0 0
    %3353 = vmatprep.subr.bf16.mxu0 0
    %3354 = vmatpush2.bf16.xpose.msra.mxu0 0
    %3355 = vmatprep.subr.bf16.mxu0 0
    %3356 = vmatpush2.bf16.xpose.msra.mxu0 0
    %3357 = vmatprep.mubr.bf16.mxu0 0
    %3358 = vmatmul.mubr.bf16.gmra.mxu0 %v3320
    %v3359 = vpop.f32.mrf.mxu0
    %v3360 = vadd.f32 0.0, %v3359
    %v3361 = vpop.f32.mrf.mxu0
    %v3362 = vpop.f32.mrf.mxu0
    %v3363 = vpop.f32.mrf.mxu0
    %3364 = vdwg.mxu0
    %v3365 = vmul.f32 %v3311, 0.35355338
    %v3366 = vmul.f32 %v3360, 0.35355338
    %v3367 = vsel %vm99, %v3365, -inf
    %3368 = vmax.xlane.f32.xlu0 %v3367
    %v3369 = vpop.xlane.xlu0 %3368
    %v3370 = vsel %vm99, %v3366, -inf
    %3371 = vmax.xlane.f32.xlu0 %v3370
    %v3372 = vpop.xlane.xlu0 %3371
    %v3373 = vsub.f32 %v3365, %v3369
    %v3374 = vsub.f32 %v3366, %v3372
    %v3375 = vmul.f32 %v3373, 1.442695
    %v3376 = vpow.pop %v3375
    %v3377 = vmul.f32 %v3374, 1.442695
    %v3378 = vpow.pop %v3377
    %v3379 = vsel %vm99, %v3376, 0.0
    %3380 = vadd.xlane.f32.xlu0 %v3379
    %v3381 = vpop.xlane.xlu0 %3380
    %v3382 = vsel %vm99, %v3378, 0.0
    %3383 = vadd.xlane.f32.xlu0 %v3382
    %v3384 = vpop.xlane.xlu0 %3383
    %v3385 = vrcp.pop %v3381
    %v3386 = vrcp.pop %v3384
    %v3387 = vmul.f32 %v3376, %v3385
    %v3388 = vmul.f32 %v3378, %v3386
    %v3389 = vpack.c.bf16 %v3387, %v3387
    %v3390 = vpack.c.bf16 %v3388, %v3388
    %3391 = vrot.lane.b32.xlu0 %v3265, 64
    %v3392 = vpop.permute.xlu0 %3391
    %v3394 = vsel %vm99, %v3389, 0
    %v3397 = vsel %vm226, %v3392, 0
    %3399 = vmatprep.subr.bf16.mxu0 0
    %3400 = vmatpush1.bf16.msra.mxu0 0
    %3401 = vmatprep.subr.bf16.mxu0 0
    %3402 = vmatpush1.bf16.msra.mxu0 0
    %3403 = vmatprep.subr.bf16.mxu0 0
    %3404 = vmatpush1.bf16.msra.mxu0 0
    %3405 = vmatprep.subr.bf16.mxu0 0
    %3406 = vmatpush1.bf16.msra.mxu0 0
    %3407 = vmatprep.subr.bf16.mxu0 0
    %3408 = vmatpush1.bf16.msra.mxu0 0
    %3409 = vmatprep.subr.bf16.mxu0 0
    %3410 = vmatpush1.bf16.msra.mxu0 0
    %3411 = vmatprep.subr.bf16.mxu0 0
    %3412 = vmatpush1.bf16.msra.mxu0 0
    %3413 = vmatprep.subr.bf16.mxu0 0
    %3414 = vmatpush1.bf16.msra.mxu0 %v3397
    %3415 = vmatprep.subr.bf16.mxu0 0
    %3416 = vmatpush2.bf16.msra.mxu0 0
    %3417 = vmatprep.subr.bf16.mxu0 0
    %3418 = vmatpush2.bf16.msra.mxu0 0
    %3419 = vmatprep.subr.bf16.mxu0 0
    %3420 = vmatpush2.bf16.msra.mxu0 0
    %3421 = vmatprep.subr.bf16.mxu0 0
    %3422 = vmatpush2.bf16.msra.mxu0 0
    %3423 = vmatprep.subr.bf16.mxu0 0
    %3424 = vmatpush2.bf16.msra.mxu0 0
    %3425 = vmatprep.subr.bf16.mxu0 0
    %3426 = vmatpush2.bf16.msra.mxu0 0
    %3427 = vmatprep.subr.bf16.mxu0 0
    %3428 = vmatpush2.bf16.msra.mxu0 0
    %3429 = vmatprep.subr.bf16.mxu0 0
    %3430 = vmatpush2.bf16.msra.mxu0 0
    %3431 = vmatprep.mubr.bf16.mxu0 0
    %3432 = vmatmul.mubr.bf16.gmra.mxu0 %v3394
    %v3433 = vpop.f32.mrf.mxu0
    %v3434 = vadd.f32 0.0, %v3433
    %v3435 = vpop.f32.mrf.mxu0
    %v3436 = vpop.f32.mrf.mxu0
    %v3437 = vpop.f32.mrf.mxu0
    %3438 = vdwg.mxu0
    %3439 = vrot.lane.b32.xlu0 %v3266, 64
    %v3440 = vpop.permute.xlu0 %3439
    %v3442 = vsel %vm99, %v3390, 0
    %v3445 = vsel %vm226, %v3440, 0
    %3447 = vmatprep.subr.bf16.mxu0 0
    %3448 = vmatpush1.bf16.msra.mxu0 0
    %3449 = vmatprep.subr.bf16.mxu0 0
    %3450 = vmatpush1.bf16.msra.mxu0 0
    %3451 = vmatprep.subr.bf16.mxu0 0
    %3452 = vmatpush1.bf16.msra.mxu0 0
    %3453 = vmatprep.subr.bf16.mxu0 0
    %3454 = vmatpush1.bf16.msra.mxu0 0
    %3455 = vmatprep.subr.bf16.mxu0 0
    %3456 = vmatpush1.bf16.msra.mxu0 0
    %3457 = vmatprep.subr.bf16.mxu0 0
    %3458 = vmatpush1.bf16.msra.mxu0 0
    %3459 = vmatprep.subr.bf16.mxu0 0
    %3460 = vmatpush1.bf16.msra.mxu0 0
    %3461 = vmatprep.subr.bf16.mxu0 0
    %3462 = vmatpush1.bf16.msra.mxu0 %v3445
    %3463 = vmatprep.subr.bf16.mxu0 0
    %3464 = vmatpush2.bf16.msra.mxu0 0
    %3465 = vmatprep.subr.bf16.mxu0 0
    %3466 = vmatpush2.bf16.msra.mxu0 0
    %3467 = vmatprep.subr.bf16.mxu0 0
    %3468 = vmatpush2.bf16.msra.mxu0 0
    %3469 = vmatprep.subr.bf16.mxu0 0
    %3470 = vmatpush2.bf16.msra.mxu0 0
    %3471 = vmatprep.subr.bf16.mxu0 0
    %3472 = vmatpush2.bf16.msra.mxu0 0
    %3473 = vmatprep.subr.bf16.mxu0 0
    %3474 = vmatpush2.bf16.msra.mxu0 0
    %3475 = vmatprep.subr.bf16.mxu0 0
    %3476 = vmatpush2.bf16.msra.mxu0 0
    %3477 = vmatprep.subr.bf16.mxu0 0
    %3478 = vmatpush2.bf16.msra.mxu0 0
    %3479 = vmatprep.mubr.bf16.mxu0 0
    %3480 = vmatmul.mubr.bf16.gmra.mxu0 %v3442
    %v3481 = vpop.f32.mrf.mxu0
    %v3482 = vadd.f32 0.0, %v3481
    %v3483 = vpop.f32.mrf.mxu0
    %v3484 = vpop.f32.mrf.mxu0
    %v3485 = vpop.f32.mrf.mxu0
    %3486 = vdwg.mxu0
    %3487 = vrot.lane.b32.xlu0 %v3265, 120
    %v3488 = vpop.permute.xlu0 %3487
    %3489 = vrot.lane.b32.xlu0 %v3265, 88
    %v3490 = vpop.permute.xlu0 %3489
    %v3492 = vsel %vm99, %v3488, 0
    %v3495 = vsel %vm99, %v3490, 0
    %3497 = vmatprep.subr.bf16.mxu0 0
    %3498 = vmatpush1.bf16.xpose.msra.mxu0 0
    %3499 = vmatprep.subr.bf16.mxu0 0
    %3500 = vmatpush1.bf16.xpose.msra.mxu0 0
    %3501 = vmatprep.subr.bf16.mxu0 0
    %3502 = vmatpush1.bf16.xpose.msra.mxu0 0
    %3503 = vmatprep.subr.bf16.mxu0 0
    %3504 = vmatpush1.bf16.xpose.msra.mxu0 0
    %3505 = vmatprep.subr.bf16.mxu0 0
    %3506 = vmatpush1.bf16.xpose.msra.mxu0 0
    %3507 = vmatprep.subr.bf16.mxu0 0
    %3508 = vmatpush1.bf16.xpose.msra.mxu0 0
    %3509 = vmatprep.subr.bf16.mxu0 0
    %3510 = vmatpush1.bf16.xpose.msra.mxu0 0
    %3511 = vmatprep.subr.bf16.mxu0 0
    %3512 = vmatpush1.bf16.xpose.msra.mxu0 %v3495
    %3513 = vmatprep.subr.bf16.mxu0 0
    %3514 = vmatpush2.bf16.xpose.msra.mxu0 0
    %3515 = vmatprep.subr.bf16.mxu0 0
    %3516 = vmatpush2.bf16.xpose.msra.mxu0 0
    %3517 = vmatprep.subr.bf16.mxu0 0
    %3518 = vmatpush2.bf16.xpose.msra.mxu0 0
    %3519 = vmatprep.subr.bf16.mxu0 0
    %3520 = vmatpush2.bf16.xpose.msra.mxu0 0
    %3521 = vmatprep.subr.bf16.mxu0 0
    %3522 = vmatpush2.bf16.xpose.msra.mxu0 0
    %3523 = vmatprep.subr.bf16.mxu0 0
    %3524 = vmatpush2.bf16.xpose.msra.mxu0 0
    %3525 = vmatprep.subr.bf16.mxu0 0
    %3526 = vmatpush2.bf16.xpose.msra.mxu0 0
    %3527 = vmatprep.subr.bf16.mxu0 0
    %3528 = vmatpush2.bf16.xpose.msra.mxu0 0
    %3529 = vmatprep.mubr.bf16.mxu0 0
    %3530 = vmatmul.mubr.bf16.gmra.mxu0 %v3492
    %v3531 = vpop.f32.mrf.mxu0
    %v3532 = vadd.f32 0.0, %v3531
    %v3533 = vpop.f32.mrf.mxu0
    %v3534 = vpop.f32.mrf.mxu0
    %v3535 = vpop.f32.mrf.mxu0
    %3536 = vdwg.mxu0
    %3537 = vrot.lane.b32.xlu0 %v3266, 120
    %v3538 = vpop.permute.xlu0 %3537
    %3539 = vrot.lane.b32.xlu0 %v3266, 88
    %v3540 = vpop.permute.xlu0 %3539
    %v3542 = vsel %vm99, %v3538, 0
    %v3545 = vsel %vm99, %v3540, 0
    %3547 = vmatprep.subr.bf16.mxu0 0
    %3548 = vmatpush1.bf16.xpose.msra.mxu0 0
    %3549 = vmatprep.subr.bf16.mxu0 0
    %3550 = vmatpush1.bf16.xpose.msra.mxu0 0
    %3551 = vmatprep.subr.bf16.mxu0 0
    %3552 = vmatpush1.bf16.xpose.msra.mxu0 0
    %3553 = vmatprep.subr.bf16.mxu0 0
    %3554 = vmatpush1.bf16.xpose.msra.mxu0 0
    %3555 = vmatprep.subr.bf16.mxu0 0
    %3556 = vmatpush1.bf16.xpose.msra.mxu0 0
    %3557 = vmatprep.subr.bf16.mxu0 0
    %3558 = vmatpush1.bf16.xpose.msra.mxu0 0
    %3559 = vmatprep.subr.bf16.mxu0 0
    %3560 = vmatpush1.bf16.xpose.msra.mxu0 0
    %3561 = vmatprep.subr.bf16.mxu0 0
    %3562 = vmatpush1.bf16.xpose.msra.mxu0 %v3545
    %3563 = vmatprep.subr.bf16.mxu0 0
    %3564 = vmatpush2.bf16.xpose.msra.mxu0 0
    %3565 = vmatprep.subr.bf16.mxu0 0
    %3566 = vmatpush2.bf16.xpose.msra.mxu0 0
    %3567 = vmatprep.subr.bf16.mxu0 0
    %3568 = vmatpush2.bf16.xpose.msra.mxu0 0
    %3569 = vmatprep.subr.bf16.mxu0 0
    %3570 = vmatpush2.bf16.xpose.msra.mxu0 0
    %3571 = vmatprep.subr.bf16.mxu0 0
    %3572 = vmatpush2.bf16.xpose.msra.mxu0 0
    %3573 = vmatprep.subr.bf16.mxu0 0
    %3574 = vmatpush2.bf16.xpose.msra.mxu0 0
    %3575 = vmatprep.subr.bf16.mxu0 0
    %3576 = vmatpush2.bf16.xpose.msra.mxu0 0
    %3577 = vmatprep.subr.bf16.mxu0 0
    %3578 = vmatpush2.bf16.xpose.msra.mxu0 0
    %3579 = vmatprep.mubr.bf16.mxu0 0
    %3580 = vmatmul.mubr.bf16.gmra.mxu0 %v3542
    %v3581 = vpop.f32.mrf.mxu0
    %v3582 = vadd.f32 0.0, %v3581
    %v3583 = vpop.f32.mrf.mxu0
    %v3584 = vpop.f32.mrf.mxu0
    %v3585 = vpop.f32.mrf.mxu0
    %3586 = vdwg.mxu0
    %v3587 = vmul.f32 %v3532, 0.35355338
    %v3588 = vmul.f32 %v3582, 0.35355338
    %v3589 = vsel %vm99, %v3587, -inf
    %3590 = vmax.xlane.f32.xlu0 %v3589
    %v3591 = vpop.xlane.xlu0 %3590
    %v3592 = vsel %vm99, %v3588, -inf
    %3593 = vmax.xlane.f32.xlu0 %v3592
    %v3594 = vpop.xlane.xlu0 %3593
    %v3595 = vsub.f32 %v3587, %v3591
    %v3596 = vsub.f32 %v3588, %v3594
    %v3597 = vmul.f32 %v3595, 1.442695
    %v3598 = vpow.pop %v3597
    %v3599 = vmul.f32 %v3596, 1.442695
    %v3600 = vpow.pop %v3599
    %v3601 = vsel %vm99, %v3598, 0.0
    %3602 = vadd.xlane.f32.xlu0 %v3601
    %v3603 = vpop.xlane.xlu0 %3602
    %v3604 = vsel %vm99, %v3600, 0.0
    %3605 = vadd.xlane.f32.xlu0 %v3604
    %v3606 = vpop.xlane.xlu0 %3605
    %v3607 = vrcp.pop %v3603
    %v3608 = vrcp.pop %v3606
    %v3609 = vmul.f32 %v3598, %v3607
    %v3610 = vmul.f32 %v3600, %v3608
    %v3611 = vpack.c.bf16 %v3609, %v3609
    %v3612 = vpack.c.bf16 %v3610, %v3610
    %3613 = vrot.lane.b32.xlu0 %v3265, 56
    %v3614 = vpop.permute.xlu0 %3613
    %v3616 = vsel %vm99, %v3611, 0
    %v3619 = vsel %vm226, %v3614, 0
    %3621 = vmatprep.subr.bf16.mxu0 0
    %3622 = vmatpush1.bf16.msra.mxu0 0
    %3623 = vmatprep.subr.bf16.mxu0 0
    %3624 = vmatpush1.bf16.msra.mxu0 0
    %3625 = vmatprep.subr.bf16.mxu0 0
    %3626 = vmatpush1.bf16.msra.mxu0 0
    %3627 = vmatprep.subr.bf16.mxu0 0
    %3628 = vmatpush1.bf16.msra.mxu0 0
    %3629 = vmatprep.subr.bf16.mxu0 0
    %3630 = vmatpush1.bf16.msra.mxu0 0
    %3631 = vmatprep.subr.bf16.mxu0 0
    %3632 = vmatpush1.bf16.msra.mxu0 0
    %3633 = vmatprep.subr.bf16.mxu0 0
    %3634 = vmatpush1.bf16.msra.mxu0 0
    %3635 = vmatprep.subr.bf16.mxu0 0
    %3636 = vmatpush1.bf16.msra.mxu0 %v3619
    %3637 = vmatprep.subr.bf16.mxu0 0
    %3638 = vmatpush2.bf16.msra.mxu0 0
    %3639 = vmatprep.subr.bf16.mxu0 0
    %3640 = vmatpush2.bf16.msra.mxu0 0
    %3641 = vmatprep.subr.bf16.mxu0 0
    %3642 = vmatpush2.bf16.msra.mxu0 0
    %3643 = vmatprep.subr.bf16.mxu0 0
    %3644 = vmatpush2.bf16.msra.mxu0 0
    %3645 = vmatprep.subr.bf16.mxu0 0
    %3646 = vmatpush2.bf16.msra.mxu0 0
    %3647 = vmatprep.subr.bf16.mxu0 0
    %3648 = vmatpush2.bf16.msra.mxu0 0
    %3649 = vmatprep.subr.bf16.mxu0 0
    %3650 = vmatpush2.bf16.msra.mxu0 0
    %3651 = vmatprep.subr.bf16.mxu0 0
    %3652 = vmatpush2.bf16.msra.mxu0 0
    %3653 = vmatprep.mubr.bf16.mxu0 0
    %3654 = vmatmul.mubr.bf16.gmra.mxu0 %v3616
    %v3655 = vpop.f32.mrf.mxu0
    %v3656 = vadd.f32 0.0, %v3655
    %v3657 = vpop.f32.mrf.mxu0
    %v3658 = vpop.f32.mrf.mxu0
    %v3659 = vpop.f32.mrf.mxu0
    %3660 = vdwg.mxu0
    %3661 = vrot.lane.b32.xlu0 %v3266, 56
    %v3662 = vpop.permute.xlu0 %3661
    %v3664 = vsel %vm99, %v3612, 0
    %v3667 = vsel %vm226, %v3662, 0
    %3669 = vmatprep.subr.bf16.mxu0 0
    %3670 = vmatpush1.bf16.msra.mxu0 0
    %3671 = vmatprep.subr.bf16.mxu0 0
    %3672 = vmatpush1.bf16.msra.mxu0 0
    %3673 = vmatprep.subr.bf16.mxu0 0
    %3674 = vmatpush1.bf16.msra.mxu0 0
    %3675 = vmatprep.subr.bf16.mxu0 0
    %3676 = vmatpush1.bf16.msra.mxu0 0
    %3677 = vmatprep.subr.bf16.mxu0 0
    %3678 = vmatpush1.bf16.msra.mxu0 0
    %3679 = vmatprep.subr.bf16.mxu0 0
    %3680 = vmatpush1.bf16.msra.mxu0 0
    %3681 = vmatprep.subr.bf16.mxu0 0
    %3682 = vmatpush1.bf16.msra.mxu0 0
    %3683 = vmatprep.subr.bf16.mxu0 0
    %3684 = vmatpush1.bf16.msra.mxu0 %v3667
    %3685 = vmatprep.subr.bf16.mxu0 0
    %3686 = vmatpush2.bf16.msra.mxu0 0
    %3687 = vmatprep.subr.bf16.mxu0 0
    %3688 = vmatpush2.bf16.msra.mxu0 0
    %3689 = vmatprep.subr.bf16.mxu0 0
    %3690 = vmatpush2.bf16.msra.mxu0 0
    %3691 = vmatprep.subr.bf16.mxu0 0
    %3692 = vmatpush2.bf16.msra.mxu0 0
    %3693 = vmatprep.subr.bf16.mxu0 0
    %3694 = vmatpush2.bf16.msra.mxu0 0
    %3695 = vmatprep.subr.bf16.mxu0 0
    %3696 = vmatpush2.bf16.msra.mxu0 0
    %3697 = vmatprep.subr.bf16.mxu0 0
    %3698 = vmatpush2.bf16.msra.mxu0 0
    %3699 = vmatprep.subr.bf16.mxu0 0
    %3700 = vmatpush2.bf16.msra.mxu0 0
    %3701 = vmatprep.mubr.bf16.mxu0 0
    %3702 = vmatmul.mubr.bf16.gmra.mxu0 %v3664
    %v3703 = vpop.f32.mrf.mxu0
    %v3704 = vadd.f32 0.0, %v3703
    %v3705 = vpop.f32.mrf.mxu0
    %v3706 = vpop.f32.mrf.mxu0
    %v3707 = vpop.f32.mrf.mxu0
    %3708 = vdwg.mxu0
    %3709 = vrot.lane.b32.xlu0 %v3265, 112
    %v3710 = vpop.permute.xlu0 %3709
    %3711 = vrot.lane.b32.xlu0 %v3265, 80
    %v3712 = vpop.permute.xlu0 %3711
    %v3714 = vsel %vm99, %v3710, 0
    %v3717 = vsel %vm99, %v3712, 0
    %3719 = vmatprep.subr.bf16.mxu0 0
    %3720 = vmatpush1.bf16.xpose.msra.mxu0 0
    %3721 = vmatprep.subr.bf16.mxu0 0
    %3722 = vmatpush1.bf16.xpose.msra.mxu0 0
    %3723 = vmatprep.subr.bf16.mxu0 0
    %3724 = vmatpush1.bf16.xpose.msra.mxu0 0
    %3725 = vmatprep.subr.bf16.mxu0 0
    %3726 = vmatpush1.bf16.xpose.msra.mxu0 0
    %3727 = vmatprep.subr.bf16.mxu0 0
    %3728 = vmatpush1.bf16.xpose.msra.mxu0 0
    %3729 = vmatprep.subr.bf16.mxu0 0
    %3730 = vmatpush1.bf16.xpose.msra.mxu0 0
    %3731 = vmatprep.subr.bf16.mxu0 0
    %3732 = vmatpush1.bf16.xpose.msra.mxu0 0
    %3733 = vmatprep.subr.bf16.mxu0 0
    %3734 = vmatpush1.bf16.xpose.msra.mxu0 %v3717
    %3735 = vmatprep.subr.bf16.mxu0 0
    %3736 = vmatpush2.bf16.xpose.msra.mxu0 0
    %3737 = vmatprep.subr.bf16.mxu0 0
    %3738 = vmatpush2.bf16.xpose.msra.mxu0 0
    %3739 = vmatprep.subr.bf16.mxu0 0
    %3740 = vmatpush2.bf16.xpose.msra.mxu0 0
    %3741 = vmatprep.subr.bf16.mxu0 0
    %3742 = vmatpush2.bf16.xpose.msra.mxu0 0
    %3743 = vmatprep.subr.bf16.mxu0 0
    %3744 = vmatpush2.bf16.xpose.msra.mxu0 0
    %3745 = vmatprep.subr.bf16.mxu0 0
    %3746 = vmatpush2.bf16.xpose.msra.mxu0 0
    %3747 = vmatprep.subr.bf16.mxu0 0
    %3748 = vmatpush2.bf16.xpose.msra.mxu0 0
    %3749 = vmatprep.subr.bf16.mxu0 0
    %3750 = vmatpush2.bf16.xpose.msra.mxu0 0
    %3751 = vmatprep.mubr.bf16.mxu0 0
    %3752 = vmatmul.mubr.bf16.gmra.mxu0 %v3714
    %v3753 = vpop.f32.mrf.mxu0
    %v3754 = vadd.f32 0.0, %v3753
    %v3755 = vpop.f32.mrf.mxu0
    %v3756 = vpop.f32.mrf.mxu0
    %v3757 = vpop.f32.mrf.mxu0
    %3758 = vdwg.mxu0
    %3759 = vrot.lane.b32.xlu0 %v3266, 112
    %v3760 = vpop.permute.xlu0 %3759
    %3761 = vrot.lane.b32.xlu0 %v3266, 80
    %v3762 = vpop.permute.xlu0 %3761
    %v3764 = vsel %vm99, %v3760, 0
    %v3767 = vsel %vm99, %v3762, 0
    %3769 = vmatprep.subr.bf16.mxu0 0
    %3770 = vmatpush1.bf16.xpose.msra.mxu0 0
    %3771 = vmatprep.subr.bf16.mxu0 0
    %3772 = vmatpush1.bf16.xpose.msra.mxu0 0
    %3773 = vmatprep.subr.bf16.mxu0 0
    %3774 = vmatpush1.bf16.xpose.msra.mxu0 0
    %3775 = vmatprep.subr.bf16.mxu0 0
    %3776 = vmatpush1.bf16.xpose.msra.mxu0 0
    %3777 = vmatprep.subr.bf16.mxu0 0
    %3778 = vmatpush1.bf16.xpose.msra.mxu0 0
    %3779 = vmatprep.subr.bf16.mxu0 0
    %3780 = vmatpush1.bf16.xpose.msra.mxu0 0
    %3781 = vmatprep.subr.bf16.mxu0 0
    %3782 = vmatpush1.bf16.xpose.msra.mxu0 0
    %3783 = vmatprep.subr.bf16.mxu0 0
    %3784 = vmatpush1.bf16.xpose.msra.mxu0 %v3767
    %3785 = vmatprep.subr.bf16.mxu0 0
    %3786 = vmatpush2.bf16.xpose.msra.mxu0 0
    %3787 = vmatprep.subr.bf16.mxu0 0
    %3788 = vmatpush2.bf16.xpose.msra.mxu0 0
    %3789 = vmatprep.subr.bf16.mxu0 0
    %3790 = vmatpush2.bf16.xpose.msra.mxu0 0
    %3791 = vmatprep.subr.bf16.mxu0 0
    %3792 = vmatpush2.bf16.xpose.msra.mxu0 0
    %3793 = vmatprep.subr.bf16.mxu0 0
    %3794 = vmatpush2.bf16.xpose.msra.mxu0 0
    %3795 = vmatprep.subr.bf16.mxu0 0
    %3796 = vmatpush2.bf16.xpose.msra.mxu0 0
    %3797 = vmatprep.subr.bf16.mxu0 0
    %3798 = vmatpush2.bf16.xpose.msra.mxu0 0
    %3799 = vmatprep.subr.bf16.mxu0 0
    %3800 = vmatpush2.bf16.xpose.msra.mxu0 0
    %3801 = vmatprep.mubr.bf16.mxu0 0
    %3802 = vmatmul.mubr.bf16.gmra.mxu0 %v3764
    %v3803 = vpop.f32.mrf.mxu0
    %v3804 = vadd.f32 0.0, %v3803
    %v3805 = vpop.f32.mrf.mxu0
    %v3806 = vpop.f32.mrf.mxu0
    %v3807 = vpop.f32.mrf.mxu0
    %3808 = vdwg.mxu0
    %v3809 = vmul.f32 %v3754, 0.35355338
    %v3810 = vmul.f32 %v3804, 0.35355338
    %v3811 = vsel %vm99, %v3809, -inf
    %3812 = vmax.xlane.f32.xlu0 %v3811
    %v3813 = vpop.xlane.xlu0 %3812
    %v3814 = vsel %vm99, %v3810, -inf
    %3815 = vmax.xlane.f32.xlu0 %v3814
    %v3816 = vpop.xlane.xlu0 %3815
    %v3817 = vsub.f32 %v3809, %v3813
    %v3818 = vsub.f32 %v3810, %v3816
    %v3819 = vmul.f32 %v3817, 1.442695
    %v3820 = vpow.pop %v3819
    %v3821 = vmul.f32 %v3818, 1.442695
    %v3822 = vpow.pop %v3821
    %v3823 = vsel %vm99, %v3820, 0.0
    %3824 = vadd.xlane.f32.xlu0 %v3823
    %v3825 = vpop.xlane.xlu0 %3824
    %v3826 = vsel %vm99, %v3822, 0.0
    %3827 = vadd.xlane.f32.xlu0 %v3826
    %v3828 = vpop.xlane.xlu0 %3827
    %v3829 = vrcp.pop %v3825
    %v3830 = vrcp.pop %v3828
    %v3831 = vmul.f32 %v3820, %v3829
    %v3832 = vmul.f32 %v3822, %v3830
    %v3833 = vpack.c.bf16 %v3831, %v3831
    %v3834 = vpack.c.bf16 %v3832, %v3832
    %3835 = vrot.lane.b32.xlu0 %v3265, 48
    %v3836 = vpop.permute.xlu0 %3835
    %v3838 = vsel %vm99, %v3833, 0
    %v3841 = vsel %vm226, %v3836, 0
    %3843 = vmatprep.subr.bf16.mxu0 0
    %3844 = vmatpush1.bf16.msra.mxu0 0
    %3845 = vmatprep.subr.bf16.mxu0 0
    %3846 = vmatpush1.bf16.msra.mxu0 0
    %3847 = vmatprep.subr.bf16.mxu0 0
    %3848 = vmatpush1.bf16.msra.mxu0 0
    %3849 = vmatprep.subr.bf16.mxu0 0
    %3850 = vmatpush1.bf16.msra.mxu0 0
    %3851 = vmatprep.subr.bf16.mxu0 0
    %3852 = vmatpush1.bf16.msra.mxu0 0
    %3853 = vmatprep.subr.bf16.mxu0 0
    %3854 = vmatpush1.bf16.msra.mxu0 0
    %3855 = vmatprep.subr.bf16.mxu0 0
    %3856 = vmatpush1.bf16.msra.mxu0 0
    %3857 = vmatprep.subr.bf16.mxu0 0
    %3858 = vmatpush1.bf16.msra.mxu0 %v3841
    %3859 = vmatprep.subr.bf16.mxu0 0
    %3860 = vmatpush2.bf16.msra.mxu0 0
    %3861 = vmatprep.subr.bf16.mxu0 0
    %3862 = vmatpush2.bf16.msra.mxu0 0
    %3863 = vmatprep.subr.bf16.mxu0 0
    %3864 = vmatpush2.bf16.msra.mxu0 0
    %3865 = vmatprep.subr.bf16.mxu0 0
    %3866 = vmatpush2.bf16.msra.mxu0 0
    %3867 = vmatprep.subr.bf16.mxu0 0
    %3868 = vmatpush2.bf16.msra.mxu0 0
    %3869 = vmatprep.subr.bf16.mxu0 0
    %3870 = vmatpush2.bf16.msra.mxu0 0
    %3871 = vmatprep.subr.bf16.mxu0 0
    %3872 = vmatpush2.bf16.msra.mxu0 0
    %3873 = vmatprep.subr.bf16.mxu0 0
    %3874 = vmatpush2.bf16.msra.mxu0 0
    %3875 = vmatprep.mubr.bf16.mxu0 0
    %3876 = vmatmul.mubr.bf16.gmra.mxu0 %v3838
    %v3877 = vpop.f32.mrf.mxu0
    %v3878 = vadd.f32 0.0, %v3877
    %v3879 = vpop.f32.mrf.mxu0
    %v3880 = vpop.f32.mrf.mxu0
    %v3881 = vpop.f32.mrf.mxu0
    %3882 = vdwg.mxu0
    %3883 = vrot.lane.b32.xlu0 %v3266, 48
    %v3884 = vpop.permute.xlu0 %3883
    %v3886 = vsel %vm99, %v3834, 0
    %v3889 = vsel %vm226, %v3884, 0
    %3891 = vmatprep.subr.bf16.mxu0 0
    %3892 = vmatpush1.bf16.msra.mxu0 0
    %3893 = vmatprep.subr.bf16.mxu0 0
    %3894 = vmatpush1.bf16.msra.mxu0 0
    %3895 = vmatprep.subr.bf16.mxu0 0
    %3896 = vmatpush1.bf16.msra.mxu0 0
    %3897 = vmatprep.subr.bf16.mxu0 0
    %3898 = vmatpush1.bf16.msra.mxu0 0
    %3899 = vmatprep.subr.bf16.mxu0 0
    %3900 = vmatpush1.bf16.msra.mxu0 0
    %3901 = vmatprep.subr.bf16.mxu0 0
    %3902 = vmatpush1.bf16.msra.mxu0 0
    %3903 = vmatprep.subr.bf16.mxu0 0
    %3904 = vmatpush1.bf16.msra.mxu0 0
    %3905 = vmatprep.subr.bf16.mxu0 0
    %3906 = vmatpush1.bf16.msra.mxu0 %v3889
    %3907 = vmatprep.subr.bf16.mxu0 0
    %3908 = vmatpush2.bf16.msra.mxu0 0
    %3909 = vmatprep.subr.bf16.mxu0 0
    %3910 = vmatpush2.bf16.msra.mxu0 0
    %3911 = vmatprep.subr.bf16.mxu0 0
    %3912 = vmatpush2.bf16.msra.mxu0 0
    %3913 = vmatprep.subr.bf16.mxu0 0
    %3914 = vmatpush2.bf16.msra.mxu0 0
    %3915 = vmatprep.subr.bf16.mxu0 0
    %3916 = vmatpush2.bf16.msra.mxu0 0
    %3917 = vmatprep.subr.bf16.mxu0 0
    %3918 = vmatpush2.bf16.msra.mxu0 0
    %3919 = vmatprep.subr.bf16.mxu0 0
    %3920 = vmatpush2.bf16.msra.mxu0 0
    %3921 = vmatprep.subr.bf16.mxu0 0
    %3922 = vmatpush2.bf16.msra.mxu0 0
    %3923 = vmatprep.mubr.bf16.mxu0 0
    %3924 = vmatmul.mubr.bf16.gmra.mxu0 %v3886
    %v3925 = vpop.f32.mrf.mxu0
    %v3926 = vadd.f32 0.0, %v3925
    %v3927 = vpop.f32.mrf.mxu0
    %v3928 = vpop.f32.mrf.mxu0
    %v3929 = vpop.f32.mrf.mxu0
    %3930 = vdwg.mxu0
    %3931 = vrot.lane.b32.xlu0 %v3265, 104
    %v3932 = vpop.permute.xlu0 %3931
    %3933 = vrot.lane.b32.xlu0 %v3265, 72
    %v3934 = vpop.permute.xlu0 %3933
    %v3936 = vsel %vm99, %v3932, 0
    %v3939 = vsel %vm99, %v3934, 0
    %3941 = vmatprep.subr.bf16.mxu0 0
    %3942 = vmatpush1.bf16.xpose.msra.mxu0 0
    %3943 = vmatprep.subr.bf16.mxu0 0
    %3944 = vmatpush1.bf16.xpose.msra.mxu0 0
    %3945 = vmatprep.subr.bf16.mxu0 0
    %3946 = vmatpush1.bf16.xpose.msra.mxu0 0
    %3947 = vmatprep.subr.bf16.mxu0 0
    %3948 = vmatpush1.bf16.xpose.msra.mxu0 0
    %3949 = vmatprep.subr.bf16.mxu0 0
    %3950 = vmatpush1.bf16.xpose.msra.mxu0 0
    %3951 = vmatprep.subr.bf16.mxu0 0
    %3952 = vmatpush1.bf16.xpose.msra.mxu0 0
    %3953 = vmatprep.subr.bf16.mxu0 0
    %3954 = vmatpush1.bf16.xpose.msra.mxu0 0
    %3955 = vmatprep.subr.bf16.mxu0 0
    %3956 = vmatpush1.bf16.xpose.msra.mxu0 %v3939
    %3957 = vmatprep.subr.bf16.mxu0 0
    %3958 = vmatpush2.bf16.xpose.msra.mxu0 0
    %3959 = vmatprep.subr.bf16.mxu0 0
    %3960 = vmatpush2.bf16.xpose.msra.mxu0 0
    %3961 = vmatprep.subr.bf16.mxu0 0
    %3962 = vmatpush2.bf16.xpose.msra.mxu0 0
    %3963 = vmatprep.subr.bf16.mxu0 0
    %3964 = vmatpush2.bf16.xpose.msra.mxu0 0
    %3965 = vmatprep.subr.bf16.mxu0 0
    %3966 = vmatpush2.bf16.xpose.msra.mxu0 0
    %3967 = vmatprep.subr.bf16.mxu0 0
    %3968 = vmatpush2.bf16.xpose.msra.mxu0 0
    %3969 = vmatprep.subr.bf16.mxu0 0
    %3970 = vmatpush2.bf16.xpose.msra.mxu0 0
    %3971 = vmatprep.subr.bf16.mxu0 0
    %3972 = vmatpush2.bf16.xpose.msra.mxu0 0
    %3973 = vmatprep.mubr.bf16.mxu0 0
    %3974 = vmatmul.mubr.bf16.gmra.mxu0 %v3936
    %v3975 = vpop.f32.mrf.mxu0
    %v3976 = vadd.f32 0.0, %v3975
    %v3977 = vpop.f32.mrf.mxu0
    %v3978 = vpop.f32.mrf.mxu0
    %v3979 = vpop.f32.mrf.mxu0
    %3980 = vdwg.mxu0
    %3981 = vrot.lane.b32.xlu0 %v3266, 104
    %v3982 = vpop.permute.xlu0 %3981
    %3983 = vrot.lane.b32.xlu0 %v3266, 72
    %v3984 = vpop.permute.xlu0 %3983
    %v3986 = vsel %vm99, %v3982, 0
    %v3989 = vsel %vm99, %v3984, 0
    %3991 = vmatprep.subr.bf16.mxu0 0
    %3992 = vmatpush1.bf16.xpose.msra.mxu0 0
    %3993 = vmatprep.subr.bf16.mxu0 0
    %3994 = vmatpush1.bf16.xpose.msra.mxu0 0
    %3995 = vmatprep.subr.bf16.mxu0 0
    %3996 = vmatpush1.bf16.xpose.msra.mxu0 0
    %3997 = vmatprep.subr.bf16.mxu0 0
    %3998 = vmatpush1.bf16.xpose.msra.mxu0 0
    %3999 = vmatprep.subr.bf16.mxu0 0
    %4000 = vmatpush1.bf16.xpose.msra.mxu0 0
    %4001 = vmatprep.subr.bf16.mxu0 0
    %4002 = vmatpush1.bf16.xpose.msra.mxu0 0
    %4003 = vmatprep.subr.bf16.mxu0 0
    %4004 = vmatpush1.bf16.xpose.msra.mxu0 0
    %4005 = vmatprep.subr.bf16.mxu0 0
    %4006 = vmatpush1.bf16.xpose.msra.mxu0 %v3989
    %4007 = vmatprep.subr.bf16.mxu0 0
    %4008 = vmatpush2.bf16.xpose.msra.mxu0 0
    %4009 = vmatprep.subr.bf16.mxu0 0
    %4010 = vmatpush2.bf16.xpose.msra.mxu0 0
    %4011 = vmatprep.subr.bf16.mxu0 0
    %4012 = vmatpush2.bf16.xpose.msra.mxu0 0
    %4013 = vmatprep.subr.bf16.mxu0 0
    %4014 = vmatpush2.bf16.xpose.msra.mxu0 0
    %4015 = vmatprep.subr.bf16.mxu0 0
    %4016 = vmatpush2.bf16.xpose.msra.mxu0 0
    %4017 = vmatprep.subr.bf16.mxu0 0
    %4018 = vmatpush2.bf16.xpose.msra.mxu0 0
    %4019 = vmatprep.subr.bf16.mxu0 0
    %4020 = vmatpush2.bf16.xpose.msra.mxu0 0
    %4021 = vmatprep.subr.bf16.mxu0 0
    %4022 = vmatpush2.bf16.xpose.msra.mxu0 0
    %4023 = vmatprep.mubr.bf16.mxu0 0
    %4024 = vmatmul.mubr.bf16.gmra.mxu0 %v3986
    %v4025 = vpop.f32.mrf.mxu0
    %v4026 = vadd.f32 0.0, %v4025
    %v4027 = vpop.f32.mrf.mxu0
    %v4028 = vpop.f32.mrf.mxu0
    %v4029 = vpop.f32.mrf.mxu0
    %4030 = vdwg.mxu0
    %v4031 = vmul.f32 %v3976, 0.35355338
    %v4032 = vmul.f32 %v4026, 0.35355338
    %v4033 = vsel %vm99, %v4031, -inf
    %4034 = vmax.xlane.f32.xlu0 %v4033
    %v4035 = vpop.xlane.xlu0 %4034
    %v4036 = vsel %vm99, %v4032, -inf
    %4037 = vmax.xlane.f32.xlu0 %v4036
    %v4038 = vpop.xlane.xlu0 %4037
    %v4039 = vsub.f32 %v4031, %v4035
    %v4040 = vsub.f32 %v4032, %v4038
    %v4041 = vmul.f32 %v4039, 1.442695
    %v4042 = vpow.pop %v4041
    %v4043 = vmul.f32 %v4040, 1.442695
    %v4044 = vpow.pop %v4043
    %v4045 = vsel %vm99, %v4042, 0.0
    %4046 = vadd.xlane.f32.xlu0 %v4045
    %v4047 = vpop.xlane.xlu0 %4046
    %v4048 = vsel %vm99, %v4044, 0.0
    %4049 = vadd.xlane.f32.xlu0 %v4048
    %v4050 = vpop.xlane.xlu0 %4049
    %v4051 = vrcp.pop %v4047
    %v4052 = vrcp.pop %v4050
    %v4053 = vmul.f32 %v4042, %v4051
    %v4054 = vmul.f32 %v4044, %v4052
    %v4055 = vpack.c.bf16 %v4053, %v4053
    %v4056 = vpack.c.bf16 %v4054, %v4054
    %4057 = vrot.lane.b32.xlu0 %v3265, 40
    %v4058 = vpop.permute.xlu0 %4057
    %v4060 = vsel %vm99, %v4055, 0
    %v4063 = vsel %vm226, %v4058, 0
    %4065 = vmatprep.subr.bf16.mxu0 0
    %4066 = vmatpush1.bf16.msra.mxu0 0
    %4067 = vmatprep.subr.bf16.mxu0 0
    %4068 = vmatpush1.bf16.msra.mxu0 0
    %4069 = vmatprep.subr.bf16.mxu0 0
    %4070 = vmatpush1.bf16.msra.mxu0 0
    %4071 = vmatprep.subr.bf16.mxu0 0
    %4072 = vmatpush1.bf16.msra.mxu0 0
    %4073 = vmatprep.subr.bf16.mxu0 0
    %4074 = vmatpush1.bf16.msra.mxu0 0
    %4075 = vmatprep.subr.bf16.mxu0 0
    %4076 = vmatpush1.bf16.msra.mxu0 0
    %4077 = vmatprep.subr.bf16.mxu0 0
    %4078 = vmatpush1.bf16.msra.mxu0 0
    %4079 = vmatprep.subr.bf16.mxu0 0
    %4080 = vmatpush1.bf16.msra.mxu0 %v4063
    %4081 = vmatprep.subr.bf16.mxu0 0
    %4082 = vmatpush2.bf16.msra.mxu0 0
    %4083 = vmatprep.subr.bf16.mxu0 0
    %4084 = vmatpush2.bf16.msra.mxu0 0
    %4085 = vmatprep.subr.bf16.mxu0 0
    %4086 = vmatpush2.bf16.msra.mxu0 0
    %4087 = vmatprep.subr.bf16.mxu0 0
    %4088 = vmatpush2.bf16.msra.mxu0 0
    %4089 = vmatprep.subr.bf16.mxu0 0
    %4090 = vmatpush2.bf16.msra.mxu0 0
    %4091 = vmatprep.subr.bf16.mxu0 0
    %4092 = vmatpush2.bf16.msra.mxu0 0
    %4093 = vmatprep.subr.bf16.mxu0 0
    %4094 = vmatpush2.bf16.msra.mxu0 0
    %4095 = vmatprep.subr.bf16.mxu0 0
    %4096 = vmatpush2.bf16.msra.mxu0 0
    %4097 = vmatprep.mubr.bf16.mxu0 0
    %4098 = vmatmul.mubr.bf16.gmra.mxu0 %v4060
    %v4099 = vpop.f32.mrf.mxu0
    %v4100 = vadd.f32 0.0, %v4099
    %v4101 = vpop.f32.mrf.mxu0
    %v4102 = vpop.f32.mrf.mxu0
    %v4103 = vpop.f32.mrf.mxu0
    %4104 = vdwg.mxu0
    %4105 = vrot.lane.b32.xlu0 %v3266, 40
    %v4106 = vpop.permute.xlu0 %4105
    %v4108 = vsel %vm99, %v4056, 0
    %v4111 = vsel %vm226, %v4106, 0
    %4113 = vmatprep.subr.bf16.mxu0 0
    %4114 = vmatpush1.bf16.msra.mxu0 0
    %4115 = vmatprep.subr.bf16.mxu0 0
    %4116 = vmatpush1.bf16.msra.mxu0 0
    %4117 = vmatprep.subr.bf16.mxu0 0
    %4118 = vmatpush1.bf16.msra.mxu0 0
    %4119 = vmatprep.subr.bf16.mxu0 0
    %4120 = vmatpush1.bf16.msra.mxu0 0
    %4121 = vmatprep.subr.bf16.mxu0 0
    %4122 = vmatpush1.bf16.msra.mxu0 0
    %4123 = vmatprep.subr.bf16.mxu0 0
    %4124 = vmatpush1.bf16.msra.mxu0 0
    %4125 = vmatprep.subr.bf16.mxu0 0
    %4126 = vmatpush1.bf16.msra.mxu0 0
    %4127 = vmatprep.subr.bf16.mxu0 0
    %4128 = vmatpush1.bf16.msra.mxu0 %v4111
    %4129 = vmatprep.subr.bf16.mxu0 0
    %4130 = vmatpush2.bf16.msra.mxu0 0
    %4131 = vmatprep.subr.bf16.mxu0 0
    %4132 = vmatpush2.bf16.msra.mxu0 0
    %4133 = vmatprep.subr.bf16.mxu0 0
    %4134 = vmatpush2.bf16.msra.mxu0 0
    %4135 = vmatprep.subr.bf16.mxu0 0
    %4136 = vmatpush2.bf16.msra.mxu0 0
    %4137 = vmatprep.subr.bf16.mxu0 0
    %4138 = vmatpush2.bf16.msra.mxu0 0
    %4139 = vmatprep.subr.bf16.mxu0 0
    %4140 = vmatpush2.bf16.msra.mxu0 0
    %4141 = vmatprep.subr.bf16.mxu0 0
    %4142 = vmatpush2.bf16.msra.mxu0 0
    %4143 = vmatprep.subr.bf16.mxu0 0
    %4144 = vmatpush2.bf16.msra.mxu0 0
    %4145 = vmatprep.mubr.bf16.mxu0 0
    %4146 = vmatmul.mubr.bf16.gmra.mxu0 %v4108
    %v4147 = vpop.f32.mrf.mxu0
    %v4148 = vadd.f32 0.0, %v4147
    %v4149 = vpop.f32.mrf.mxu0
    %v4150 = vpop.f32.mrf.mxu0
    %v4151 = vpop.f32.mrf.mxu0
    %4152 = vdwg.mxu0
    %4155 = vrot.lane.b32.xlu0 %v3656, 8
    %v4156 = vpop.permute.xlu0 %4155
    %4157 = vrot.lane.b32.xlu0 %v3704, 8
    %v4158 = vpop.permute.xlu0 %4157
    %4163 = vrot.lane.b32.xlu0 %v3878, 16
    %v4164 = vpop.permute.xlu0 %4163
    %4165 = vrot.lane.b32.xlu0 %v3926, 16
    %v4166 = vpop.permute.xlu0 %4165
    %4171 = vrot.lane.b32.xlu0 %v4100, 24
    %v4172 = vpop.permute.xlu0 %4171
    %4173 = vrot.lane.b32.xlu0 %v4148, 24
    %v4174 = vpop.permute.xlu0 %4173
    %v4177 = vsel %vm99, %v3434, %v4156
    %v4178 = vsel %vm99, %v3482, %v4158
    %v4179 = vsel %vm1010, %v4177, %v4164
    %v4180 = vsel %vm1010, %v4178, %v4166
    %v4181 = vsel %vm1013, %v4179, %v4172
    %v4182 = vsel %vm1013, %v4180, %v4174
    %s4183 = scalar_lea.vmem %s2, 16
    %v4184 = vld [vmem:[%s4183] sm:$0xf]
    %v4185 = vld [vmem:[%s4183 + $0x4] sm:$0xf]
    %v4186 = vld [vmem:[%s4183 + $0x8] sm:$0xf]
    %v4187 = vld [vmem:[%s4183 + $0xc] sm:$0xf]
    %v4188 = vpack.c.bf16 %v4182, %v4181
    %v4189 = vld [vmem:[%s5 + $0x3] sm:$0x1]
    %v4190 = vlaneseq
    %v4191 = vshrl.u32 %v4190, 7
    %v4192 = vsub.s32 0, %v4191
    %v4193 = vrot.slane %v4189, %v4192
    %v4198 = vunpack.c.l.b16 %v4184
    %v4199 = vunpack.c.l.b16 %v4185
    %v4200 = vunpack.c.l.b16 %v4186
    %v4201 = vunpack.c.l.b16 %v4187
    %v4202 = vpack.c.b16 %v4199, %v4198
    %v4203 = vpack.c.b16 %v4201, %v4200
    %v4207 = vsel %vm49, %v4188, 0
    %4209 = vmatprep.subr.bf16.mxu0 0
    %4210 = vmatpush1.bf16.msra.mxu0 0
    %4211 = vmatprep.subr.bf16.mxu0 0
    %4212 = vmatpush1.bf16.msra.mxu0 0
    %4213 = vmatprep.subr.bf16.mxu0 0
    %4214 = vmatpush1.bf16.msra.mxu0 0
    %4215 = vmatprep.subr.bf16.mxu0 0
    %4216 = vmatpush1.bf16.msra.mxu0 0
    %4217 = vmatprep.subr.bf16.mxu0 0
    %4218 = vmatpush1.bf16.msra.mxu0 0
    %4219 = vmatprep.subr.bf16.mxu0 0
    %4220 = vmatpush1.bf16.msra.mxu0 0
    %4221 = vmatprep.subr.bf16.mxu0 0
    %4222 = vmatpush1.bf16.msra.mxu0 %v4203
    %4223 = vmatprep.subr.bf16.mxu0 0
    %4224 = vmatpush1.bf16.msra.mxu0 %v4202
    %4225 = vmatprep.subr.bf16.mxu0 0
    %4226 = vmatpush2.bf16.msra.mxu0 0
    %4227 = vmatprep.subr.bf16.mxu0 0
    %4228 = vmatpush2.bf16.msra.mxu0 0
    %4229 = vmatprep.subr.bf16.mxu0 0
    %4230 = vmatpush2.bf16.msra.mxu0 0
    %4231 = vmatprep.subr.bf16.mxu0 0
    %4232 = vmatpush2.bf16.msra.mxu0 0
    %4233 = vmatprep.subr.bf16.mxu0 0
    %4234 = vmatpush2.bf16.msra.mxu0 0
    %4235 = vmatprep.subr.bf16.mxu0 0
    %4236 = vmatpush2.bf16.msra.mxu0 0
    %4237 = vmatprep.subr.bf16.mxu0 0
    %4238 = vmatpush2.bf16.msra.mxu0 0
    %4239 = vmatprep.subr.bf16.mxu0 0
    %4240 = vmatpush2.bf16.msra.mxu0 0
    %4241 = vmatprep.mubr.bf16.mxu0 0
    %4242 = vmatmul.mubr.bf16.gmra.mxu0 %v4207
    %v4243 = vpop.f32.mrf.mxu0
    %v4244 = vadd.f32 %v4193, %v4243
    %v4245 = vpop.f32.mrf.mxu0
    %v4246 = vpop.f32.mrf.mxu0
    %v4247 = vadd.f32 %v4193, %v4246
    %v4248 = vpop.f32.mrf.mxu0
    %4249 = vdwg.mxu0
    %v4250 = vadd.f32 %v3196, %v4244
    %v4251 = vadd.f32 %v3197, %v4247
    %v4252 = vld [vmem:[%s5 + $0x5] sm:$0x1]
    %v4253 = vld [vmem:[%s5 + $0x7] sm:$0x1]
    %v4254 = vsel %vm49, %v4250, 0.0
    %4255 = vadd.xlane.f32.xlu0 %v4254
    %v4256 = vpop.xlane.xlu0 %4255
    %v4257 = vsel %vm49, %v4251, 0.0
    %4258 = vadd.xlane.f32.xlu0 %v4257
    %v4259 = vpop.xlane.xlu0 %4258
    %v4260 = vmul.f32 %v4256, %v1092
    %v4261 = vmul.f32 %v4259, %v1092
    %v4262 = vsub.f32 %v4250, %v4260
    %v4263 = vsub.f32 %v4251, %v4261
    %v4264 = vmul.f32 %v4262, %v4262
    %v4265 = vmul.f32 %v4263, %v4263
    %v4266 = vsel %vm49, %v4264, 0.0
    %4267 = vadd.xlane.f32.xlu0 %v4266
    %v4268 = vpop.xlane.xlu0 %4267
    %v4269 = vsel %vm49, %v4265, 0.0
    %4270 = vadd.xlane.f32.xlu0 %v4269
    %v4271 = vpop.xlane.xlu0 %4270
    %v4272 = vmul.f32 %v4268, %v1092
    %v4273 = vmul.f32 %v4271, %v1092
    %v4274 = vadd.f32 %v4272, 1e-05
    %v4275 = vadd.f32 %v4273, 1e-05
    %v4276 = vrsqrt.pop %v4274
    %v4277 = vrsqrt.pop %v4275
    %v4278 = vmul.f32 %v4262, %v4276
    %v4279 = vmul.f32 %v4263, %v4277
    %v4280 = vlaneseq
    %v4281 = vshrl.u32 %v4280, 7
    %v4282 = vsub.s32 0, %v4281
    %v4283 = vrot.slane %v4252, %v4282
    %v4284 = vmul.f32 %v4278, %v4283
    %v4285 = vmul.f32 %v4279, %v4283
    %v4286 = vlaneseq
    %v4287 = vshrl.u32 %v4286, 7
    %v4288 = vsub.s32 0, %v4287
    %v4289 = vrot.slane %v4253, %v4288
    %v4290 = vadd.f32 %v4284, %v4289
    %v4291 = vadd.f32 %v4285, %v4289
    %s4292 = scalar_lea.vmem %s3, 256
    %v4293 = vld [vmem:[%s4292] sm:$0xff]
    %v4294 = vld [vmem:[%s4292 + $0x8] sm:$0xff]
    %v4295 = vld [vmem:[%s4292 + $0x10] sm:$0xff]
    %v4296 = vld [vmem:[%s4292 + $0x18] sm:$0xff]
    %v4297 = vld [vmem:[%s4292 + $0x20] sm:$0xff]
    %v4298 = vld [vmem:[%s4292 + $0x28] sm:$0xff]
    %v4299 = vld [vmem:[%s4292 + $0x30] sm:$0xff]
    %v4300 = vld [vmem:[%s4292 + $0x38] sm:$0xff]
    %v4301 = vld [vmem:[%s4292 + $0x40] sm:$0xff]
    %v4302 = vld [vmem:[%s4292 + $0x48] sm:$0xff]
    %v4303 = vld [vmem:[%s4292 + $0x50] sm:$0xff]
    %v4304 = vld [vmem:[%s4292 + $0x58] sm:$0xff]
    %v4305 = vld [vmem:[%s4292 + $0x60] sm:$0xff]
    %v4306 = vld [vmem:[%s4292 + $0x68] sm:$0xff]
    %v4307 = vld [vmem:[%s4292 + $0x70] sm:$0xff]
    %v4308 = vld [vmem:[%s4292 + $0x78] sm:$0xff]
    %v4309 = vld [vmem:[%s4292 + $0x80] sm:$0xff]
    %v4310 = vld [vmem:[%s4292 + $0x88] sm:$0xff]
    %v4311 = vld [vmem:[%s4292 + $0x90] sm:$0xff]
    %v4312 = vld [vmem:[%s4292 + $0x98] sm:$0xff]
    %v4313 = vld [vmem:[%s4292 + $0xa0] sm:$0xff]
    %v4314 = vld [vmem:[%s4292 + $0xa8] sm:$0xff]
    %v4315 = vld [vmem:[%s4292 + $0xb0] sm:$0xff]
    %v4316 = vld [vmem:[%s4292 + $0xb8] sm:$0xff]
    %v4317 = vld [vmem:[%s4292 + $0xc0] sm:$0xff]
    %v4318 = vld [vmem:[%s4292 + $0xc8] sm:$0xff]
    %v4319 = vld [vmem:[%s4292 + $0xd0] sm:$0xff]
    %v4320 = vld [vmem:[%s4292 + $0xd8] sm:$0xff]
    %v4321 = vld [vmem:[%s4292 + $0xe0] sm:$0xff]
    %v4322 = vld [vmem:[%s4292 + $0xe8] sm:$0xff]
    %v4323 = vld [vmem:[%s4292 + $0xf0] sm:$0xff]
    %v4324 = vld [vmem:[%s4292 + $0xf8] sm:$0xff]
    %v4325 = vpack.c.bf16 %v4291, %v4290
    %s4326 = scalar_lea.vmem %s5, 9
    %v4327 = vld [vmem:[%s4326] ss:$2 sm:$0xff]
    %s4328 = scalar_lea.vmem %s5, 25
    %v4329 = vld [vmem:[%s4328] ss:$2 sm:$0xff]
    %v4332 = vlaneseq
    %v4333 = vshrl.u32 %v4332, 7
    %v4334 = vsub.s32 0, %v4333
    %v4335 = vrot.slane %v4327, %v4334
    %v4336 = vlaneseq
    %v4337 = vshrl.u32 %v4336, 7
    %v4338 = vsub.s32 1, %v4337
    %v4339 = vrot.slane %v4327, %v4338
    %v4340 = vlaneseq
    %v4341 = vshrl.u32 %v4340, 7
    %v4342 = vsub.s32 2, %v4341
    %v4343 = vrot.slane %v4327, %v4342
    %v4344 = vlaneseq
    %v4345 = vshrl.u32 %v4344, 7
    %v4346 = vsub.s32 3, %v4345
    %v4347 = vrot.slane %v4327, %v4346
    %v4348 = vlaneseq
    %v4349 = vshrl.u32 %v4348, 7
    %v4350 = vsub.s32 4, %v4349
    %v4351 = vrot.slane %v4327, %v4350
    %v4352 = vlaneseq
    %v4353 = vshrl.u32 %v4352, 7
    %v4354 = vsub.s32 5, %v4353
    %v4355 = vrot.slane %v4327, %v4354
    %v4356 = vlaneseq
    %v4357 = vshrl.u32 %v4356, 7
    %v4358 = vsub.s32 6, %v4357
    %v4359 = vrot.slane %v4327, %v4358
    %v4360 = vlaneseq
    %v4361 = vshrl.u32 %v4360, 7
    %v4362 = vsub.s32 7, %v4361
    %v4363 = vrot.slane %v4327, %v4362
    %v4364 = vlaneseq
    %v4365 = vshrl.u32 %v4364, 7
    %v4366 = vsub.s32 0, %v4365
    %v4367 = vrot.slane %v4329, %v4366
    %v4368 = vlaneseq
    %v4369 = vshrl.u32 %v4368, 7
    %v4370 = vsub.s32 1, %v4369
    %v4371 = vrot.slane %v4329, %v4370
    %v4372 = vlaneseq
    %v4373 = vshrl.u32 %v4372, 7
    %v4374 = vsub.s32 2, %v4373
    %v4375 = vrot.slane %v4329, %v4374
    %v4376 = vlaneseq
    %v4377 = vshrl.u32 %v4376, 7
    %v4378 = vsub.s32 3, %v4377
    %v4379 = vrot.slane %v4329, %v4378
    %v4380 = vlaneseq
    %v4381 = vshrl.u32 %v4380, 7
    %v4382 = vsub.s32 4, %v4381
    %v4383 = vrot.slane %v4329, %v4382
    %v4384 = vlaneseq
    %v4385 = vshrl.u32 %v4384, 7
    %v4386 = vsub.s32 5, %v4385
    %v4387 = vrot.slane %v4329, %v4386
    %v4388 = vlaneseq
    %v4389 = vshrl.u32 %v4388, 7
    %v4390 = vsub.s32 6, %v4389
    %v4391 = vrot.slane %v4329, %v4390
    %v4392 = vlaneseq
    %v4393 = vshrl.u32 %v4392, 7
    %v4394 = vsub.s32 7, %v4393
    %v4395 = vrot.slane %v4329, %v4394
    %v4444 = vunpack.c.l.b16 %v4293
    %v4445 = vunpack.c.h.b16 %v4293
    %v4446 = vunpack.c.l.b16 %v4294
    %v4447 = vunpack.c.h.b16 %v4294
    %v4448 = vunpack.c.l.b16 %v4295
    %v4449 = vunpack.c.h.b16 %v4295
    %v4450 = vunpack.c.l.b16 %v4296
    %v4451 = vunpack.c.h.b16 %v4296
    %v4452 = vunpack.c.l.b16 %v4297
    %v4453 = vunpack.c.h.b16 %v4297
    %v4454 = vunpack.c.l.b16 %v4298
    %v4455 = vunpack.c.h.b16 %v4298
    %v4456 = vunpack.c.l.b16 %v4299
    %v4457 = vunpack.c.h.b16 %v4299
    %v4458 = vunpack.c.l.b16 %v4300
    %v4459 = vunpack.c.h.b16 %v4300
    %v4460 = vunpack.c.l.b16 %v4301
    %v4461 = vunpack.c.h.b16 %v4301
    %v4462 = vunpack.c.l.b16 %v4302
    %v4463 = vunpack.c.h.b16 %v4302
    %v4464 = vunpack.c.l.b16 %v4303
    %v4465 = vunpack.c.h.b16 %v4303
    %v4466 = vunpack.c.l.b16 %v4304
    %v4467 = vunpack.c.h.b16 %v4304
    %v4468 = vunpack.c.l.b16 %v4305
    %v4469 = vunpack.c.h.b16 %v4305
    %v4470 = vunpack.c.l.b16 %v4306
    %v4471 = vunpack.c.h.b16 %v4306
    %v4472 = vunpack.c.l.b16 %v4307
    %v4473 = vunpack.c.h.b16 %v4307
    %v4474 = vunpack.c.l.b16 %v4308
    %v4475 = vunpack.c.h.b16 %v4308
    %v4476 = vunpack.c.l.b16 %v4309
    %v4477 = vunpack.c.h.b16 %v4309
    %v4478 = vunpack.c.l.b16 %v4310
    %v4479 = vunpack.c.h.b16 %v4310
    %v4480 = vunpack.c.l.b16 %v4311
    %v4481 = vunpack.c.h.b16 %v4311
    %v4482 = vunpack.c.l.b16 %v4312
    %v4483 = vunpack.c.h.b16 %v4312
    %v4484 = vunpack.c.l.b16 %v4313
    %v4485 = vunpack.c.h.b16 %v4313
    %v4486 = vunpack.c.l.b16 %v4314
    %v4487 = vunpack.c.h.b16 %v4314
    %v4488 = vunpack.c.l.b16 %v4315
    %v4489 = vunpack.c.h.b16 %v4315
    %v4490 = vunpack.c.l.b16 %v4316
    %v4491 = vunpack.c.h.b16 %v4316
    %v4492 = vunpack.c.l.b16 %v4317
    %v4493 = vunpack.c.h.b16 %v4317
    %v4494 = vunpack.c.l.b16 %v4318
    %v4495 = vunpack.c.h.b16 %v4318
    %v4496 = vunpack.c.l.b16 %v4319
    %v4497 = vunpack.c.h.b16 %v4319
    %v4498 = vunpack.c.l.b16 %v4320
    %v4499 = vunpack.c.h.b16 %v4320
    %v4500 = vunpack.c.l.b16 %v4321
    %v4501 = vunpack.c.h.b16 %v4321
    %v4502 = vunpack.c.l.b16 %v4322
    %v4503 = vunpack.c.h.b16 %v4322
    %v4504 = vunpack.c.l.b16 %v4323
    %v4505 = vunpack.c.h.b16 %v4323
    %v4506 = vunpack.c.l.b16 %v4324
    %v4507 = vunpack.c.h.b16 %v4324
    %v4508 = vpack.c.b16 %v4460, %v4444
    %v4509 = vpack.c.b16 %v4461, %v4445
    %v4510 = vpack.c.b16 %v4462, %v4446
    %v4511 = vpack.c.b16 %v4463, %v4447
    %v4512 = vpack.c.b16 %v4464, %v4448
    %v4513 = vpack.c.b16 %v4465, %v4449
    %v4514 = vpack.c.b16 %v4466, %v4450
    %v4515 = vpack.c.b16 %v4467, %v4451
    %v4516 = vpack.c.b16 %v4468, %v4452
    %v4517 = vpack.c.b16 %v4469, %v4453
    %v4518 = vpack.c.b16 %v4470, %v4454
    %v4519 = vpack.c.b16 %v4471, %v4455
    %v4520 = vpack.c.b16 %v4472, %v4456
    %v4521 = vpack.c.b16 %v4473, %v4457
    %v4522 = vpack.c.b16 %v4474, %v4458
    %v4523 = vpack.c.b16 %v4475, %v4459
    %v4524 = vpack.c.b16 %v4492, %v4476
    %v4525 = vpack.c.b16 %v4493, %v4477
    %v4526 = vpack.c.b16 %v4494, %v4478
    %v4527 = vpack.c.b16 %v4495, %v4479
    %v4528 = vpack.c.b16 %v4496, %v4480
    %v4529 = vpack.c.b16 %v4497, %v4481
    %v4530 = vpack.c.b16 %v4498, %v4482
    %v4531 = vpack.c.b16 %v4499, %v4483
    %v4532 = vpack.c.b16 %v4500, %v4484
    %v4533 = vpack.c.b16 %v4501, %v4485
    %v4534 = vpack.c.b16 %v4502, %v4486
    %v4535 = vpack.c.b16 %v4503, %v4487
    %v4536 = vpack.c.b16 %v4504, %v4488
    %v4537 = vpack.c.b16 %v4505, %v4489
    %v4538 = vpack.c.b16 %v4506, %v4490
    %v4539 = vpack.c.b16 %v4507, %v4491
    %v4573 = vsel %vm49, %v4325, 0
    %4575 = vmatprep.subr.bf16.mxu0 0
    %4576 = vmatpush1.bf16.msra.mxu0 0
    %4577 = vmatprep.subr.bf16.mxu0 0
    %4578 = vmatpush1.bf16.msra.mxu0 0
    %4579 = vmatprep.subr.bf16.mxu0 0
    %4580 = vmatpush1.bf16.msra.mxu0 0
    %4581 = vmatprep.subr.bf16.mxu0 0
    %4582 = vmatpush1.bf16.msra.mxu0 0
    %4583 = vmatprep.subr.bf16.mxu0 0
    %4584 = vmatpush1.bf16.msra.mxu0 0
    %4585 = vmatprep.subr.bf16.mxu0 0
    %4586 = vmatpush1.bf16.msra.mxu0 0
    %4587 = vmatprep.subr.bf16.mxu0 %v4525
    %4588 = vmatpush1.bf16.msra.mxu0 %v4524
    %4589 = vmatprep.subr.bf16.mxu0 %v4509
    %4590 = vmatpush1.bf16.msra.mxu0 %v4508
    %4591 = vmatprep.subr.bf16.mxu0 0
    %4592 = vmatpush2.bf16.msra.mxu0 0
    %4593 = vmatprep.subr.bf16.mxu0 0
    %4594 = vmatpush2.bf16.msra.mxu0 0
    %4595 = vmatprep.subr.bf16.mxu0 0
    %4596 = vmatpush2.bf16.msra.mxu0 0
    %4597 = vmatprep.subr.bf16.mxu0 0
    %4598 = vmatpush2.bf16.msra.mxu0 0
    %4599 = vmatprep.subr.bf16.mxu0 0
    %4600 = vmatpush2.bf16.msra.mxu0 0
    %4601 = vmatprep.subr.bf16.mxu0 0
    %4602 = vmatpush2.bf16.msra.mxu0 0
    %4603 = vmatprep.subr.bf16.mxu0 0
    %4604 = vmatpush2.bf16.msra.mxu0 0
    %4605 = vmatprep.subr.bf16.mxu0 0
    %4606 = vmatpush2.bf16.msra.mxu0 0
    %4607 = vmatprep.mubr.bf16.mxu0 0
    %4608 = vmatmul.mubr.bf16.gmra.mxu0 %v4573
    %v4609 = vpop.f32.mrf.mxu0
    %v4610 = vadd.f32 %v4335, %v4609
    %v4611 = vpop.f32.mrf.mxu0
    %v4612 = vadd.f32 %v4339, %v4611
    %v4613 = vpop.f32.mrf.mxu0
    %v4614 = vadd.f32 %v4335, %v4613
    %v4615 = vpop.f32.mrf.mxu0
    %v4616 = vadd.f32 %v4339, %v4615
    %4617 = vdwg.mxu0
    %4618 = vmatprep.subr.bf16.mxu0 0
    %4619 = vmatpush1.bf16.msra.mxu0 0
    %4620 = vmatprep.subr.bf16.mxu0 0
    %4621 = vmatpush1.bf16.msra.mxu0 0
    %4622 = vmatprep.subr.bf16.mxu0 0
    %4623 = vmatpush1.bf16.msra.mxu0 0
    %4624 = vmatprep.subr.bf16.mxu0 0
    %4625 = vmatpush1.bf16.msra.mxu0 0
    %4626 = vmatprep.subr.bf16.mxu0 0
    %4627 = vmatpush1.bf16.msra.mxu0 0
    %4628 = vmatprep.subr.bf16.mxu0 0
    %4629 = vmatpush1.bf16.msra.mxu0 0
    %4630 = vmatprep.subr.bf16.mxu0 %v4527
    %4631 = vmatpush1.bf16.msra.mxu0 %v4526
    %4632 = vmatprep.subr.bf16.mxu0 %v4511
    %4633 = vmatpush1.bf16.msra.mxu0 %v4510
    %4634 = vmatprep.subr.bf16.mxu0 0
    %4635 = vmatpush2.bf16.msra.mxu0 0
    %4636 = vmatprep.subr.bf16.mxu0 0
    %4637 = vmatpush2.bf16.msra.mxu0 0
    %4638 = vmatprep.subr.bf16.mxu0 0
    %4639 = vmatpush2.bf16.msra.mxu0 0
    %4640 = vmatprep.subr.bf16.mxu0 0
    %4641 = vmatpush2.bf16.msra.mxu0 0
    %4642 = vmatprep.subr.bf16.mxu0 0
    %4643 = vmatpush2.bf16.msra.mxu0 0
    %4644 = vmatprep.subr.bf16.mxu0 0
    %4645 = vmatpush2.bf16.msra.mxu0 0
    %4646 = vmatprep.subr.bf16.mxu0 0
    %4647 = vmatpush2.bf16.msra.mxu0 0
    %4648 = vmatprep.subr.bf16.mxu0 0
    %4649 = vmatpush2.bf16.msra.mxu0 0
    %4650 = vmatprep.mubr.bf16.mxu0 0
    %4651 = vmatmul.mubr.bf16.gmra.mxu0 %v4573
    %v4652 = vpop.f32.mrf.mxu0
    %v4653 = vadd.f32 %v4343, %v4652
    %v4654 = vpop.f32.mrf.mxu0
    %v4655 = vadd.f32 %v4347, %v4654
    %v4656 = vpop.f32.mrf.mxu0
    %v4657 = vadd.f32 %v4343, %v4656
    %v4658 = vpop.f32.mrf.mxu0
    %v4659 = vadd.f32 %v4347, %v4658
    %4660 = vdwg.mxu0
    %4661 = vmatprep.subr.bf16.mxu0 0
    %4662 = vmatpush1.bf16.msra.mxu0 0
    %4663 = vmatprep.subr.bf16.mxu0 0
    %4664 = vmatpush1.bf16.msra.mxu0 0
    %4665 = vmatprep.subr.bf16.mxu0 0
    %4666 = vmatpush1.bf16.msra.mxu0 0
    %4667 = vmatprep.subr.bf16.mxu0 0
    %4668 = vmatpush1.bf16.msra.mxu0 0
    %4669 = vmatprep.subr.bf16.mxu0 0
    %4670 = vmatpush1.bf16.msra.mxu0 0
    %4671 = vmatprep.subr.bf16.mxu0 0
    %4672 = vmatpush1.bf16.msra.mxu0 0
    %4673 = vmatprep.subr.bf16.mxu0 %v4529
    %4674 = vmatpush1.bf16.msra.mxu0 %v4528
    %4675 = vmatprep.subr.bf16.mxu0 %v4513
    %4676 = vmatpush1.bf16.msra.mxu0 %v4512
    %4677 = vmatprep.subr.bf16.mxu0 0
    %4678 = vmatpush2.bf16.msra.mxu0 0
    %4679 = vmatprep.subr.bf16.mxu0 0
    %4680 = vmatpush2.bf16.msra.mxu0 0
    %4681 = vmatprep.subr.bf16.mxu0 0
    %4682 = vmatpush2.bf16.msra.mxu0 0
    %4683 = vmatprep.subr.bf16.mxu0 0
    %4684 = vmatpush2.bf16.msra.mxu0 0
    %4685 = vmatprep.subr.bf16.mxu0 0
    %4686 = vmatpush2.bf16.msra.mxu0 0
    %4687 = vmatprep.subr.bf16.mxu0 0
    %4688 = vmatpush2.bf16.msra.mxu0 0
    %4689 = vmatprep.subr.bf16.mxu0 0
    %4690 = vmatpush2.bf16.msra.mxu0 0
    %4691 = vmatprep.subr.bf16.mxu0 0
    %4692 = vmatpush2.bf16.msra.mxu0 0
    %4693 = vmatprep.mubr.bf16.mxu0 0
    %4694 = vmatmul.mubr.bf16.gmra.mxu0 %v4573
    %v4695 = vpop.f32.mrf.mxu0
    %v4696 = vadd.f32 %v4351, %v4695
    %v4697 = vpop.f32.mrf.mxu0
    %v4698 = vadd.f32 %v4355, %v4697
    %v4699 = vpop.f32.mrf.mxu0
    %v4700 = vadd.f32 %v4351, %v4699
    %v4701 = vpop.f32.mrf.mxu0
    %v4702 = vadd.f32 %v4355, %v4701
    %4703 = vdwg.mxu0
    %4704 = vmatprep.subr.bf16.mxu0 0
    %4705 = vmatpush1.bf16.msra.mxu0 0
    %4706 = vmatprep.subr.bf16.mxu0 0
    %4707 = vmatpush1.bf16.msra.mxu0 0
    %4708 = vmatprep.subr.bf16.mxu0 0
    %4709 = vmatpush1.bf16.msra.mxu0 0
    %4710 = vmatprep.subr.bf16.mxu0 0
    %4711 = vmatpush1.bf16.msra.mxu0 0
    %4712 = vmatprep.subr.bf16.mxu0 0
    %4713 = vmatpush1.bf16.msra.mxu0 0
    %4714 = vmatprep.subr.bf16.mxu0 0
    %4715 = vmatpush1.bf16.msra.mxu0 0
    %4716 = vmatprep.subr.bf16.mxu0 %v4531
    %4717 = vmatpush1.bf16.msra.mxu0 %v4530
    %4718 = vmatprep.subr.bf16.mxu0 %v4515
    %4719 = vmatpush1.bf16.msra.mxu0 %v4514
    %4720 = vmatprep.subr.bf16.mxu0 0
    %4721 = vmatpush2.bf16.msra.mxu0 0
    %4722 = vmatprep.subr.bf16.mxu0 0
    %4723 = vmatpush2.bf16.msra.mxu0 0
    %4724 = vmatprep.subr.bf16.mxu0 0
    %4725 = vmatpush2.bf16.msra.mxu0 0
    %4726 = vmatprep.subr.bf16.mxu0 0
    %4727 = vmatpush2.bf16.msra.mxu0 0
    %4728 = vmatprep.subr.bf16.mxu0 0
    %4729 = vmatpush2.bf16.msra.mxu0 0
    %4730 = vmatprep.subr.bf16.mxu0 0
    %4731 = vmatpush2.bf16.msra.mxu0 0
    %4732 = vmatprep.subr.bf16.mxu0 0
    %4733 = vmatpush2.bf16.msra.mxu0 0
    %4734 = vmatprep.subr.bf16.mxu0 0
    %4735 = vmatpush2.bf16.msra.mxu0 0
    %4736 = vmatprep.mubr.bf16.mxu0 0
    %4737 = vmatmul.mubr.bf16.gmra.mxu0 %v4573
    %v4738 = vpop.f32.mrf.mxu0
    %v4739 = vadd.f32 %v4359, %v4738
    %v4740 = vpop.f32.mrf.mxu0
    %v4741 = vadd.f32 %v4363, %v4740
    %v4742 = vpop.f32.mrf.mxu0
    %v4743 = vadd.f32 %v4359, %v4742
    %v4744 = vpop.f32.mrf.mxu0
    %v4745 = vadd.f32 %v4363, %v4744
    %4746 = vdwg.mxu0
    %4747 = vmatprep.subr.bf16.mxu0 0
    %4748 = vmatpush1.bf16.msra.mxu0 0
    %4749 = vmatprep.subr.bf16.mxu0 0
    %4750 = vmatpush1.bf16.msra.mxu0 0
    %4751 = vmatprep.subr.bf16.mxu0 0
    %4752 = vmatpush1.bf16.msra.mxu0 0
    %4753 = vmatprep.subr.bf16.mxu0 0
    %4754 = vmatpush1.bf16.msra.mxu0 0
    %4755 = vmatprep.subr.bf16.mxu0 0
    %4756 = vmatpush1.bf16.msra.mxu0 0
    %4757 = vmatprep.subr.bf16.mxu0 0
    %4758 = vmatpush1.bf16.msra.mxu0 0
    %4759 = vmatprep.subr.bf16.mxu0 %v4533
    %4760 = vmatpush1.bf16.msra.mxu0 %v4532
    %4761 = vmatprep.subr.bf16.mxu0 %v4517
    %4762 = vmatpush1.bf16.msra.mxu0 %v4516
    %4763 = vmatprep.subr.bf16.mxu0 0
    %4764 = vmatpush2.bf16.msra.mxu0 0
    %4765 = vmatprep.subr.bf16.mxu0 0
    %4766 = vmatpush2.bf16.msra.mxu0 0
    %4767 = vmatprep.subr.bf16.mxu0 0
    %4768 = vmatpush2.bf16.msra.mxu0 0
    %4769 = vmatprep.subr.bf16.mxu0 0
    %4770 = vmatpush2.bf16.msra.mxu0 0
    %4771 = vmatprep.subr.bf16.mxu0 0
    %4772 = vmatpush2.bf16.msra.mxu0 0
    %4773 = vmatprep.subr.bf16.mxu0 0
    %4774 = vmatpush2.bf16.msra.mxu0 0
    %4775 = vmatprep.subr.bf16.mxu0 0
    %4776 = vmatpush2.bf16.msra.mxu0 0
    %4777 = vmatprep.subr.bf16.mxu0 0
    %4778 = vmatpush2.bf16.msra.mxu0 0
    %4779 = vmatprep.mubr.bf16.mxu0 0
    %4780 = vmatmul.mubr.bf16.gmra.mxu0 %v4573
    %v4781 = vpop.f32.mrf.mxu0
    %v4782 = vadd.f32 %v4367, %v4781
    %v4783 = vpop.f32.mrf.mxu0
    %v4784 = vadd.f32 %v4371, %v4783
    %v4785 = vpop.f32.mrf.mxu0
    %v4786 = vadd.f32 %v4367, %v4785
    %v4787 = vpop.f32.mrf.mxu0
    %v4788 = vadd.f32 %v4371, %v4787
    %4789 = vdwg.mxu0
    %4790 = vmatprep.subr.bf16.mxu0 0
    %4791 = vmatpush1.bf16.msra.mxu0 0
    %4792 = vmatprep.subr.bf16.mxu0 0
    %4793 = vmatpush1.bf16.msra.mxu0 0
    %4794 = vmatprep.subr.bf16.mxu0 0
    %4795 = vmatpush1.bf16.msra.mxu0 0
    %4796 = vmatprep.subr.bf16.mxu0 0
    %4797 = vmatpush1.bf16.msra.mxu0 0
    %4798 = vmatprep.subr.bf16.mxu0 0
    %4799 = vmatpush1.bf16.msra.mxu0 0
    %4800 = vmatprep.subr.bf16.mxu0 0
    %4801 = vmatpush1.bf16.msra.mxu0 0
    %4802 = vmatprep.subr.bf16.mxu0 %v4535
    %4803 = vmatpush1.bf16.msra.mxu0 %v4534
    %4804 = vmatprep.subr.bf16.mxu0 %v4519
    %4805 = vmatpush1.bf16.msra.mxu0 %v4518
    %4806 = vmatprep.subr.bf16.mxu0 0
    %4807 = vmatpush2.bf16.msra.mxu0 0
    %4808 = vmatprep.subr.bf16.mxu0 0
    %4809 = vmatpush2.bf16.msra.mxu0 0
    %4810 = vmatprep.subr.bf16.mxu0 0
    %4811 = vmatpush2.bf16.msra.mxu0 0
    %4812 = vmatprep.subr.bf16.mxu0 0
    %4813 = vmatpush2.bf16.msra.mxu0 0
    %4814 = vmatprep.subr.bf16.mxu0 0
    %4815 = vmatpush2.bf16.msra.mxu0 0
    %4816 = vmatprep.subr.bf16.mxu0 0
    %4817 = vmatpush2.bf16.msra.mxu0 0
    %4818 = vmatprep.subr.bf16.mxu0 0
    %4819 = vmatpush2.bf16.msra.mxu0 0
    %4820 = vmatprep.subr.bf16.mxu0 0
    %4821 = vmatpush2.bf16.msra.mxu0 0
    %4822 = vmatprep.mubr.bf16.mxu0 0
    %4823 = vmatmul.mubr.bf16.gmra.mxu0 %v4573
    %v4824 = vpop.f32.mrf.mxu0
    %v4825 = vadd.f32 %v4375, %v4824
    %v4826 = vpop.f32.mrf.mxu0
    %v4827 = vadd.f32 %v4379, %v4826
    %v4828 = vpop.f32.mrf.mxu0
    %v4829 = vadd.f32 %v4375, %v4828
    %v4830 = vpop.f32.mrf.mxu0
    %v4831 = vadd.f32 %v4379, %v4830
    %4832 = vdwg.mxu0
    %4833 = vmatprep.subr.bf16.mxu0 0
    %4834 = vmatpush1.bf16.msra.mxu0 0
    %4835 = vmatprep.subr.bf16.mxu0 0
    %4836 = vmatpush1.bf16.msra.mxu0 0
    %4837 = vmatprep.subr.bf16.mxu0 0
    %4838 = vmatpush1.bf16.msra.mxu0 0
    %4839 = vmatprep.subr.bf16.mxu0 0
    %4840 = vmatpush1.bf16.msra.mxu0 0
    %4841 = vmatprep.subr.bf16.mxu0 0
    %4842 = vmatpush1.bf16.msra.mxu0 0
    %4843 = vmatprep.subr.bf16.mxu0 0
    %4844 = vmatpush1.bf16.msra.mxu0 0
    %4845 = vmatprep.subr.bf16.mxu0 %v4537
    %4846 = vmatpush1.bf16.msra.mxu0 %v4536
    %4847 = vmatprep.subr.bf16.mxu0 %v4521
    %4848 = vmatpush1.bf16.msra.mxu0 %v4520
    %4849 = vmatprep.subr.bf16.mxu0 0
    %4850 = vmatpush2.bf16.msra.mxu0 0
    %4851 = vmatprep.subr.bf16.mxu0 0
    %4852 = vmatpush2.bf16.msra.mxu0 0
    %4853 = vmatprep.subr.bf16.mxu0 0
    %4854 = vmatpush2.bf16.msra.mxu0 0
    %4855 = vmatprep.subr.bf16.mxu0 0
    %4856 = vmatpush2.bf16.msra.mxu0 0
    %4857 = vmatprep.subr.bf16.mxu0 0
    %4858 = vmatpush2.bf16.msra.mxu0 0
    %4859 = vmatprep.subr.bf16.mxu0 0
    %4860 = vmatpush2.bf16.msra.mxu0 0
    %4861 = vmatprep.subr.bf16.mxu0 0
    %4862 = vmatpush2.bf16.msra.mxu0 0
    %4863 = vmatprep.subr.bf16.mxu0 0
    %4864 = vmatpush2.bf16.msra.mxu0 0
    %4865 = vmatprep.mubr.bf16.mxu0 0
    %4866 = vmatmul.mubr.bf16.gmra.mxu0 %v4573
    %v4867 = vpop.f32.mrf.mxu0
    %v4868 = vadd.f32 %v4383, %v4867
    %v4869 = vpop.f32.mrf.mxu0
    %v4870 = vadd.f32 %v4387, %v4869
    %v4871 = vpop.f32.mrf.mxu0
    %v4872 = vadd.f32 %v4383, %v4871
    %v4873 = vpop.f32.mrf.mxu0
    %v4874 = vadd.f32 %v4387, %v4873
    %4875 = vdwg.mxu0
    %4876 = vmatprep.subr.bf16.mxu0 0
    %4877 = vmatpush1.bf16.msra.mxu0 0
    %4878 = vmatprep.subr.bf16.mxu0 0
    %4879 = vmatpush1.bf16.msra.mxu0 0
    %4880 = vmatprep.subr.bf16.mxu0 0
    %4881 = vmatpush1.bf16.msra.mxu0 0
    %4882 = vmatprep.subr.bf16.mxu0 0
    %4883 = vmatpush1.bf16.msra.mxu0 0
    %4884 = vmatprep.subr.bf16.mxu0 0
    %4885 = vmatpush1.bf16.msra.mxu0 0
    %4886 = vmatprep.subr.bf16.mxu0 0
    %4887 = vmatpush1.bf16.msra.mxu0 0
    %4888 = vmatprep.subr.bf16.mxu0 %v4539
    %4889 = vmatpush1.bf16.msra.mxu0 %v4538
    %4890 = vmatprep.subr.bf16.mxu0 %v4523
    %4891 = vmatpush1.bf16.msra.mxu0 %v4522
    %4892 = vmatprep.subr.bf16.mxu0 0
    %4893 = vmatpush2.bf16.msra.mxu0 0
    %4894 = vmatprep.subr.bf16.mxu0 0
    %4895 = vmatpush2.bf16.msra.mxu0 0
    %4896 = vmatprep.subr.bf16.mxu0 0
    %4897 = vmatpush2.bf16.msra.mxu0 0
    %4898 = vmatprep.subr.bf16.mxu0 0
    %4899 = vmatpush2.bf16.msra.mxu0 0
    %4900 = vmatprep.subr.bf16.mxu0 0
    %4901 = vmatpush2.bf16.msra.mxu0 0
    %4902 = vmatprep.subr.bf16.mxu0 0
    %4903 = vmatpush2.bf16.msra.mxu0 0
    %4904 = vmatprep.subr.bf16.mxu0 0
    %4905 = vmatpush2.bf16.msra.mxu0 0
    %4906 = vmatprep.subr.bf16.mxu0 0
    %4907 = vmatpush2.bf16.msra.mxu0 0
    %4908 = vmatprep.mubr.bf16.mxu0 0
    %4909 = vmatmul.mubr.bf16.gmra.mxu0 %v4573
    %v4910 = vpop.f32.mrf.mxu0
    %v4911 = vadd.f32 %v4391, %v4910
    %v4912 = vpop.f32.mrf.mxu0
    %v4913 = vadd.f32 %v4395, %v4912
    %v4914 = vpop.f32.mrf.mxu0
    %v4915 = vadd.f32 %v4391, %v4914
    %v4916 = vpop.f32.mrf.mxu0
    %v4917 = vadd.f32 %v4395, %v4916
    %4918 = vdwg.mxu0
    %v4919 = vmax.f32 %v4610, 0.0
    %v4920 = vmax.f32 %v4612, 0.0
    %v4921 = vmax.f32 %v4653, 0.0
    %v4922 = vmax.f32 %v4655, 0.0
    %v4923 = vmax.f32 %v4696, 0.0
    %v4924 = vmax.f32 %v4698, 0.0
    %v4925 = vmax.f32 %v4739, 0.0
    %v4926 = vmax.f32 %v4741, 0.0
    %v4927 = vmax.f32 %v4782, 0.0
    %v4928 = vmax.f32 %v4784, 0.0
    %v4929 = vmax.f32 %v4825, 0.0
    %v4930 = vmax.f32 %v4827, 0.0
    %v4931 = vmax.f32 %v4868, 0.0
    %v4932 = vmax.f32 %v4870, 0.0
    %v4933 = vmax.f32 %v4911, 0.0
    %v4934 = vmax.f32 %v4913, 0.0
    %v4935 = vmax.f32 %v4614, 0.0
    %v4936 = vmax.f32 %v4616, 0.0
    %v4937 = vmax.f32 %v4657, 0.0
    %v4938 = vmax.f32 %v4659, 0.0
    %v4939 = vmax.f32 %v4700, 0.0
    %v4940 = vmax.f32 %v4702, 0.0
    %v4941 = vmax.f32 %v4743, 0.0
    %v4942 = vmax.f32 %v4745, 0.0
    %v4943 = vmax.f32 %v4786, 0.0
    %v4944 = vmax.f32 %v4788, 0.0
    %v4945 = vmax.f32 %v4829, 0.0
    %v4946 = vmax.f32 %v4831, 0.0
    %v4947 = vmax.f32 %v4872, 0.0
    %v4948 = vmax.f32 %v4874, 0.0
    %v4949 = vmax.f32 %v4915, 0.0
    %v4950 = vmax.f32 %v4917, 0.0
    %s4951 = scalar_lea.vmem %s4, 1024
    %v4952 = vld [vmem:[%s4951] sm:$0xf]
    %v4953 = vld [vmem:[%s4951 + $0x4] sm:$0xf]
    %v4954 = vld [vmem:[%s4951 + $0x8] sm:$0xf]
    %v4955 = vld [vmem:[%s4951 + $0xc] sm:$0xf]
    %v4956 = vld [vmem:[%s4951 + $0x10] sm:$0xf]
    %v4957 = vld [vmem:[%s4951 + $0x14] sm:$0xf]
    %v4958 = vld [vmem:[%s4951 + $0x18] sm:$0xf]
    %v4959 = vld [vmem:[%s4951 + $0x1c] sm:$0xf]
    %v4960 = vld [vmem:[%s4951 + $0x20] sm:$0xf]
    %v4961 = vld [vmem:[%s4951 + $0x24] sm:$0xf]
    %v4962 = vld [vmem:[%s4951 + $0x28] sm:$0xf]
    %v4963 = vld [vmem:[%s4951 + $0x2c] sm:$0xf]
    %v4964 = vld [vmem:[%s4951 + $0x30] sm:$0xf]
    %v4965 = vld [vmem:[%s4951 + $0x34] sm:$0xf]
    %v4966 = vld [vmem:[%s4951 + $0x38] sm:$0xf]
    %v4967 = vld [vmem:[%s4951 + $0x3c] sm:$0xf]
    %v4968 = vld [vmem:[%s4951 + $0x40] sm:$0xf]
    %v4969 = vld [vmem:[%s4951 + $0x44] sm:$0xf]
    %v4970 = vld [vmem:[%s4951 + $0x48] sm:$0xf]
    %v4971 = vld [vmem:[%s4951 + $0x4c] sm:$0xf]
    %v4972 = vld [vmem:[%s4951 + $0x50] sm:$0xf]
    %v4973 = vld [vmem:[%s4951 + $0x54] sm:$0xf]
    %v4974 = vld [vmem:[%s4951 + $0x58] sm:$0xf]
    %v4975 = vld [vmem:[%s4951 + $0x5c] sm:$0xf]
    %v4976 = vld [vmem:[%s4951 + $0x60] sm:$0xf]
    %v4977 = vld [vmem:[%s4951 + $0x64] sm:$0xf]
    %v4978 = vld [vmem:[%s4951 + $0x68] sm:$0xf]
    %v4979 = vld [vmem:[%s4951 + $0x6c] sm:$0xf]
    %v4980 = vld [vmem:[%s4951 + $0x70] sm:$0xf]
    %v4981 = vld [vmem:[%s4951 + $0x74] sm:$0xf]
    %v4982 = vld [vmem:[%s4951 + $0x78] sm:$0xf]
    %v4983 = vld [vmem:[%s4951 + $0x7c] sm:$0xf]
    %v4984 = vld [vmem:[%s4951 + $0x80] sm:$0xf]
    %v4985 = vld [vmem:[%s4951 + $0x84] sm:$0xf]
    %v4986 = vld [vmem:[%s4951 + $0x88] sm:$0xf]
    %v4987 = vld [vmem:[%s4951 + $0x8c] sm:$0xf]
    %v4988 = vld [vmem:[%s4951 + $0x90] sm:$0xf]
    %v4989 = vld [vmem:[%s4951 + $0x94] sm:$0xf]
    %v4990 = vld [vmem:[%s4951 + $0x98] sm:$0xf]
    %v4991 = vld [vmem:[%s4951 + $0x9c] sm:$0xf]
    %v4992 = vld [vmem:[%s4951 + $0xa0] sm:$0xf]
    %v4993 = vld [vmem:[%s4951 + $0xa4] sm:$0xf]
    %v4994 = vld [vmem:[%s4951 + $0xa8] sm:$0xf]
    %v4995 = vld [vmem:[%s4951 + $0xac] sm:$0xf]
    %v4996 = vld [vmem:[%s4951 + $0xb0] sm:$0xf]
    %v4997 = vld [vmem:[%s4951 + $0xb4] sm:$0xf]
    %v4998 = vld [vmem:[%s4951 + $0xb8] sm:$0xf]
    %v4999 = vld [vmem:[%s4951 + $0xbc] sm:$0xf]
    %v5000 = vld [vmem:[%s4951 + $0xc0] sm:$0xf]
    %v5001 = vld [vmem:[%s4951 + $0xc4] sm:$0xf]
    %v5002 = vld [vmem:[%s4951 + $0xc8] sm:$0xf]
    %v5003 = vld [vmem:[%s4951 + $0xcc] sm:$0xf]
    %v5004 = vld [vmem:[%s4951 + $0xd0] sm:$0xf]
    %v5005 = vld [vmem:[%s4951 + $0xd4] sm:$0xf]
    %v5006 = vld [vmem:[%s4951 + $0xd8] sm:$0xf]
    %v5007 = vld [vmem:[%s4951 + $0xdc] sm:$0xf]
    %v5008 = vld [vmem:[%s4951 + $0xe0] sm:$0xf]
    %v5009 = vld [vmem:[%s4951 + $0xe4] sm:$0xf]
    %v5010 = vld [vmem:[%s4951 + $0xe8] sm:$0xf]
    %v5011 = vld [vmem:[%s4951 + $0xec] sm:$0xf]
    %v5012 = vld [vmem:[%s4951 + $0xf0] sm:$0xf]
    %v5013 = vld [vmem:[%s4951 + $0xf4] sm:$0xf]
    %v5014 = vld [vmem:[%s4951 + $0xf8] sm:$0xf]
    %v5015 = vld [vmem:[%s4951 + $0xfc] sm:$0xf]
    %v5016 = vld [vmem:[%s4951 + $0x100] sm:$0xf]
    %v5017 = vld [vmem:[%s4951 + $0x104] sm:$0xf]
    %v5018 = vld [vmem:[%s4951 + $0x108] sm:$0xf]
    %v5019 = vld [vmem:[%s4951 + $0x10c] sm:$0xf]
    %v5020 = vld [vmem:[%s4951 + $0x110] sm:$0xf]
    %v5021 = vld [vmem:[%s4951 + $0x114] sm:$0xf]
    %v5022 = vld [vmem:[%s4951 + $0x118] sm:$0xf]
    %v5023 = vld [vmem:[%s4951 + $0x11c] sm:$0xf]
    %v5024 = vld [vmem:[%s4951 + $0x120] sm:$0xf]
    %v5025 = vld [vmem:[%s4951 + $0x124] sm:$0xf]
    %v5026 = vld [vmem:[%s4951 + $0x128] sm:$0xf]
    %v5027 = vld [vmem:[%s4951 + $0x12c] sm:$0xf]
    %v5028 = vld [vmem:[%s4951 + $0x130] sm:$0xf]
    %v5029 = vld [vmem:[%s4951 + $0x134] sm:$0xf]
    %v5030 = vld [vmem:[%s4951 + $0x138] sm:$0xf]
    %v5031 = vld [vmem:[%s4951 + $0x13c] sm:$0xf]
    %v5032 = vld [vmem:[%s4951 + $0x140] sm:$0xf]
    %v5033 = vld [vmem:[%s4951 + $0x144] sm:$0xf]
    %v5034 = vld [vmem:[%s4951 + $0x148] sm:$0xf]
    %v5035 = vld [vmem:[%s4951 + $0x14c] sm:$0xf]
    %v5036 = vld [vmem:[%s4951 + $0x150] sm:$0xf]
    %v5037 = vld [vmem:[%s4951 + $0x154] sm:$0xf]
    %v5038 = vld [vmem:[%s4951 + $0x158] sm:$0xf]
    %v5039 = vld [vmem:[%s4951 + $0x15c] sm:$0xf]
    %v5040 = vld [vmem:[%s4951 + $0x160] sm:$0xf]
    %v5041 = vld [vmem:[%s4951 + $0x164] sm:$0xf]
    %v5042 = vld [vmem:[%s4951 + $0x168] sm:$0xf]
    %v5043 = vld [vmem:[%s4951 + $0x16c] sm:$0xf]
    %v5044 = vld [vmem:[%s4951 + $0x170] sm:$0xf]
    %v5045 = vld [vmem:[%s4951 + $0x174] sm:$0xf]
    %v5046 = vld [vmem:[%s4951 + $0x178] sm:$0xf]
    %v5047 = vld [vmem:[%s4951 + $0x17c] sm:$0xf]
    %v5048 = vld [vmem:[%s4951 + $0x180] sm:$0xf]
    %v5049 = vld [vmem:[%s4951 + $0x184] sm:$0xf]
    %v5050 = vld [vmem:[%s4951 + $0x188] sm:$0xf]
    %v5051 = vld [vmem:[%s4951 + $0x18c] sm:$0xf]
    %v5052 = vld [vmem:[%s4951 + $0x190] sm:$0xf]
    %v5053 = vld [vmem:[%s4951 + $0x194] sm:$0xf]
    %v5054 = vld [vmem:[%s4951 + $0x198] sm:$0xf]
    %v5055 = vld [vmem:[%s4951 + $0x19c] sm:$0xf]
    %v5056 = vld [vmem:[%s4951 + $0x1a0] sm:$0xf]
    %v5057 = vld [vmem:[%s4951 + $0x1a4] sm:$0xf]
    %v5058 = vld [vmem:[%s4951 + $0x1a8] sm:$0xf]
    %v5059 = vld [vmem:[%s4951 + $0x1ac] sm:$0xf]
    %v5060 = vld [vmem:[%s4951 + $0x1b0] sm:$0xf]
    %v5061 = vld [vmem:[%s4951 + $0x1b4] sm:$0xf]
    %v5062 = vld [vmem:[%s4951 + $0x1b8] sm:$0xf]
    %v5063 = vld [vmem:[%s4951 + $0x1bc] sm:$0xf]
    %v5064 = vld [vmem:[%s4951 + $0x1c0] sm:$0xf]
    %v5065 = vld [vmem:[%s4951 + $0x1c4] sm:$0xf]
    %v5066 = vld [vmem:[%s4951 + $0x1c8] sm:$0xf]
    %v5067 = vld [vmem:[%s4951 + $0x1cc] sm:$0xf]
    %v5068 = vld [vmem:[%s4951 + $0x1d0] sm:$0xf]
    %v5069 = vld [vmem:[%s4951 + $0x1d4] sm:$0xf]
    %v5070 = vld [vmem:[%s4951 + $0x1d8] sm:$0xf]
    %v5071 = vld [vmem:[%s4951 + $0x1dc] sm:$0xf]
    %v5072 = vld [vmem:[%s4951 + $0x1e0] sm:$0xf]
    %v5073 = vld [vmem:[%s4951 + $0x1e4] sm:$0xf]
    %v5074 = vld [vmem:[%s4951 + $0x1e8] sm:$0xf]
    %v5075 = vld [vmem:[%s4951 + $0x1ec] sm:$0xf]
    %v5076 = vld [vmem:[%s4951 + $0x1f0] sm:$0xf]
    %v5077 = vld [vmem:[%s4951 + $0x1f4] sm:$0xf]
    %v5078 = vld [vmem:[%s4951 + $0x1f8] sm:$0xf]
    %v5079 = vld [vmem:[%s4951 + $0x1fc] sm:$0xf]
    %v5080 = vld [vmem:[%s4951 + $0x200] sm:$0xf]
    %v5081 = vld [vmem:[%s4951 + $0x204] sm:$0xf]
    %v5082 = vld [vmem:[%s4951 + $0x208] sm:$0xf]
    %v5083 = vld [vmem:[%s4951 + $0x20c] sm:$0xf]
    %v5084 = vld [vmem:[%s4951 + $0x210] sm:$0xf]
    %v5085 = vld [vmem:[%s4951 + $0x214] sm:$0xf]
    %v5086 = vld [vmem:[%s4951 + $0x218] sm:$0xf]
    %v5087 = vld [vmem:[%s4951 + $0x21c] sm:$0xf]
    %v5088 = vld [vmem:[%s4951 + $0x220] sm:$0xf]
    %v5089 = vld [vmem:[%s4951 + $0x224] sm:$0xf]
    %v5090 = vld [vmem:[%s4951 + $0x228] sm:$0xf]
    %v5091 = vld [vmem:[%s4951 + $0x22c] sm:$0xf]
    %v5092 = vld [vmem:[%s4951 + $0x230] sm:$0xf]
    %v5093 = vld [vmem:[%s4951 + $0x234] sm:$0xf]
    %v5094 = vld [vmem:[%s4951 + $0x238] sm:$0xf]
    %v5095 = vld [vmem:[%s4951 + $0x23c] sm:$0xf]
    %v5096 = vld [vmem:[%s4951 + $0x240] sm:$0xf]
    %v5097 = vld [vmem:[%s4951 + $0x244] sm:$0xf]
    %v5098 = vld [vmem:[%s4951 + $0x248] sm:$0xf]
    %v5099 = vld [vmem:[%s4951 + $0x24c] sm:$0xf]
    %v5100 = vld [vmem:[%s4951 + $0x250] sm:$0xf]
    %v5101 = vld [vmem:[%s4951 + $0x254] sm:$0xf]
    %v5102 = vld [vmem:[%s4951 + $0x258] sm:$0xf]
    %v5103 = vld [vmem:[%s4951 + $0x25c] sm:$0xf]
    %v5104 = vld [vmem:[%s4951 + $0x260] sm:$0xf]
    %v5105 = vld [vmem:[%s4951 + $0x264] sm:$0xf]
    %v5106 = vld [vmem:[%s4951 + $0x268] sm:$0xf]
    %v5107 = vld [vmem:[%s4951 + $0x26c] sm:$0xf]
    %v5108 = vld [vmem:[%s4951 + $0x270] sm:$0xf]
    %v5109 = vld [vmem:[%s4951 + $0x274] sm:$0xf]
    %v5110 = vld [vmem:[%s4951 + $0x278] sm:$0xf]
    %v5111 = vld [vmem:[%s4951 + $0x27c] sm:$0xf]
    %v5112 = vld [vmem:[%s4951 + $0x280] sm:$0xf]
    %v5113 = vld [vmem:[%s4951 + $0x284] sm:$0xf]
    %v5114 = vld [vmem:[%s4951 + $0x288] sm:$0xf]
    %v5115 = vld [vmem:[%s4951 + $0x28c] sm:$0xf]
    %v5116 = vld [vmem:[%s4951 + $0x290] sm:$0xf]
    %v5117 = vld [vmem:[%s4951 + $0x294] sm:$0xf]
    %v5118 = vld [vmem:[%s4951 + $0x298] sm:$0xf]
    %v5119 = vld [vmem:[%s4951 + $0x29c] sm:$0xf]
    %v5120 = vld [vmem:[%s4951 + $0x2a0] sm:$0xf]
    %v5121 = vld [vmem:[%s4951 + $0x2a4] sm:$0xf]
    %v5122 = vld [vmem:[%s4951 + $0x2a8] sm:$0xf]
    %v5123 = vld [vmem:[%s4951 + $0x2ac] sm:$0xf]
    %v5124 = vld [vmem:[%s4951 + $0x2b0] sm:$0xf]
    %v5125 = vld [vmem:[%s4951 + $0x2b4] sm:$0xf]
    %v5126 = vld [vmem:[%s4951 + $0x2b8] sm:$0xf]
    %v5127 = vld [vmem:[%s4951 + $0x2bc] sm:$0xf]
    %v5128 = vld [vmem:[%s4951 + $0x2c0] sm:$0xf]
    %v5129 = vld [vmem:[%s4951 + $0x2c4] sm:$0xf]
    %v5130 = vld [vmem:[%s4951 + $0x2c8] sm:$0xf]
    %v5131 = vld [vmem:[%s4951 + $0x2cc] sm:$0xf]
    %v5132 = vld [vmem:[%s4951 + $0x2d0] sm:$0xf]
    %v5133 = vld [vmem:[%s4951 + $0x2d4] sm:$0xf]
    %v5134 = vld [vmem:[%s4951 + $0x2d8] sm:$0xf]
    %v5135 = vld [vmem:[%s4951 + $0x2dc] sm:$0xf]
    %v5136 = vld [vmem:[%s4951 + $0x2e0] sm:$0xf]
    %v5137 = vld [vmem:[%s4951 + $0x2e4] sm:$0xf]
    %v5138 = vld [vmem:[%s4951 + $0x2e8] sm:$0xf]
    %v5139 = vld [vmem:[%s4951 + $0x2ec] sm:$0xf]
    %v5140 = vld [vmem:[%s4951 + $0x2f0] sm:$0xf]
    %v5141 = vld [vmem:[%s4951 + $0x2f4] sm:$0xf]
    %v5142 = vld [vmem:[%s4951 + $0x2f8] sm:$0xf]
    %v5143 = vld [vmem:[%s4951 + $0x2fc] sm:$0xf]
    %v5144 = vld [vmem:[%s4951 + $0x300] sm:$0xf]
    %v5145 = vld [vmem:[%s4951 + $0x304] sm:$0xf]
    %v5146 = vld [vmem:[%s4951 + $0x308] sm:$0xf]
    %v5147 = vld [vmem:[%s4951 + $0x30c] sm:$0xf]
    %v5148 = vld [vmem:[%s4951 + $0x310] sm:$0xf]
    %v5149 = vld [vmem:[%s4951 + $0x314] sm:$0xf]
    %v5150 = vld [vmem:[%s4951 + $0x318] sm:$0xf]
    %v5151 = vld [vmem:[%s4951 + $0x31c] sm:$0xf]
    %v5152 = vld [vmem:[%s4951 + $0x320] sm:$0xf]
    %v5153 = vld [vmem:[%s4951 + $0x324] sm:$0xf]
    %v5154 = vld [vmem:[%s4951 + $0x328] sm:$0xf]
    %v5155 = vld [vmem:[%s4951 + $0x32c] sm:$0xf]
    %v5156 = vld [vmem:[%s4951 + $0x330] sm:$0xf]
    %v5157 = vld [vmem:[%s4951 + $0x334] sm:$0xf]
    %v5158 = vld [vmem:[%s4951 + $0x338] sm:$0xf]
    %v5159 = vld [vmem:[%s4951 + $0x33c] sm:$0xf]
    %v5160 = vld [vmem:[%s4951 + $0x340] sm:$0xf]
    %v5161 = vld [vmem:[%s4951 + $0x344] sm:$0xf]
    %v5162 = vld [vmem:[%s4951 + $0x348] sm:$0xf]
    %v5163 = vld [vmem:[%s4951 + $0x34c] sm:$0xf]
    %v5164 = vld [vmem:[%s4951 + $0x350] sm:$0xf]
    %v5165 = vld [vmem:[%s4951 + $0x354] sm:$0xf]
    %v5166 = vld [vmem:[%s4951 + $0x358] sm:$0xf]
    %v5167 = vld [vmem:[%s4951 + $0x35c] sm:$0xf]
    %v5168 = vld [vmem:[%s4951 + $0x360] sm:$0xf]
    %v5169 = vld [vmem:[%s4951 + $0x364] sm:$0xf]
    %v5170 = vld [vmem:[%s4951 + $0x368] sm:$0xf]
    %v5171 = vld [vmem:[%s4951 + $0x36c] sm:$0xf]
    %v5172 = vld [vmem:[%s4951 + $0x370] sm:$0xf]
    %v5173 = vld [vmem:[%s4951 + $0x374] sm:$0xf]
    %v5174 = vld [vmem:[%s4951 + $0x378] sm:$0xf]
    %v5175 = vld [vmem:[%s4951 + $0x37c] sm:$0xf]
    %v5176 = vld [vmem:[%s4951 + $0x380] sm:$0xf]
    %v5177 = vld [vmem:[%s4951 + $0x384] sm:$0xf]
    %v5178 = vld [vmem:[%s4951 + $0x388] sm:$0xf]
    %v5179 = vld [vmem:[%s4951 + $0x38c] sm:$0xf]
    %v5180 = vld [vmem:[%s4951 + $0x390] sm:$0xf]
    %v5181 = vld [vmem:[%s4951 + $0x394] sm:$0xf]
    %v5182 = vld [vmem:[%s4951 + $0x398] sm:$0xf]
    %v5183 = vld [vmem:[%s4951 + $0x39c] sm:$0xf]
    %v5184 = vld [vmem:[%s4951 + $0x3a0] sm:$0xf]
    %v5185 = vld [vmem:[%s4951 + $0x3a4] sm:$0xf]
    %v5186 = vld [vmem:[%s4951 + $0x3a8] sm:$0xf]
    %v5187 = vld [vmem:[%s4951 + $0x3ac] sm:$0xf]
    %v5188 = vld [vmem:[%s4951 + $0x3b0] sm:$0xf]
    %v5189 = vld [vmem:[%s4951 + $0x3b4] sm:$0xf]
    %v5190 = vld [vmem:[%s4951 + $0x3b8] sm:$0xf]
    %v5191 = vld [vmem:[%s4951 + $0x3bc] sm:$0xf]
    %v5192 = vld [vmem:[%s4951 + $0x3c0] sm:$0xf]
    %v5193 = vld [vmem:[%s4951 + $0x3c4] sm:$0xf]
    %v5194 = vld [vmem:[%s4951 + $0x3c8] sm:$0xf]
    %v5195 = vld [vmem:[%s4951 + $0x3cc] sm:$0xf]
    %v5196 = vld [vmem:[%s4951 + $0x3d0] sm:$0xf]
    %v5197 = vld [vmem:[%s4951 + $0x3d4] sm:$0xf]
    %v5198 = vld [vmem:[%s4951 + $0x3d8] sm:$0xf]
    %v5199 = vld [vmem:[%s4951 + $0x3dc] sm:$0xf]
    %v5200 = vld [vmem:[%s4951 + $0x3e0] sm:$0xf]
    %v5201 = vld [vmem:[%s4951 + $0x3e4] sm:$0xf]
    %v5202 = vld [vmem:[%s4951 + $0x3e8] sm:$0xf]
    %v5203 = vld [vmem:[%s4951 + $0x3ec] sm:$0xf]
    %v5204 = vld [vmem:[%s4951 + $0x3f0] sm:$0xf]
    %v5205 = vld [vmem:[%s4951 + $0x3f4] sm:$0xf]
    %v5206 = vld [vmem:[%s4951 + $0x3f8] sm:$0xf]
    %v5207 = vld [vmem:[%s4951 + $0x3fc] sm:$0xf]
    %v5208 = vpack.c.bf16 %v4935, %v4919
    %v5209 = vpack.c.bf16 %v4936, %v4920
    %v5210 = vpack.c.bf16 %v4937, %v4921
    %v5211 = vpack.c.bf16 %v4938, %v4922
    %v5212 = vpack.c.bf16 %v4939, %v4923
    %v5213 = vpack.c.bf16 %v4940, %v4924
    %v5214 = vpack.c.bf16 %v4941, %v4925
    %v5215 = vpack.c.bf16 %v4942, %v4926
    %v5216 = vpack.c.bf16 %v4943, %v4927
    %v5217 = vpack.c.bf16 %v4944, %v4928
    %v5218 = vpack.c.bf16 %v4945, %v4929
    %v5219 = vpack.c.bf16 %v4946, %v4930
    %v5220 = vpack.c.bf16 %v4947, %v4931
    %v5221 = vpack.c.bf16 %v4948, %v4932
    %v5222 = vpack.c.bf16 %v4949, %v4933
    %v5223 = vpack.c.bf16 %v4950, %v4934
    %v5224 = vld [vmem:[%s5 + $0x29] sm:$0x1]
    %v5225 = vlaneseq
    %v5226 = vshrl.u32 %v5225, 7
    %v5227 = vsub.s32 0, %v5226
    %v5228 = vrot.slane %v5224, %v5227
    %v5485 = vunpack.c.l.b16 %v4952
    %v5486 = vunpack.c.l.b16 %v4953
    %v5487 = vunpack.c.l.b16 %v4954
    %v5488 = vunpack.c.l.b16 %v4955
    %v5489 = vunpack.c.l.b16 %v4956
    %v5490 = vunpack.c.l.b16 %v4957
    %v5491 = vunpack.c.l.b16 %v4958
    %v5492 = vunpack.c.l.b16 %v4959
    %v5493 = vunpack.c.l.b16 %v4960
    %v5494 = vunpack.c.l.b16 %v4961
    %v5495 = vunpack.c.l.b16 %v4962
    %v5496 = vunpack.c.l.b16 %v4963
    %v5497 = vunpack.c.l.b16 %v4964
    %v5498 = vunpack.c.l.b16 %v4965
    %v5499 = vunpack.c.l.b16 %v4966
    %v5500 = vunpack.c.l.b16 %v4967
    %v5501 = vunpack.c.l.b16 %v4968
    %v5502 = vunpack.c.l.b16 %v4969
    %v5503 = vunpack.c.l.b16 %v4970
    %v5504 = vunpack.c.l.b16 %v4971
    %v5505 = vunpack.c.l.b16 %v4972
    %v5506 = vunpack.c.l.b16 %v4973
    %v5507 = vunpack.c.l.b16 %v4974
    %v5508 = vunpack.c.l.b16 %v4975
    %v5509 = vunpack.c.l.b16 %v4976
    %v5510 = vunpack.c.l.b16 %v4977
    %v5511 = vunpack.c.l.b16 %v4978
    %v5512 = vunpack.c.l.b16 %v4979
    %v5513 = vunpack.c.l.b16 %v4980
    %v5514 = vunpack.c.l.b16 %v4981
    %v5515 = vunpack.c.l.b16 %v4982
    %v5516 = vunpack.c.l.b16 %v4983
    %v5517 = vunpack.c.l.b16 %v4984
    %v5518 = vunpack.c.l.b16 %v4985
    %v5519 = vunpack.c.l.b16 %v4986
    %v5520 = vunpack.c.l.b16 %v4987
    %v5521 = vunpack.c.l.b16 %v4988
    %v5522 = vunpack.c.l.b16 %v4989
    %v5523 = vunpack.c.l.b16 %v4990
    %v5524 = vunpack.c.l.b16 %v4991
    %v5525 = vunpack.c.l.b16 %v4992
    %v5526 = vunpack.c.l.b16 %v4993
    %v5527 = vunpack.c.l.b16 %v4994
    %v5528 = vunpack.c.l.b16 %v4995
    %v5529 = vunpack.c.l.b16 %v4996
    %v5530 = vunpack.c.l.b16 %v4997
    %v5531 = vunpack.c.l.b16 %v4998
    %v5532 = vunpack.c.l.b16 %v4999
    %v5533 = vunpack.c.l.b16 %v5000
    %v5534 = vunpack.c.l.b16 %v5001
    %v5535 = vunpack.c.l.b16 %v5002
    %v5536 = vunpack.c.l.b16 %v5003
    %v5537 = vunpack.c.l.b16 %v5004
    %v5538 = vunpack.c.l.b16 %v5005
    %v5539 = vunpack.c.l.b16 %v5006
    %v5540 = vunpack.c.l.b16 %v5007
    %v5541 = vunpack.c.l.b16 %v5008
    %v5542 = vunpack.c.l.b16 %v5009
    %v5543 = vunpack.c.l.b16 %v5010
    %v5544 = vunpack.c.l.b16 %v5011
    %v5545 = vunpack.c.l.b16 %v5012
    %v5546 = vunpack.c.l.b16 %v5013
    %v5547 = vunpack.c.l.b16 %v5014
    %v5548 = vunpack.c.l.b16 %v5015
    %v5549 = vunpack.c.l.b16 %v5016
    %v5550 = vunpack.c.l.b16 %v5017
    %v5551 = vunpack.c.l.b16 %v5018
    %v5552 = vunpack.c.l.b16 %v5019
    %v5553 = vunpack.c.l.b16 %v5020
    %v5554 = vunpack.c.l.b16 %v5021
    %v5555 = vunpack.c.l.b16 %v5022
    %v5556 = vunpack.c.l.b16 %v5023
    %v5557 = vunpack.c.l.b16 %v5024
    %v5558 = vunpack.c.l.b16 %v5025
    %v5559 = vunpack.c.l.b16 %v5026
    %v5560 = vunpack.c.l.b16 %v5027
    %v5561 = vunpack.c.l.b16 %v5028
    %v5562 = vunpack.c.l.b16 %v5029
    %v5563 = vunpack.c.l.b16 %v5030
    %v5564 = vunpack.c.l.b16 %v5031
    %v5565 = vunpack.c.l.b16 %v5032
    %v5566 = vunpack.c.l.b16 %v5033
    %v5567 = vunpack.c.l.b16 %v5034
    %v5568 = vunpack.c.l.b16 %v5035
    %v5569 = vunpack.c.l.b16 %v5036
    %v5570 = vunpack.c.l.b16 %v5037
    %v5571 = vunpack.c.l.b16 %v5038
    %v5572 = vunpack.c.l.b16 %v5039
    %v5573 = vunpack.c.l.b16 %v5040
    %v5574 = vunpack.c.l.b16 %v5041
    %v5575 = vunpack.c.l.b16 %v5042
    %v5576 = vunpack.c.l.b16 %v5043
    %v5577 = vunpack.c.l.b16 %v5044
    %v5578 = vunpack.c.l.b16 %v5045
    %v5579 = vunpack.c.l.b16 %v5046
    %v5580 = vunpack.c.l.b16 %v5047
    %v5581 = vunpack.c.l.b16 %v5048
    %v5582 = vunpack.c.l.b16 %v5049
    %v5583 = vunpack.c.l.b16 %v5050
    %v5584 = vunpack.c.l.b16 %v5051
    %v5585 = vunpack.c.l.b16 %v5052
    %v5586 = vunpack.c.l.b16 %v5053
    %v5587 = vunpack.c.l.b16 %v5054
    %v5588 = vunpack.c.l.b16 %v5055
    %v5589 = vunpack.c.l.b16 %v5056
    %v5590 = vunpack.c.l.b16 %v5057
    %v5591 = vunpack.c.l.b16 %v5058
    %v5592 = vunpack.c.l.b16 %v5059
    %v5593 = vunpack.c.l.b16 %v5060
    %v5594 = vunpack.c.l.b16 %v5061
    %v5595 = vunpack.c.l.b16 %v5062
    %v5596 = vunpack.c.l.b16 %v5063
    %v5597 = vunpack.c.l.b16 %v5064
    %v5598 = vunpack.c.l.b16 %v5065
    %v5599 = vunpack.c.l.b16 %v5066
    %v5600 = vunpack.c.l.b16 %v5067
    %v5601 = vunpack.c.l.b16 %v5068
    %v5602 = vunpack.c.l.b16 %v5069
    %v5603 = vunpack.c.l.b16 %v5070
    %v5604 = vunpack.c.l.b16 %v5071
    %v5605 = vunpack.c.l.b16 %v5072
    %v5606 = vunpack.c.l.b16 %v5073
    %v5607 = vunpack.c.l.b16 %v5074
    %v5608 = vunpack.c.l.b16 %v5075
    %v5609 = vunpack.c.l.b16 %v5076
    %v5610 = vunpack.c.l.b16 %v5077
    %v5611 = vunpack.c.l.b16 %v5078
    %v5612 = vunpack.c.l.b16 %v5079
    %v5613 = vunpack.c.l.b16 %v5080
    %v5614 = vunpack.c.l.b16 %v5081
    %v5615 = vunpack.c.l.b16 %v5082
    %v5616 = vunpack.c.l.b16 %v5083
    %v5617 = vunpack.c.l.b16 %v5084
    %v5618 = vunpack.c.l.b16 %v5085
    %v5619 = vunpack.c.l.b16 %v5086
    %v5620 = vunpack.c.l.b16 %v5087
    %v5621 = vunpack.c.l.b16 %v5088
    %v5622 = vunpack.c.l.b16 %v5089
    %v5623 = vunpack.c.l.b16 %v5090
    %v5624 = vunpack.c.l.b16 %v5091
    %v5625 = vunpack.c.l.b16 %v5092
    %v5626 = vunpack.c.l.b16 %v5093
    %v5627 = vunpack.c.l.b16 %v5094
    %v5628 = vunpack.c.l.b16 %v5095
    %v5629 = vunpack.c.l.b16 %v5096
    %v5630 = vunpack.c.l.b16 %v5097
    %v5631 = vunpack.c.l.b16 %v5098
    %v5632 = vunpack.c.l.b16 %v5099
    %v5633 = vunpack.c.l.b16 %v5100
    %v5634 = vunpack.c.l.b16 %v5101
    %v5635 = vunpack.c.l.b16 %v5102
    %v5636 = vunpack.c.l.b16 %v5103
    %v5637 = vunpack.c.l.b16 %v5104
    %v5638 = vunpack.c.l.b16 %v5105
    %v5639 = vunpack.c.l.b16 %v5106
    %v5640 = vunpack.c.l.b16 %v5107
    %v5641 = vunpack.c.l.b16 %v5108
    %v5642 = vunpack.c.l.b16 %v5109
    %v5643 = vunpack.c.l.b16 %v5110
    %v5644 = vunpack.c.l.b16 %v5111
    %v5645 = vunpack.c.l.b16 %v5112
    %v5646 = vunpack.c.l.b16 %v5113
    %v5647 = vunpack.c.l.b16 %v5114
    %v5648 = vunpack.c.l.b16 %v5115
    %v5649 = vunpack.c.l.b16 %v5116
    %v5650 = vunpack.c.l.b16 %v5117
    %v5651 = vunpack.c.l.b16 %v5118
    %v5652 = vunpack.c.l.b16 %v5119
    %v5653 = vunpack.c.l.b16 %v5120
    %v5654 = vunpack.c.l.b16 %v5121
    %v5655 = vunpack.c.l.b16 %v5122
    %v5656 = vunpack.c.l.b16 %v5123
    %v5657 = vunpack.c.l.b16 %v5124
    %v5658 = vunpack.c.l.b16 %v5125
    %v5659 = vunpack.c.l.b16 %v5126
    %v5660 = vunpack.c.l.b16 %v5127
    %v5661 = vunpack.c.l.b16 %v5128
    %v5662 = vunpack.c.l.b16 %v5129
    %v5663 = vunpack.c.l.b16 %v5130
    %v5664 = vunpack.c.l.b16 %v5131
    %v5665 = vunpack.c.l.b16 %v5132
    %v5666 = vunpack.c.l.b16 %v5133
    %v5667 = vunpack.c.l.b16 %v5134
    %v5668 = vunpack.c.l.b16 %v5135
    %v5669 = vunpack.c.l.b16 %v5136
    %v5670 = vunpack.c.l.b16 %v5137
    %v5671 = vunpack.c.l.b16 %v5138
    %v5672 = vunpack.c.l.b16 %v5139
    %v5673 = vunpack.c.l.b16 %v5140
    %v5674 = vunpack.c.l.b16 %v5141
    %v5675 = vunpack.c.l.b16 %v5142
    %v5676 = vunpack.c.l.b16 %v5143
    %v5677 = vunpack.c.l.b16 %v5144
    %v5678 = vunpack.c.l.b16 %v5145
    %v5679 = vunpack.c.l.b16 %v5146
    %v5680 = vunpack.c.l.b16 %v5147
    %v5681 = vunpack.c.l.b16 %v5148
    %v5682 = vunpack.c.l.b16 %v5149
    %v5683 = vunpack.c.l.b16 %v5150
    %v5684 = vunpack.c.l.b16 %v5151
    %v5685 = vunpack.c.l.b16 %v5152
    %v5686 = vunpack.c.l.b16 %v5153
    %v5687 = vunpack.c.l.b16 %v5154
    %v5688 = vunpack.c.l.b16 %v5155
    %v5689 = vunpack.c.l.b16 %v5156
    %v5690 = vunpack.c.l.b16 %v5157
    %v5691 = vunpack.c.l.b16 %v5158
    %v5692 = vunpack.c.l.b16 %v5159
    %v5693 = vunpack.c.l.b16 %v5160
    %v5694 = vunpack.c.l.b16 %v5161
    %v5695 = vunpack.c.l.b16 %v5162
    %v5696 = vunpack.c.l.b16 %v5163
    %v5697 = vunpack.c.l.b16 %v5164
    %v5698 = vunpack.c.l.b16 %v5165
    %v5699 = vunpack.c.l.b16 %v5166
    %v5700 = vunpack.c.l.b16 %v5167
    %v5701 = vunpack.c.l.b16 %v5168
    %v5702 = vunpack.c.l.b16 %v5169
    %v5703 = vunpack.c.l.b16 %v5170
    %v5704 = vunpack.c.l.b16 %v5171
    %v5705 = vunpack.c.l.b16 %v5172
    %v5706 = vunpack.c.l.b16 %v5173
    %v5707 = vunpack.c.l.b16 %v5174
    %v5708 = vunpack.c.l.b16 %v5175
    %v5709 = vunpack.c.l.b16 %v5176
    %v5710 = vunpack.c.l.b16 %v5177
    %v5711 = vunpack.c.l.b16 %v5178
    %v5712 = vunpack.c.l.b16 %v5179
    %v5713 = vunpack.c.l.b16 %v5180
    %v5714 = vunpack.c.l.b16 %v5181
    %v5715 = vunpack.c.l.b16 %v5182
    %v5716 = vunpack.c.l.b16 %v5183
    %v5717 = vunpack.c.l.b16 %v5184
    %v5718 = vunpack.c.l.b16 %v5185
    %v5719 = vunpack.c.l.b16 %v5186
    %v5720 = vunpack.c.l.b16 %v5187
    %v5721 = vunpack.c.l.b16 %v5188
    %v5722 = vunpack.c.l.b16 %v5189
    %v5723 = vunpack.c.l.b16 %v5190
    %v5724 = vunpack.c.l.b16 %v5191
    %v5725 = vunpack.c.l.b16 %v5192
    %v5726 = vunpack.c.l.b16 %v5193
    %v5727 = vunpack.c.l.b16 %v5194
    %v5728 = vunpack.c.l.b16 %v5195
    %v5729 = vunpack.c.l.b16 %v5196
    %v5730 = vunpack.c.l.b16 %v5197
    %v5731 = vunpack.c.l.b16 %v5198
    %v5732 = vunpack.c.l.b16 %v5199
    %v5733 = vunpack.c.l.b16 %v5200
    %v5734 = vunpack.c.l.b16 %v5201
    %v5735 = vunpack.c.l.b16 %v5202
    %v5736 = vunpack.c.l.b16 %v5203
    %v5737 = vunpack.c.l.b16 %v5204
    %v5738 = vunpack.c.l.b16 %v5205
    %v5739 = vunpack.c.l.b16 %v5206
    %v5740 = vunpack.c.l.b16 %v5207
    %v5741 = vpack.c.b16 %v5486, %v5485
    %v5742 = vpack.c.b16 %v5488, %v5487
    %v5743 = vpack.c.b16 %v5490, %v5489
    %v5744 = vpack.c.b16 %v5492, %v5491
    %v5745 = vpack.c.b16 %v5494, %v5493
    %v5746 = vpack.c.b16 %v5496, %v5495
    %v5747 = vpack.c.b16 %v5498, %v5497
    %v5748 = vpack.c.b16 %v5500, %v5499
    %v5749 = vpack.c.b16 %v5502, %v5501
    %v5750 = vpack.c.b16 %v5504, %v5503
    %v5751 = vpack.c.b16 %v5506, %v5505
    %v5752 = vpack.c.b16 %v5508, %v5507
    %v5753 = vpack.c.b16 %v5510, %v5509
    %v5754 = vpack.c.b16 %v5512, %v5511
    %v5755 = vpack.c.b16 %v5514, %v5513
    %v5756 = vpack.c.b16 %v5516, %v5515
    %v5757 = vpack.c.b16 %v5518, %v5517
    %v5758 = vpack.c.b16 %v5520, %v5519
    %v5759 = vpack.c.b16 %v5522, %v5521
    %v5760 = vpack.c.b16 %v5524, %v5523
    %v5761 = vpack.c.b16 %v5526, %v5525
    %v5762 = vpack.c.b16 %v5528, %v5527
    %v5763 = vpack.c.b16 %v5530, %v5529
    %v5764 = vpack.c.b16 %v5532, %v5531
    %v5765 = vpack.c.b16 %v5534, %v5533
    %v5766 = vpack.c.b16 %v5536, %v5535
    %v5767 = vpack.c.b16 %v5538, %v5537
    %v5768 = vpack.c.b16 %v5540, %v5539
    %v5769 = vpack.c.b16 %v5542, %v5541
    %v5770 = vpack.c.b16 %v5544, %v5543
    %v5771 = vpack.c.b16 %v5546, %v5545
    %v5772 = vpack.c.b16 %v5548, %v5547
    %v5773 = vpack.c.b16 %v5550, %v5549
    %v5774 = vpack.c.b16 %v5552, %v5551
    %v5775 = vpack.c.b16 %v5554, %v5553
    %v5776 = vpack.c.b16 %v5556, %v5555
    %v5777 = vpack.c.b16 %v5558, %v5557
    %v5778 = vpack.c.b16 %v5560, %v5559
    %v5779 = vpack.c.b16 %v5562, %v5561
    %v5780 = vpack.c.b16 %v5564, %v5563
    %v5781 = vpack.c.b16 %v5566, %v5565
    %v5782 = vpack.c.b16 %v5568, %v5567
    %v5783 = vpack.c.b16 %v5570, %v5569
    %v5784 = vpack.c.b16 %v5572, %v5571
    %v5785 = vpack.c.b16 %v5574, %v5573
    %v5786 = vpack.c.b16 %v5576, %v5575
    %v5787 = vpack.c.b16 %v5578, %v5577
    %v5788 = vpack.c.b16 %v5580, %v5579
    %v5789 = vpack.c.b16 %v5582, %v5581
    %v5790 = vpack.c.b16 %v5584, %v5583
    %v5791 = vpack.c.b16 %v5586, %v5585
    %v5792 = vpack.c.b16 %v5588, %v5587
    %v5793 = vpack.c.b16 %v5590, %v5589
    %v5794 = vpack.c.b16 %v5592, %v5591
    %v5795 = vpack.c.b16 %v5594, %v5593
    %v5796 = vpack.c.b16 %v5596, %v5595
    %v5797 = vpack.c.b16 %v5598, %v5597
    %v5798 = vpack.c.b16 %v5600, %v5599
    %v5799 = vpack.c.b16 %v5602, %v5601
    %v5800 = vpack.c.b16 %v5604, %v5603
    %v5801 = vpack.c.b16 %v5606, %v5605
    %v5802 = vpack.c.b16 %v5608, %v5607
    %v5803 = vpack.c.b16 %v5610, %v5609
    %v5804 = vpack.c.b16 %v5612, %v5611
    %v5805 = vpack.c.b16 %v5614, %v5613
    %v5806 = vpack.c.b16 %v5616, %v5615
    %v5807 = vpack.c.b16 %v5618, %v5617
    %v5808 = vpack.c.b16 %v5620, %v5619
    %v5809 = vpack.c.b16 %v5622, %v5621
    %v5810 = vpack.c.b16 %v5624, %v5623
    %v5811 = vpack.c.b16 %v5626, %v5625
    %v5812 = vpack.c.b16 %v5628, %v5627
    %v5813 = vpack.c.b16 %v5630, %v5629
    %v5814 = vpack.c.b16 %v5632, %v5631
    %v5815 = vpack.c.b16 %v5634, %v5633
    %v5816 = vpack.c.b16 %v5636, %v5635
    %v5817 = vpack.c.b16 %v5638, %v5637
    %v5818 = vpack.c.b16 %v5640, %v5639
    %v5819 = vpack.c.b16 %v5642, %v5641
    %v5820 = vpack.c.b16 %v5644, %v5643
    %v5821 = vpack.c.b16 %v5646, %v5645
    %v5822 = vpack.c.b16 %v5648, %v5647
    %v5823 = vpack.c.b16 %v5650, %v5649
    %v5824 = vpack.c.b16 %v5652, %v5651
    %v5825 = vpack.c.b16 %v5654, %v5653
    %v5826 = vpack.c.b16 %v5656, %v5655
    %v5827 = vpack.c.b16 %v5658, %v5657
    %v5828 = vpack.c.b16 %v5660, %v5659
    %v5829 = vpack.c.b16 %v5662, %v5661
    %v5830 = vpack.c.b16 %v5664, %v5663
    %v5831 = vpack.c.b16 %v5666, %v5665
    %v5832 = vpack.c.b16 %v5668, %v5667
    %v5833 = vpack.c.b16 %v5670, %v5669
    %v5834 = vpack.c.b16 %v5672, %v5671
    %v5835 = vpack.c.b16 %v5674, %v5673
    %v5836 = vpack.c.b16 %v5676, %v5675
    %v5837 = vpack.c.b16 %v5678, %v5677
    %v5838 = vpack.c.b16 %v5680, %v5679
    %v5839 = vpack.c.b16 %v5682, %v5681
    %v5840 = vpack.c.b16 %v5684, %v5683
    %v5841 = vpack.c.b16 %v5686, %v5685
    %v5842 = vpack.c.b16 %v5688, %v5687
    %v5843 = vpack.c.b16 %v5690, %v5689
    %v5844 = vpack.c.b16 %v5692, %v5691
    %v5845 = vpack.c.b16 %v5694, %v5693
    %v5846 = vpack.c.b16 %v5696, %v5695
    %v5847 = vpack.c.b16 %v5698, %v5697
    %v5848 = vpack.c.b16 %v5700, %v5699
    %v5849 = vpack.c.b16 %v5702, %v5701
    %v5850 = vpack.c.b16 %v5704, %v5703
    %v5851 = vpack.c.b16 %v5706, %v5705
    %v5852 = vpack.c.b16 %v5708, %v5707
    %v5853 = vpack.c.b16 %v5710, %v5709
    %v5854 = vpack.c.b16 %v5712, %v5711
    %v5855 = vpack.c.b16 %v5714, %v5713
    %v5856 = vpack.c.b16 %v5716, %v5715
    %v5857 = vpack.c.b16 %v5718, %v5717
    %v5858 = vpack.c.b16 %v5720, %v5719
    %v5859 = vpack.c.b16 %v5722, %v5721
    %v5860 = vpack.c.b16 %v5724, %v5723
    %v5861 = vpack.c.b16 %v5726, %v5725
    %v5862 = vpack.c.b16 %v5728, %v5727
    %v5863 = vpack.c.b16 %v5730, %v5729
    %v5864 = vpack.c.b16 %v5732, %v5731
    %v5865 = vpack.c.b16 %v5734, %v5733
    %v5866 = vpack.c.b16 %v5736, %v5735
    %v5867 = vpack.c.b16 %v5738, %v5737
    %v5868 = vpack.c.b16 %v5740, %v5739
    %5997 = vmatprep.subr.bf16.mxu0 0
    %5998 = vmatpush1.bf16.msra.mxu0 %v5748
    %5999 = vmatprep.subr.bf16.mxu0 0
    %6000 = vmatpush1.bf16.msra.mxu0 %v5747
    %6001 = vmatprep.subr.bf16.mxu0 0
    %6002 = vmatpush1.bf16.msra.mxu0 %v5746
    %6003 = vmatprep.subr.bf16.mxu0 0
    %6004 = vmatpush1.bf16.msra.mxu0 %v5745
    %6005 = vmatprep.subr.bf16.mxu0 0
    %6006 = vmatpush1.bf16.msra.mxu0 %v5744
    %6007 = vmatprep.subr.bf16.mxu0 0
    %6008 = vmatpush1.bf16.msra.mxu0 %v5743
    %6009 = vmatprep.subr.bf16.mxu0 0
    %6010 = vmatpush1.bf16.msra.mxu0 %v5742
    %6011 = vmatprep.subr.bf16.mxu0 0
    %6012 = vmatpush1.bf16.msra.mxu0 %v5741
    %6013 = vmatprep.subr.bf16.mxu0 0
    %6014 = vmatpush2.bf16.msra.mxu0 %v5756
    %6015 = vmatprep.subr.bf16.mxu0 0
    %6016 = vmatpush2.bf16.msra.mxu0 %v5755
    %6017 = vmatprep.subr.bf16.mxu0 0
    %6018 = vmatpush2.bf16.msra.mxu0 %v5754
    %6019 = vmatprep.subr.bf16.mxu0 0
    %6020 = vmatpush2.bf16.msra.mxu0 %v5753
    %6021 = vmatprep.subr.bf16.mxu0 0
    %6022 = vmatpush2.bf16.msra.mxu0 %v5752
    %6023 = vmatprep.subr.bf16.mxu0 0
    %6024 = vmatpush2.bf16.msra.mxu0 %v5751
    %6025 = vmatprep.subr.bf16.mxu0 0
    %6026 = vmatpush2.bf16.msra.mxu0 %v5750
    %6027 = vmatprep.subr.bf16.mxu0 0
    %6028 = vmatpush2.bf16.msra.mxu0 %v5749
    %6029 = vmatprep.mubr.bf16.mxu0 %v5209
    %6030 = vmatmul.mubr.bf16.gmra.mxu0 %v5208
    %v6031 = vpop.f32.mrf.mxu0
    %v6032 = vadd.f32 %v5228, %v6031
    %v6033 = vpop.f32.mrf.mxu0
    %v6034 = vpop.f32.mrf.mxu0
    %v6035 = vadd.f32 %v5228, %v6034
    %v6036 = vpop.f32.mrf.mxu0
    %6037 = vdwg.mxu0
    %6038 = vmatprep.subr.bf16.mxu0 0
    %6039 = vmatpush1.bf16.msra.mxu0 %v5764
    %6040 = vmatprep.subr.bf16.mxu0 0
    %6041 = vmatpush1.bf16.msra.mxu0 %v5763
    %6042 = vmatprep.subr.bf16.mxu0 0
    %6043 = vmatpush1.bf16.msra.mxu0 %v5762
    %6044 = vmatprep.subr.bf16.mxu0 0
    %6045 = vmatpush1.bf16.msra.mxu0 %v5761
    %6046 = vmatprep.subr.bf16.mxu0 0
    %6047 = vmatpush1.bf16.msra.mxu0 %v5760
    %6048 = vmatprep.subr.bf16.mxu0 0
    %6049 = vmatpush1.bf16.msra.mxu0 %v5759
    %6050 = vmatprep.subr.bf16.mxu0 0
    %6051 = vmatpush1.bf16.msra.mxu0 %v5758
    %6052 = vmatprep.subr.bf16.mxu0 0
    %6053 = vmatpush1.bf16.msra.mxu0 %v5757
    %6054 = vmatprep.subr.bf16.mxu0 0
    %6055 = vmatpush2.bf16.msra.mxu0 %v5772
    %6056 = vmatprep.subr.bf16.mxu0 0
    %6057 = vmatpush2.bf16.msra.mxu0 %v5771
    %6058 = vmatprep.subr.bf16.mxu0 0
    %6059 = vmatpush2.bf16.msra.mxu0 %v5770
    %6060 = vmatprep.subr.bf16.mxu0 0
    %6061 = vmatpush2.bf16.msra.mxu0 %v5769
    %6062 = vmatprep.subr.bf16.mxu0 0
    %6063 = vmatpush2.bf16.msra.mxu0 %v5768
    %6064 = vmatprep.subr.bf16.mxu0 0
    %6065 = vmatpush2.bf16.msra.mxu0 %v5767
    %6066 = vmatprep.subr.bf16.mxu0 0
    %6067 = vmatpush2.bf16.msra.mxu0 %v5766
    %6068 = vmatprep.subr.bf16.mxu0 0
    %6069 = vmatpush2.bf16.msra.mxu0 %v5765
    %6070 = vmatprep.mubr.bf16.mxu0 %v5211
    %6071 = vmatmul.mubr.bf16.gmra.mxu0 %v5210
    %v6072 = vpop.f32.mrf.mxu0
    %v6073 = vadd.f32 %v6032, %v6072
    %v6074 = vpop.f32.mrf.mxu0
    %v6075 = vpop.f32.mrf.mxu0
    %v6076 = vadd.f32 %v6035, %v6075
    %v6077 = vpop.f32.mrf.mxu0
    %6078 = vdwg.mxu0
    %6079 = vmatprep.subr.bf16.mxu0 0
    %6080 = vmatpush1.bf16.msra.mxu0 %v5780
    %6081 = vmatprep.subr.bf16.mxu0 0
    %6082 = vmatpush1.bf16.msra.mxu0 %v5779
    %6083 = vmatprep.subr.bf16.mxu0 0
    %6084 = vmatpush1.bf16.msra.mxu0 %v5778
    %6085 = vmatprep.subr.bf16.mxu0 0
    %6086 = vmatpush1.bf16.msra.mxu0 %v5777
    %6087 = vmatprep.subr.bf16.mxu0 0
    %6088 = vmatpush1.bf16.msra.mxu0 %v5776
    %6089 = vmatprep.subr.bf16.mxu0 0
    %6090 = vmatpush1.bf16.msra.mxu0 %v5775
    %6091 = vmatprep.subr.bf16.mxu0 0
    %6092 = vmatpush1.bf16.msra.mxu0 %v5774
    %6093 = vmatprep.subr.bf16.mxu0 0
    %6094 = vmatpush1.bf16.msra.mxu0 %v5773
    %6095 = vmatprep.subr.bf16.mxu0 0
    %6096 = vmatpush2.bf16.msra.mxu0 %v5788
    %6097 = vmatprep.subr.bf16.mxu0 0
    %6098 = vmatpush2.bf16.msra.mxu0 %v5787
    %6099 = vmatprep.subr.bf16.mxu0 0
    %6100 = vmatpush2.bf16.msra.mxu0 %v5786
    %6101 = vmatprep.subr.bf16.mxu0 0
    %6102 = vmatpush2.bf16.msra.mxu0 %v5785
    %6103 = vmatprep.subr.bf16.mxu0 0
    %6104 = vmatpush2.bf16.msra.mxu0 %v5784
    %6105 = vmatprep.subr.bf16.mxu0 0
    %6106 = vmatpush2.bf16.msra.mxu0 %v5783
    %6107 = vmatprep.subr.bf16.mxu0 0
    %6108 = vmatpush2.bf16.msra.mxu0 %v5782
    %6109 = vmatprep.subr.bf16.mxu0 0
    %6110 = vmatpush2.bf16.msra.mxu0 %v5781
    %6111 = vmatprep.mubr.bf16.mxu0 %v5213
    %6112 = vmatmul.mubr.bf16.gmra.mxu0 %v5212
    %v6113 = vpop.f32.mrf.mxu0
    %v6114 = vadd.f32 %v6073, %v6113
    %v6115 = vpop.f32.mrf.mxu0
    %v6116 = vpop.f32.mrf.mxu0
    %v6117 = vadd.f32 %v6076, %v6116
    %v6118 = vpop.f32.mrf.mxu0
    %6119 = vdwg.mxu0
    %6120 = vmatprep.subr.bf16.mxu0 0
    %6121 = vmatpush1.bf16.msra.mxu0 %v5796
    %6122 = vmatprep.subr.bf16.mxu0 0
    %6123 = vmatpush1.bf16.msra.mxu0 %v5795
    %6124 = vmatprep.subr.bf16.mxu0 0
    %6125 = vmatpush1.bf16.msra.mxu0 %v5794
    %6126 = vmatprep.subr.bf16.mxu0 0
    %6127 = vmatpush1.bf16.msra.mxu0 %v5793
    %6128 = vmatprep.subr.bf16.mxu0 0
    %6129 = vmatpush1.bf16.msra.mxu0 %v5792
    %6130 = vmatprep.subr.bf16.mxu0 0
    %6131 = vmatpush1.bf16.msra.mxu0 %v5791
    %6132 = vmatprep.subr.bf16.mxu0 0
    %6133 = vmatpush1.bf16.msra.mxu0 %v5790
    %6134 = vmatprep.subr.bf16.mxu0 0
    %6135 = vmatpush1.bf16.msra.mxu0 %v5789
    %6136 = vmatprep.subr.bf16.mxu0 0
    %6137 = vmatpush2.bf16.msra.mxu0 %v5804
    %6138 = vmatprep.subr.bf16.mxu0 0
    %6139 = vmatpush2.bf16.msra.mxu0 %v5803
    %6140 = vmatprep.subr.bf16.mxu0 0
    %6141 = vmatpush2.bf16.msra.mxu0 %v5802
    %6142 = vmatprep.subr.bf16.mxu0 0
    %6143 = vmatpush2.bf16.msra.mxu0 %v5801
    %6144 = vmatprep.subr.bf16.mxu0 0
    %6145 = vmatpush2.bf16.msra.mxu0 %v5800
    %6146 = vmatprep.subr.bf16.mxu0 0
    %6147 = vmatpush2.bf16.msra.mxu0 %v5799
    %6148 = vmatprep.subr.bf16.mxu0 0
    %6149 = vmatpush2.bf16.msra.mxu0 %v5798
    %6150 = vmatprep.subr.bf16.mxu0 0
    %6151 = vmatpush2.bf16.msra.mxu0 %v5797
    %6152 = vmatprep.mubr.bf16.mxu0 %v5215
    %6153 = vmatmul.mubr.bf16.gmra.mxu0 %v5214
    %v6154 = vpop.f32.mrf.mxu0
    %v6155 = vadd.f32 %v6114, %v6154
    %v6156 = vpop.f32.mrf.mxu0
    %v6157 = vpop.f32.mrf.mxu0
    %v6158 = vadd.f32 %v6117, %v6157
    %v6159 = vpop.f32.mrf.mxu0
    %6160 = vdwg.mxu0
    %6161 = vmatprep.subr.bf16.mxu0 0
    %6162 = vmatpush1.bf16.msra.mxu0 %v5812
    %6163 = vmatprep.subr.bf16.mxu0 0
    %6164 = vmatpush1.bf16.msra.mxu0 %v5811
    %6165 = vmatprep.subr.bf16.mxu0 0
    %6166 = vmatpush1.bf16.msra.mxu0 %v5810
    %6167 = vmatprep.subr.bf16.mxu0 0
    %6168 = vmatpush1.bf16.msra.mxu0 %v5809
    %6169 = vmatprep.subr.bf16.mxu0 0
    %6170 = vmatpush1.bf16.msra.mxu0 %v5808
    %6171 = vmatprep.subr.bf16.mxu0 0
    %6172 = vmatpush1.bf16.msra.mxu0 %v5807
    %6173 = vmatprep.subr.bf16.mxu0 0
    %6174 = vmatpush1.bf16.msra.mxu0 %v5806
    %6175 = vmatprep.subr.bf16.mxu0 0
    %6176 = vmatpush1.bf16.msra.mxu0 %v5805
    %6177 = vmatprep.subr.bf16.mxu0 0
    %6178 = vmatpush2.bf16.msra.mxu0 %v5820
    %6179 = vmatprep.subr.bf16.mxu0 0
    %6180 = vmatpush2.bf16.msra.mxu0 %v5819
    %6181 = vmatprep.subr.bf16.mxu0 0
    %6182 = vmatpush2.bf16.msra.mxu0 %v5818
    %6183 = vmatprep.subr.bf16.mxu0 0
    %6184 = vmatpush2.bf16.msra.mxu0 %v5817
    %6185 = vmatprep.subr.bf16.mxu0 0
    %6186 = vmatpush2.bf16.msra.mxu0 %v5816
    %6187 = vmatprep.subr.bf16.mxu0 0
    %6188 = vmatpush2.bf16.msra.mxu0 %v5815
    %6189 = vmatprep.subr.bf16.mxu0 0
    %6190 = vmatpush2.bf16.msra.mxu0 %v5814
    %6191 = vmatprep.subr.bf16.mxu0 0
    %6192 = vmatpush2.bf16.msra.mxu0 %v5813
    %6193 = vmatprep.mubr.bf16.mxu0 %v5217
    %6194 = vmatmul.mubr.bf16.gmra.mxu0 %v5216
    %v6195 = vpop.f32.mrf.mxu0
    %v6196 = vadd.f32 %v6155, %v6195
    %v6197 = vpop.f32.mrf.mxu0
    %v6198 = vpop.f32.mrf.mxu0
    %v6199 = vadd.f32 %v6158, %v6198
    %v6200 = vpop.f32.mrf.mxu0
    %6201 = vdwg.mxu0
    %6202 = vmatprep.subr.bf16.mxu0 0
    %6203 = vmatpush1.bf16.msra.mxu0 %v5828
    %6204 = vmatprep.subr.bf16.mxu0 0
    %6205 = vmatpush1.bf16.msra.mxu0 %v5827
    %6206 = vmatprep.subr.bf16.mxu0 0
    %6207 = vmatpush1.bf16.msra.mxu0 %v5826
    %6208 = vmatprep.subr.bf16.mxu0 0
    %6209 = vmatpush1.bf16.msra.mxu0 %v5825
    %6210 = vmatprep.subr.bf16.mxu0 0
    %6211 = vmatpush1.bf16.msra.mxu0 %v5824
    %6212 = vmatprep.subr.bf16.mxu0 0
    %6213 = vmatpush1.bf16.msra.mxu0 %v5823
    %6214 = vmatprep.subr.bf16.mxu0 0
    %6215 = vmatpush1.bf16.msra.mxu0 %v5822
    %6216 = vmatprep.subr.bf16.mxu0 0
    %6217 = vmatpush1.bf16.msra.mxu0 %v5821
    %6218 = vmatprep.subr.bf16.mxu0 0
    %6219 = vmatpush2.bf16.msra.mxu0 %v5836
    %6220 = vmatprep.subr.bf16.mxu0 0
    %6221 = vmatpush2.bf16.msra.mxu0 %v5835
    %6222 = vmatprep.subr.bf16.mxu0 0
    %6223 = vmatpush2.bf16.msra.mxu0 %v5834
    %6224 = vmatprep.subr.bf16.mxu0 0
    %6225 = vmatpush2.bf16.msra.mxu0 %v5833
    %6226 = vmatprep.subr.bf16.mxu0 0
    %6227 = vmatpush2.bf16.msra.mxu0 %v5832
    %6228 = vmatprep.subr.bf16.mxu0 0
    %6229 = vmatpush2.bf16.msra.mxu0 %v5831
    %6230 = vmatprep.subr.bf16.mxu0 0
    %6231 = vmatpush2.bf16.msra.mxu0 %v5830
    %6232 = vmatprep.subr.bf16.mxu0 0
    %6233 = vmatpush2.bf16.msra.mxu0 %v5829
    %6234 = vmatprep.mubr.bf16.mxu0 %v5219
    %6235 = vmatmul.mubr.bf16.gmra.mxu0 %v5218
    %v6236 = vpop.f32.mrf.mxu0
    %v6237 = vadd.f32 %v6196, %v6236
    %v6238 = vpop.f32.mrf.mxu0
    %v6239 = vpop.f32.mrf.mxu0
    %v6240 = vadd.f32 %v6199, %v6239
    %v6241 = vpop.f32.mrf.mxu0
    %6242 = vdwg.mxu0
    %6243 = vmatprep.subr.bf16.mxu0 0
    %6244 = vmatpush1.bf16.msra.mxu0 %v5844
    %6245 = vmatprep.subr.bf16.mxu0 0
    %6246 = vmatpush1.bf16.msra.mxu0 %v5843
    %6247 = vmatprep.subr.bf16.mxu0 0
    %6248 = vmatpush1.bf16.msra.mxu0 %v5842
    %6249 = vmatprep.subr.bf16.mxu0 0
    %6250 = vmatpush1.bf16.msra.mxu0 %v5841
    %6251 = vmatprep.subr.bf16.mxu0 0
    %6252 = vmatpush1.bf16.msra.mxu0 %v5840
    %6253 = vmatprep.subr.bf16.mxu0 0
    %6254 = vmatpush1.bf16.msra.mxu0 %v5839
    %6255 = vmatprep.subr.bf16.mxu0 0
    %6256 = vmatpush1.bf16.msra.mxu0 %v5838
    %6257 = vmatprep.subr.bf16.mxu0 0
    %6258 = vmatpush1.bf16.msra.mxu0 %v5837
    %6259 = vmatprep.subr.bf16.mxu0 0
    %6260 = vmatpush2.bf16.msra.mxu0 %v5852
    %6261 = vmatprep.subr.bf16.mxu0 0
    %6262 = vmatpush2.bf16.msra.mxu0 %v5851
    %6263 = vmatprep.subr.bf16.mxu0 0
    %6264 = vmatpush2.bf16.msra.mxu0 %v5850
    %6265 = vmatprep.subr.bf16.mxu0 0
    %6266 = vmatpush2.bf16.msra.mxu0 %v5849
    %6267 = vmatprep.subr.bf16.mxu0 0
    %6268 = vmatpush2.bf16.msra.mxu0 %v5848
    %6269 = vmatprep.subr.bf16.mxu0 0
    %6270 = vmatpush2.bf16.msra.mxu0 %v5847
    %6271 = vmatprep.subr.bf16.mxu0 0
    %6272 = vmatpush2.bf16.msra.mxu0 %v5846
    %6273 = vmatprep.subr.bf16.mxu0 0
    %6274 = vmatpush2.bf16.msra.mxu0 %v5845
    %6275 = vmatprep.mubr.bf16.mxu0 %v5221
    %6276 = vmatmul.mubr.bf16.gmra.mxu0 %v5220
    %v6277 = vpop.f32.mrf.mxu0
    %v6278 = vadd.f32 %v6237, %v6277
    %v6279 = vpop.f32.mrf.mxu0
    %v6280 = vpop.f32.mrf.mxu0
    %v6281 = vadd.f32 %v6240, %v6280
    %v6282 = vpop.f32.mrf.mxu0
    %6283 = vdwg.mxu0
    %6284 = vmatprep.subr.bf16.mxu0 0
    %6285 = vmatpush1.bf16.msra.mxu0 %v5860
    %6286 = vmatprep.subr.bf16.mxu0 0
    %6287 = vmatpush1.bf16.msra.mxu0 %v5859
    %6288 = vmatprep.subr.bf16.mxu0 0
    %6289 = vmatpush1.bf16.msra.mxu0 %v5858
    %6290 = vmatprep.subr.bf16.mxu0 0
    %6291 = vmatpush1.bf16.msra.mxu0 %v5857
    %6292 = vmatprep.subr.bf16.mxu0 0
    %6293 = vmatpush1.bf16.msra.mxu0 %v5856
    %6294 = vmatprep.subr.bf16.mxu0 0
    %6295 = vmatpush1.bf16.msra.mxu0 %v5855
    %6296 = vmatprep.subr.bf16.mxu0 0
    %6297 = vmatpush1.bf16.msra.mxu0 %v5854
    %6298 = vmatprep.subr.bf16.mxu0 0
    %6299 = vmatpush1.bf16.msra.mxu0 %v5853
    %6300 = vmatprep.subr.bf16.mxu0 0
    %6301 = vmatpush2.bf16.msra.mxu0 %v5868
    %6302 = vmatprep.subr.bf16.mxu0 0
    %6303 = vmatpush2.bf16.msra.mxu0 %v5867
    %6304 = vmatprep.subr.bf16.mxu0 0
    %6305 = vmatpush2.bf16.msra.mxu0 %v5866
    %6306 = vmatprep.subr.bf16.mxu0 0
    %6307 = vmatpush2.bf16.msra.mxu0 %v5865
    %6308 = vmatprep.subr.bf16.mxu0 0
    %6309 = vmatpush2.bf16.msra.mxu0 %v5864
    %6310 = vmatprep.subr.bf16.mxu0 0
    %6311 = vmatpush2.bf16.msra.mxu0 %v5863
    %6312 = vmatprep.subr.bf16.mxu0 0
    %6313 = vmatpush2.bf16.msra.mxu0 %v5862
    %6314 = vmatprep.subr.bf16.mxu0 0
    %6315 = vmatpush2.bf16.msra.mxu0 %v5861
    %6316 = vmatprep.mubr.bf16.mxu0 %v5223
    %6317 = vmatmul.mubr.bf16.gmra.mxu0 %v5222
    %v6318 = vpop.f32.mrf.mxu0
    %v6319 = vadd.f32 %v6278, %v6318
    %v6320 = vpop.f32.mrf.mxu0
    %v6321 = vpop.f32.mrf.mxu0
    %v6322 = vadd.f32 %v6281, %v6321
    %v6323 = vpop.f32.mrf.mxu0
    %6324 = vdwg.mxu0
    %v6325 = vadd.f32 %v4290, %v6319
    %v6326 = vadd.f32 %v4291, %v6322
    %v6327 = vld [vmem:[%s5 + $0x2b] sm:$0x1]
    %v6328 = vld [vmem:[%s5 + $0x2d] sm:$0x1]
    %v6329 = vsel %vm49, %v6325, 0.0
    %6330 = vadd.xlane.f32.xlu0 %v6329
    %v6331 = vpop.xlane.xlu0 %6330
    %v6332 = vsel %vm49, %v6326, 0.0
    %6333 = vadd.xlane.f32.xlu0 %v6332
    %v6334 = vpop.xlane.xlu0 %6333
    %v6335 = vmul.f32 %v6331, %v1092
    %v6336 = vmul.f32 %v6334, %v1092
    %v6337 = vsub.f32 %v6325, %v6335
    %v6338 = vsub.f32 %v6326, %v6336
    %v6339 = vmul.f32 %v6337, %v6337
    %v6340 = vmul.f32 %v6338, %v6338
    %v6341 = vsel %vm49, %v6339, 0.0
    %6342 = vadd.xlane.f32.xlu0 %v6341
    %v6343 = vpop.xlane.xlu0 %6342
    %v6344 = vsel %vm49, %v6340, 0.0
    %6345 = vadd.xlane.f32.xlu0 %v6344
    %v6346 = vpop.xlane.xlu0 %6345
    %v6347 = vmul.f32 %v6343, %v1092
    %v6348 = vmul.f32 %v6346, %v1092
    %v6349 = vadd.f32 %v6347, 1e-05
    %v6350 = vadd.f32 %v6348, 1e-05
    %v6351 = vrsqrt.pop %v6349
    %v6352 = vrsqrt.pop %v6350
    %v6353 = vmul.f32 %v6337, %v6351
    %v6354 = vmul.f32 %v6338, %v6352
    %v6355 = vlaneseq
    %v6356 = vshrl.u32 %v6355, 7
    %v6357 = vsub.s32 0, %v6356
    %v6358 = vrot.slane %v6327, %v6357
    %v6359 = vmul.f32 %v6353, %v6358
    %v6360 = vmul.f32 %v6354, %v6358
    %v6361 = vlaneseq
    %v6362 = vshrl.u32 %v6361, 7
    %v6363 = vsub.s32 0, %v6362
    %v6364 = vrot.slane %v6328, %v6363
    %v6365 = vadd.f32 %v6359, %v6364
    %v6366 = vadd.f32 %v6360, %v6364
    %6367 = vst.msk [vmem:[#allocation2] sm:$0xff] %vm49, %v6365
    %6368 = vst.msk [vmem:[#allocation2 + $0x8] sm:$0xff] %vm49, %v6366
    // Predicated region
    $region26: #{tpu_custom_call.1} parent=1 // pred_check
      _
    $region27: #{tpu_custom_call.1} parent=1 // pred_check_branch
      %6370 = sbr.rel (0) target = $region29
    $region28: #{tpu_custom_call.1} parent=1 // pred_region
      %s6372 = ssub.s32 256, 256
      %6373 = vsyncadd [#allocation3], %s6372
      %s6374 = sshll.u32 [#allocation2], 4
      %s6375 = int_to_ptr.vmem [resolvable:$true] %s6374
      %6380 = dma.vmem_to_hbm [thread:$0]  %s6375, 256, %s6, [#allocation3], 128, 128, 8
    $region29: #{tpu_custom_call.1} parent=1 // pred_fallthru
      _
    // Predicated region
    $region30: #{tpu_custom_call.1} parent=1 // pred_check
      _
    $region31: #{tpu_custom_call.1} parent=1 // pred_check_branch
      %6382 = sbr.rel (0) target = $region33
    $region32: #{tpu_custom_call.1} parent=1 // pred_region
      %6383 = dma.done [#allocation3], 256
    $region33: #{tpu_custom_call.1} parent=1 // pred_fallthru
      _
    %6384 = vsyncpa [#allocation3], 1

</llo_original>
